<compile_context>
chip_gen: v7x
topology: tpu7x:2x2x1
jax: 0.10.0
libtpu: 0.0.40
codegen_flags: <defaults>
</compile_context>

<pallas_src>
import functools

import numpy as np
import jax
import jax.numpy as jnp
from jax.experimental import pallas as pl
from jax.experimental.pallas import tpu as pltpu

_BN_EPS = 1e-5
_LANE = 128


def _round_up(x, m):
    return (x + m - 1) // m * m


def _cdiv(a, b):
    return (a + b - 1) // b


@functools.lru_cache(maxsize=None)
def _vmem_cap():
    """Generation-aware scoped-VMEM cap: ~half of physical VMEM.

    v5e/v6e: 128 MiB physical -> 64 MiB cap; v7x: 64 MiB physical -> 32 MiB.
    Falls back to a v7x-safe 32 MiB if the hardware query is unavailable.
    """
    try:
        phys = int(pltpu.get_tpu_info().vmem_capacity_bytes)
        if phys > 0:
            return int(min(phys // 2, 64 * 1024 * 1024))
    except Exception:
        pass
    return 32 * 1024 * 1024


def _vmem_limit(working_set_bytes):
    # working set + headroom for compiler-internal buffers, generation-capped.
    return int(min(max(working_set_bytes + 2 * 1024 * 1024, 4 * 1024 * 1024),
                   _vmem_cap()))


def _pick_m_tiling(M, K, N, out_bytes):
    """Pad rows to full sublanes and pick an M tile.

    Targets >= 2 tiles whenever the row count permits so both v7x TensorCores
    get work under dimension_semantics=('parallel',) (harmless no-op on
    v5e/v6e), and bounds the tile size by the generation-aware VMEM budget.
    """
    m_pad = _round_up(max(M, 8), 8)
    # VMEM budget per tile: double-buffered x / out tiles + resident W + slack.
    budget = _vmem_cap() - K * N * 2 - 2 * 1024 * 1024
    max_tm = min(1024, budget // (2 * (K * 2 + N * out_bytes)) // 8 * 8)
    max_tm = max(8, max_tm)
    n_tiles = _cdiv(m_pad, max_tm)
    if m_pad >= 16 and n_tiles < 2:
        n_tiles = 2                       # one tile per v7x TensorCore
    tm = _round_up(_cdiv(m_pad, n_tiles), 8)
    m_pad = _round_up(m_pad, tm)
    return m_pad, tm


# ----------------------------------------------------------------------------
# Pallas kernel 1: M-tiled fused matmul + per-channel affine (conv bias + BN)
# + optional ReLU.  bf16 operands on the MXU, f32 accumulate/affine.
# ----------------------------------------------------------------------------
def _fused_mm_kernel(x_ref, w_ref, scale_ref, bias_ref, o_ref, *, apply_relu):
    acc = jnp.dot(x_ref[...], w_ref[...], preferred_element_type=jnp.float32)
    acc = acc * scale_ref[...] + bias_ref[...]
    if apply_relu:
        acc = jnp.maximum(acc, 0.0)
    o_ref[...] = acc.astype(o_ref.dtype)


def fused_matmul_affine(x, w, scale, bias, *, apply_relu, out_dtype=jnp.float32):
    """out[M, N] = relu?( x[M, K] @ w[K, N] * scale[N] + bias[N] ).

    Tiled over M (>= 2 tiles when possible) with double-buffered activation
    DMA; W stays VMEM-resident.  K is the true contraction size (no padded
    lanes leak in); N must be lane-dense (multiple of 128) for the store.
    """
    M, K = x.shape
    Kw, N = w.shape
    assert K == Kw and N % _LANE == 0

    out_b = jnp.dtype(out_dtype).itemsize
    m_pad, tm = _pick_m_tiling(M, K, N, out_b)
    if m_pad != M:
        x = jnp.pad(x, ((0, m_pad - M), (0, 0)))
    x = x.astype(jnp.bfloat16)
    w = w.astype(jnp.bfloat16)
    scale2 = scale.reshape(1, N).astype(jnp.float32)
    bias2 = bias.reshape(1, N).astype(jnp.float32)

    vmem = _vmem_limit(2 * tm * K * 2        # x tile, double-buffered (bf16)
                       + K * N * 2           # W (resident, bf16)
                       + 2 * tm * N * out_b  # out tile, double-buffered
                       + 4 * N * 4)          # scale / bias
    # True-K / actual-N scheduler hints (review #8).
    cost = pl.CostEstimate(
        flops=2 * m_pad * K * N,
        transcendentals=0,
        bytes_accessed=m_pad * K * 2 + K * N * 2 + m_pad * N * out_b + 2 * N * 4,
    )

    out = pl.pallas_call(
        functools.partial(_fused_mm_kernel, apply_relu=apply_relu),
        out_shape=jax.ShapeDtypeStruct((m_pad, N), out_dtype),
        grid=(m_pad // tm,),
        in_specs=[
            pl.BlockSpec((tm, K), lambda i: (i, 0)),
            pl.BlockSpec((K, N), lambda i: (0, 0)),   # constant -> VMEM-resident
            pl.BlockSpec((1, N), lambda i: (0, 0)),
            pl.BlockSpec((1, N), lambda i: (0, 0)),
        ],
        out_specs=pl.BlockSpec((tm, N), lambda i: (i, 0)),
        compiler_params=pltpu.CompilerParams(
            dimension_semantics=("parallel",),
            vmem_limit_bytes=vmem,
        ),
        cost_estimate=cost,
    )(x, w, scale2, bias2)
    return out[:M] if m_pad != M else out


# ----------------------------------------------------------------------------
# Pallas kernel 2: fused tail — conv4 (4x4 s2, +BN+ReLU) -> conv5 (4x4 valid,
# +BN+ReLU) -> conv6 (1x1) -> Linear, chained on VMEM-resident weights.
# conv4 patch rows are ordered (spatial offset p, batch) so conv5 is 16
# sublane-aligned row-block matmul accumulations (no in-kernel reshape).
# ----------------------------------------------------------------------------
def _tail_kernel(p4_ref, w4_ref, s4_ref, b4_ref, w5_ref, s5_ref, b5_ref,
                 w6_ref, b6_ref, wl_ref, bl_ref, o_ref):
    bp = o_ref.shape[0]          # padded batch rows (multiple of 8)
    c4 = w4_ref.shape[1]         # conv4 output channels (= conv5 cin) = 128
    # conv4 as matmul on pre-extracted patches (rows = 16 offsets x bp batches)
    h4 = jnp.dot(p4_ref[...], w4_ref[...], preferred_element_type=jnp.float32)
    h4 = jnp.maximum(h4 * s4_ref[...] + b4_ref[...], 0.0)            # BN + ReLU
    # conv5 (4x4 valid on the 4x4 map): accumulate 16 per-offset matmuls.
    acc = None
    for p in range(16):
        blk = h4[p * bp:(p + 1) * bp, :].astype(w5_ref.dtype)        # tile-aligned
        term = jnp.dot(blk, w5_ref[p * c4:(p + 1) * c4, :],
                       preferred_element_type=jnp.float32)
        acc = term if acc is None else acc + term
    h5 = jnp.maximum(acc * s5_ref[...] + b5_ref[...], 0.0)           # BN + ReLU
    h6 = jnp.dot(h5.astype(w6_ref.dtype), w6_ref[...],
                 preferred_element_type=jnp.float32) + b6_ref[...]   # conv6 1x1
    out = jnp.dot(h6.astype(wl_ref.dtype), wl_ref[...],
                  preferred_element_type=jnp.float32) + bl_ref[...]  # Linear
    o_ref[...] = out.astype(o_ref.dtype)


def fused_tail(p4, tail, bp):
    """p4: (16*bp, 16*cin4) conv4 patch matrix, rows ordered (offset, batch)."""
    Mp, K4 = p4.shape
    w4, s4, b4 = tail["w4"], tail["s4"], tail["b4"]
    w5, s5, b5 = tail["w5"], tail["s5"], tail["b5"]
    w6, b6 = tail["w6"], tail["b6"]
    wl, bl = tail["wl"], tail["bl"]
    n4, n5, n6, nl = w4.shape[1], w5.shape[1], w6.shape[1], wl.shape[1]
    assert Mp == 16 * bp and K4 == w4.shape[0] and w5.shape[0] == 16 * n4

    p4 = p4.astype(jnp.bfloat16)
    w_bytes = 2 * (K4 * n4 + 16 * n4 * n5 + n5 * n6 + n6 * nl)
    vmem = _vmem_limit(2 * Mp * K4 * 2 + w_bytes + Mp * n4 * 4
                       + 2 * bp * nl * 4 + 4 * (2 * n4 + 2 * n5 + n6 + nl))
    cost = pl.CostEstimate(
        flops=2 * (Mp * K4 * n4 + bp * 16 * n4 * n5 + bp * n5 * n6 + bp * n6 * nl),
        transcendentals=0,
        bytes_accessed=Mp * K4 * 2 + w_bytes + bp * nl * 4,
    )

    return pl.pallas_call(
        _tail_kernel,
        out_shape=jax.ShapeDtypeStruct((bp, nl), jnp.float32),
        grid=(1,),
        in_specs=[
            pl.BlockSpec((Mp, K4), lambda i: (0, 0)),
            pl.BlockSpec((K4, n4), lambda i: (0, 0)),
            pl.BlockSpec((1, n4), lambda i: (0, 0)),
            pl.BlockSpec((1, n4), lambda i: (0, 0)),
            pl.BlockSpec((16 * n4, n5), lambda i: (0, 0)),
            pl.BlockSpec((1, n5), lambda i: (0, 0)),
            pl.BlockSpec((1, n5), lambda i: (0, 0)),
            pl.BlockSpec((n5, n6), lambda i: (0, 0)),
            pl.BlockSpec((1, n6), lambda i: (0, 0)),
            pl.BlockSpec((n6, nl), lambda i: (0, 0)),
            pl.BlockSpec((1, nl), lambda i: (0, 0)),
        ],
        out_specs=pl.BlockSpec((bp, nl), lambda i: (0, 0)),
        compiler_params=pltpu.CompilerParams(
            dimension_semantics=("arbitrary",),
            vmem_limit_bytes=vmem,
        ),
        cost_estimate=cost,
    )(p4, w4, s4, b4, w5, s5, b5, w6, b6, wl, bl)


# ----------------------------------------------------------------------------
# JAX glue: im2col patch extraction (layout plumbing only; bf16 activations)
# ----------------------------------------------------------------------------
def im2col(x_nhwc, k, stride, pad):
    N, H, W, C = x_nhwc.shape
    if pad:
        x_nhwc = jnp.pad(x_nhwc, ((0, 0), (pad, pad), (pad, pad), (0, 0)))
    Hp, Wp = H + 2 * pad, W + 2 * pad
    Ho = (Hp - k) // stride + 1
    Wo = (Wp - k) // stride + 1
    cols = []
    for kh in range(k):
        for kw in range(k):
            cols.append(
                jax.lax.slice(
                    x_nhwc,
                    (0, kh, kw, 0),
                    (N, kh + stride * (Ho - 1) + 1, kw + stride * (Wo - 1) + 1, C),
                    (1, stride, stride, 1),
                )
            )
    # flattened patch ordering is (kh, kw, ci) -> matches W transposed (2,3,1,0)
    patches = jnp.concatenate(cols, axis=-1)           # (N, Ho, Wo, k*k*C)
    return patches, (N, Ho, Wo)


# ----------------------------------------------------------------------------
# Parameters (deterministic synthetic init; shapes follow nn.Conv2d / nn.Linear)
# ----------------------------------------------------------------------------
def init_params(key, input_dim, output_dim):
    conv_cfg = [
        # (Cin,      Cout, k, stride, pad, has_bn, relu)
        (input_dim, 32, 4, 2, 1, True, True),
        (32, 32, 4, 2, 1, True, True),
        (32, 64, 4, 2, 1, True, True),
        (64, 128, 4, 2, 1, True, True),
        (128, 256, 4, 1, 0, True, True),
        (256, 512, 1, 1, 0, False, False),
    ]
    conv_params = []
    for (cin, cout, k, s, p, has_bn, relu) in conv_cfg:
        key, kw_, kb_, kg_, kbe_ = jax.random.split(key, 5)
        W = 0.05 * jax.random.normal(kw_, (cout, cin, k, k), jnp.float32)  # OIHW
        b = 0.05 * jax.random.normal(kb_, (cout,), jnp.float32)
        if has_bn:
            gamma = 1.0 + 0.1 * jax.random.normal(kg_, (cout,), jnp.float32)
            beta = 0.1 * jax.random.normal(kbe_, (cout,), jnp.float32)
        else:
            gamma = jnp.ones((cout,), jnp.float32)
            beta = jnp.zeros((cout,), jnp.float32)
        conv_params.append(
            dict(W=W, b=b, gamma=gamma, beta=beta,
                 mu=jnp.zeros((cout,), jnp.float32),
                 var=jnp.ones((cout,), jnp.float32),
                 stride=s, pad=p, has_bn=has_bn, relu=relu))
    key, kW, kb = jax.random.split(key, 3)
    lin_W = 0.05 * jax.random.normal(kW, (output_dim, 512), jnp.float32)
    lin_b = 0.05 * jax.random.normal(kb, (output_dim,), jnp.float32)
    return conv_params, (lin_W, lin_b)


def _fold_bn(p):
    s = p["gamma"] / jnp.sqrt(p["var"] + _BN_EPS)
    return s, p["b"] * s + p["beta"] - p["mu"] * s


# ----------------------------------------------------------------------------
# One-time weight repack: OIHW -> (K, N) with cin = TRUE previous cout
# (de-padded K, review #1), cout padded to 128 lanes only for the store,
# BN fold, bf16 cast.  conv4..Linear packed for the fused tail.
# ----------------------------------------------------------------------------
def prepack_params(conv_params, lin_params, output_dim):
    convs = []
    for p in conv_params[:3]:                  # conv1..conv3 (stride-2 layers)
        cout, cin, k, _ = p["W"].shape
        cout_pad = _round_up(cout, _LANE)
        W = p["W"]
        if cout_pad != cout:                   # lane-dense output columns only
            W = jnp.pad(W, ((0, cout_pad - cout), (0, 0), (0, 0), (0, 0)))
        w_mat = jnp.transpose(W, (2, 3, 1, 0)).reshape(k * k * cin, cout_pad)
        s, b = _fold_bn(p)
        if cout_pad != cout:                   # padded lanes: benign (sliced away)
            s = jnp.concatenate([s, jnp.ones((cout_pad - cout,), jnp.float32)])
            b = jnp.concatenate([b, jnp.zeros((cout_pad - cout,), jnp.float32)])
        convs.append(dict(w=w_mat.astype(jnp.bfloat16),
                          scale=s.astype(jnp.float32),
                          bias=b.astype(jnp.float32),
                          k=k, stride=p["stride"], pad=p["pad"],
                          cout=cout, cout_pad=cout_pad))

    # Fused tail: conv4 (4x4 s2, 64->128, BN+ReLU), conv5 (4x4 valid, 128->256,
    # BN+ReLU), conv6 (1x1, 256->512), Linear (512 -> output_dim padded to 128).
    p4c, p5c, p6c = conv_params[3], conv_params[4], conv_params[5]
    k4 = p4c["W"].shape[2]
    w4 = jnp.transpose(p4c["W"], (2, 3, 1, 0)).reshape(k4 * k4 * p4c["W"].shape[1], -1)
    s4, b4 = _fold_bn(p4c)
    k5 = p5c["W"].shape[2]
    w5 = jnp.transpose(p5c["W"], (2, 3, 1, 0)).reshape(k5 * k5 * p5c["W"].shape[1], -1)
    s5, b5 = _fold_bn(p5c)
    w6 = jnp.transpose(p6c["W"], (2, 3, 1, 0)).reshape(p6c["W"].shape[1], -1)
    b6 = p6c["b"]
    lin_W, lin_b = lin_params
    nl = _round_up(output_dim, _LANE)
    wl = jnp.zeros((lin_W.shape[1], nl), jnp.float32).at[:, :output_dim].set(lin_W.T)
    bl = jnp.zeros((nl,), jnp.float32).at[:output_dim].set(lin_b)
    tail = dict(
        w4=w4.astype(jnp.bfloat16),
        s4=s4.reshape(1, -1).astype(jnp.float32),
        b4=b4.reshape(1, -1).astype(jnp.float32),
        w5=w5.astype(jnp.bfloat16),
        s5=s5.reshape(1, -1).astype(jnp.float32),
        b5=b5.reshape(1, -1).astype(jnp.float32),
        w6=w6.astype(jnp.bfloat16),
        b6=b6.reshape(1, -1).astype(jnp.float32),
        wl=wl.astype(jnp.bfloat16),
        bl=bl.reshape(1, -1).astype(jnp.float32),
    )
    return dict(convs=convs, tail=tail, out_dim=output_dim)


# ----------------------------------------------------------------------------
# Forward pass
# ----------------------------------------------------------------------------
def conv_encoder_forward(x_nchw, packed):
    x = jnp.transpose(x_nchw, (0, 2, 3, 1)).astype(jnp.bfloat16)  # NCHW -> NHWC
    for layer in packed["convs"]:                                 # conv1..conv3
        patches, (N, Ho, Wo) = im2col(x, layer["k"], layer["stride"], layer["pad"])
        out = fused_matmul_affine(
            patches.reshape(N * Ho * Wo, patches.shape[-1]),
            layer["w"], layer["scale"], layer["bias"],
            apply_relu=True, out_dtype=jnp.bfloat16)
        # De-pad: the 128-lane padding is only for the store; the next layer
        # contracts over the true channel count (review #1).
        x = out.reshape(N, Ho, Wo, layer["cout_pad"])[..., :layer["cout"]]

    # conv4 .. Linear fused into one pallas_call (review #3, small batch).
    B = x.shape[0]
    bp = _round_up(max(B, 8), 8)               # pad batch to a full sublane
    if bp != B:
        x = jnp.pad(x, ((0, bp - B), (0, 0), (0, 0), (0, 0)))
    patches4, (_, Ho, Wo) = im2col(x, 4, 2, 1)
    assert (Ho, Wo) == (4, 4) and patches4.shape[-1] == packed["tail"]["w4"].shape[0], \
        "ConvEncoder expects 64x64 spatial input"
    # Rows ordered (spatial offset, batch) so conv5 becomes 16 sublane-aligned
    # row-block matmuls inside the kernel (no in-kernel reshape needed).
    p4 = jnp.transpose(patches4, (1, 2, 0, 3)).reshape(Ho * Wo * bp, -1)
    out = fused_tail(p4, packed["tail"], bp)                      # (bp, 128) f32
    return out[:B, :packed["out_dim"]]


# ----------------------------------------------------------------------------
# Pure-JAX f32 reference (lax.conv) for correctness check
# ----------------------------------------------------------------------------
def reference_forward(x_nchw, conv_params, lin_params):
    x = x_nchw.astype(jnp.float32)
    for p in conv_params:
        x = jax.lax.conv_general_dilated(
            x, p["W"], (p["stride"], p["stride"]),
            [(p["pad"], p["pad"]), (p["pad"], p["pad"])],
            dimension_numbers=("NCHW", "OIHW", "NCHW"),
            precision=jax.lax.Precision.HIGHEST,
        )
        x = x + p["b"][None, :, None, None]
        if p["has_bn"]:
            s = p["gamma"] / jnp.sqrt(p["var"] + _BN_EPS)
            x = (x - p["mu"][None, :, None, None]) * s[None, :, None, None] \
                + p["beta"][None, :, None, None]
        if p["relu"]:
            x = jnp.maximum(x, 0.0)
    feat = x.reshape(x.shape[0], 512)
    lin_W, lin_b = lin_params
    return feat @ lin_W.T + lin_b


if __name__ == "__main__":
    input_dim, output_dim = 4, 32
    B, H, W = 2, 64, 64  # architecture requires 64x64 so the final spatial is 1x1

    key = jax.random.PRNGKey(0)
    kx, kp = jax.random.split(key)
    x = jax.random.normal(kx, (B, input_dim, H, W), jnp.float32)
    conv_params, lin_params = init_params(kp, input_dim, output_dim)

    # One-time weight repack (not on the per-forward path).
    packed = prepack_params(conv_params, lin_params, output_dim)

    fwd = jax.jit(lambda inp: conv_encoder_forward(inp, packed))
    out = jax.block_until_ready(fwd(x))
    assert out.shape == (B, output_dim)

    ref = reference_forward(x, conv_params, lin_params)
    # bf16 MXU operands (per perf review) give ~1% deviation vs the f32 ref.
    np.testing.assert_allclose(np.asarray(out, dtype=np.float32),
                               np.asarray(ref), rtol=5e-2, atol=5e-2)

    print("KERNEL_OK")
</pallas_src>

<mosaic_0001>
module attributes {stable_mosaic.version = 11 : i64} {
  func.func @_fused_mm_kernel(%arg0: i32, %arg1: memref<1024x64xbf16, #tpu.memory_space<vmem>>, %arg2: memref<64x128xbf16, #tpu.memory_space<vmem>>, %arg3: memref<1x128xf32, #tpu.memory_space<vmem>>, %arg4: memref<1x128xf32, #tpu.memory_space<vmem>>, %arg5: memref<1024x128xbf16, #tpu.memory_space<vmem>>) attributes {dimension_semantics = [#tpu.dimension_semantics<parallel>], iteration_bounds = array<i64: 2>, scalar_prefetch = 0 : i64, scratch_operands = 0 : i64, tpu.core_type = #tpu.core_type<tc>, window_params = [{transform_indices = @transform_0, window_bounds = array<i64: 1024, 64>}, {pipeline_mode = #tpu.pipeline_mode<synchronous>, transform_indices = @transform_1, window_bounds = array<i64: 64, 128>}, {pipeline_mode = #tpu.pipeline_mode<synchronous>, transform_indices = @transform_2, window_bounds = array<i64: 1, 128>}, {pipeline_mode = #tpu.pipeline_mode<synchronous>, transform_indices = @transform_3, window_bounds = array<i64: 1, 128>}, {transform_indices = @transform_4, window_bounds = array<i64: 1024, 128>}]} {
    %c0 = arith.constant 0 : index
    %c0_0 = arith.constant 0 : index
    %0 = vector.load %arg1[%c0, %c0_0] : memref<1024x64xbf16, #tpu.memory_space<vmem>>, vector<1024x64xbf16>
    %c0_1 = arith.constant 0 : index
    %c0_2 = arith.constant 0 : index
    %1 = vector.load %arg2[%c0_1, %c0_2] : memref<64x128xbf16, #tpu.memory_space<vmem>>, vector<64x128xbf16>
    %cst = arith.constant dense<0.000000e+00> : vector<1024x128xf32>
    %2 = tpu.matmul %0, %1, %cst {dimension_numbers = #tpu.dot_dimension_numbers<[1], [0], [0], [1], [0, 0, 1, 1], [], []>} : vector<1024x64xbf16>, vector<64x128xbf16>, vector<1024x128xf32> -> vector<1024x128xf32>
    %c0_3 = arith.constant 0 : index
    %c0_4 = arith.constant 0 : index
    %3 = vector.load %arg3[%c0_3, %c0_4] : memref<1x128xf32, #tpu.memory_space<vmem>>, vector<1x128xf32>
    %4 = vector.broadcast %3 : vector<1x128xf32> to vector<1024x128xf32>
    %5 = arith.mulf %2, %4 : vector<1024x128xf32>
    %c0_5 = arith.constant 0 : index
    %c0_6 = arith.constant 0 : index
    %6 = vector.load %arg4[%c0_5, %c0_6] : memref<1x128xf32, #tpu.memory_space<vmem>>, vector<1x128xf32>
    %7 = vector.broadcast %6 : vector<1x128xf32> to vector<1024x128xf32>
    %8 = arith.addf %5, %7 : vector<1024x128xf32>
    %cst_7 = arith.constant 0.000000e+00 : f32
    %9 = vector.broadcast %cst_7 : f32 to vector<1024x128xf32>
    %10 = arith.maximumf %8, %9 : vector<1024x128xf32>
    %11 = arith.truncf %10 : vector<1024x128xf32> to vector<1024x128xbf16>
    %c0_8 = arith.constant 0 : index
    %c0_9 = arith.constant 0 : index
    %12 = vector.load %arg5[%c0_8, %c0_9] : memref<1024x128xbf16, #tpu.memory_space<vmem>>, vector<1024x128xbf16>
    tpu.vector_store %arg5[%c0_8, %c0_9], %11 {strides = array<i32>} : memref<1024x128xbf16, #tpu.memory_space<vmem>>, vector<1024x128xbf16>,
    return
  }
  func.func @transform_0(%arg0: i32) -> (i32, i32) {
    %c0_i32 = arith.constant 0 : i32
    %c0_i32_0 = arith.constant 0 : i32
    return %arg0, %c0_i32 : i32, i32
  }
  func.func @transform_1(%arg0: i32) -> (i32, i32) {
    %c0_i32 = arith.constant 0 : i32
    %c0_i32_0 = arith.constant 0 : i32
    %c0_i32_1 = arith.constant 0 : i32
    return %c0_i32, %c0_i32_0 : i32, i32
  }
  func.func @transform_2(%arg0: i32) -> (i32, i32) {
    %c0_i32 = arith.constant 0 : i32
    %c0_i32_0 = arith.constant 0 : i32
    %c0_i32_1 = arith.constant 0 : i32
    return %c0_i32, %c0_i32_0 : i32, i32
  }
  func.func @transform_3(%arg0: i32) -> (i32, i32) {
    %c0_i32 = arith.constant 0 : i32
    %c0_i32_0 = arith.constant 0 : i32
    %c0_i32_1 = arith.constant 0 : i32
    return %c0_i32, %c0_i32_0 : i32, i32
  }
  func.func @transform_4(%arg0: i32) -> (i32, i32) {
    %c0_i32 = arith.constant 0 : i32
    %c0_i32_0 = arith.constant 0 : i32
    return %arg0, %c0_i32 : i32, i32
  }
}

module attributes {stable_mosaic.version = 11 : i64} {
  func.func @_fused_mm_kernel(%arg0: i32, %arg1: memref<256x512xbf16, #tpu.memory_space<vmem>>, %arg2: memref<512x128xbf16, #tpu.memory_space<vmem>>, %arg3: memref<1x128xf32, #tpu.memory_space<vmem>>, %arg4: memref<1x128xf32, #tpu.memory_space<vmem>>, %arg5: memref<256x128xbf16, #tpu.memory_space<vmem>>) attributes {dimension_semantics = [#tpu.dimension_semantics<parallel>], iteration_bounds = array<i64: 2>, scalar_prefetch = 0 : i64, scratch_operands = 0 : i64, tpu.core_type = #tpu.core_type<tc>, window_params = [{transform_indices = @transform_0, window_bounds = array<i64: 256, 512>}, {pipeline_mode = #tpu.pipeline_mode<synchronous>, transform_indices = @transform_1, window_bounds = array<i64: 512, 128>}, {pipeline_mode = #tpu.pipeline_mode<synchronous>, transform_indices = @transform_2, window_bounds = array<i64: 1, 128>}, {pipeline_mode = #tpu.pipeline_mode<synchronous>, transform_indices = @transform_3, window_bounds = array<i64: 1, 128>}, {transform_indices = @transform_4, window_bounds = array<i64: 256, 128>}]} {
    %c0 = arith.constant 0 : index
    %c0_0 = arith.constant 0 : index
    %0 = vector.load %arg1[%c0, %c0_0] : memref<256x512xbf16, #tpu.memory_space<vmem>>, vector<256x512xbf16>
    %c0_1 = arith.constant 0 : index
    %c0_2 = arith.constant 0 : index
    %1 = vector.load %arg2[%c0_1, %c0_2] : memref<512x128xbf16, #tpu.memory_space<vmem>>, vector<512x128xbf16>
    %cst = arith.constant dense<0.000000e+00> : vector<256x128xf32>
    %2 = tpu.matmul %0, %1, %cst {dimension_numbers = #tpu.dot_dimension_numbers<[1], [0], [0], [1], [0, 0, 1, 1], [], []>} : vector<256x512xbf16>, vector<512x128xbf16>, vector<256x128xf32> -> vector<256x128xf32>
    %c0_3 = arith.constant 0 : index
    %c0_4 = arith.constant 0 : index
    %3 = vector.load %arg3[%c0_3, %c0_4] : memref<1x128xf32, #tpu.memory_space<vmem>>, vector<1x128xf32>
    %4 = vector.broadcast %3 : vector<1x128xf32> to vector<256x128xf32>
    %5 = arith.mulf %2, %4 : vector<256x128xf32>
    %c0_5 = arith.constant 0 : index
    %c0_6 = arith.constant 0 : index
    %6 = vector.load %arg4[%c0_5, %c0_6] : memref<1x128xf32, #tpu.memory_space<vmem>>, vector<1x128xf32>
    %7 = vector.broadcast %6 : vector<1x128xf32> to vector<256x128xf32>
    %8 = arith.addf %5, %7 : vector<256x128xf32>
    %cst_7 = arith.constant 0.000000e+00 : f32
    %9 = vector.broadcast %cst_7 : f32 to vector<256x128xf32>
    %10 = arith.maximumf %8, %9 : vector<256x128xf32>
    %11 = arith.truncf %10 : vector<256x128xf32> to vector<256x128xbf16>
    %c0_8 = arith.constant 0 : index
    %c0_9 = arith.constant 0 : index
    %12 = vector.load %arg5[%c0_8, %c0_9] : memref<256x128xbf16, #tpu.memory_space<vmem>>, vector<256x128xbf16>
    tpu.vector_store %arg5[%c0_8, %c0_9], %11 {strides = array<i32>} : memref<256x128xbf16, #tpu.memory_space<vmem>>, vector<256x128xbf16>,
    return
  }
  func.func @transform_0(%arg0: i32) -> (i32, i32) {
    %c0_i32 = arith.constant 0 : i32
    %c0_i32_0 = arith.constant 0 : i32
    return %arg0, %c0_i32 : i32, i32
  }
  func.func @transform_1(%arg0: i32) -> (i32, i32) {
    %c0_i32 = arith.constant 0 : i32
    %c0_i32_0 = arith.constant 0 : i32
    %c0_i32_1 = arith.constant 0 : i32
    return %c0_i32, %c0_i32_0 : i32, i32
  }
  func.func @transform_2(%arg0: i32) -> (i32, i32) {
    %c0_i32 = arith.constant 0 : i32
    %c0_i32_0 = arith.constant 0 : i32
    %c0_i32_1 = arith.constant 0 : i32
    return %c0_i32, %c0_i32_0 : i32, i32
  }
  func.func @transform_3(%arg0: i32) -> (i32, i32) {
    %c0_i32 = arith.constant 0 : i32
    %c0_i32_0 = arith.constant 0 : i32
    %c0_i32_1 = arith.constant 0 : i32
    return %c0_i32, %c0_i32_0 : i32, i32
  }
  func.func @transform_4(%arg0: i32) -> (i32, i32) {
    %c0_i32 = arith.constant 0 : i32
    %c0_i32_0 = arith.constant 0 : i32
    return %arg0, %c0_i32 : i32, i32
  }
}

module attributes {stable_mosaic.version = 11 : i64} {
  func.func @_fused_mm_kernel(%arg0: i32, %arg1: memref<64x512xbf16, #tpu.memory_space<vmem>>, %arg2: memref<512x128xbf16, #tpu.memory_space<vmem>>, %arg3: memref<1x128xf32, #tpu.memory_space<vmem>>, %arg4: memref<1x128xf32, #tpu.memory_space<vmem>>, %arg5: memref<64x128xbf16, #tpu.memory_space<vmem>>) attributes {dimension_semantics = [#tpu.dimension_semantics<parallel>], iteration_bounds = array<i64: 2>, scalar_prefetch = 0 : i64, scratch_operands = 0 : i64, tpu.core_type = #tpu.core_type<tc>, window_params = [{transform_indices = @transform_0, window_bounds = array<i64: 64, 512>}, {pipeline_mode = #tpu.pipeline_mode<synchronous>, transform_indices = @transform_1, window_bounds = array<i64: 512, 128>}, {pipeline_mode = #tpu.pipeline_mode<synchronous>, transform_indices = @transform_2, window_bounds = array<i64: 1, 128>}, {pipeline_mode = #tpu.pipeline_mode<synchronous>, transform_indices = @transform_3, window_bounds = array<i64: 1, 128>}, {transform_indices = @transform_4, window_bounds = array<i64: 64, 128>}]} {
    %c0 = arith.constant 0 : index
    %c0_0 = arith.constant 0 : index
    %0 = vector.load %arg1[%c0, %c0_0] : memref<64x512xbf16, #tpu.memory_space<vmem>>, vector<64x512xbf16>
    %c0_1 = arith.constant 0 : index
    %c0_2 = arith.constant 0 : index
    %1 = vector.load %arg2[%c0_1, %c0_2] : memref<512x128xbf16, #tpu.memory_space<vmem>>, vector<512x128xbf16>
    %cst = arith.constant dense<0.000000e+00> : vector<64x128xf32>
    %2 = tpu.matmul %0, %1, %cst {dimension_numbers = #tpu.dot_dimension_numbers<[1], [0], [0], [1], [0, 0, 1, 1], [], []>} : vector<64x512xbf16>, vector<512x128xbf16>, vector<64x128xf32> -> vector<64x128xf32>
    %c0_3 = arith.constant 0 : index
    %c0_4 = arith.constant 0 : index
    %3 = vector.load %arg3[%c0_3, %c0_4] : memref<1x128xf32, #tpu.memory_space<vmem>>, vector<1x128xf32>
    %4 = vector.broadcast %3 : vector<1x128xf32> to vector<64x128xf32>
    %5 = arith.mulf %2, %4 : vector<64x128xf32>
    %c0_5 = arith.constant 0 : index
    %c0_6 = arith.constant 0 : index
    %6 = vector.load %arg4[%c0_5, %c0_6] : memref<1x128xf32, #tpu.memory_space<vmem>>, vector<1x128xf32>
    %7 = vector.broadcast %6 : vector<1x128xf32> to vector<64x128xf32>
    %8 = arith.addf %5, %7 : vector<64x128xf32>
    %cst_7 = arith.constant 0.000000e+00 : f32
    %9 = vector.broadcast %cst_7 : f32 to vector<64x128xf32>
    %10 = arith.maximumf %8, %9 : vector<64x128xf32>
    %11 = arith.truncf %10 : vector<64x128xf32> to vector<64x128xbf16>
    %c0_8 = arith.constant 0 : index
    %c0_9 = arith.constant 0 : index
    %12 = vector.load %arg5[%c0_8, %c0_9] : memref<64x128xbf16, #tpu.memory_space<vmem>>, vector<64x128xbf16>
    tpu.vector_store %arg5[%c0_8, %c0_9], %11 {strides = array<i32>} : memref<64x128xbf16, #tpu.memory_space<vmem>>, vector<64x128xbf16>,
    return
  }
  func.func @transform_0(%arg0: i32) -> (i32, i32) {
    %c0_i32 = arith.constant 0 : i32
    %c0_i32_0 = arith.constant 0 : i32
    return %arg0, %c0_i32 : i32, i32
  }
  func.func @transform_1(%arg0: i32) -> (i32, i32) {
    %c0_i32 = arith.constant 0 : i32
    %c0_i32_0 = arith.constant 0 : i32
    %c0_i32_1 = arith.constant 0 : i32
    return %c0_i32, %c0_i32_0 : i32, i32
  }
  func.func @transform_2(%arg0: i32) -> (i32, i32) {
    %c0_i32 = arith.constant 0 : i32
    %c0_i32_0 = arith.constant 0 : i32
    %c0_i32_1 = arith.constant 0 : i32
    return %c0_i32, %c0_i32_0 : i32, i32
  }
  func.func @transform_3(%arg0: i32) -> (i32, i32) {
    %c0_i32 = arith.constant 0 : i32
    %c0_i32_0 = arith.constant 0 : i32
    %c0_i32_1 = arith.constant 0 : i32
    return %c0_i32, %c0_i32_0 : i32, i32
  }
  func.func @transform_4(%arg0: i32) -> (i32, i32) {
    %c0_i32 = arith.constant 0 : i32
    %c0_i32_0 = arith.constant 0 : i32
    return %arg0, %c0_i32 : i32, i32
  }
}

module attributes {stable_mosaic.version = 11 : i64} {
  func.func @_tail_kernel(%arg0: i32, %arg1: memref<128x1024xbf16, #tpu.memory_space<vmem>>, %arg2: memref<1024x128xbf16, #tpu.memory_space<vmem>>, %arg3: memref<1x128xf32, #tpu.memory_space<vmem>>, %arg4: memref<1x128xf32, #tpu.memory_space<vmem>>, %arg5: memref<2048x256xbf16, #tpu.memory_space<vmem>>, %arg6: memref<1x256xf32, #tpu.memory_space<vmem>>, %arg7: memref<1x256xf32, #tpu.memory_space<vmem>>, %arg8: memref<256x512xbf16, #tpu.memory_space<vmem>>, %arg9: memref<1x512xf32, #tpu.memory_space<vmem>>, %arg10: memref<512x128xbf16, #tpu.memory_space<vmem>>, %arg11: memref<1x128xf32, #tpu.memory_space<vmem>>, %arg12: memref<8x128xf32, #tpu.memory_space<vmem>>) attributes {dimension_semantics = [#tpu.dimension_semantics<arbitrary>], iteration_bounds = array<i64: 1>, scalar_prefetch = 0 : i64, scratch_operands = 0 : i64, tpu.core_type = #tpu.core_type<tc>, window_params = [{pipeline_mode = #tpu.pipeline_mode<synchronous>, transform_indices = @transform_0, window_bounds = array<i64: 128, 1024>}, {pipeline_mode = #tpu.pipeline_mode<synchronous>, transform_indices = @transform_1, window_bounds = array<i64: 1024, 128>}, {pipeline_mode = #tpu.pipeline_mode<synchronous>, transform_indices = @transform_2, window_bounds = array<i64: 1, 128>}, {pipeline_mode = #tpu.pipeline_mode<synchronous>, transform_indices = @transform_3, window_bounds = array<i64: 1, 128>}, {pipeline_mode = #tpu.pipeline_mode<synchronous>, transform_indices = @transform_4, window_bounds = array<i64: 2048, 256>}, {pipeline_mode = #tpu.pipeline_mode<synchronous>, transform_indices = @transform_5, window_bounds = array<i64: 1, 256>}, {pipeline_mode = #tpu.pipeline_mode<synchronous>, transform_indices = @transform_6, window_bounds = array<i64: 1, 256>}, {pipeline_mode = #tpu.pipeline_mode<synchronous>, transform_indices = @transform_7, window_bounds = array<i64: 256, 512>}, {pipeline_mode = #tpu.pipeline_mode<synchronous>, transform_indices = @transform_8, window_bounds = array<i64: 1, 512>}, {pipeline_mode = #tpu.pipeline_mode<synchronous>, transform_indices = @transform_9, window_bounds = array<i64: 512, 128>}, {pipeline_mode = #tpu.pipeline_mode<synchronous>, transform_indices = @transform_10, window_bounds = array<i64: 1, 128>}, {pipeline_mode = #tpu.pipeline_mode<synchronous>, transform_indices = @transform_11, window_bounds = array<i64: 8, 128>}]} {
    %c0 = arith.constant 0 : index
    %c0_0 = arith.constant 0 : index
    %0 = vector.load %arg1[%c0, %c0_0] : memref<128x1024xbf16, #tpu.memory_space<vmem>>, vector<128x1024xbf16>
    %c0_1 = arith.constant 0 : index
    %c0_2 = arith.constant 0 : index
    %1 = vector.load %arg2[%c0_1, %c0_2] : memref<1024x128xbf16, #tpu.memory_space<vmem>>, vector<1024x128xbf16>
    %cst = arith.constant dense<0.000000e+00> : vector<128x128xf32>
    %2 = tpu.matmul %0, %1, %cst {dimension_numbers = #tpu.dot_dimension_numbers<[1], [0], [0], [1], [0, 0, 1, 1], [], []>} : vector<128x1024xbf16>, vector<1024x128xbf16>, vector<128x128xf32> -> vector<128x128xf32>
    %c0_3 = arith.constant 0 : index
    %c0_4 = arith.constant 0 : index
    %3 = vector.load %arg3[%c0_3, %c0_4] : memref<1x128xf32, #tpu.memory_space<vmem>>, vector<1x128xf32>
    %4 = vector.broadcast %3 : vector<1x128xf32> to vector<128x128xf32>
    %5 = arith.mulf %2, %4 : vector<128x128xf32>
    %c0_5 = arith.constant 0 : index
    %c0_6 = arith.constant 0 : index
    %6 = vector.load %arg4[%c0_5, %c0_6] : memref<1x128xf32, #tpu.memory_space<vmem>>, vector<1x128xf32>
    %7 = vector.broadcast %6 : vector<1x128xf32> to vector<128x128xf32>
    %8 = arith.addf %5, %7 : vector<128x128xf32>
    %cst_7 = arith.constant 0.000000e+00 : f32
    %9 = vector.broadcast %cst_7 : f32 to vector<128x128xf32>
    %10 = arith.maximumf %8, %9 : vector<128x128xf32>
    %11 = vector.extract_strided_slice %10 {offsets = [0, 0], sizes = [8, 128], strides = [1, 1]} : vector<128x128xf32> to vector<8x128xf32>
    %12 = arith.truncf %11 : vector<8x128xf32> to vector<8x128xbf16>
    %c0_8 = arith.constant 0 : index
    %c0_9 = arith.constant 0 : index
    %13 = vector.load %arg5[%c0_8, %c0_9] : memref<2048x256xbf16, #tpu.memory_space<vmem>>, vector<128x256xbf16>
    %cst_10 = arith.constant dense<0.000000e+00> : vector<8x256xf32>
    %14 = tpu.matmul %12, %13, %cst_10 {dimension_numbers = #tpu.dot_dimension_numbers<[1], [0], [0], [1], [0, 0, 1, 1], [], []>} : vector<8x128xbf16>, vector<128x256xbf16>, vector<8x256xf32> -> vector<8x256xf32>
    %15 = vector.extract_strided_slice %10 {offsets = [8, 0], sizes = [8, 128], strides = [1, 1]} : vector<128x128xf32> to vector<8x128xf32>
    %16 = arith.truncf %15 : vector<8x128xf32> to vector<8x128xbf16>
    %c128 = arith.constant 128 : index
    %c0_11 = arith.constant 0 : index
    %17 = vector.load %arg5[%c128, %c0_11] : memref<2048x256xbf16, #tpu.memory_space<vmem>>, vector<128x256xbf16>
    %cst_12 = arith.constant dense<0.000000e+00> : vector<8x256xf32>
    %18 = tpu.matmul %16, %17, %cst_12 {dimension_numbers = #tpu.dot_dimension_numbers<[1], [0], [0], [1], [0, 0, 1, 1], [], []>} : vector<8x128xbf16>, vector<128x256xbf16>, vector<8x256xf32> -> vector<8x256xf32>
    %19 = arith.addf %14, %18 : vector<8x256xf32>
    %20 = vector.extract_strided_slice %10 {offsets = [16, 0], sizes = [8, 128], strides = [1, 1]} : vector<128x128xf32> to vector<8x128xf32>
    %21 = arith.truncf %20 : vector<8x128xf32> to vector<8x128xbf16>
    %c256 = arith.constant 256 : index
    %c0_13 = arith.constant 0 : index
    %22 = vector.load %arg5[%c256, %c0_13] : memref<2048x256xbf16, #tpu.memory_space<vmem>>, vector<128x256xbf16>
    %cst_14 = arith.constant dense<0.000000e+00> : vector<8x256xf32>
    %23 = tpu.matmul %21, %22, %cst_14 {dimension_numbers = #tpu.dot_dimension_numbers<[1], [0], [0], [1], [0, 0, 1, 1], [], []>} : vector<8x128xbf16>, vector<128x256xbf16>, vector<8x256xf32> -> vector<8x256xf32>
    %24 = arith.addf %19, %23 : vector<8x256xf32>
    %25 = vector.extract_strided_slice %10 {offsets = [24, 0], sizes = [8, 128], strides = [1, 1]} : vector<128x128xf32> to vector<8x128xf32>
    %26 = arith.truncf %25 : vector<8x128xf32> to vector<8x128xbf16>
    %c384 = arith.constant 384 : index
    %c0_15 = arith.constant 0 : index
    %27 = vector.load %arg5[%c384, %c0_15] : memref<2048x256xbf16, #tpu.memory_space<vmem>>, vector<128x256xbf16>
    %cst_16 = arith.constant dense<0.000000e+00> : vector<8x256xf32>
    %28 = tpu.matmul %26, %27, %cst_16 {dimension_numbers = #tpu.dot_dimension_numbers<[1], [0], [0], [1], [0, 0, 1, 1], [], []>} : vector<8x128xbf16>, vector<128x256xbf16>, vector<8x256xf32> -> vector<8x256xf32>
    %29 = arith.addf %24, %28 : vector<8x256xf32>
    %30 = vector.extract_strided_slice %10 {offsets = [32, 0], sizes = [8, 128], strides = [1, 1]} : vector<128x128xf32> to vector<8x128xf32>
    %31 = arith.truncf %30 : vector<8x128xf32> to vector<8x128xbf16>
    %c512 = arith.constant 512 : index
    %c0_17 = arith.constant 0 : index
    %32 = vector.load %arg5[%c512, %c0_17] : memref<2048x256xbf16, #tpu.memory_space<vmem>>, vector<128x256xbf16>
    %cst_18 = arith.constant dense<0.000000e+00> : vector<8x256xf32>
    %33 = tpu.matmul %31, %32, %cst_18 {dimension_numbers = #tpu.dot_dimension_numbers<[1], [0], [0], [1], [0, 0, 1, 1], [], []>} : vector<8x128xbf16>, vector<128x256xbf16>, vector<8x256xf32> -> vector<8x256xf32>
    %34 = arith.addf %29, %33 : vector<8x256xf32>
    %35 = vector.extract_strided_slice %10 {offsets = [40, 0], sizes = [8, 128], strides = [1, 1]} : vector<128x128xf32> to vector<8x128xf32>
    %36 = arith.truncf %35 : vector<8x128xf32> to vector<8x128xbf16>
    %c640 = arith.constant 640 : index
    %c0_19 = arith.constant 0 : index
    %37 = vector.load %arg5[%c640, %c0_19] : memref<2048x256xbf16, #tpu.memory_space<vmem>>, vector<128x256xbf16>
    %cst_20 = arith.constant dense<0.000000e+00> : vector<8x256xf32>
    %38 = tpu.matmul %36, %37, %cst_20 {dimension_numbers = #tpu.dot_dimension_numbers<[1], [0], [0], [1], [0, 0, 1, 1], [], []>} : vector<8x128xbf16>, vector<128x256xbf16>, vector<8x256xf32> -> vector<8x256xf32>
    %39 = arith.addf %34, %38 : vector<8x256xf32>
    %40 = vector.extract_strided_slice %10 {offsets = [48, 0], sizes = [8, 128], strides = [1, 1]} : vector<128x128xf32> to vector<8x128xf32>
    %41 = arith.truncf %40 : vector<8x128xf32> to vector<8x128xbf16>
    %c768 = arith.constant 768 : index
    %c0_21 = arith.constant 0 : index
    %42 = vector.load %arg5[%c768, %c0_21] : memref<2048x256xbf16, #tpu.memory_space<vmem>>, vector<128x256xbf16>
    %cst_22 = arith.constant dense<0.000000e+00> : vector<8x256xf32>
    %43 = tpu.matmul %41, %42, %cst_22 {dimension_numbers = #tpu.dot_dimension_numbers<[1], [0], [0], [1], [0, 0, 1, 1], [], []>} : vector<8x128xbf16>, vector<128x256xbf16>, vector<8x256xf32> -> vector<8x256xf32>
    %44 = arith.addf %39, %43 : vector<8x256xf32>
    %45 = vector.extract_strided_slice %10 {offsets = [56, 0], sizes = [8, 128], strides = [1, 1]} : vector<128x128xf32> to vector<8x128xf32>
    %46 = arith.truncf %45 : vector<8x128xf32> to vector<8x128xbf16>
    %c896 = arith.constant 896 : index
    %c0_23 = arith.constant 0 : index
    %47 = vector.load %arg5[%c896, %c0_23] : memref<2048x256xbf16, #tpu.memory_space<vmem>>, vector<128x256xbf16>
    %cst_24 = arith.constant dense<0.000000e+00> : vector<8x256xf32>
    %48 = tpu.matmul %46, %47, %cst_24 {dimension_numbers = #tpu.dot_dimension_numbers<[1], [0], [0], [1], [0, 0, 1, 1], [], []>} : vector<8x128xbf16>, vector<128x256xbf16>, vector<8x256xf32> -> vector<8x256xf32>
    %49 = arith.addf %44, %48 : vector<8x256xf32>
    %50 = vector.extract_strided_slice %10 {offsets = [64, 0], sizes = [8, 128], strides = [1, 1]} : vector<128x128xf32> to vector<8x128xf32>
    %51 = arith.truncf %50 : vector<8x128xf32> to vector<8x128xbf16>
    %c1024 = arith.constant 1024 : index
    %c0_25 = arith.constant 0 : index
    %52 = vector.load %arg5[%c1024, %c0_25] : memref<2048x256xbf16, #tpu.memory_space<vmem>>, vector<128x256xbf16>
    %cst_26 = arith.constant dense<0.000000e+00> : vector<8x256xf32>
    %53 = tpu.matmul %51, %52, %cst_26 {dimension_numbers = #tpu.dot_dimension_numbers<[1], [0], [0], [1], [0, 0, 1, 1], [], []>} : vector<8x128xbf16>, vector<128x256xbf16>, vector<8x256xf32> -> vector<8x256xf32>
    %54 = arith.addf %49, %53 : vector<8x256xf32>
    %55 = vector.extract_strided_slice %10 {offsets = [72, 0], sizes = [8, 128], strides = [1, 1]} : vector<128x128xf32> to vector<8x128xf32>
    %56 = arith.truncf %55 : vector<8x128xf32> to vector<8x128xbf16>
    %c1152 = arith.constant 1152 : index
    %c0_27 = arith.constant 0 : index
    %57 = vector.load %arg5[%c1152, %c0_27] : memref<2048x256xbf16, #tpu.memory_space<vmem>>, vector<128x256xbf16>
    %cst_28 = arith.constant dense<0.000000e+00> : vector<8x256xf32>
    %58 = tpu.matmul %56, %57, %cst_28 {dimension_numbers = #tpu.dot_dimension_numbers<[1], [0], [0], [1], [0, 0, 1, 1], [], []>} : vector<8x128xbf16>, vector<128x256xbf16>, vector<8x256xf32> -> vector<8x256xf32>
    %59 = arith.addf %54, %58 : vector<8x256xf32>
    %60 = vector.extract_strided_slice %10 {offsets = [80, 0], sizes = [8, 128], strides = [1, 1]} : vector<128x128xf32> to vector<8x128xf32>
    %61 = arith.truncf %60 : vector<8x128xf32> to vector<8x128xbf16>
    %c1280 = arith.constant 1280 : index
    %c0_29 = arith.constant 0 : index
    %62 = vector.load %arg5[%c1280, %c0_29] : memref<2048x256xbf16, #tpu.memory_space<vmem>>, vector<128x256xbf16>
    %cst_30 = arith.constant dense<0.000000e+00> : vector<8x256xf32>
    %63 = tpu.matmul %61, %62, %cst_30 {dimension_numbers = #tpu.dot_dimension_numbers<[1], [0], [0], [1], [0, 0, 1, 1], [], []>} : vector<8x128xbf16>, vector<128x256xbf16>, vector<8x256xf32> -> vector<8x256xf32>
    %64 = arith.addf %59, %63 : vector<8x256xf32>
    %65 = vector.extract_strided_slice %10 {offsets = [88, 0], sizes = [8, 128], strides = [1, 1]} : vector<128x128xf32> to vector<8x128xf32>
    %66 = arith.truncf %65 : vector<8x128xf32> to vector<8x128xbf16>
    %c1408 = arith.constant 1408 : index
    %c0_31 = arith.constant 0 : index
    %67 = vector.load %arg5[%c1408, %c0_31] : memref<2048x256xbf16, #tpu.memory_space<vmem>>, vector<128x256xbf16>
    %cst_32 = arith.constant dense<0.000000e+00> : vector<8x256xf32>
    %68 = tpu.matmul %66, %67, %cst_32 {dimension_numbers = #tpu.dot_dimension_numbers<[1], [0], [0], [1], [0, 0, 1, 1], [], []>} : vector<8x128xbf16>, vector<128x256xbf16>, vector<8x256xf32> -> vector<8x256xf32>
    %69 = arith.addf %64, %68 : vector<8x256xf32>
    %70 = vector.extract_strided_slice %10 {offsets = [96, 0], sizes = [8, 128], strides = [1, 1]} : vector<128x128xf32> to vector<8x128xf32>
    %71 = arith.truncf %70 : vector<8x128xf32> to vector<8x128xbf16>
    %c1536 = arith.constant 1536 : index
    %c0_33 = arith.constant 0 : index
    %72 = vector.load %arg5[%c1536, %c0_33] : memref<2048x256xbf16, #tpu.memory_space<vmem>>, vector<128x256xbf16>
    %cst_34 = arith.constant dense<0.000000e+00> : vector<8x256xf32>
    %73 = tpu.matmul %71, %72, %cst_34 {dimension_numbers = #tpu.dot_dimension_numbers<[1], [0], [0], [1], [0, 0, 1, 1], [], []>} : vector<8x128xbf16>, vector<128x256xbf16>, vector<8x256xf32> -> vector<8x256xf32>
    %74 = arith.addf %69, %73 : vector<8x256xf32>
    %75 = vector.extract_strided_slice %10 {offsets = [104, 0], sizes = [8, 128], strides = [1, 1]} : vector<128x128xf32> to vector<8x128xf32>
    %76 = arith.truncf %75 : vector<8x128xf32> to vector<8x128xbf16>
    %c1664 = arith.constant 1664 : index
    %c0_35 = arith.constant 0 : index
    %77 = vector.load %arg5[%c1664, %c0_35] : memref<2048x256xbf16, #tpu.memory_space<vmem>>, vector<128x256xbf16>
    %cst_36 = arith.constant dense<0.000000e+00> : vector<8x256xf32>
    %78 = tpu.matmul %76, %77, %cst_36 {dimension_numbers = #tpu.dot_dimension_numbers<[1], [0], [0], [1], [0, 0, 1, 1], [], []>} : vector<8x128xbf16>, vector<128x256xbf16>, vector<8x256xf32> -> vector<8x256xf32>
    %79 = arith.addf %74, %78 : vector<8x256xf32>
    %80 = vector.extract_strided_slice %10 {offsets = [112, 0], sizes = [8, 128], strides = [1, 1]} : vector<128x128xf32> to vector<8x128xf32>
    %81 = arith.truncf %80 : vector<8x128xf32> to vector<8x128xbf16>
    %c1792 = arith.constant 1792 : index
    %c0_37 = arith.constant 0 : index
    %82 = vector.load %arg5[%c1792, %c0_37] : memref<2048x256xbf16, #tpu.memory_space<vmem>>, vector<128x256xbf16>
    %cst_38 = arith.constant dense<0.000000e+00> : vector<8x256xf32>
    %83 = tpu.matmul %81, %82, %cst_38 {dimension_numbers = #tpu.dot_dimension_numbers<[1], [0], [0], [1], [0, 0, 1, 1], [], []>} : vector<8x128xbf16>, vector<128x256xbf16>, vector<8x256xf32> -> vector<8x256xf32>
    %84 = arith.addf %79, %83 : vector<8x256xf32>
    %85 = vector.extract_strided_slice %10 {offsets = [120, 0], sizes = [8, 128], strides = [1, 1]} : vector<128x128xf32> to vector<8x128xf32>
    %86 = arith.truncf %85 : vector<8x128xf32> to vector<8x128xbf16>
    %c1920 = arith.constant 1920 : index
    %c0_39 = arith.constant 0 : index
    %87 = vector.load %arg5[%c1920, %c0_39] : memref<2048x256xbf16, #tpu.memory_space<vmem>>, vector<128x256xbf16>
    %cst_40 = arith.constant dense<0.000000e+00> : vector<8x256xf32>
    %88 = tpu.matmul %86, %87, %cst_40 {dimension_numbers = #tpu.dot_dimension_numbers<[1], [0], [0], [1], [0, 0, 1, 1], [], []>} : vector<8x128xbf16>, vector<128x256xbf16>, vector<8x256xf32> -> vector<8x256xf32>
    %89 = arith.addf %84, %88 : vector<8x256xf32>
    %c0_41 = arith.constant 0 : index
    %c0_42 = arith.constant 0 : index
    %90 = vector.load %arg6[%c0_41, %c0_42] : memref<1x256xf32, #tpu.memory_space<vmem>>, vector<1x256xf32>
    %91 = vector.broadcast %90 : vector<1x256xf32> to vector<8x256xf32>
    %92 = arith.mulf %89, %91 : vector<8x256xf32>
    %c0_43 = arith.constant 0 : index
    %c0_44 = arith.constant 0 : index
    %93 = vector.load %arg7[%c0_43, %c0_44] : memref<1x256xf32, #tpu.memory_space<vmem>>, vector<1x256xf32>
    %94 = vector.broadcast %93 : vector<1x256xf32> to vector<8x256xf32>
    %95 = arith.addf %92, %94 : vector<8x256xf32>
    %cst_45 = arith.constant 0.000000e+00 : f32
    %96 = vector.broadcast %cst_45 : f32 to vector<8x256xf32>
    %97 = arith.maximumf %95, %96 : vector<8x256xf32>
    %98 = arith.truncf %97 : vector<8x256xf32> to vector<8x256xbf16>
    %c0_46 = arith.constant 0 : index
    %c0_47 = arith.constant 0 : index
    %99 = vector.load %arg8[%c0_46, %c0_47] : memref<256x512xbf16, #tpu.memory_space<vmem>>, vector<256x512xbf16>
    %cst_48 = arith.constant dense<0.000000e+00> : vector<8x512xf32>
    %100 = tpu.matmul %98, %99, %cst_48 {dimension_numbers = #tpu.dot_dimension_numbers<[1], [0], [0], [1], [0, 0, 1, 1], [], []>} : vector<8x256xbf16>, vector<256x512xbf16>, vector<8x512xf32> -> vector<8x512xf32>
    %c0_49 = arith.constant 0 : index
    %c0_50 = arith.constant 0 : index
    %101 = vector.load %arg9[%c0_49, %c0_50] : memref<1x512xf32, #tpu.memory_space<vmem>>, vector<1x512xf32>
    %102 = vector.broadcast %101 : vector<1x512xf32> to vector<8x512xf32>
    %103 = arith.addf %100, %102 : vector<8x512xf32>
    %104 = arith.truncf %103 : vector<8x512xf32> to vector<8x512xbf16>
    %c0_51 = arith.constant 0 : index
    %c0_52 = arith.constant 0 : index
    %105 = vector.load %arg10[%c0_51, %c0_52] : memref<512x128xbf16, #tpu.memory_space<vmem>>, vector<512x128xbf16>
    %cst_53 = arith.constant dense<0.000000e+00> : vector<8x128xf32>
    %106 = tpu.matmul %104, %105, %cst_53 {dimension_numbers = #tpu.dot_dimension_numbers<[1], [0], [0], [1], [0, 0, 1, 1], [], []>} : vector<8x512xbf16>, vector<512x128xbf16>, vector<8x128xf32> -> vector<8x128xf32>
    %c0_54 = arith.constant 0 : index
    %c0_55 = arith.constant 0 : index
    %107 = vector.load %arg11[%c0_54, %c0_55] : memref<1x128xf32, #tpu.memory_space<vmem>>, vector<1x128xf32>
    %108 = vector.broadcast %107 : vector<1x128xf32> to vector<8x128xf32>
    %109 = arith.addf %106, %108 : vector<8x128xf32>
    %c0_56 = arith.constant 0 : index
    %c0_57 = arith.constant 0 : index
    %110 = vector.load %arg12[%c0_56, %c0_57] : memref<8x128xf32, #tpu.memory_space<vmem>>, vector<8x128xf32>
    tpu.vector_store %arg12[%c0_56, %c0_57], %109 {strides = array<i32>} : memref<8x128xf32, #tpu.memory_space<vmem>>, vector<8x128xf32>,
    return
  }
  func.func @transform_0(%arg0: i32) -> (i32, i32) {
    %c0_i32 = arith.constant 0 : i32
    %c0_i32_0 = arith.constant 0 : i32
    %c0_i32_1 = arith.constant 0 : i32
    return %c0_i32, %c0_i32_0 : i32, i32
  }
  func.func @transform_1(%arg0: i32) -> (i32, i32) {
    %c0_i32 = arith.constant 0 : i32
    %c0_i32_0 = arith.constant 0 : i32
    %c0_i32_1 = arith.constant 0 : i32
    return %c0_i32, %c0_i32_0 : i32, i32
  }
  func.func @transform_2(%arg0: i32) -> (i32, i32) {
    %c0_i32 = arith.constant 0 : i32
    %c0_i32_0 = arith.constant 0 : i32
    %c0_i32_1 = arith.constant 0 : i32
    return %c0_i32, %c0_i32_0 : i32, i32
  }
  func.func @transform_3(%arg0: i32) -> (i32, i32) {
    %c0_i32 = arith.constant 0 : i32
    %c0_i32_0 = arith.constant 0 : i32
    %c0_i32_1 = arith.constant 0 : i32
    return %c0_i32, %c0_i32_0 : i32, i32
  }
  func.func @transform_4(%arg0: i32) -> (i32, i32) {
    %c0_i32 = arith.constant 0 : i32
    %c0_i32_0 = arith.constant 0 : i32
    %c0_i32_1 = arith.constant 0 : i32
    return %c0_i32, %c0_i32_0 : i32, i32
  }
  func.func @transform_5(%arg0: i32) -> (i32, i32) {
    %c0_i32 = arith.constant 0 : i32
    %c0_i32_0 = arith.constant 0 : i32
    %c0_i32_1 = arith.constant 0 : i32
    return %c0_i32, %c0_i32_0 : i32, i32
  }
  func.func @transform_6(%arg0: i32) -> (i32, i32) {
    %c0_i32 = arith.constant 0 : i32
    %c0_i32_0 = arith.constant 0 : i32
    %c0_i32_1 = arith.constant 0 : i32
    return %c0_i32, %c0_i32_0 : i32, i32
  }
  func.func @transform_7(%arg0: i32) -> (i32, i32) {
    %c0_i32 = arith.constant 0 : i32
    %c0_i32_0 = arith.constant 0 : i32
    %c0_i32_1 = arith.constant 0 : i32
    return %c0_i32, %c0_i32_0 : i32, i32
  }
  func.func @transform_8(%arg0: i32) -> (i32, i32) {
    %c0_i32 = arith.constant 0 : i32
    %c0_i32_0 = arith.constant 0 : i32
    %c0_i32_1 = arith.constant 0 : i32
    return %c0_i32, %c0_i32_0 : i32, i32
  }
  func.func @transform_9(%arg0: i32) -> (i32, i32) {
    %c0_i32 = arith.constant 0 : i32
    %c0_i32_0 = arith.constant 0 : i32
    %c0_i32_1 = arith.constant 0 : i32
    return %c0_i32, %c0_i32_0 : i32, i32
  }
  func.func @transform_10(%arg0: i32) -> (i32, i32) {
    %c0_i32 = arith.constant 0 : i32
    %c0_i32_0 = arith.constant 0 : i32
    %c0_i32_1 = arith.constant 0 : i32
    return %c0_i32, %c0_i32_0 : i32, i32
  }
  func.func @transform_11(%arg0: i32) -> (i32, i32) {
    %c0_i32 = arith.constant 0 : i32
    %c0_i32_0 = arith.constant 0 : i32
    %c0_i32_1 = arith.constant 0 : i32
    return %c0_i32, %c0_i32_0 : i32, i32
  }
}

</mosaic_0001>

<llo_original>
// kernel: _lambda_.4
$region0: #{_lambda_.4}
  #allocation0 [shape = 'u32[]', space=smem, size = 0x4, offset = 0x4, fixed_abs, tag = 'smem constant byte address 0x4 - core index']
  #allocation1 [shape = 'u32[144,128]{1,0:T(1,128)}', space=vmem, size = 0x12000, scoped, tag = 'internal scratch']
  %s0 = inlined_call_operand.vmem [shape: bf16[2048,64], index: 0, kind: input, shape index: {}]
  %s1 = inlined_call_operand.vmem [shape: bf16[64,128], index: 1, kind: input, shape index: {}]
  %s2 = inlined_call_operand.vmem [shape: f32[1,128], index: 2, kind: input, shape index: {}]
  %s3 = inlined_call_operand.vmem [shape: f32[1,128], index: 3, kind: input, shape index: {}]
  %s4 = inlined_call_operand.vmem [shape: bf16[2048,128], index: 4, kind: output, shape index: {}]
  %s5 = sld [smem:[#allocation0]]
  $region49: #{_lambda_.4} parent=0
    _
  %s7 = ssub.s32 1, %s5
  %s8 = scalar_select 0, %s7, %s5
  loop: start=0, step=1, limit=4
  $region2: #{_lambda_.4} parent=0 // loop_pre_header
    _
  $region3: #{_lambda_.4} parent=0 // loop_header
    %s10 = sphi 0, %s14
    %p11 = scmp.ge.s32.totalorder %s10, 4
    %s20 = sphi 0, %s22
    %s23 = sphi 0, %s20
    %s24 = sphi 0, %s23
    %s40 = sphi 0, %s24
    %s44 = sphi 0, %s44
    %s46 = sphi 0, %s44
    %s47 = sphi 0, %s46
    %s61 = sphi 0, %s47
    %s65 = sphi 0, %s65
    %s67 = sphi 0, %s65
    %s68 = sphi 0, %s67
    %s82 = sphi 0, %s68
    %s86 = sphi 0, %s86
    %s88 = sphi 0, %s86
    %s89 = sphi 0, %s88
    %s103 = sphi 0, %s89
    %s109 = sphi 0, %s111
    %s112 = sphi 0, %s109
    %s113 = sphi 0, %s112
    %s129 = sphi 0, %s113
  $region4: #{_lambda_.4} parent=0 // loop_header_branch
    %13 = sbr.rel (%p11) target = $region8
  $region5: #{_lambda_.4} parent=0 // loop_body
    %s15 = ssub.s32 %s10, 1
    %s16 = ssub.s32 %s10, 2
    %s17 = sadd.s32 %s10, 1
    %s18 = ssub.s32 %s10, %s17
    %p19 = scmp.eq.s32.totalorder %s18, 0
    %s21 = sadd.s32 %s20, 1
    %s22 = scalar_select %p19, %s20, %s21
    %p25 = pneg %p19
    %p26 = scmp.eq.s32.totalorder %s10, 1
    %p27 = por %p25, %p26
    %p28 = scmp.ne.s32.totalorder %s20, %s23
    %p29 = scmp.eq.s32.totalorder %s10, 0
    %p30 = por %p28, %p29
    %p31 = scmp.ne.s32.totalorder %s20, %s23
    %p32 = scmp.eq.s32.totalorder %s15, 1
    %p33 = por %p31, %p32
    %p34 = scmp.ne.s32.totalorder %s23, %s24
    %p35 = scmp.eq.s32.totalorder %s15, 0
    %p36 = por %p34, %p35
    %p37 = scmp.ne.s32.totalorder %s23, %s24
    %p38 = scmp.eq.s32.totalorder %s16, 1
    %p39 = por %p37, %p38
    %p41 = scmp.ne.s32.totalorder %s24, %s40
    %p42 = scmp.eq.s32.totalorder %s16, 0
    %p43 = por %p41, %p42
    %s45 = sadd.s32 %s44, 1
    %p48 = scmp.eq.s32.totalorder %s10, 1
    %p49 = scmp.ne.s32.totalorder %s44, %s46
    %p50 = scmp.eq.s32.totalorder %s10, 0
    %p51 = por %p49, %p50
    %p52 = scmp.ne.s32.totalorder %s44, %s46
    %p53 = scmp.eq.s32.totalorder %s15, 1
    %p54 = por %p52, %p53
    %p55 = scmp.ne.s32.totalorder %s46, %s47
    %p56 = scmp.eq.s32.totalorder %s15, 0
    %p57 = por %p55, %p56
    %p58 = scmp.ne.s32.totalorder %s46, %s47
    %p59 = scmp.eq.s32.totalorder %s16, 1
    %p60 = por %p58, %p59
    %p62 = scmp.ne.s32.totalorder %s47, %s61
    %p63 = scmp.eq.s32.totalorder %s16, 0
    %p64 = por %p62, %p63
    %s66 = sadd.s32 %s65, 1
    %p69 = scmp.eq.s32.totalorder %s10, 1
    %p70 = scmp.ne.s32.totalorder %s65, %s67
    %p71 = scmp.eq.s32.totalorder %s10, 0
    %p72 = por %p70, %p71
    %p73 = scmp.ne.s32.totalorder %s65, %s67
    %p74 = scmp.eq.s32.totalorder %s15, 1
    %p75 = por %p73, %p74
    %p76 = scmp.ne.s32.totalorder %s67, %s68
    %p77 = scmp.eq.s32.totalorder %s15, 0
    %p78 = por %p76, %p77
    %p79 = scmp.ne.s32.totalorder %s67, %s68
    %p80 = scmp.eq.s32.totalorder %s16, 1
    %p81 = por %p79, %p80
    %p83 = scmp.ne.s32.totalorder %s68, %s82
    %p84 = scmp.eq.s32.totalorder %s16, 0
    %p85 = por %p83, %p84
    %s87 = sadd.s32 %s86, 1
    %p90 = scmp.eq.s32.totalorder %s10, 1
    %p91 = scmp.ne.s32.totalorder %s86, %s88
    %p92 = scmp.eq.s32.totalorder %s10, 0
    %p93 = por %p91, %p92
    %p94 = scmp.ne.s32.totalorder %s86, %s88
    %p95 = scmp.eq.s32.totalorder %s15, 1
    %p96 = por %p94, %p95
    %p97 = scmp.ne.s32.totalorder %s88, %s89
    %p98 = scmp.eq.s32.totalorder %s15, 0
    %p99 = por %p97, %p98
    %p100 = scmp.ne.s32.totalorder %s88, %s89
    %p101 = scmp.eq.s32.totalorder %s16, 1
    %p102 = por %p100, %p101
    %p104 = scmp.ne.s32.totalorder %s89, %s103
    %p105 = scmp.eq.s32.totalorder %s16, 0
    %p106 = por %p104, %p105
    %s107 = ssub.s32 %s10, %s17
    %p108 = scmp.eq.s32.totalorder %s107, 0
    %s110 = sadd.s32 %s109, 1
    %s111 = scalar_select %p108, %s109, %s110
    %p114 = pneg %p108
    %p115 = scmp.eq.s32.totalorder %s10, 1
    %p116 = por %p114, %p115
    %p117 = scmp.ne.s32.totalorder %s109, %s112
    %p118 = scmp.eq.s32.totalorder %s10, 0
    %p119 = por %p117, %p118
    %p120 = scmp.ne.s32.totalorder %s109, %s112
    %p121 = scmp.eq.s32.totalorder %s15, 1
    %p122 = por %p120, %p121
    %p123 = scmp.ne.s32.totalorder %s112, %s113
    %p124 = scmp.eq.s32.totalorder %s15, 0
    %p125 = por %p123, %p124
    %p126 = scmp.ne.s32.totalorder %s112, %s113
    %p127 = scmp.eq.s32.totalorder %s16, 1
    %p128 = por %p126, %p127
    %p130 = scmp.ne.s32.totalorder %s113, %s129
    %p131 = scmp.eq.s32.totalorder %s16, 0
    %p132 = por %p130, %p131
    %p133 = scmp.le.s32.totalorder 1, %s10
    %p134 = scmp.lt.s32.totalorder %s10, 3
    %p135 = pnand %p133, %p134
    %p136 = pneg %p135
    // Predicated region
    $region9: #{_lambda_.4} parent=5 // pred_check
      _
    $region10: #{_lambda_.4} parent=5 // pred_check_branch
      %138 = sbr.rel (%p135) target = $region12
    $region11: #{_lambda_.4} parent=5 // pred_region
      %s139 = ssub.s32 %s10, 1
      // Predicated region
      $region13: #{_lambda_.4} parent=11 // pred_check
        %p140 = pneg %p57
      $region14: #{_lambda_.4} parent=11 // pred_check_branch
        %142 = sbr.rel (%p140) target = $region16
      $region15: #{_lambda_.4} parent=11 // pred_region
        _
      $region16: #{_lambda_.4} parent=11 // pred_fallthru
        _
      // Predicated region
      $region17: #{_lambda_.4} parent=11 // pred_check
        %p143 = pneg %p78
      $region18: #{_lambda_.4} parent=11 // pred_check_branch
        %145 = sbr.rel (%p143) target = $region20
      $region19: #{_lambda_.4} parent=11 // pred_region
        _
      $region20: #{_lambda_.4} parent=11 // pred_fallthru
        _
      // Predicated region
      $region21: #{_lambda_.4} parent=11 // pred_check
        %p146 = pneg %p99
      $region22: #{_lambda_.4} parent=11 // pred_check_branch
        %148 = sbr.rel (%p146) target = $region24
      $region23: #{_lambda_.4} parent=11 // pred_region
        _
      $region24: #{_lambda_.4} parent=11 // pred_fallthru
        _
    $region12: #{_lambda_.4} parent=5 // pred_fallthru
      _
    %p149 = scmp.lt.s32.totalorder %s10, 2
    // Predicated region
    $region25: #{_lambda_.4} parent=5 // pred_check
      %p150 = pneg %p149
    $region26: #{_lambda_.4} parent=5 // pred_check_branch
      %152 = sbr.rel (%p150) target = $region28
    $region27: #{_lambda_.4} parent=5 // pred_region
      // Predicated region
      $region29: #{_lambda_.4} parent=27 // pred_check
        %p153 = pneg %p30
      $region30: #{_lambda_.4} parent=27 // pred_check_branch
        %155 = sbr.rel (%p153) target = $region32
      $region31: #{_lambda_.4} parent=27 // pred_region
        %s156 = smul.u32 128, %s10
        %p157 = scmp.lt.s32.totalorder %s156, 255
        %s158 = scalar_select %p157, %s156, 255
        %s159 = smul.addr %s158, 4
        %s160 = scalar_lea.vmem %s0, %s159
        %s161 = smul.u32 128, %s10
      $region32: #{_lambda_.4} parent=27 // pred_fallthru
        _
    $region28: #{_lambda_.4} parent=5 // pred_fallthru
      _
    %p162 = scmp.le.s32.totalorder 1, %s10
    %p163 = scmp.lt.s32.totalorder %s10, 3
    %p164 = pnand %p162, %p163
    %p165 = pneg %p164
    // Predicated region
    $region33: #{_lambda_.4} parent=5 // pred_check
      _
    $region34: #{_lambda_.4} parent=5 // pred_check_branch
      %167 = sbr.rel (%p164) target = $region36
    $region35: #{_lambda_.4} parent=5 // pred_region
      %s168 = ssub.s32 %s10, 1
      %s169 = smul.u32 128, %s15
      %p170 = scmp.lt.s32.totalorder %s169, 255
      %s171 = scalar_select %p170, %s169, 255
      %s172 = smul.addr %s171, 4
      %s173 = scalar_lea.vmem %s0, %s172
      %p174 = pneg %p36
      %p175 = pneg %p33
      %p176 = pneg %p57
      %p177 = pneg %p54
      %p178 = pneg %p78
      %p179 = pneg %p75
      %p180 = pneg %p99
      %p181 = pneg %p96
      %p182 = pneg %p125
      %p183 = pneg %p122
      %s184 = smul.u32 128, %s15
      %p185 = scmp.lt.s32.totalorder %s184, 255
      %s186 = scalar_select %p185, %s184, 255
      %s187 = smul.addr %s186, 4
      %s188 = scalar_lea.vmem %s4, %s187
      %s189 = smul.u32 128, %s15
      %p190 = scmp.lt.s32.totalorder %s189, 255
      %s191 = scalar_select %p190, %s189, 255
      %s192 = smul.addr %s191, 4
      %s193 = scalar_lea.vmem %s0, %s192
      %s194 = smul.u32 128, %s15
      %s195 = smul.u32 128, %s15
      %p196 = scmp.lt.s32.totalorder %s195, 255
      %s197 = scalar_select %p196, %s195, 255
      %s198 = smul.addr %s197, 4
      %s199 = scalar_lea.vmem %s4, %s198
      %s200 = smul.u32 128, %s15
      %v202 = vld [vmem:[%s193] sm:$0xf]
      %v203 = vld [vmem:[%s193 + $0x4] sm:$0xf]
      %v204 = vld [vmem:[%s193 + $0x8] sm:$0xf]
      %v205 = vld [vmem:[%s193 + $0xc] sm:$0xf]
      %v206 = vld [vmem:[%s193 + $0x10] sm:$0xf]
      %v207 = vld [vmem:[%s193 + $0x14] sm:$0xf]
      %v208 = vld [vmem:[%s193 + $0x18] sm:$0xf]
      %v209 = vld [vmem:[%s193 + $0x1c] sm:$0xf]
      %v210 = vld [vmem:[%s193 + $0x20] sm:$0xf]
      %v211 = vld [vmem:[%s193 + $0x24] sm:$0xf]
      %v212 = vld [vmem:[%s193 + $0x28] sm:$0xf]
      %v213 = vld [vmem:[%s193 + $0x2c] sm:$0xf]
      %v214 = vld [vmem:[%s193 + $0x30] sm:$0xf]
      %v215 = vld [vmem:[%s193 + $0x34] sm:$0xf]
      %v216 = vld [vmem:[%s193 + $0x38] sm:$0xf]
      %v217 = vld [vmem:[%s193 + $0x3c] sm:$0xf]
      %v218 = vld [vmem:[%s193 + $0x40] sm:$0xf]
      %v219 = vld [vmem:[%s193 + $0x44] sm:$0xf]
      %v220 = vld [vmem:[%s193 + $0x48] sm:$0xf]
      %v221 = vld [vmem:[%s193 + $0x4c] sm:$0xf]
      %v222 = vld [vmem:[%s193 + $0x50] sm:$0xf]
      %v223 = vld [vmem:[%s193 + $0x54] sm:$0xf]
      %v224 = vld [vmem:[%s193 + $0x58] sm:$0xf]
      %v225 = vld [vmem:[%s193 + $0x5c] sm:$0xf]
      %v226 = vld [vmem:[%s193 + $0x60] sm:$0xf]
      %v227 = vld [vmem:[%s193 + $0x64] sm:$0xf]
      %v228 = vld [vmem:[%s193 + $0x68] sm:$0xf]
      %v229 = vld [vmem:[%s193 + $0x6c] sm:$0xf]
      %v230 = vld [vmem:[%s193 + $0x70] sm:$0xf]
      %v231 = vld [vmem:[%s193 + $0x74] sm:$0xf]
      %v232 = vld [vmem:[%s193 + $0x78] sm:$0xf]
      %v233 = vld [vmem:[%s193 + $0x7c] sm:$0xf]
      %v234 = vld [vmem:[%s193 + $0x80] sm:$0xf]
      %v235 = vld [vmem:[%s193 + $0x84] sm:$0xf]
      %v236 = vld [vmem:[%s193 + $0x88] sm:$0xf]
      %v237 = vld [vmem:[%s193 + $0x8c] sm:$0xf]
      %v238 = vld [vmem:[%s193 + $0x90] sm:$0xf]
      %v239 = vld [vmem:[%s193 + $0x94] sm:$0xf]
      %v240 = vld [vmem:[%s193 + $0x98] sm:$0xf]
      %v241 = vld [vmem:[%s193 + $0x9c] sm:$0xf]
      %v242 = vld [vmem:[%s193 + $0xa0] sm:$0xf]
      %v243 = vld [vmem:[%s193 + $0xa4] sm:$0xf]
      %v244 = vld [vmem:[%s193 + $0xa8] sm:$0xf]
      %v245 = vld [vmem:[%s193 + $0xac] sm:$0xf]
      %v246 = vld [vmem:[%s193 + $0xb0] sm:$0xf]
      %v247 = vld [vmem:[%s193 + $0xb4] sm:$0xf]
      %v248 = vld [vmem:[%s193 + $0xb8] sm:$0xf]
      %v249 = vld [vmem:[%s193 + $0xbc] sm:$0xf]
      %v250 = vld [vmem:[%s193 + $0xc0] sm:$0xf]
      %v251 = vld [vmem:[%s193 + $0xc4] sm:$0xf]
      %v252 = vld [vmem:[%s193 + $0xc8] sm:$0xf]
      %v253 = vld [vmem:[%s193 + $0xcc] sm:$0xf]
      %v254 = vld [vmem:[%s193 + $0xd0] sm:$0xf]
      %v255 = vld [vmem:[%s193 + $0xd4] sm:$0xf]
      %v256 = vld [vmem:[%s193 + $0xd8] sm:$0xf]
      %v257 = vld [vmem:[%s193 + $0xdc] sm:$0xf]
      %v258 = vld [vmem:[%s193 + $0xe0] sm:$0xf]
      %v259 = vld [vmem:[%s193 + $0xe4] sm:$0xf]
      %v260 = vld [vmem:[%s193 + $0xe8] sm:$0xf]
      %v261 = vld [vmem:[%s193 + $0xec] sm:$0xf]
      %v262 = vld [vmem:[%s193 + $0xf0] sm:$0xf]
      %v263 = vld [vmem:[%s193 + $0xf4] sm:$0xf]
      %v264 = vld [vmem:[%s193 + $0xf8] sm:$0xf]
      %v265 = vld [vmem:[%s193 + $0xfc] sm:$0xf]
      %v266 = vld [vmem:[%s193 + $0x100] sm:$0xf]
      %v267 = vld [vmem:[%s193 + $0x104] sm:$0xf]
      %v268 = vld [vmem:[%s193 + $0x108] sm:$0xf]
      %v269 = vld [vmem:[%s193 + $0x10c] sm:$0xf]
      %v270 = vld [vmem:[%s193 + $0x110] sm:$0xf]
      %v271 = vld [vmem:[%s193 + $0x114] sm:$0xf]
      %v272 = vld [vmem:[%s193 + $0x118] sm:$0xf]
      %v273 = vld [vmem:[%s193 + $0x11c] sm:$0xf]
      %v274 = vld [vmem:[%s193 + $0x120] sm:$0xf]
      %v275 = vld [vmem:[%s193 + $0x124] sm:$0xf]
      %v276 = vld [vmem:[%s193 + $0x128] sm:$0xf]
      %v277 = vld [vmem:[%s193 + $0x12c] sm:$0xf]
      %v278 = vld [vmem:[%s193 + $0x130] sm:$0xf]
      %v279 = vld [vmem:[%s193 + $0x134] sm:$0xf]
      %v280 = vld [vmem:[%s193 + $0x138] sm:$0xf]
      %v281 = vld [vmem:[%s193 + $0x13c] sm:$0xf]
      %v282 = vld [vmem:[%s193 + $0x140] sm:$0xf]
      %v283 = vld [vmem:[%s193 + $0x144] sm:$0xf]
      %v284 = vld [vmem:[%s193 + $0x148] sm:$0xf]
      %v285 = vld [vmem:[%s193 + $0x14c] sm:$0xf]
      %v286 = vld [vmem:[%s193 + $0x150] sm:$0xf]
      %v287 = vld [vmem:[%s193 + $0x154] sm:$0xf]
      %v288 = vld [vmem:[%s193 + $0x158] sm:$0xf]
      %v289 = vld [vmem:[%s193 + $0x15c] sm:$0xf]
      %v290 = vld [vmem:[%s193 + $0x160] sm:$0xf]
      %v291 = vld [vmem:[%s193 + $0x164] sm:$0xf]
      %v292 = vld [vmem:[%s193 + $0x168] sm:$0xf]
      %v293 = vld [vmem:[%s193 + $0x16c] sm:$0xf]
      %v294 = vld [vmem:[%s193 + $0x170] sm:$0xf]
      %v295 = vld [vmem:[%s193 + $0x174] sm:$0xf]
      %v296 = vld [vmem:[%s193 + $0x178] sm:$0xf]
      %v297 = vld [vmem:[%s193 + $0x17c] sm:$0xf]
      %v298 = vld [vmem:[%s193 + $0x180] sm:$0xf]
      %v299 = vld [vmem:[%s193 + $0x184] sm:$0xf]
      %v300 = vld [vmem:[%s193 + $0x188] sm:$0xf]
      %v301 = vld [vmem:[%s193 + $0x18c] sm:$0xf]
      %v302 = vld [vmem:[%s193 + $0x190] sm:$0xf]
      %v303 = vld [vmem:[%s193 + $0x194] sm:$0xf]
      %v304 = vld [vmem:[%s193 + $0x198] sm:$0xf]
      %v305 = vld [vmem:[%s193 + $0x19c] sm:$0xf]
      %v306 = vld [vmem:[%s193 + $0x1a0] sm:$0xf]
      %v307 = vld [vmem:[%s193 + $0x1a4] sm:$0xf]
      %v308 = vld [vmem:[%s193 + $0x1a8] sm:$0xf]
      %v309 = vld [vmem:[%s193 + $0x1ac] sm:$0xf]
      %v310 = vld [vmem:[%s193 + $0x1b0] sm:$0xf]
      %v311 = vld [vmem:[%s193 + $0x1b4] sm:$0xf]
      %v312 = vld [vmem:[%s193 + $0x1b8] sm:$0xf]
      %v313 = vld [vmem:[%s193 + $0x1bc] sm:$0xf]
      %v314 = vld [vmem:[%s193 + $0x1c0] sm:$0xf]
      %v315 = vld [vmem:[%s193 + $0x1c4] sm:$0xf]
      %v316 = vld [vmem:[%s193 + $0x1c8] sm:$0xf]
      %v317 = vld [vmem:[%s193 + $0x1cc] sm:$0xf]
      %v318 = vld [vmem:[%s193 + $0x1d0] sm:$0xf]
      %v319 = vld [vmem:[%s193 + $0x1d4] sm:$0xf]
      %v320 = vld [vmem:[%s193 + $0x1d8] sm:$0xf]
      %v321 = vld [vmem:[%s193 + $0x1dc] sm:$0xf]
      %v322 = vld [vmem:[%s193 + $0x1e0] sm:$0xf]
      %v323 = vld [vmem:[%s193 + $0x1e4] sm:$0xf]
      %v324 = vld [vmem:[%s193 + $0x1e8] sm:$0xf]
      %v325 = vld [vmem:[%s193 + $0x1ec] sm:$0xf]
      %v326 = vld [vmem:[%s193 + $0x1f0] sm:$0xf]
      %v327 = vld [vmem:[%s193 + $0x1f4] sm:$0xf]
      %v328 = vld [vmem:[%s193 + $0x1f8] sm:$0xf]
      %v329 = vld [vmem:[%s193 + $0x1fc] sm:$0xf]
      %v330 = vld [vmem:[%s1] sm:$0xf]
      %v331 = vld [vmem:[%s1 + $0x4] sm:$0xf]
      %v332 = vld [vmem:[%s1 + $0x8] sm:$0xf]
      %v333 = vld [vmem:[%s1 + $0xc] sm:$0xf]
      %v334 = vld [vmem:[%s1 + $0x10] sm:$0xf]
      %v335 = vld [vmem:[%s1 + $0x14] sm:$0xf]
      %v336 = vld [vmem:[%s1 + $0x18] sm:$0xf]
      %v337 = vld [vmem:[%s1 + $0x1c] sm:$0xf]
      %v466 = vunpack.c.l.b16 %v202
      %v467 = vunpack.c.l.b16 %v203
      %v468 = vunpack.c.l.b16 %v204
      %v469 = vunpack.c.l.b16 %v205
      %v470 = vunpack.c.l.b16 %v206
      %v471 = vunpack.c.l.b16 %v207
      %v472 = vunpack.c.l.b16 %v208
      %v473 = vunpack.c.l.b16 %v209
      %v474 = vunpack.c.l.b16 %v210
      %v475 = vunpack.c.l.b16 %v211
      %v476 = vunpack.c.l.b16 %v212
      %v477 = vunpack.c.l.b16 %v213
      %v478 = vunpack.c.l.b16 %v214
      %v479 = vunpack.c.l.b16 %v215
      %v480 = vunpack.c.l.b16 %v216
      %v481 = vunpack.c.l.b16 %v217
      %v482 = vunpack.c.l.b16 %v218
      %v483 = vunpack.c.l.b16 %v219
      %v484 = vunpack.c.l.b16 %v220
      %v485 = vunpack.c.l.b16 %v221
      %v486 = vunpack.c.l.b16 %v222
      %v487 = vunpack.c.l.b16 %v223
      %v488 = vunpack.c.l.b16 %v224
      %v489 = vunpack.c.l.b16 %v225
      %v490 = vunpack.c.l.b16 %v226
      %v491 = vunpack.c.l.b16 %v227
      %v492 = vunpack.c.l.b16 %v228
      %v493 = vunpack.c.l.b16 %v229
      %v494 = vunpack.c.l.b16 %v230
      %v495 = vunpack.c.l.b16 %v231
      %v496 = vunpack.c.l.b16 %v232
      %v497 = vunpack.c.l.b16 %v233
      %v498 = vunpack.c.l.b16 %v234
      %v499 = vunpack.c.l.b16 %v235
      %v500 = vunpack.c.l.b16 %v236
      %v501 = vunpack.c.l.b16 %v237
      %v502 = vunpack.c.l.b16 %v238
      %v503 = vunpack.c.l.b16 %v239
      %v504 = vunpack.c.l.b16 %v240
      %v505 = vunpack.c.l.b16 %v241
      %v506 = vunpack.c.l.b16 %v242
      %v507 = vunpack.c.l.b16 %v243
      %v508 = vunpack.c.l.b16 %v244
      %v509 = vunpack.c.l.b16 %v245
      %v510 = vunpack.c.l.b16 %v246
      %v511 = vunpack.c.l.b16 %v247
      %v512 = vunpack.c.l.b16 %v248
      %v513 = vunpack.c.l.b16 %v249
      %v514 = vunpack.c.l.b16 %v250
      %v515 = vunpack.c.l.b16 %v251
      %v516 = vunpack.c.l.b16 %v252
      %v517 = vunpack.c.l.b16 %v253
      %v518 = vunpack.c.l.b16 %v254
      %v519 = vunpack.c.l.b16 %v255
      %v520 = vunpack.c.l.b16 %v256
      %v521 = vunpack.c.l.b16 %v257
      %v522 = vunpack.c.l.b16 %v258
      %v523 = vunpack.c.l.b16 %v259
      %v524 = vunpack.c.l.b16 %v260
      %v525 = vunpack.c.l.b16 %v261
      %v526 = vunpack.c.l.b16 %v262
      %v527 = vunpack.c.l.b16 %v263
      %v528 = vunpack.c.l.b16 %v264
      %v529 = vunpack.c.l.b16 %v265
      %v530 = vunpack.c.l.b16 %v266
      %v531 = vunpack.c.l.b16 %v267
      %v532 = vunpack.c.l.b16 %v268
      %v533 = vunpack.c.l.b16 %v269
      %v534 = vunpack.c.l.b16 %v270
      %v535 = vunpack.c.l.b16 %v271
      %v536 = vunpack.c.l.b16 %v272
      %v537 = vunpack.c.l.b16 %v273
      %v538 = vunpack.c.l.b16 %v274
      %v539 = vunpack.c.l.b16 %v275
      %v540 = vunpack.c.l.b16 %v276
      %v541 = vunpack.c.l.b16 %v277
      %v542 = vunpack.c.l.b16 %v278
      %v543 = vunpack.c.l.b16 %v279
      %v544 = vunpack.c.l.b16 %v280
      %v545 = vunpack.c.l.b16 %v281
      %v546 = vunpack.c.l.b16 %v282
      %v547 = vunpack.c.l.b16 %v283
      %v548 = vunpack.c.l.b16 %v284
      %v549 = vunpack.c.l.b16 %v285
      %v550 = vunpack.c.l.b16 %v286
      %v551 = vunpack.c.l.b16 %v287
      %v552 = vunpack.c.l.b16 %v288
      %v553 = vunpack.c.l.b16 %v289
      %v554 = vunpack.c.l.b16 %v290
      %v555 = vunpack.c.l.b16 %v291
      %v556 = vunpack.c.l.b16 %v292
      %v557 = vunpack.c.l.b16 %v293
      %v558 = vunpack.c.l.b16 %v294
      %v559 = vunpack.c.l.b16 %v295
      %v560 = vunpack.c.l.b16 %v296
      %v561 = vunpack.c.l.b16 %v297
      %v562 = vunpack.c.l.b16 %v298
      %v563 = vunpack.c.l.b16 %v299
      %v564 = vunpack.c.l.b16 %v300
      %v565 = vunpack.c.l.b16 %v301
      %v566 = vunpack.c.l.b16 %v302
      %v567 = vunpack.c.l.b16 %v303
      %v568 = vunpack.c.l.b16 %v304
      %v569 = vunpack.c.l.b16 %v305
      %v570 = vunpack.c.l.b16 %v306
      %v571 = vunpack.c.l.b16 %v307
      %v572 = vunpack.c.l.b16 %v308
      %v573 = vunpack.c.l.b16 %v309
      %v574 = vunpack.c.l.b16 %v310
      %v575 = vunpack.c.l.b16 %v311
      %v576 = vunpack.c.l.b16 %v312
      %v577 = vunpack.c.l.b16 %v313
      %v578 = vunpack.c.l.b16 %v314
      %v579 = vunpack.c.l.b16 %v315
      %v580 = vunpack.c.l.b16 %v316
      %v581 = vunpack.c.l.b16 %v317
      %v582 = vunpack.c.l.b16 %v318
      %v583 = vunpack.c.l.b16 %v319
      %v584 = vunpack.c.l.b16 %v320
      %v585 = vunpack.c.l.b16 %v321
      %v586 = vunpack.c.l.b16 %v322
      %v587 = vunpack.c.l.b16 %v323
      %v588 = vunpack.c.l.b16 %v324
      %v589 = vunpack.c.l.b16 %v325
      %v590 = vunpack.c.l.b16 %v326
      %v591 = vunpack.c.l.b16 %v327
      %v592 = vunpack.c.l.b16 %v328
      %v593 = vunpack.c.l.b16 %v329
      %v594 = vpack.c.b16 %v467, %v466
      %v595 = vpack.c.b16 %v469, %v468
      %v596 = vpack.c.b16 %v471, %v470
      %v597 = vpack.c.b16 %v473, %v472
      %v598 = vpack.c.b16 %v475, %v474
      %v599 = vpack.c.b16 %v477, %v476
      %v600 = vpack.c.b16 %v479, %v478
      %v601 = vpack.c.b16 %v481, %v480
      %v602 = vpack.c.b16 %v483, %v482
      %v603 = vpack.c.b16 %v485, %v484
      %v604 = vpack.c.b16 %v487, %v486
      %v605 = vpack.c.b16 %v489, %v488
      %v606 = vpack.c.b16 %v491, %v490
      %v607 = vpack.c.b16 %v493, %v492
      %v608 = vpack.c.b16 %v495, %v494
      %v609 = vpack.c.b16 %v497, %v496
      %v610 = vpack.c.b16 %v499, %v498
      %v611 = vpack.c.b16 %v501, %v500
      %v612 = vpack.c.b16 %v503, %v502
      %v613 = vpack.c.b16 %v505, %v504
      %v614 = vpack.c.b16 %v507, %v506
      %v615 = vpack.c.b16 %v509, %v508
      %v616 = vpack.c.b16 %v511, %v510
      %v617 = vpack.c.b16 %v513, %v512
      %v618 = vpack.c.b16 %v515, %v514
      %v619 = vpack.c.b16 %v517, %v516
      %v620 = vpack.c.b16 %v519, %v518
      %v621 = vpack.c.b16 %v521, %v520
      %v622 = vpack.c.b16 %v523, %v522
      %v623 = vpack.c.b16 %v525, %v524
      %v624 = vpack.c.b16 %v527, %v526
      %v625 = vpack.c.b16 %v529, %v528
      %v626 = vpack.c.b16 %v531, %v530
      %v627 = vpack.c.b16 %v533, %v532
      %v628 = vpack.c.b16 %v535, %v534
      %v629 = vpack.c.b16 %v537, %v536
      %v630 = vpack.c.b16 %v539, %v538
      %v631 = vpack.c.b16 %v541, %v540
      %v632 = vpack.c.b16 %v543, %v542
      %v633 = vpack.c.b16 %v545, %v544
      %v634 = vpack.c.b16 %v547, %v546
      %v635 = vpack.c.b16 %v549, %v548
      %v636 = vpack.c.b16 %v551, %v550
      %v637 = vpack.c.b16 %v553, %v552
      %v638 = vpack.c.b16 %v555, %v554
      %v639 = vpack.c.b16 %v557, %v556
      %v640 = vpack.c.b16 %v559, %v558
      %v641 = vpack.c.b16 %v561, %v560
      %v642 = vpack.c.b16 %v563, %v562
      %v643 = vpack.c.b16 %v565, %v564
      %v644 = vpack.c.b16 %v567, %v566
      %v645 = vpack.c.b16 %v569, %v568
      %v646 = vpack.c.b16 %v571, %v570
      %v647 = vpack.c.b16 %v573, %v572
      %v648 = vpack.c.b16 %v575, %v574
      %v649 = vpack.c.b16 %v577, %v576
      %v650 = vpack.c.b16 %v579, %v578
      %v651 = vpack.c.b16 %v581, %v580
      %v652 = vpack.c.b16 %v583, %v582
      %v653 = vpack.c.b16 %v585, %v584
      %v654 = vpack.c.b16 %v587, %v586
      %v655 = vpack.c.b16 %v589, %v588
      %v656 = vpack.c.b16 %v591, %v590
      %v657 = vpack.c.b16 %v593, %v592
      %v666 = vunpack.c.l.b16 %v330
      %v667 = vunpack.c.l.b16 %v331
      %v668 = vunpack.c.l.b16 %v332
      %v669 = vunpack.c.l.b16 %v333
      %v670 = vunpack.c.l.b16 %v334
      %v671 = vunpack.c.l.b16 %v335
      %v672 = vunpack.c.l.b16 %v336
      %v673 = vunpack.c.l.b16 %v337
      %v674 = vpack.c.b16 %v667, %v666
      %v675 = vpack.c.b16 %v669, %v668
      %v676 = vpack.c.b16 %v671, %v670
      %v677 = vpack.c.b16 %v673, %v672
      %vm682 = vcmask 523264
      %v684 = vsel %vm682, %v594, 0
      %v687 = vsel %vm682, %v595, 0
      %v690 = vsel %vm682, %v596, 0
      %v693 = vsel %vm682, %v597, 0
      %v696 = vsel %vm682, %v598, 0
      %v699 = vsel %vm682, %v599, 0
      %v702 = vsel %vm682, %v600, 0
      %v705 = vsel %vm682, %v601, 0
      %v708 = vsel %vm682, %v602, 0
      %v711 = vsel %vm682, %v603, 0
      %v714 = vsel %vm682, %v604, 0
      %v717 = vsel %vm682, %v605, 0
      %v720 = vsel %vm682, %v606, 0
      %v723 = vsel %vm682, %v607, 0
      %v726 = vsel %vm682, %v608, 0
      %v729 = vsel %vm682, %v609, 0
      %v732 = vsel %vm682, %v610, 0
      %v735 = vsel %vm682, %v611, 0
      %v738 = vsel %vm682, %v612, 0
      %v741 = vsel %vm682, %v613, 0
      %v744 = vsel %vm682, %v614, 0
      %v747 = vsel %vm682, %v615, 0
      %v750 = vsel %vm682, %v616, 0
      %v753 = vsel %vm682, %v617, 0
      %v756 = vsel %vm682, %v618, 0
      %v759 = vsel %vm682, %v619, 0
      %v762 = vsel %vm682, %v620, 0
      %v765 = vsel %vm682, %v621, 0
      %v768 = vsel %vm682, %v622, 0
      %v771 = vsel %vm682, %v623, 0
      %v774 = vsel %vm682, %v624, 0
      %v777 = vsel %vm682, %v625, 0
      %v780 = vsel %vm682, %v626, 0
      %v783 = vsel %vm682, %v627, 0
      %v786 = vsel %vm682, %v628, 0
      %v789 = vsel %vm682, %v629, 0
      %v792 = vsel %vm682, %v630, 0
      %v795 = vsel %vm682, %v631, 0
      %v798 = vsel %vm682, %v632, 0
      %v801 = vsel %vm682, %v633, 0
      %v804 = vsel %vm682, %v634, 0
      %v807 = vsel %vm682, %v635, 0
      %v810 = vsel %vm682, %v636, 0
      %v813 = vsel %vm682, %v637, 0
      %v816 = vsel %vm682, %v638, 0
      %v819 = vsel %vm682, %v639, 0
      %v822 = vsel %vm682, %v640, 0
      %v825 = vsel %vm682, %v641, 0
      %v828 = vsel %vm682, %v642, 0
      %v831 = vsel %vm682, %v643, 0
      %v834 = vsel %vm682, %v644, 0
      %v837 = vsel %vm682, %v645, 0
      %v840 = vsel %vm682, %v646, 0
      %v843 = vsel %vm682, %v647, 0
      %v846 = vsel %vm682, %v648, 0
      %v849 = vsel %vm682, %v649, 0
      %v852 = vsel %vm682, %v650, 0
      %v855 = vsel %vm682, %v651, 0
      %v858 = vsel %vm682, %v652, 0
      %v861 = vsel %vm682, %v653, 0
      %v864 = vsel %vm682, %v654, 0
      %v867 = vsel %vm682, %v655, 0
      %v870 = vsel %vm682, %v656, 0
      %v873 = vsel %vm682, %v657, 0
      %875 = vmatprep.subr.bf16.mxu0 0
      %876 = vmatpush1.bf16.msra.mxu0 %v674
      %877 = vmatprep.subr.bf16.mxu0 0
      %878 = vmatpush1.bf16.msra.mxu0 %v675
      %879 = vmatprep.subr.bf16.mxu0 0
      %880 = vmatpush1.bf16.msra.mxu0 %v676
      %881 = vmatprep.subr.bf16.mxu0 0
      %882 = vmatpush1.bf16.msra.mxu0 %v677
      %883 = vmatprep.subr.bf16.mxu0 0
      %884 = vmatpush1.bf16.msra.mxu0 0
      %885 = vmatprep.subr.bf16.mxu0 0
      %886 = vmatpush1.bf16.msra.mxu0 0
      %887 = vmatprep.subr.bf16.mxu0 0
      %888 = vmatpush1.bf16.msra.mxu0 0
      %889 = vmatprep.subr.bf16.mxu0 0
      %890 = vmatpush1.bf16.msra.mxu0 0
      %891 = vmatprep.subr.bf16.mxu0 0
      %892 = vmatpush1.bf16.msra.mxu0 0
      %893 = vmatprep.subr.bf16.mxu0 0
      %894 = vmatpush1.bf16.msra.mxu0 0
      %895 = vmatprep.subr.bf16.mxu0 0
      %896 = vmatpush1.bf16.msra.mxu0 0
      %897 = vmatprep.subr.bf16.mxu0 0
      %898 = vmatpush1.bf16.msra.mxu0 0
      %899 = vmatprep.subr.bf16.mxu0 0
      %900 = vmatpush1.bf16.msra.mxu0 0
      %901 = vmatprep.subr.bf16.mxu0 0
      %902 = vmatpush1.bf16.msra.mxu0 0
      %903 = vmatprep.subr.bf16.mxu0 0
      %904 = vmatpush1.bf16.msra.mxu0 0
      %905 = vmatprep.subr.bf16.mxu0 0
      %906 = vmatpush1.bf16.msra.mxu0 0
      %907 = vmatprep.mubr.bf16.mxu0 0
      %908 = vmatmul.mubr.bf16.gmra.mrb[0].mxu0 %v684
      %v909 = vpop.f32.mrb[0].mxu0
      %v910 = vadd.f32 0.0, %v909
      %v911 = vpop.f32.mrb[0].mxu0
      %v912 = vpop.f32.mrb[0].mxu0
      %v913 = vadd.f32 0.0, %v912
      %v914 = vpop.f32.mrb[0].mxu0
      %915 = vmatprep.mubr.bf16.mxu0 0
      %916 = vmatmul.mubr.bf16.gmra.mrb[0].mxu0 %v687
      %v917 = vpop.f32.mrb[0].mxu0
      %v918 = vadd.f32 0.0, %v917
      %v919 = vpop.f32.mrb[0].mxu0
      %v920 = vpop.f32.mrb[0].mxu0
      %v921 = vadd.f32 0.0, %v920
      %v922 = vpop.f32.mrb[0].mxu0
      %923 = vmatprep.mubr.bf16.mxu0 0
      %924 = vmatmul.mubr.bf16.gmra.mrb[0].mxu0 %v690
      %v925 = vpop.f32.mrb[0].mxu0
      %v926 = vadd.f32 0.0, %v925
      %v927 = vpop.f32.mrb[0].mxu0
      %v928 = vpop.f32.mrb[0].mxu0
      %v929 = vadd.f32 0.0, %v928
      %v930 = vpop.f32.mrb[0].mxu0
      %931 = vmatprep.mubr.bf16.mxu0 0
      %932 = vmatmul.mubr.bf16.gmra.mrb[0].mxu0 %v693
      %v933 = vpop.f32.mrb[0].mxu0
      %v934 = vadd.f32 0.0, %v933
      %v935 = vpop.f32.mrb[0].mxu0
      %v936 = vpop.f32.mrb[0].mxu0
      %v937 = vadd.f32 0.0, %v936
      %v938 = vpop.f32.mrb[0].mxu0
      %939 = vmatprep.mubr.bf16.mxu0 0
      %940 = vmatmul.mubr.bf16.gmra.mrb[0].mxu0 %v696
      %v941 = vpop.f32.mrb[0].mxu0
      %v942 = vadd.f32 0.0, %v941
      %v943 = vpop.f32.mrb[0].mxu0
      %v944 = vpop.f32.mrb[0].mxu0
      %v945 = vadd.f32 0.0, %v944
      %v946 = vpop.f32.mrb[0].mxu0
      %947 = vmatprep.mubr.bf16.mxu0 0
      %948 = vmatmul.mubr.bf16.gmra.mrb[0].mxu0 %v699
      %v949 = vpop.f32.mrb[0].mxu0
      %v950 = vadd.f32 0.0, %v949
      %v951 = vpop.f32.mrb[0].mxu0
      %v952 = vpop.f32.mrb[0].mxu0
      %v953 = vadd.f32 0.0, %v952
      %v954 = vpop.f32.mrb[0].mxu0
      %955 = vmatprep.mubr.bf16.mxu0 0
      %956 = vmatmul.mubr.bf16.gmra.mrb[0].mxu0 %v702
      %v957 = vpop.f32.mrb[0].mxu0
      %v958 = vadd.f32 0.0, %v957
      %v959 = vpop.f32.mrb[0].mxu0
      %v960 = vpop.f32.mrb[0].mxu0
      %v961 = vadd.f32 0.0, %v960
      %v962 = vpop.f32.mrb[0].mxu0
      %963 = vmatprep.mubr.bf16.mxu0 0
      %964 = vmatmul.mubr.bf16.gmra.mrb[0].mxu0 %v705
      %v965 = vpop.f32.mrb[0].mxu0
      %v966 = vadd.f32 0.0, %v965
      %v967 = vpop.f32.mrb[0].mxu0
      %v968 = vpop.f32.mrb[0].mxu0
      %v969 = vadd.f32 0.0, %v968
      %v970 = vpop.f32.mrb[0].mxu0
      %971 = vmatprep.mubr.bf16.mxu0 0
      %972 = vmatmul.mubr.bf16.gmra.mrb[0].mxu0 %v708
      %v973 = vpop.f32.mrb[0].mxu0
      %v974 = vadd.f32 0.0, %v973
      %v975 = vpop.f32.mrb[0].mxu0
      %v976 = vpop.f32.mrb[0].mxu0
      %v977 = vadd.f32 0.0, %v976
      %v978 = vpop.f32.mrb[0].mxu0
      %979 = vmatprep.mubr.bf16.mxu0 0
      %980 = vmatmul.mubr.bf16.gmra.mrb[0].mxu0 %v711
      %v981 = vpop.f32.mrb[0].mxu0
      %v982 = vadd.f32 0.0, %v981
      %v983 = vpop.f32.mrb[0].mxu0
      %v984 = vpop.f32.mrb[0].mxu0
      %v985 = vadd.f32 0.0, %v984
      %v986 = vpop.f32.mrb[0].mxu0
      %987 = vmatprep.mubr.bf16.mxu0 0
      %988 = vmatmul.mubr.bf16.gmra.mrb[0].mxu0 %v714
      %v989 = vpop.f32.mrb[0].mxu0
      %v990 = vadd.f32 0.0, %v989
      %v991 = vpop.f32.mrb[0].mxu0
      %v992 = vpop.f32.mrb[0].mxu0
      %v993 = vadd.f32 0.0, %v992
      %v994 = vpop.f32.mrb[0].mxu0
      %995 = vmatprep.mubr.bf16.mxu0 0
      %996 = vmatmul.mubr.bf16.gmra.mrb[0].mxu0 %v717
      %v997 = vpop.f32.mrb[0].mxu0
      %v998 = vadd.f32 0.0, %v997
      %v999 = vpop.f32.mrb[0].mxu0
      %v1000 = vpop.f32.mrb[0].mxu0
      %v1001 = vadd.f32 0.0, %v1000
      %v1002 = vpop.f32.mrb[0].mxu0
      %1003 = vmatprep.mubr.bf16.mxu0 0
      %1004 = vmatmul.mubr.bf16.gmra.mrb[0].mxu0 %v720
      %v1005 = vpop.f32.mrb[0].mxu0
      %v1006 = vadd.f32 0.0, %v1005
      %v1007 = vpop.f32.mrb[0].mxu0
      %v1008 = vpop.f32.mrb[0].mxu0
      %v1009 = vadd.f32 0.0, %v1008
      %v1010 = vpop.f32.mrb[0].mxu0
      %1011 = vmatprep.mubr.bf16.mxu0 0
      %1012 = vmatmul.mubr.bf16.gmra.mrb[0].mxu0 %v723
      %v1013 = vpop.f32.mrb[0].mxu0
      %v1014 = vadd.f32 0.0, %v1013
      %v1015 = vpop.f32.mrb[0].mxu0
      %v1016 = vpop.f32.mrb[0].mxu0
      %v1017 = vadd.f32 0.0, %v1016
      %v1018 = vpop.f32.mrb[0].mxu0
      %1019 = vmatprep.mubr.bf16.mxu0 0
      %1020 = vmatmul.mubr.bf16.gmra.mrb[0].mxu0 %v726
      %v1021 = vpop.f32.mrb[0].mxu0
      %v1022 = vadd.f32 0.0, %v1021
      %v1023 = vpop.f32.mrb[0].mxu0
      %v1024 = vpop.f32.mrb[0].mxu0
      %v1025 = vadd.f32 0.0, %v1024
      %v1026 = vpop.f32.mrb[0].mxu0
      %1027 = vmatprep.mubr.bf16.mxu0 0
      %1028 = vmatmul.mubr.bf16.gmra.mrb[0].mxu0 %v729
      %v1029 = vpop.f32.mrb[0].mxu0
      %v1030 = vadd.f32 0.0, %v1029
      %v1031 = vpop.f32.mrb[0].mxu0
      %v1032 = vpop.f32.mrb[0].mxu0
      %v1033 = vadd.f32 0.0, %v1032
      %v1034 = vpop.f32.mrb[0].mxu0
      %1035 = vmatprep.mubr.bf16.mxu0 0
      %1036 = vmatmul.mubr.bf16.gmra.mrb[0].mxu0 %v732
      %v1037 = vpop.f32.mrb[0].mxu0
      %v1038 = vadd.f32 0.0, %v1037
      %v1039 = vpop.f32.mrb[0].mxu0
      %v1040 = vpop.f32.mrb[0].mxu0
      %v1041 = vadd.f32 0.0, %v1040
      %v1042 = vpop.f32.mrb[0].mxu0
      %1043 = vmatprep.mubr.bf16.mxu0 0
      %1044 = vmatmul.mubr.bf16.gmra.mrb[0].mxu0 %v735
      %v1045 = vpop.f32.mrb[0].mxu0
      %v1046 = vadd.f32 0.0, %v1045
      %v1047 = vpop.f32.mrb[0].mxu0
      %v1048 = vpop.f32.mrb[0].mxu0
      %v1049 = vadd.f32 0.0, %v1048
      %v1050 = vpop.f32.mrb[0].mxu0
      %1051 = vmatprep.mubr.bf16.mxu0 0
      %1052 = vmatmul.mubr.bf16.gmra.mrb[0].mxu0 %v738
      %v1053 = vpop.f32.mrb[0].mxu0
      %v1054 = vadd.f32 0.0, %v1053
      %v1055 = vpop.f32.mrb[0].mxu0
      %v1056 = vpop.f32.mrb[0].mxu0
      %v1057 = vadd.f32 0.0, %v1056
      %v1058 = vpop.f32.mrb[0].mxu0
      %1059 = vmatprep.mubr.bf16.mxu0 0
      %1060 = vmatmul.mubr.bf16.gmra.mrb[0].mxu0 %v741
      %v1061 = vpop.f32.mrb[0].mxu0
      %v1062 = vadd.f32 0.0, %v1061
      %v1063 = vpop.f32.mrb[0].mxu0
      %v1064 = vpop.f32.mrb[0].mxu0
      %v1065 = vadd.f32 0.0, %v1064
      %v1066 = vpop.f32.mrb[0].mxu0
      %1067 = vmatprep.mubr.bf16.mxu0 0
      %1068 = vmatmul.mubr.bf16.gmra.mrb[0].mxu0 %v744
      %v1069 = vpop.f32.mrb[0].mxu0
      %v1070 = vadd.f32 0.0, %v1069
      %v1071 = vpop.f32.mrb[0].mxu0
      %v1072 = vpop.f32.mrb[0].mxu0
      %v1073 = vadd.f32 0.0, %v1072
      %v1074 = vpop.f32.mrb[0].mxu0
      %1075 = vmatprep.mubr.bf16.mxu0 0
      %1076 = vmatmul.mubr.bf16.gmra.mrb[0].mxu0 %v747
      %v1077 = vpop.f32.mrb[0].mxu0
      %v1078 = vadd.f32 0.0, %v1077
      %v1079 = vpop.f32.mrb[0].mxu0
      %v1080 = vpop.f32.mrb[0].mxu0
      %v1081 = vadd.f32 0.0, %v1080
      %v1082 = vpop.f32.mrb[0].mxu0
      %1083 = vmatprep.mubr.bf16.mxu0 0
      %1084 = vmatmul.mubr.bf16.gmra.mrb[0].mxu0 %v750
      %v1085 = vpop.f32.mrb[0].mxu0
      %v1086 = vadd.f32 0.0, %v1085
      %v1087 = vpop.f32.mrb[0].mxu0
      %v1088 = vpop.f32.mrb[0].mxu0
      %v1089 = vadd.f32 0.0, %v1088
      %v1090 = vpop.f32.mrb[0].mxu0
      %1091 = vmatprep.mubr.bf16.mxu0 0
      %1092 = vmatmul.mubr.bf16.gmra.mrb[0].mxu0 %v753
      %v1093 = vpop.f32.mrb[0].mxu0
      %v1094 = vadd.f32 0.0, %v1093
      %v1095 = vpop.f32.mrb[0].mxu0
      %v1096 = vpop.f32.mrb[0].mxu0
      %v1097 = vadd.f32 0.0, %v1096
      %v1098 = vpop.f32.mrb[0].mxu0
      %1099 = vmatprep.mubr.bf16.mxu0 0
      %1100 = vmatmul.mubr.bf16.gmra.mrb[0].mxu0 %v756
      %v1101 = vpop.f32.mrb[0].mxu0
      %v1102 = vadd.f32 0.0, %v1101
      %v1103 = vpop.f32.mrb[0].mxu0
      %v1104 = vpop.f32.mrb[0].mxu0
      %v1105 = vadd.f32 0.0, %v1104
      %v1106 = vpop.f32.mrb[0].mxu0
      %1107 = vmatprep.mubr.bf16.mxu0 0
      %1108 = vmatmul.mubr.bf16.gmra.mrb[0].mxu0 %v759
      %v1109 = vpop.f32.mrb[0].mxu0
      %v1110 = vadd.f32 0.0, %v1109
      %v1111 = vpop.f32.mrb[0].mxu0
      %v1112 = vpop.f32.mrb[0].mxu0
      %v1113 = vadd.f32 0.0, %v1112
      %v1114 = vpop.f32.mrb[0].mxu0
      %1115 = vmatprep.mubr.bf16.mxu0 0
      %1116 = vmatmul.mubr.bf16.gmra.mrb[0].mxu0 %v762
      %v1117 = vpop.f32.mrb[0].mxu0
      %v1118 = vadd.f32 0.0, %v1117
      %v1119 = vpop.f32.mrb[0].mxu0
      %v1120 = vpop.f32.mrb[0].mxu0
      %v1121 = vadd.f32 0.0, %v1120
      %v1122 = vpop.f32.mrb[0].mxu0
      %1123 = vmatprep.mubr.bf16.mxu0 0
      %1124 = vmatmul.mubr.bf16.gmra.mrb[0].mxu0 %v765
      %v1125 = vpop.f32.mrb[0].mxu0
      %v1126 = vadd.f32 0.0, %v1125
      %v1127 = vpop.f32.mrb[0].mxu0
      %v1128 = vpop.f32.mrb[0].mxu0
      %v1129 = vadd.f32 0.0, %v1128
      %v1130 = vpop.f32.mrb[0].mxu0
      %1131 = vmatprep.mubr.bf16.mxu0 0
      %1132 = vmatmul.mubr.bf16.gmra.mrb[0].mxu0 %v768
      %v1133 = vpop.f32.mrb[0].mxu0
      %v1134 = vadd.f32 0.0, %v1133
      %v1135 = vpop.f32.mrb[0].mxu0
      %v1136 = vpop.f32.mrb[0].mxu0
      %v1137 = vadd.f32 0.0, %v1136
      %v1138 = vpop.f32.mrb[0].mxu0
      %1139 = vmatprep.mubr.bf16.mxu0 0
      %1140 = vmatmul.mubr.bf16.gmra.mrb[0].mxu0 %v771
      %v1141 = vpop.f32.mrb[0].mxu0
      %v1142 = vadd.f32 0.0, %v1141
      %v1143 = vpop.f32.mrb[0].mxu0
      %v1144 = vpop.f32.mrb[0].mxu0
      %v1145 = vadd.f32 0.0, %v1144
      %v1146 = vpop.f32.mrb[0].mxu0
      %1147 = vmatprep.mubr.bf16.mxu0 0
      %1148 = vmatmul.mubr.bf16.gmra.mrb[0].mxu0 %v774
      %v1149 = vpop.f32.mrb[0].mxu0
      %v1150 = vadd.f32 0.0, %v1149
      %v1151 = vpop.f32.mrb[0].mxu0
      %v1152 = vpop.f32.mrb[0].mxu0
      %v1153 = vadd.f32 0.0, %v1152
      %v1154 = vpop.f32.mrb[0].mxu0
      %1155 = vmatprep.mubr.bf16.mxu0 0
      %1156 = vmatmul.mubr.bf16.gmra.mrb[0].mxu0 %v777
      %v1157 = vpop.f32.mrb[0].mxu0
      %v1158 = vadd.f32 0.0, %v1157
      %v1159 = vpop.f32.mrb[0].mxu0
      %v1160 = vpop.f32.mrb[0].mxu0
      %v1161 = vadd.f32 0.0, %v1160
      %v1162 = vpop.f32.mrb[0].mxu0
      %1163 = vmatprep.mubr.bf16.mxu0 0
      %1164 = vmatmul.mubr.bf16.gmra.mrb[0].mxu0 %v780
      %v1165 = vpop.f32.mrb[0].mxu0
      %v1166 = vadd.f32 0.0, %v1165
      %v1167 = vpop.f32.mrb[0].mxu0
      %v1168 = vpop.f32.mrb[0].mxu0
      %v1169 = vadd.f32 0.0, %v1168
      %v1170 = vpop.f32.mrb[0].mxu0
      %1171 = vmatprep.mubr.bf16.mxu0 0
      %1172 = vmatmul.mubr.bf16.gmra.mrb[0].mxu0 %v783
      %v1173 = vpop.f32.mrb[0].mxu0
      %v1174 = vadd.f32 0.0, %v1173
      %v1175 = vpop.f32.mrb[0].mxu0
      %v1176 = vpop.f32.mrb[0].mxu0
      %v1177 = vadd.f32 0.0, %v1176
      %v1178 = vpop.f32.mrb[0].mxu0
      %1179 = vmatprep.mubr.bf16.mxu0 0
      %1180 = vmatmul.mubr.bf16.gmra.mrb[0].mxu0 %v786
      %v1181 = vpop.f32.mrb[0].mxu0
      %v1182 = vadd.f32 0.0, %v1181
      %v1183 = vpop.f32.mrb[0].mxu0
      %v1184 = vpop.f32.mrb[0].mxu0
      %v1185 = vadd.f32 0.0, %v1184
      %v1186 = vpop.f32.mrb[0].mxu0
      %1187 = vmatprep.mubr.bf16.mxu0 0
      %1188 = vmatmul.mubr.bf16.gmra.mrb[0].mxu0 %v789
      %v1189 = vpop.f32.mrb[0].mxu0
      %v1190 = vadd.f32 0.0, %v1189
      %v1191 = vpop.f32.mrb[0].mxu0
      %v1192 = vpop.f32.mrb[0].mxu0
      %v1193 = vadd.f32 0.0, %v1192
      %v1194 = vpop.f32.mrb[0].mxu0
      %1195 = vmatprep.mubr.bf16.mxu0 0
      %1196 = vmatmul.mubr.bf16.gmra.mrb[0].mxu0 %v792
      %v1197 = vpop.f32.mrb[0].mxu0
      %v1198 = vadd.f32 0.0, %v1197
      %v1199 = vpop.f32.mrb[0].mxu0
      %v1200 = vpop.f32.mrb[0].mxu0
      %v1201 = vadd.f32 0.0, %v1200
      %v1202 = vpop.f32.mrb[0].mxu0
      %1203 = vmatprep.mubr.bf16.mxu0 0
      %1204 = vmatmul.mubr.bf16.gmra.mrb[0].mxu0 %v795
      %v1205 = vpop.f32.mrb[0].mxu0
      %v1206 = vadd.f32 0.0, %v1205
      %v1207 = vpop.f32.mrb[0].mxu0
      %v1208 = vpop.f32.mrb[0].mxu0
      %v1209 = vadd.f32 0.0, %v1208
      %v1210 = vpop.f32.mrb[0].mxu0
      %1211 = vmatprep.mubr.bf16.mxu0 0
      %1212 = vmatmul.mubr.bf16.gmra.mrb[0].mxu0 %v798
      %v1213 = vpop.f32.mrb[0].mxu0
      %v1214 = vadd.f32 0.0, %v1213
      %v1215 = vpop.f32.mrb[0].mxu0
      %v1216 = vpop.f32.mrb[0].mxu0
      %v1217 = vadd.f32 0.0, %v1216
      %v1218 = vpop.f32.mrb[0].mxu0
      %1219 = vmatprep.mubr.bf16.mxu0 0
      %1220 = vmatmul.mubr.bf16.gmra.mrb[0].mxu0 %v801
      %v1221 = vpop.f32.mrb[0].mxu0
      %v1222 = vadd.f32 0.0, %v1221
      %v1223 = vpop.f32.mrb[0].mxu0
      %v1224 = vpop.f32.mrb[0].mxu0
      %v1225 = vadd.f32 0.0, %v1224
      %v1226 = vpop.f32.mrb[0].mxu0
      %1227 = vmatprep.mubr.bf16.mxu0 0
      %1228 = vmatmul.mubr.bf16.gmra.mrb[0].mxu0 %v804
      %v1229 = vpop.f32.mrb[0].mxu0
      %v1230 = vadd.f32 0.0, %v1229
      %v1231 = vpop.f32.mrb[0].mxu0
      %v1232 = vpop.f32.mrb[0].mxu0
      %v1233 = vadd.f32 0.0, %v1232
      %v1234 = vpop.f32.mrb[0].mxu0
      %1235 = vmatprep.mubr.bf16.mxu0 0
      %1236 = vmatmul.mubr.bf16.gmra.mrb[0].mxu0 %v807
      %v1237 = vpop.f32.mrb[0].mxu0
      %v1238 = vadd.f32 0.0, %v1237
      %v1239 = vpop.f32.mrb[0].mxu0
      %v1240 = vpop.f32.mrb[0].mxu0
      %v1241 = vadd.f32 0.0, %v1240
      %v1242 = vpop.f32.mrb[0].mxu0
      %1243 = vmatprep.mubr.bf16.mxu0 0
      %1244 = vmatmul.mubr.bf16.gmra.mrb[0].mxu0 %v810
      %v1245 = vpop.f32.mrb[0].mxu0
      %v1246 = vadd.f32 0.0, %v1245
      %v1247 = vpop.f32.mrb[0].mxu0
      %v1248 = vpop.f32.mrb[0].mxu0
      %v1249 = vadd.f32 0.0, %v1248
      %v1250 = vpop.f32.mrb[0].mxu0
      %1251 = vmatprep.mubr.bf16.mxu0 0
      %1252 = vmatmul.mubr.bf16.gmra.mrb[0].mxu0 %v813
      %v1253 = vpop.f32.mrb[0].mxu0
      %v1254 = vadd.f32 0.0, %v1253
      %v1255 = vpop.f32.mrb[0].mxu0
      %v1256 = vpop.f32.mrb[0].mxu0
      %v1257 = vadd.f32 0.0, %v1256
      %v1258 = vpop.f32.mrb[0].mxu0
      %1259 = vmatprep.mubr.bf16.mxu0 0
      %1260 = vmatmul.mubr.bf16.gmra.mrb[0].mxu0 %v816
      %v1261 = vpop.f32.mrb[0].mxu0
      %v1262 = vadd.f32 0.0, %v1261
      %v1263 = vpop.f32.mrb[0].mxu0
      %v1264 = vpop.f32.mrb[0].mxu0
      %v1265 = vadd.f32 0.0, %v1264
      %v1266 = vpop.f32.mrb[0].mxu0
      %1267 = vmatprep.mubr.bf16.mxu0 0
      %1268 = vmatmul.mubr.bf16.gmra.mrb[0].mxu0 %v819
      %v1269 = vpop.f32.mrb[0].mxu0
      %v1270 = vadd.f32 0.0, %v1269
      %v1271 = vpop.f32.mrb[0].mxu0
      %v1272 = vpop.f32.mrb[0].mxu0
      %v1273 = vadd.f32 0.0, %v1272
      %v1274 = vpop.f32.mrb[0].mxu0
      %1275 = vmatprep.mubr.bf16.mxu0 0
      %1276 = vmatmul.mubr.bf16.gmra.mrb[0].mxu0 %v822
      %v1277 = vpop.f32.mrb[0].mxu0
      %v1278 = vadd.f32 0.0, %v1277
      %v1279 = vpop.f32.mrb[0].mxu0
      %v1280 = vpop.f32.mrb[0].mxu0
      %v1281 = vadd.f32 0.0, %v1280
      %v1282 = vpop.f32.mrb[0].mxu0
      %1283 = vmatprep.mubr.bf16.mxu0 0
      %1284 = vmatmul.mubr.bf16.gmra.mrb[0].mxu0 %v825
      %v1285 = vpop.f32.mrb[0].mxu0
      %v1286 = vadd.f32 0.0, %v1285
      %v1287 = vpop.f32.mrb[0].mxu0
      %v1288 = vpop.f32.mrb[0].mxu0
      %v1289 = vadd.f32 0.0, %v1288
      %v1290 = vpop.f32.mrb[0].mxu0
      %1291 = vmatprep.mubr.bf16.mxu0 0
      %1292 = vmatmul.mubr.bf16.gmra.mrb[0].mxu0 %v828
      %v1293 = vpop.f32.mrb[0].mxu0
      %v1294 = vadd.f32 0.0, %v1293
      %v1295 = vpop.f32.mrb[0].mxu0
      %v1296 = vpop.f32.mrb[0].mxu0
      %v1297 = vadd.f32 0.0, %v1296
      %v1298 = vpop.f32.mrb[0].mxu0
      %1299 = vmatprep.mubr.bf16.mxu0 0
      %1300 = vmatmul.mubr.bf16.gmra.mrb[0].mxu0 %v831
      %v1301 = vpop.f32.mrb[0].mxu0
      %v1302 = vadd.f32 0.0, %v1301
      %v1303 = vpop.f32.mrb[0].mxu0
      %v1304 = vpop.f32.mrb[0].mxu0
      %v1305 = vadd.f32 0.0, %v1304
      %v1306 = vpop.f32.mrb[0].mxu0
      %1307 = vmatprep.mubr.bf16.mxu0 0
      %1308 = vmatmul.mubr.bf16.gmra.mrb[0].mxu0 %v834
      %v1309 = vpop.f32.mrb[0].mxu0
      %v1310 = vadd.f32 0.0, %v1309
      %v1311 = vpop.f32.mrb[0].mxu0
      %v1312 = vpop.f32.mrb[0].mxu0
      %v1313 = vadd.f32 0.0, %v1312
      %v1314 = vpop.f32.mrb[0].mxu0
      %1315 = vmatprep.mubr.bf16.mxu0 0
      %1316 = vmatmul.mubr.bf16.gmra.mrb[0].mxu0 %v837
      %v1317 = vpop.f32.mrb[0].mxu0
      %v1318 = vadd.f32 0.0, %v1317
      %v1319 = vpop.f32.mrb[0].mxu0
      %v1320 = vpop.f32.mrb[0].mxu0
      %v1321 = vadd.f32 0.0, %v1320
      %v1322 = vpop.f32.mrb[0].mxu0
      %1323 = vmatprep.mubr.bf16.mxu0 0
      %1324 = vmatmul.mubr.bf16.gmra.mrb[0].mxu0 %v840
      %v1325 = vpop.f32.mrb[0].mxu0
      %v1326 = vadd.f32 0.0, %v1325
      %v1327 = vpop.f32.mrb[0].mxu0
      %v1328 = vpop.f32.mrb[0].mxu0
      %v1329 = vadd.f32 0.0, %v1328
      %v1330 = vpop.f32.mrb[0].mxu0
      %1331 = vmatprep.mubr.bf16.mxu0 0
      %1332 = vmatmul.mubr.bf16.gmra.mrb[0].mxu0 %v843
      %v1333 = vpop.f32.mrb[0].mxu0
      %v1334 = vadd.f32 0.0, %v1333
      %v1335 = vpop.f32.mrb[0].mxu0
      %v1336 = vpop.f32.mrb[0].mxu0
      %v1337 = vadd.f32 0.0, %v1336
      %v1338 = vpop.f32.mrb[0].mxu0
      %1339 = vmatprep.mubr.bf16.mxu0 0
      %1340 = vmatmul.mubr.bf16.gmra.mrb[0].mxu0 %v846
      %v1341 = vpop.f32.mrb[0].mxu0
      %v1342 = vadd.f32 0.0, %v1341
      %v1343 = vpop.f32.mrb[0].mxu0
      %v1344 = vpop.f32.mrb[0].mxu0
      %v1345 = vadd.f32 0.0, %v1344
      %v1346 = vpop.f32.mrb[0].mxu0
      %1347 = vmatprep.mubr.bf16.mxu0 0
      %1348 = vmatmul.mubr.bf16.gmra.mrb[0].mxu0 %v849
      %v1349 = vpop.f32.mrb[0].mxu0
      %v1350 = vadd.f32 0.0, %v1349
      %v1351 = vpop.f32.mrb[0].mxu0
      %v1352 = vpop.f32.mrb[0].mxu0
      %v1353 = vadd.f32 0.0, %v1352
      %v1354 = vpop.f32.mrb[0].mxu0
      %1355 = vmatprep.mubr.bf16.mxu0 0
      %1356 = vmatmul.mubr.bf16.gmra.mrb[0].mxu0 %v852
      %v1357 = vpop.f32.mrb[0].mxu0
      %v1358 = vadd.f32 0.0, %v1357
      %v1359 = vpop.f32.mrb[0].mxu0
      %v1360 = vpop.f32.mrb[0].mxu0
      %v1361 = vadd.f32 0.0, %v1360
      %v1362 = vpop.f32.mrb[0].mxu0
      %1363 = vmatprep.mubr.bf16.mxu0 0
      %1364 = vmatmul.mubr.bf16.gmra.mrb[0].mxu0 %v855
      %v1365 = vpop.f32.mrb[0].mxu0
      %v1366 = vadd.f32 0.0, %v1365
      %v1367 = vpop.f32.mrb[0].mxu0
      %v1368 = vpop.f32.mrb[0].mxu0
      %v1369 = vadd.f32 0.0, %v1368
      %v1370 = vpop.f32.mrb[0].mxu0
      %1371 = vmatprep.mubr.bf16.mxu0 0
      %1372 = vmatmul.mubr.bf16.gmra.mrb[0].mxu0 %v858
      %v1373 = vpop.f32.mrb[0].mxu0
      %v1374 = vadd.f32 0.0, %v1373
      %v1375 = vpop.f32.mrb[0].mxu0
      %v1376 = vpop.f32.mrb[0].mxu0
      %v1377 = vadd.f32 0.0, %v1376
      %v1378 = vpop.f32.mrb[0].mxu0
      %1379 = vmatprep.mubr.bf16.mxu0 0
      %1380 = vmatmul.mubr.bf16.gmra.mrb[0].mxu0 %v861
      %v1381 = vpop.f32.mrb[0].mxu0
      %v1382 = vadd.f32 0.0, %v1381
      %v1383 = vpop.f32.mrb[0].mxu0
      %v1384 = vpop.f32.mrb[0].mxu0
      %v1385 = vadd.f32 0.0, %v1384
      %v1386 = vpop.f32.mrb[0].mxu0
      %1387 = vmatprep.mubr.bf16.mxu0 0
      %1388 = vmatmul.mubr.bf16.gmra.mrb[0].mxu0 %v864
      %v1389 = vpop.f32.mrb[0].mxu0
      %v1390 = vadd.f32 0.0, %v1389
      %v1391 = vpop.f32.mrb[0].mxu0
      %v1392 = vpop.f32.mrb[0].mxu0
      %v1393 = vadd.f32 0.0, %v1392
      %v1394 = vpop.f32.mrb[0].mxu0
      %1395 = vmatprep.mubr.bf16.mxu0 0
      %1396 = vmatmul.mubr.bf16.gmra.mrb[0].mxu0 %v867
      %v1397 = vpop.f32.mrb[0].mxu0
      %v1398 = vadd.f32 0.0, %v1397
      %v1399 = vpop.f32.mrb[0].mxu0
      %v1400 = vpop.f32.mrb[0].mxu0
      %v1401 = vadd.f32 0.0, %v1400
      %v1402 = vpop.f32.mrb[0].mxu0
      %1403 = vmatprep.mubr.bf16.mxu0 0
      %1404 = vmatmul.mubr.bf16.gmra.mrb[0].mxu0 %v870
      %v1405 = vpop.f32.mrb[0].mxu0
      %v1406 = vadd.f32 0.0, %v1405
      %v1407 = vpop.f32.mrb[0].mxu0
      %v1408 = vpop.f32.mrb[0].mxu0
      %v1409 = vadd.f32 0.0, %v1408
      %v1410 = vpop.f32.mrb[0].mxu0
      %1411 = vmatprep.mubr.bf16.mxu0 0
      %1412 = vmatmul.mubr.bf16.gmra.mrb[0].mxu0 %v873
      %v1413 = vpop.f32.mrb[0].mxu0
      %v1414 = vadd.f32 0.0, %v1413
      %v1415 = vpop.f32.mrb[0].mxu0
      %v1416 = vpop.f32.mrb[0].mxu0
      %v1417 = vadd.f32 0.0, %v1416
      %v1418 = vpop.f32.mrb[0].mxu0
      %1419 = vdwg.mxu0
      %v1420 = vld [vmem:[%s2] sm:$0x1]
      %v1422 = vlaneseq
      %v1423 = vshrl.u32 %v1422, 7
      %v1424 = vsub.s32 0, %v1423
      %v1425 = vrot.slane %v1420, %v1424
      %v1427 = vmul.f32 %v910, %v1425
      %v1428 = vmul.f32 %v913, %v1425
      %v1429 = vmul.f32 %v918, %v1425
      %v1430 = vmul.f32 %v921, %v1425
      %v1431 = vmul.f32 %v926, %v1425
      %v1432 = vmul.f32 %v929, %v1425
      %v1433 = vmul.f32 %v934, %v1425
      %v1434 = vmul.f32 %v937, %v1425
      %v1435 = vmul.f32 %v942, %v1425
      %v1436 = vmul.f32 %v945, %v1425
      %v1437 = vmul.f32 %v950, %v1425
      %v1438 = vmul.f32 %v953, %v1425
      %v1439 = vmul.f32 %v958, %v1425
      %v1440 = vmul.f32 %v961, %v1425
      %v1441 = vmul.f32 %v966, %v1425
      %v1442 = vmul.f32 %v969, %v1425
      %v1443 = vmul.f32 %v974, %v1425
      %v1444 = vmul.f32 %v977, %v1425
      %v1445 = vmul.f32 %v982, %v1425
      %v1446 = vmul.f32 %v985, %v1425
      %v1447 = vmul.f32 %v990, %v1425
      %v1448 = vmul.f32 %v993, %v1425
      %v1449 = vmul.f32 %v998, %v1425
      %v1450 = vmul.f32 %v1001, %v1425
      %v1451 = vmul.f32 %v1006, %v1425
      %v1452 = vmul.f32 %v1009, %v1425
      %v1453 = vmul.f32 %v1014, %v1425
      %v1454 = vmul.f32 %v1017, %v1425
      %v1455 = vmul.f32 %v1022, %v1425
      %v1456 = vmul.f32 %v1025, %v1425
      %v1457 = vmul.f32 %v1030, %v1425
      %v1458 = vmul.f32 %v1033, %v1425
      %v1459 = vmul.f32 %v1038, %v1425
      %v1460 = vmul.f32 %v1041, %v1425
      %v1461 = vmul.f32 %v1046, %v1425
      %v1462 = vmul.f32 %v1049, %v1425
      %v1463 = vmul.f32 %v1054, %v1425
      %v1464 = vmul.f32 %v1057, %v1425
      %v1465 = vmul.f32 %v1062, %v1425
      %v1466 = vmul.f32 %v1065, %v1425
      %v1467 = vmul.f32 %v1070, %v1425
      %v1468 = vmul.f32 %v1073, %v1425
      %v1469 = vmul.f32 %v1078, %v1425
      %v1470 = vmul.f32 %v1081, %v1425
      %v1471 = vmul.f32 %v1086, %v1425
      %v1472 = vmul.f32 %v1089, %v1425
      %v1473 = vmul.f32 %v1094, %v1425
      %v1474 = vmul.f32 %v1097, %v1425
      %v1475 = vmul.f32 %v1102, %v1425
      %v1476 = vmul.f32 %v1105, %v1425
      %v1477 = vmul.f32 %v1110, %v1425
      %v1478 = vmul.f32 %v1113, %v1425
      %v1479 = vmul.f32 %v1118, %v1425
      %v1480 = vmul.f32 %v1121, %v1425
      %v1481 = vmul.f32 %v1126, %v1425
      %v1482 = vmul.f32 %v1129, %v1425
      %v1483 = vmul.f32 %v1134, %v1425
      %v1484 = vmul.f32 %v1137, %v1425
      %v1485 = vmul.f32 %v1142, %v1425
      %v1486 = vmul.f32 %v1145, %v1425
      %v1487 = vmul.f32 %v1150, %v1425
      %v1488 = vmul.f32 %v1153, %v1425
      %v1489 = vmul.f32 %v1158, %v1425
      %v1490 = vmul.f32 %v1161, %v1425
      %v1491 = vmul.f32 %v1166, %v1425
      %v1492 = vmul.f32 %v1169, %v1425
      %v1493 = vmul.f32 %v1174, %v1425
      %v1494 = vmul.f32 %v1177, %v1425
      %v1495 = vmul.f32 %v1182, %v1425
      %v1496 = vmul.f32 %v1185, %v1425
      %v1497 = vmul.f32 %v1190, %v1425
      %v1498 = vmul.f32 %v1193, %v1425
      %v1499 = vmul.f32 %v1198, %v1425
      %v1500 = vmul.f32 %v1201, %v1425
      %v1501 = vmul.f32 %v1206, %v1425
      %v1502 = vmul.f32 %v1209, %v1425
      %v1503 = vmul.f32 %v1214, %v1425
      %v1504 = vmul.f32 %v1217, %v1425
      %v1505 = vmul.f32 %v1222, %v1425
      %v1506 = vmul.f32 %v1225, %v1425
      %v1507 = vmul.f32 %v1230, %v1425
      %v1508 = vmul.f32 %v1233, %v1425
      %v1509 = vmul.f32 %v1238, %v1425
      %v1510 = vmul.f32 %v1241, %v1425
      %v1511 = vmul.f32 %v1246, %v1425
      %v1512 = vmul.f32 %v1249, %v1425
      %v1513 = vmul.f32 %v1254, %v1425
      %v1514 = vmul.f32 %v1257, %v1425
      %v1515 = vmul.f32 %v1262, %v1425
      %v1516 = vmul.f32 %v1265, %v1425
      %v1517 = vmul.f32 %v1270, %v1425
      %v1518 = vmul.f32 %v1273, %v1425
      %v1519 = vmul.f32 %v1278, %v1425
      %v1520 = vmul.f32 %v1281, %v1425
      %v1521 = vmul.f32 %v1286, %v1425
      %v1522 = vmul.f32 %v1289, %v1425
      %v1523 = vmul.f32 %v1294, %v1425
      %v1524 = vmul.f32 %v1297, %v1425
      %v1525 = vmul.f32 %v1302, %v1425
      %v1526 = vmul.f32 %v1305, %v1425
      %v1527 = vmul.f32 %v1310, %v1425
      %v1528 = vmul.f32 %v1313, %v1425
      %v1529 = vmul.f32 %v1318, %v1425
      %v1530 = vmul.f32 %v1321, %v1425
      %v1531 = vmul.f32 %v1326, %v1425
      %v1532 = vmul.f32 %v1329, %v1425
      %v1533 = vmul.f32 %v1334, %v1425
      %v1534 = vmul.f32 %v1337, %v1425
      %v1535 = vmul.f32 %v1342, %v1425
      %v1536 = vmul.f32 %v1345, %v1425
      %v1537 = vmul.f32 %v1350, %v1425
      %v1538 = vmul.f32 %v1353, %v1425
      %v1539 = vmul.f32 %v1358, %v1425
      %v1540 = vmul.f32 %v1361, %v1425
      %v1541 = vmul.f32 %v1366, %v1425
      %v1542 = vmul.f32 %v1369, %v1425
      %v1543 = vmul.f32 %v1374, %v1425
      %v1544 = vmul.f32 %v1377, %v1425
      %v1545 = vmul.f32 %v1382, %v1425
      %v1546 = vmul.f32 %v1385, %v1425
      %v1547 = vmul.f32 %v1390, %v1425
      %v1548 = vmul.f32 %v1393, %v1425
      %v1549 = vmul.f32 %v1398, %v1425
      %v1550 = vmul.f32 %v1401, %v1425
      %v1551 = vmul.f32 %v1406, %v1425
      %v1552 = vmul.f32 %v1409, %v1425
      %v1553 = vmul.f32 %v1414, %v1425
      %v1554 = vmul.f32 %v1417, %v1425
      %v1555 = vld [vmem:[%s3] sm:$0x1]
      %v1557 = vlaneseq
      %v1558 = vshrl.u32 %v1557, 7
      %v1559 = vsub.s32 0, %v1558
      %v1560 = vrot.slane %v1555, %v1559
      %v1562 = vadd.f32 %v1427, %v1560
      %v1563 = vadd.f32 %v1428, %v1560
      %v1564 = vadd.f32 %v1429, %v1560
      %v1565 = vadd.f32 %v1430, %v1560
      %v1566 = vadd.f32 %v1431, %v1560
      %v1567 = vadd.f32 %v1432, %v1560
      %v1568 = vadd.f32 %v1433, %v1560
      %v1569 = vadd.f32 %v1434, %v1560
      %v1570 = vadd.f32 %v1435, %v1560
      %v1571 = vadd.f32 %v1436, %v1560
      %v1572 = vadd.f32 %v1437, %v1560
      %v1573 = vadd.f32 %v1438, %v1560
      %v1574 = vadd.f32 %v1439, %v1560
      %v1575 = vadd.f32 %v1440, %v1560
      %v1576 = vadd.f32 %v1441, %v1560
      %v1577 = vadd.f32 %v1442, %v1560
      %v1578 = vadd.f32 %v1443, %v1560
      %v1579 = vadd.f32 %v1444, %v1560
      %v1580 = vadd.f32 %v1445, %v1560
      %v1581 = vadd.f32 %v1446, %v1560
      %v1582 = vadd.f32 %v1447, %v1560
      %v1583 = vadd.f32 %v1448, %v1560
      %v1584 = vadd.f32 %v1449, %v1560
      %v1585 = vadd.f32 %v1450, %v1560
      %v1586 = vadd.f32 %v1451, %v1560
      %v1587 = vadd.f32 %v1452, %v1560
      %v1588 = vadd.f32 %v1453, %v1560
      %v1589 = vadd.f32 %v1454, %v1560
      %v1590 = vadd.f32 %v1455, %v1560
      %v1591 = vadd.f32 %v1456, %v1560
      %v1592 = vadd.f32 %v1457, %v1560
      %v1593 = vadd.f32 %v1458, %v1560
      %v1594 = vadd.f32 %v1459, %v1560
      %v1595 = vadd.f32 %v1460, %v1560
      %v1596 = vadd.f32 %v1461, %v1560
      %v1597 = vadd.f32 %v1462, %v1560
      %v1598 = vadd.f32 %v1463, %v1560
      %v1599 = vadd.f32 %v1464, %v1560
      %v1600 = vadd.f32 %v1465, %v1560
      %v1601 = vadd.f32 %v1466, %v1560
      %v1602 = vadd.f32 %v1467, %v1560
      %v1603 = vadd.f32 %v1468, %v1560
      %v1604 = vadd.f32 %v1469, %v1560
      %v1605 = vadd.f32 %v1470, %v1560
      %v1606 = vadd.f32 %v1471, %v1560
      %v1607 = vadd.f32 %v1472, %v1560
      %v1608 = vadd.f32 %v1473, %v1560
      %v1609 = vadd.f32 %v1474, %v1560
      %v1610 = vadd.f32 %v1475, %v1560
      %v1611 = vadd.f32 %v1476, %v1560
      %v1612 = vadd.f32 %v1477, %v1560
      %v1613 = vadd.f32 %v1478, %v1560
      %v1614 = vadd.f32 %v1479, %v1560
      %v1615 = vadd.f32 %v1480, %v1560
      %v1616 = vadd.f32 %v1481, %v1560
      %v1617 = vadd.f32 %v1482, %v1560
      %v1618 = vadd.f32 %v1483, %v1560
      %v1619 = vadd.f32 %v1484, %v1560
      %v1620 = vadd.f32 %v1485, %v1560
      %v1621 = vadd.f32 %v1486, %v1560
      %v1622 = vadd.f32 %v1487, %v1560
      %v1623 = vadd.f32 %v1488, %v1560
      %v1624 = vadd.f32 %v1489, %v1560
      %v1625 = vadd.f32 %v1490, %v1560
      %v1626 = vadd.f32 %v1491, %v1560
      %v1627 = vadd.f32 %v1492, %v1560
      %v1628 = vadd.f32 %v1493, %v1560
      %v1629 = vadd.f32 %v1494, %v1560
      %v1630 = vadd.f32 %v1495, %v1560
      %v1631 = vadd.f32 %v1496, %v1560
      %v1632 = vadd.f32 %v1497, %v1560
      %v1633 = vadd.f32 %v1498, %v1560
      %v1634 = vadd.f32 %v1499, %v1560
      %v1635 = vadd.f32 %v1500, %v1560
      %v1636 = vadd.f32 %v1501, %v1560
      %v1637 = vadd.f32 %v1502, %v1560
      %v1638 = vadd.f32 %v1503, %v1560
      %v1639 = vadd.f32 %v1504, %v1560
      %v1640 = vadd.f32 %v1505, %v1560
      %v1641 = vadd.f32 %v1506, %v1560
      %v1642 = vadd.f32 %v1507, %v1560
      %v1643 = vadd.f32 %v1508, %v1560
      %v1644 = vadd.f32 %v1509, %v1560
      %v1645 = vadd.f32 %v1510, %v1560
      %v1646 = vadd.f32 %v1511, %v1560
      %v1647 = vadd.f32 %v1512, %v1560
      %v1648 = vadd.f32 %v1513, %v1560
      %v1649 = vadd.f32 %v1514, %v1560
      %v1650 = vadd.f32 %v1515, %v1560
      %v1651 = vadd.f32 %v1516, %v1560
      %v1652 = vadd.f32 %v1517, %v1560
      %v1653 = vadd.f32 %v1518, %v1560
      %v1654 = vadd.f32 %v1519, %v1560
      %v1655 = vadd.f32 %v1520, %v1560
      %v1656 = vadd.f32 %v1521, %v1560
      %v1657 = vadd.f32 %v1522, %v1560
      %v1658 = vadd.f32 %v1523, %v1560
      %v1659 = vadd.f32 %v1524, %v1560
      %v1660 = vadd.f32 %v1525, %v1560
      %v1661 = vadd.f32 %v1526, %v1560
      %v1662 = vadd.f32 %v1527, %v1560
      %v1663 = vadd.f32 %v1528, %v1560
      %v1664 = vadd.f32 %v1529, %v1560
      %v1665 = vadd.f32 %v1530, %v1560
      %v1666 = vadd.f32 %v1531, %v1560
      %v1667 = vadd.f32 %v1532, %v1560
      %v1668 = vadd.f32 %v1533, %v1560
      %v1669 = vadd.f32 %v1534, %v1560
      %v1670 = vadd.f32 %v1535, %v1560
      %v1671 = vadd.f32 %v1536, %v1560
      %v1672 = vadd.f32 %v1537, %v1560
      %v1673 = vadd.f32 %v1538, %v1560
      %v1674 = vadd.f32 %v1539, %v1560
      %v1675 = vadd.f32 %v1540, %v1560
      %v1676 = vadd.f32 %v1541, %v1560
      %v1677 = vadd.f32 %v1542, %v1560
      %v1678 = vadd.f32 %v1543, %v1560
      %v1679 = vadd.f32 %v1544, %v1560
      %v1680 = vadd.f32 %v1545, %v1560
      %v1681 = vadd.f32 %v1546, %v1560
      %v1682 = vadd.f32 %v1547, %v1560
      %v1683 = vadd.f32 %v1548, %v1560
      %v1684 = vadd.f32 %v1549, %v1560
      %v1685 = vadd.f32 %v1550, %v1560
      %v1686 = vadd.f32 %v1551, %v1560
      %v1687 = vadd.f32 %v1552, %v1560
      %v1688 = vadd.f32 %v1553, %v1560
      %v1689 = vadd.f32 %v1554, %v1560
      %v1690 = vmax.f32 %v1562, 0.0
      %v1691 = vmax.f32 %v1563, 0.0
      %v1692 = vmax.f32 %v1564, 0.0
      %v1693 = vmax.f32 %v1565, 0.0
      %v1694 = vmax.f32 %v1566, 0.0
      %v1695 = vmax.f32 %v1567, 0.0
      %v1696 = vmax.f32 %v1568, 0.0
      %v1697 = vmax.f32 %v1569, 0.0
      %v1698 = vmax.f32 %v1570, 0.0
      %v1699 = vmax.f32 %v1571, 0.0
      %v1700 = vmax.f32 %v1572, 0.0
      %v1701 = vmax.f32 %v1573, 0.0
      %v1702 = vmax.f32 %v1574, 0.0
      %v1703 = vmax.f32 %v1575, 0.0
      %v1704 = vmax.f32 %v1576, 0.0
      %v1705 = vmax.f32 %v1577, 0.0
      %v1706 = vmax.f32 %v1578, 0.0
      %v1707 = vmax.f32 %v1579, 0.0
      %v1708 = vmax.f32 %v1580, 0.0
      %v1709 = vmax.f32 %v1581, 0.0
      %v1710 = vmax.f32 %v1582, 0.0
      %v1711 = vmax.f32 %v1583, 0.0
      %v1712 = vmax.f32 %v1584, 0.0
      %v1713 = vmax.f32 %v1585, 0.0
      %v1714 = vmax.f32 %v1586, 0.0
      %v1715 = vmax.f32 %v1587, 0.0
      %v1716 = vmax.f32 %v1588, 0.0
      %v1717 = vmax.f32 %v1589, 0.0
      %v1718 = vmax.f32 %v1590, 0.0
      %v1719 = vmax.f32 %v1591, 0.0
      %v1720 = vmax.f32 %v1592, 0.0
      %v1721 = vmax.f32 %v1593, 0.0
      %v1722 = vmax.f32 %v1594, 0.0
      %v1723 = vmax.f32 %v1595, 0.0
      %v1724 = vmax.f32 %v1596, 0.0
      %v1725 = vmax.f32 %v1597, 0.0
      %v1726 = vmax.f32 %v1598, 0.0
      %v1727 = vmax.f32 %v1599, 0.0
      %v1728 = vmax.f32 %v1600, 0.0
      %v1729 = vmax.f32 %v1601, 0.0
      %v1730 = vmax.f32 %v1602, 0.0
      %v1731 = vmax.f32 %v1603, 0.0
      %v1732 = vmax.f32 %v1604, 0.0
      %v1733 = vmax.f32 %v1605, 0.0
      %v1734 = vmax.f32 %v1606, 0.0
      %v1735 = vmax.f32 %v1607, 0.0
      %v1736 = vmax.f32 %v1608, 0.0
      %v1737 = vmax.f32 %v1609, 0.0
      %v1738 = vmax.f32 %v1610, 0.0
      %v1739 = vmax.f32 %v1611, 0.0
      %v1740 = vmax.f32 %v1612, 0.0
      %v1741 = vmax.f32 %v1613, 0.0
      %v1742 = vmax.f32 %v1614, 0.0
      %v1743 = vmax.f32 %v1615, 0.0
      %v1744 = vmax.f32 %v1616, 0.0
      %v1745 = vmax.f32 %v1617, 0.0
      %v1746 = vmax.f32 %v1618, 0.0
      %v1747 = vmax.f32 %v1619, 0.0
      %v1748 = vmax.f32 %v1620, 0.0
      %v1749 = vmax.f32 %v1621, 0.0
      %v1750 = vmax.f32 %v1622, 0.0
      %v1751 = vmax.f32 %v1623, 0.0
      %v1752 = vmax.f32 %v1624, 0.0
      %v1753 = vmax.f32 %v1625, 0.0
      %v1754 = vmax.f32 %v1626, 0.0
      %v1755 = vmax.f32 %v1627, 0.0
      %v1756 = vmax.f32 %v1628, 0.0
      %v1757 = vmax.f32 %v1629, 0.0
      %v1758 = vmax.f32 %v1630, 0.0
      %v1759 = vmax.f32 %v1631, 0.0
      %v1760 = vmax.f32 %v1632, 0.0
      %v1761 = vmax.f32 %v1633, 0.0
      %v1762 = vmax.f32 %v1634, 0.0
      %v1763 = vmax.f32 %v1635, 0.0
      %v1764 = vmax.f32 %v1636, 0.0
      %v1765 = vmax.f32 %v1637, 0.0
      %v1766 = vmax.f32 %v1638, 0.0
      %v1767 = vmax.f32 %v1639, 0.0
      %v1768 = vmax.f32 %v1640, 0.0
      %v1769 = vmax.f32 %v1641, 0.0
      %v1770 = vmax.f32 %v1642, 0.0
      %v1771 = vmax.f32 %v1643, 0.0
      %v1772 = vmax.f32 %v1644, 0.0
      %v1773 = vmax.f32 %v1645, 0.0
      %v1774 = vmax.f32 %v1646, 0.0
      %v1775 = vmax.f32 %v1647, 0.0
      %v1776 = vmax.f32 %v1648, 0.0
      %v1777 = vmax.f32 %v1649, 0.0
      %v1778 = vmax.f32 %v1650, 0.0
      %v1779 = vmax.f32 %v1651, 0.0
      %v1780 = vmax.f32 %v1652, 0.0
      %v1781 = vmax.f32 %v1653, 0.0
      %v1782 = vmax.f32 %v1654, 0.0
      %v1783 = vmax.f32 %v1655, 0.0
      %v1784 = vmax.f32 %v1656, 0.0
      %v1785 = vmax.f32 %v1657, 0.0
      %v1786 = vmax.f32 %v1658, 0.0
      %v1787 = vmax.f32 %v1659, 0.0
      %v1788 = vmax.f32 %v1660, 0.0
      %v1789 = vmax.f32 %v1661, 0.0
      %v1790 = vmax.f32 %v1662, 0.0
      %v1791 = vmax.f32 %v1663, 0.0
      %v1792 = vmax.f32 %v1664, 0.0
      %v1793 = vmax.f32 %v1665, 0.0
      %v1794 = vmax.f32 %v1666, 0.0
      %v1795 = vmax.f32 %v1667, 0.0
      %v1796 = vmax.f32 %v1668, 0.0
      %v1797 = vmax.f32 %v1669, 0.0
      %v1798 = vmax.f32 %v1670, 0.0
      %v1799 = vmax.f32 %v1671, 0.0
      %v1800 = vmax.f32 %v1672, 0.0
      %v1801 = vmax.f32 %v1673, 0.0
      %v1802 = vmax.f32 %v1674, 0.0
      %v1803 = vmax.f32 %v1675, 0.0
      %v1804 = vmax.f32 %v1676, 0.0
      %v1805 = vmax.f32 %v1677, 0.0
      %v1806 = vmax.f32 %v1678, 0.0
      %v1807 = vmax.f32 %v1679, 0.0
      %v1808 = vmax.f32 %v1680, 0.0
      %v1809 = vmax.f32 %v1681, 0.0
      %v1810 = vmax.f32 %v1682, 0.0
      %v1811 = vmax.f32 %v1683, 0.0
      %v1812 = vmax.f32 %v1684, 0.0
      %v1813 = vmax.f32 %v1685, 0.0
      %v1814 = vmax.f32 %v1686, 0.0
      %v1815 = vmax.f32 %v1687, 0.0
      %v1816 = vmax.f32 %v1688, 0.0
      %v1817 = vmax.f32 %v1689, 0.0
      %v1818 = vpack.c.bf16 %v1691, %v1690
      %v1819 = vpack.c.bf16 %v1693, %v1692
      %v1820 = vpack.c.bf16 %v1695, %v1694
      %v1821 = vpack.c.bf16 %v1697, %v1696
      %v1822 = vpack.c.bf16 %v1699, %v1698
      %v1823 = vpack.c.bf16 %v1701, %v1700
      %v1824 = vpack.c.bf16 %v1703, %v1702
      %v1825 = vpack.c.bf16 %v1705, %v1704
      %v1826 = vpack.c.bf16 %v1707, %v1706
      %v1827 = vpack.c.bf16 %v1709, %v1708
      %v1828 = vpack.c.bf16 %v1711, %v1710
      %v1829 = vpack.c.bf16 %v1713, %v1712
      %v1830 = vpack.c.bf16 %v1715, %v1714
      %v1831 = vpack.c.bf16 %v1717, %v1716
      %v1832 = vpack.c.bf16 %v1719, %v1718
      %v1833 = vpack.c.bf16 %v1721, %v1720
      %v1834 = vpack.c.bf16 %v1723, %v1722
      %v1835 = vpack.c.bf16 %v1725, %v1724
      %v1836 = vpack.c.bf16 %v1727, %v1726
      %v1837 = vpack.c.bf16 %v1729, %v1728
      %v1838 = vpack.c.bf16 %v1731, %v1730
      %v1839 = vpack.c.bf16 %v1733, %v1732
      %v1840 = vpack.c.bf16 %v1735, %v1734
      %v1841 = vpack.c.bf16 %v1737, %v1736
      %v1842 = vpack.c.bf16 %v1739, %v1738
      %v1843 = vpack.c.bf16 %v1741, %v1740
      %v1844 = vpack.c.bf16 %v1743, %v1742
      %v1845 = vpack.c.bf16 %v1745, %v1744
      %v1846 = vpack.c.bf16 %v1747, %v1746
      %v1847 = vpack.c.bf16 %v1749, %v1748
      %v1848 = vpack.c.bf16 %v1751, %v1750
      %v1849 = vpack.c.bf16 %v1753, %v1752
      %v1850 = vpack.c.bf16 %v1755, %v1754
      %v1851 = vpack.c.bf16 %v1757, %v1756
      %v1852 = vpack.c.bf16 %v1759, %v1758
      %v1853 = vpack.c.bf16 %v1761, %v1760
      %v1854 = vpack.c.bf16 %v1763, %v1762
      %v1855 = vpack.c.bf16 %v1765, %v1764
      %v1856 = vpack.c.bf16 %v1767, %v1766
      %v1857 = vpack.c.bf16 %v1769, %v1768
      %v1858 = vpack.c.bf16 %v1771, %v1770
      %v1859 = vpack.c.bf16 %v1773, %v1772
      %v1860 = vpack.c.bf16 %v1775, %v1774
      %v1861 = vpack.c.bf16 %v1777, %v1776
      %v1862 = vpack.c.bf16 %v1779, %v1778
      %v1863 = vpack.c.bf16 %v1781, %v1780
      %v1864 = vpack.c.bf16 %v1783, %v1782
      %v1865 = vpack.c.bf16 %v1785, %v1784
      %v1866 = vpack.c.bf16 %v1787, %v1786
      %v1867 = vpack.c.bf16 %v1789, %v1788
      %v1868 = vpack.c.bf16 %v1791, %v1790
      %v1869 = vpack.c.bf16 %v1793, %v1792
      %v1870 = vpack.c.bf16 %v1795, %v1794
      %v1871 = vpack.c.bf16 %v1797, %v1796
      %v1872 = vpack.c.bf16 %v1799, %v1798
      %v1873 = vpack.c.bf16 %v1801, %v1800
      %v1874 = vpack.c.bf16 %v1803, %v1802
      %v1875 = vpack.c.bf16 %v1805, %v1804
      %v1876 = vpack.c.bf16 %v1807, %v1806
      %v1877 = vpack.c.bf16 %v1809, %v1808
      %v1878 = vpack.c.bf16 %v1811, %v1810
      %v1879 = vpack.c.bf16 %v1813, %v1812
      %v1880 = vpack.c.bf16 %v1815, %v1814
      %v1881 = vpack.c.bf16 %v1817, %v1816
      %v1946 = vunpack.c.l.b16 %v1818
      %v1947 = vunpack.c.h.b16 %v1818
      %v1948 = vunpack.c.l.b16 %v1819
      %v1949 = vunpack.c.h.b16 %v1819
      %v1950 = vunpack.c.l.b16 %v1820
      %v1951 = vunpack.c.h.b16 %v1820
      %v1952 = vunpack.c.l.b16 %v1821
      %v1953 = vunpack.c.h.b16 %v1821
      %v1954 = vunpack.c.l.b16 %v1822
      %v1955 = vunpack.c.h.b16 %v1822
      %v1956 = vunpack.c.l.b16 %v1823
      %v1957 = vunpack.c.h.b16 %v1823
      %v1958 = vunpack.c.l.b16 %v1824
      %v1959 = vunpack.c.h.b16 %v1824
      %v1960 = vunpack.c.l.b16 %v1825
      %v1961 = vunpack.c.h.b16 %v1825
      %v1962 = vunpack.c.l.b16 %v1826
      %v1963 = vunpack.c.h.b16 %v1826
      %v1964 = vunpack.c.l.b16 %v1827
      %v1965 = vunpack.c.h.b16 %v1827
      %v1966 = vunpack.c.l.b16 %v1828
      %v1967 = vunpack.c.h.b16 %v1828
      %v1968 = vunpack.c.l.b16 %v1829
      %v1969 = vunpack.c.h.b16 %v1829
      %v1970 = vunpack.c.l.b16 %v1830
      %v1971 = vunpack.c.h.b16 %v1830
      %v1972 = vunpack.c.l.b16 %v1831
      %v1973 = vunpack.c.h.b16 %v1831
      %v1974 = vunpack.c.l.b16 %v1832
      %v1975 = vunpack.c.h.b16 %v1832
      %v1976 = vunpack.c.l.b16 %v1833
      %v1977 = vunpack.c.h.b16 %v1833
      %v1978 = vunpack.c.l.b16 %v1834
      %v1979 = vunpack.c.h.b16 %v1834
      %v1980 = vunpack.c.l.b16 %v1835
      %v1981 = vunpack.c.h.b16 %v1835
      %v1982 = vunpack.c.l.b16 %v1836
      %v1983 = vunpack.c.h.b16 %v1836
      %v1984 = vunpack.c.l.b16 %v1837
      %v1985 = vunpack.c.h.b16 %v1837
      %v1986 = vunpack.c.l.b16 %v1838
      %v1987 = vunpack.c.h.b16 %v1838
      %v1988 = vunpack.c.l.b16 %v1839
      %v1989 = vunpack.c.h.b16 %v1839
      %v1990 = vunpack.c.l.b16 %v1840
      %v1991 = vunpack.c.h.b16 %v1840
      %v1992 = vunpack.c.l.b16 %v1841
      %v1993 = vunpack.c.h.b16 %v1841
      %v1994 = vunpack.c.l.b16 %v1842
      %v1995 = vunpack.c.h.b16 %v1842
      %v1996 = vunpack.c.l.b16 %v1843
      %v1997 = vunpack.c.h.b16 %v1843
      %v1998 = vunpack.c.l.b16 %v1844
      %v1999 = vunpack.c.h.b16 %v1844
      %v2000 = vunpack.c.l.b16 %v1845
      %v2001 = vunpack.c.h.b16 %v1845
      %v2002 = vunpack.c.l.b16 %v1846
      %v2003 = vunpack.c.h.b16 %v1846
      %v2004 = vunpack.c.l.b16 %v1847
      %v2005 = vunpack.c.h.b16 %v1847
      %v2006 = vunpack.c.l.b16 %v1848
      %v2007 = vunpack.c.h.b16 %v1848
      %v2008 = vunpack.c.l.b16 %v1849
      %v2009 = vunpack.c.h.b16 %v1849
      %v2010 = vunpack.c.l.b16 %v1850
      %v2011 = vunpack.c.h.b16 %v1850
      %v2012 = vunpack.c.l.b16 %v1851
      %v2013 = vunpack.c.h.b16 %v1851
      %v2014 = vunpack.c.l.b16 %v1852
      %v2015 = vunpack.c.h.b16 %v1852
      %v2016 = vunpack.c.l.b16 %v1853
      %v2017 = vunpack.c.h.b16 %v1853
      %v2018 = vunpack.c.l.b16 %v1854
      %v2019 = vunpack.c.h.b16 %v1854
      %v2020 = vunpack.c.l.b16 %v1855
      %v2021 = vunpack.c.h.b16 %v1855
      %v2022 = vunpack.c.l.b16 %v1856
      %v2023 = vunpack.c.h.b16 %v1856
      %v2024 = vunpack.c.l.b16 %v1857
      %v2025 = vunpack.c.h.b16 %v1857
      %v2026 = vunpack.c.l.b16 %v1858
      %v2027 = vunpack.c.h.b16 %v1858
      %v2028 = vunpack.c.l.b16 %v1859
      %v2029 = vunpack.c.h.b16 %v1859
      %v2030 = vunpack.c.l.b16 %v1860
      %v2031 = vunpack.c.h.b16 %v1860
      %v2032 = vunpack.c.l.b16 %v1861
      %v2033 = vunpack.c.h.b16 %v1861
      %v2034 = vunpack.c.l.b16 %v1862
      %v2035 = vunpack.c.h.b16 %v1862
      %v2036 = vunpack.c.l.b16 %v1863
      %v2037 = vunpack.c.h.b16 %v1863
      %v2038 = vunpack.c.l.b16 %v1864
      %v2039 = vunpack.c.h.b16 %v1864
      %v2040 = vunpack.c.l.b16 %v1865
      %v2041 = vunpack.c.h.b16 %v1865
      %v2042 = vunpack.c.l.b16 %v1866
      %v2043 = vunpack.c.h.b16 %v1866
      %v2044 = vunpack.c.l.b16 %v1867
      %v2045 = vunpack.c.h.b16 %v1867
      %v2046 = vunpack.c.l.b16 %v1868
      %v2047 = vunpack.c.h.b16 %v1868
      %v2048 = vunpack.c.l.b16 %v1869
      %v2049 = vunpack.c.h.b16 %v1869
      %v2050 = vunpack.c.l.b16 %v1870
      %v2051 = vunpack.c.h.b16 %v1870
      %v2052 = vunpack.c.l.b16 %v1871
      %v2053 = vunpack.c.h.b16 %v1871
      %v2054 = vunpack.c.l.b16 %v1872
      %v2055 = vunpack.c.h.b16 %v1872
      %v2056 = vunpack.c.l.b16 %v1873
      %v2057 = vunpack.c.h.b16 %v1873
      %v2058 = vunpack.c.l.b16 %v1874
      %v2059 = vunpack.c.h.b16 %v1874
      %v2060 = vunpack.c.l.b16 %v1875
      %v2061 = vunpack.c.h.b16 %v1875
      %v2062 = vunpack.c.l.b16 %v1876
      %v2063 = vunpack.c.h.b16 %v1876
      %v2064 = vunpack.c.l.b16 %v1877
      %v2065 = vunpack.c.h.b16 %v1877
      %v2066 = vunpack.c.l.b16 %v1878
      %v2067 = vunpack.c.h.b16 %v1878
      %v2068 = vunpack.c.l.b16 %v1879
      %v2069 = vunpack.c.h.b16 %v1879
      %v2070 = vunpack.c.l.b16 %v1880
      %v2071 = vunpack.c.h.b16 %v1880
      %v2072 = vunpack.c.l.b16 %v1881
      %v2073 = vunpack.c.h.b16 %v1881
      %v2074 = vpack.c.b16 %v1946, %v1946
      %v2075 = vpack.c.b16 %v1947, %v1947
      %v2076 = vpack.c.b16 %v1948, %v1948
      %v2077 = vpack.c.b16 %v1949, %v1949
      %v2078 = vpack.c.b16 %v1950, %v1950
      %v2079 = vpack.c.b16 %v1951, %v1951
      %v2080 = vpack.c.b16 %v1952, %v1952
      %v2081 = vpack.c.b16 %v1953, %v1953
      %v2082 = vpack.c.b16 %v1954, %v1954
      %v2083 = vpack.c.b16 %v1955, %v1955
      %v2084 = vpack.c.b16 %v1956, %v1956
      %v2085 = vpack.c.b16 %v1957, %v1957
      %v2086 = vpack.c.b16 %v1958, %v1958
      %v2087 = vpack.c.b16 %v1959, %v1959
      %v2088 = vpack.c.b16 %v1960, %v1960
      %v2089 = vpack.c.b16 %v1961, %v1961
      %v2090 = vpack.c.b16 %v1962, %v1962
      %v2091 = vpack.c.b16 %v1963, %v1963
      %v2092 = vpack.c.b16 %v1964, %v1964
      %v2093 = vpack.c.b16 %v1965, %v1965
      %v2094 = vpack.c.b16 %v1966, %v1966
      %v2095 = vpack.c.b16 %v1967, %v1967
      %v2096 = vpack.c.b16 %v1968, %v1968
      %v2097 = vpack.c.b16 %v1969, %v1969
      %v2098 = vpack.c.b16 %v1970, %v1970
      %v2099 = vpack.c.b16 %v1971, %v1971
      %v2100 = vpack.c.b16 %v1972, %v1972
      %v2101 = vpack.c.b16 %v1973, %v1973
      %v2102 = vpack.c.b16 %v1974, %v1974
      %v2103 = vpack.c.b16 %v1975, %v1975
      %v2104 = vpack.c.b16 %v1976, %v1976
      %v2105 = vpack.c.b16 %v1977, %v1977
      %v2106 = vpack.c.b16 %v1978, %v1978
      %v2107 = vpack.c.b16 %v1979, %v1979
      %v2108 = vpack.c.b16 %v1980, %v1980
      %v2109 = vpack.c.b16 %v1981, %v1981
      %v2110 = vpack.c.b16 %v1982, %v1982
      %v2111 = vpack.c.b16 %v1983, %v1983
      %v2112 = vpack.c.b16 %v1984, %v1984
      %v2113 = vpack.c.b16 %v1985, %v1985
      %v2114 = vpack.c.b16 %v1986, %v1986
      %v2115 = vpack.c.b16 %v1987, %v1987
      %v2116 = vpack.c.b16 %v1988, %v1988
      %v2117 = vpack.c.b16 %v1989, %v1989
      %v2118 = vpack.c.b16 %v1990, %v1990
      %v2119 = vpack.c.b16 %v1991, %v1991
      %v2120 = vpack.c.b16 %v1992, %v1992
      %v2121 = vpack.c.b16 %v1993, %v1993
      %v2122 = vpack.c.b16 %v1994, %v1994
      %v2123 = vpack.c.b16 %v1995, %v1995
      %v2124 = vpack.c.b16 %v1996, %v1996
      %v2125 = vpack.c.b16 %v1997, %v1997
      %v2126 = vpack.c.b16 %v1998, %v1998
      %v2127 = vpack.c.b16 %v1999, %v1999
      %v2128 = vpack.c.b16 %v2000, %v2000
      %v2129 = vpack.c.b16 %v2001, %v2001
      %v2130 = vpack.c.b16 %v2002, %v2002
      %v2131 = vpack.c.b16 %v2003, %v2003
      %v2132 = vpack.c.b16 %v2004, %v2004
      %v2133 = vpack.c.b16 %v2005, %v2005
      %v2134 = vpack.c.b16 %v2006, %v2006
      %v2135 = vpack.c.b16 %v2007, %v2007
      %v2136 = vpack.c.b16 %v2008, %v2008
      %v2137 = vpack.c.b16 %v2009, %v2009
      %v2138 = vpack.c.b16 %v2010, %v2010
      %v2139 = vpack.c.b16 %v2011, %v2011
      %v2140 = vpack.c.b16 %v2012, %v2012
      %v2141 = vpack.c.b16 %v2013, %v2013
      %v2142 = vpack.c.b16 %v2014, %v2014
      %v2143 = vpack.c.b16 %v2015, %v2015
      %v2144 = vpack.c.b16 %v2016, %v2016
      %v2145 = vpack.c.b16 %v2017, %v2017
      %v2146 = vpack.c.b16 %v2018, %v2018
      %v2147 = vpack.c.b16 %v2019, %v2019
      %v2148 = vpack.c.b16 %v2020, %v2020
      %v2149 = vpack.c.b16 %v2021, %v2021
      %v2150 = vpack.c.b16 %v2022, %v2022
      %v2151 = vpack.c.b16 %v2023, %v2023
      %v2152 = vpack.c.b16 %v2024, %v2024
      %v2153 = vpack.c.b16 %v2025, %v2025
      %v2154 = vpack.c.b16 %v2026, %v2026
      %v2155 = vpack.c.b16 %v2027, %v2027
      %v2156 = vpack.c.b16 %v2028, %v2028
      %v2157 = vpack.c.b16 %v2029, %v2029
      %v2158 = vpack.c.b16 %v2030, %v2030
      %v2159 = vpack.c.b16 %v2031, %v2031
      %v2160 = vpack.c.b16 %v2032, %v2032
      %v2161 = vpack.c.b16 %v2033, %v2033
      %v2162 = vpack.c.b16 %v2034, %v2034
      %v2163 = vpack.c.b16 %v2035, %v2035
      %v2164 = vpack.c.b16 %v2036, %v2036
      %v2165 = vpack.c.b16 %v2037, %v2037
      %v2166 = vpack.c.b16 %v2038, %v2038
      %v2167 = vpack.c.b16 %v2039, %v2039
      %v2168 = vpack.c.b16 %v2040, %v2040
      %v2169 = vpack.c.b16 %v2041, %v2041
      %v2170 = vpack.c.b16 %v2042, %v2042
      %v2171 = vpack.c.b16 %v2043, %v2043
      %v2172 = vpack.c.b16 %v2044, %v2044
      %v2173 = vpack.c.b16 %v2045, %v2045
      %v2174 = vpack.c.b16 %v2046, %v2046
      %v2175 = vpack.c.b16 %v2047, %v2047
      %v2176 = vpack.c.b16 %v2048, %v2048
      %v2177 = vpack.c.b16 %v2049, %v2049
      %v2178 = vpack.c.b16 %v2050, %v2050
      %v2179 = vpack.c.b16 %v2051, %v2051
      %v2180 = vpack.c.b16 %v2052, %v2052
      %v2181 = vpack.c.b16 %v2053, %v2053
      %v2182 = vpack.c.b16 %v2054, %v2054
      %v2183 = vpack.c.b16 %v2055, %v2055
      %v2184 = vpack.c.b16 %v2056, %v2056
      %v2185 = vpack.c.b16 %v2057, %v2057
      %v2186 = vpack.c.b16 %v2058, %v2058
      %v2187 = vpack.c.b16 %v2059, %v2059
      %v2188 = vpack.c.b16 %v2060, %v2060
      %v2189 = vpack.c.b16 %v2061, %v2061
      %v2190 = vpack.c.b16 %v2062, %v2062
      %v2191 = vpack.c.b16 %v2063, %v2063
      %v2192 = vpack.c.b16 %v2064, %v2064
      %v2193 = vpack.c.b16 %v2065, %v2065
      %v2194 = vpack.c.b16 %v2066, %v2066
      %v2195 = vpack.c.b16 %v2067, %v2067
      %v2196 = vpack.c.b16 %v2068, %v2068
      %v2197 = vpack.c.b16 %v2069, %v2069
      %v2198 = vpack.c.b16 %v2070, %v2070
      %v2199 = vpack.c.b16 %v2071, %v2071
      %v2200 = vpack.c.b16 %v2072, %v2072
      %v2201 = vpack.c.b16 %v2073, %v2073
      %2330 = vst [vmem:[%s199] sm:$0xf] %v2074
      %2331 = vst [vmem:[%s199 + $0x4] sm:$0xf] %v2075
      %2332 = vst [vmem:[%s199 + $0x8] sm:$0xf] %v2076
      %2333 = vst [vmem:[%s199 + $0xc] sm:$0xf] %v2077
      %2334 = vst [vmem:[%s199 + $0x10] sm:$0xf] %v2078
      %2335 = vst [vmem:[%s199 + $0x14] sm:$0xf] %v2079
      %2336 = vst [vmem:[%s199 + $0x18] sm:$0xf] %v2080
      %2337 = vst [vmem:[%s199 + $0x1c] sm:$0xf] %v2081
      %2338 = vst [vmem:[%s199 + $0x20] sm:$0xf] %v2082
      %2339 = vst [vmem:[%s199 + $0x24] sm:$0xf] %v2083
      %2340 = vst [vmem:[%s199 + $0x28] sm:$0xf] %v2084
      %2341 = vst [vmem:[%s199 + $0x2c] sm:$0xf] %v2085
      %2342 = vst [vmem:[%s199 + $0x30] sm:$0xf] %v2086
      %2343 = vst [vmem:[%s199 + $0x34] sm:$0xf] %v2087
      %2344 = vst [vmem:[%s199 + $0x38] sm:$0xf] %v2088
      %2345 = vst [vmem:[%s199 + $0x3c] sm:$0xf] %v2089
      %2346 = vst [vmem:[%s199 + $0x40] sm:$0xf] %v2090
      %2347 = vst [vmem:[%s199 + $0x44] sm:$0xf] %v2091
      %2348 = vst [vmem:[%s199 + $0x48] sm:$0xf] %v2092
      %2349 = vst [vmem:[%s199 + $0x4c] sm:$0xf] %v2093
      %2350 = vst [vmem:[%s199 + $0x50] sm:$0xf] %v2094
      %2351 = vst [vmem:[%s199 + $0x54] sm:$0xf] %v2095
      %2352 = vst [vmem:[%s199 + $0x58] sm:$0xf] %v2096
      %2353 = vst [vmem:[%s199 + $0x5c] sm:$0xf] %v2097
      %2354 = vst [vmem:[%s199 + $0x60] sm:$0xf] %v2098
      %2355 = vst [vmem:[%s199 + $0x64] sm:$0xf] %v2099
      %2356 = vst [vmem:[%s199 + $0x68] sm:$0xf] %v2100
      %2357 = vst [vmem:[%s199 + $0x6c] sm:$0xf] %v2101
      %2358 = vst [vmem:[%s199 + $0x70] sm:$0xf] %v2102
      %2359 = vst [vmem:[%s199 + $0x74] sm:$0xf] %v2103
      %2360 = vst [vmem:[%s199 + $0x78] sm:$0xf] %v2104
      %2361 = vst [vmem:[%s199 + $0x7c] sm:$0xf] %v2105
      %2362 = vst [vmem:[%s199 + $0x80] sm:$0xf] %v2106
      %2363 = vst [vmem:[%s199 + $0x84] sm:$0xf] %v2107
      %2364 = vst [vmem:[%s199 + $0x88] sm:$0xf] %v2108
      %2365 = vst [vmem:[%s199 + $0x8c] sm:$0xf] %v2109
      %2366 = vst [vmem:[%s199 + $0x90] sm:$0xf] %v2110
      %2367 = vst [vmem:[%s199 + $0x94] sm:$0xf] %v2111
      %2368 = vst [vmem:[%s199 + $0x98] sm:$0xf] %v2112
      %2369 = vst [vmem:[%s199 + $0x9c] sm:$0xf] %v2113
      %2370 = vst [vmem:[%s199 + $0xa0] sm:$0xf] %v2114
      %2371 = vst [vmem:[%s199 + $0xa4] sm:$0xf] %v2115
      %2372 = vst [vmem:[%s199 + $0xa8] sm:$0xf] %v2116
      %2373 = vst [vmem:[%s199 + $0xac] sm:$0xf] %v2117
      %2374 = vst [vmem:[%s199 + $0xb0] sm:$0xf] %v2118
      %2375 = vst [vmem:[%s199 + $0xb4] sm:$0xf] %v2119
      %2376 = vst [vmem:[%s199 + $0xb8] sm:$0xf] %v2120
      %2377 = vst [vmem:[%s199 + $0xbc] sm:$0xf] %v2121
      %2378 = vst [vmem:[%s199 + $0xc0] sm:$0xf] %v2122
      %2379 = vst [vmem:[%s199 + $0xc4] sm:$0xf] %v2123
      %2380 = vst [vmem:[%s199 + $0xc8] sm:$0xf] %v2124
      %2381 = vst [vmem:[%s199 + $0xcc] sm:$0xf] %v2125
      %2382 = vst [vmem:[%s199 + $0xd0] sm:$0xf] %v2126
      %2383 = vst [vmem:[%s199 + $0xd4] sm:$0xf] %v2127
      %2384 = vst [vmem:[%s199 + $0xd8] sm:$0xf] %v2128
      %2385 = vst [vmem:[%s199 + $0xdc] sm:$0xf] %v2129
      %2386 = vst [vmem:[%s199 + $0xe0] sm:$0xf] %v2130
      %2387 = vst [vmem:[%s199 + $0xe4] sm:$0xf] %v2131
      %2388 = vst [vmem:[%s199 + $0xe8] sm:$0xf] %v2132
      %2389 = vst [vmem:[%s199 + $0xec] sm:$0xf] %v2133
      %2390 = vst [vmem:[%s199 + $0xf0] sm:$0xf] %v2134
      %2391 = vst [vmem:[%s199 + $0xf4] sm:$0xf] %v2135
      %2392 = vst [vmem:[%s199 + $0xf8] sm:$0xf] %v2136
      %2393 = vst [vmem:[%s199 + $0xfc] sm:$0xf] %v2137
      %2394 = vst [vmem:[%s199 + $0x100] sm:$0xf] %v2138
      %2395 = vst [vmem:[%s199 + $0x104] sm:$0xf] %v2139
      %2396 = vst [vmem:[%s199 + $0x108] sm:$0xf] %v2140
      %2397 = vst [vmem:[%s199 + $0x10c] sm:$0xf] %v2141
      %2398 = vst [vmem:[%s199 + $0x110] sm:$0xf] %v2142
      %2399 = vst [vmem:[%s199 + $0x114] sm:$0xf] %v2143
      %2400 = vst [vmem:[%s199 + $0x118] sm:$0xf] %v2144
      %2401 = vst [vmem:[%s199 + $0x11c] sm:$0xf] %v2145
      %2402 = vst [vmem:[%s199 + $0x120] sm:$0xf] %v2146
      %2403 = vst [vmem:[%s199 + $0x124] sm:$0xf] %v2147
      %2404 = vst [vmem:[%s199 + $0x128] sm:$0xf] %v2148
      %2405 = vst [vmem:[%s199 + $0x12c] sm:$0xf] %v2149
      %2406 = vst [vmem:[%s199 + $0x130] sm:$0xf] %v2150
      %2407 = vst [vmem:[%s199 + $0x134] sm:$0xf] %v2151
      %2408 = vst [vmem:[%s199 + $0x138] sm:$0xf] %v2152
      %2409 = vst [vmem:[%s199 + $0x13c] sm:$0xf] %v2153
      %2410 = vst [vmem:[%s199 + $0x140] sm:$0xf] %v2154
      %2411 = vst [vmem:[%s199 + $0x144] sm:$0xf] %v2155
      %2412 = vst [vmem:[%s199 + $0x148] sm:$0xf] %v2156
      %2413 = vst [vmem:[%s199 + $0x14c] sm:$0xf] %v2157
      %2414 = vst [vmem:[%s199 + $0x150] sm:$0xf] %v2158
      %2415 = vst [vmem:[%s199 + $0x154] sm:$0xf] %v2159
      %2416 = vst [vmem:[%s199 + $0x158] sm:$0xf] %v2160
      %2417 = vst [vmem:[%s199 + $0x15c] sm:$0xf] %v2161
      %2418 = vst [vmem:[%s199 + $0x160] sm:$0xf] %v2162
      %2419 = vst [vmem:[%s199 + $0x164] sm:$0xf] %v2163
      %2420 = vst [vmem:[%s199 + $0x168] sm:$0xf] %v2164
      %2421 = vst [vmem:[%s199 + $0x16c] sm:$0xf] %v2165
      %2422 = vst [vmem:[%s199 + $0x170] sm:$0xf] %v2166
      %2423 = vst [vmem:[%s199 + $0x174] sm:$0xf] %v2167
      %2424 = vst [vmem:[%s199 + $0x178] sm:$0xf] %v2168
      %2425 = vst [vmem:[%s199 + $0x17c] sm:$0xf] %v2169
      %2426 = vst [vmem:[%s199 + $0x180] sm:$0xf] %v2170
      %2427 = vst [vmem:[%s199 + $0x184] sm:$0xf] %v2171
      %2428 = vst [vmem:[%s199 + $0x188] sm:$0xf] %v2172
      %2429 = vst [vmem:[%s199 + $0x18c] sm:$0xf] %v2173
      %2430 = vst [vmem:[%s199 + $0x190] sm:$0xf] %v2174
      %2431 = vst [vmem:[%s199 + $0x194] sm:$0xf] %v2175
      %2432 = vst [vmem:[%s199 + $0x198] sm:$0xf] %v2176
      %2433 = vst [vmem:[%s199 + $0x19c] sm:$0xf] %v2177
      %2434 = vst [vmem:[%s199 + $0x1a0] sm:$0xf] %v2178
      %2435 = vst [vmem:[%s199 + $0x1a4] sm:$0xf] %v2179
      %2436 = vst [vmem:[%s199 + $0x1a8] sm:$0xf] %v2180
      %2437 = vst [vmem:[%s199 + $0x1ac] sm:$0xf] %v2181
      %2438 = vst [vmem:[%s199 + $0x1b0] sm:$0xf] %v2182
      %2439 = vst [vmem:[%s199 + $0x1b4] sm:$0xf] %v2183
      %2440 = vst [vmem:[%s199 + $0x1b8] sm:$0xf] %v2184
      %2441 = vst [vmem:[%s199 + $0x1bc] sm:$0xf] %v2185
      %2442 = vst [vmem:[%s199 + $0x1c0] sm:$0xf] %v2186
      %2443 = vst [vmem:[%s199 + $0x1c4] sm:$0xf] %v2187
      %2444 = vst [vmem:[%s199 + $0x1c8] sm:$0xf] %v2188
      %2445 = vst [vmem:[%s199 + $0x1cc] sm:$0xf] %v2189
      %2446 = vst [vmem:[%s199 + $0x1d0] sm:$0xf] %v2190
      %2447 = vst [vmem:[%s199 + $0x1d4] sm:$0xf] %v2191
      %2448 = vst [vmem:[%s199 + $0x1d8] sm:$0xf] %v2192
      %2449 = vst [vmem:[%s199 + $0x1dc] sm:$0xf] %v2193
      %2450 = vst [vmem:[%s199 + $0x1e0] sm:$0xf] %v2194
      %2451 = vst [vmem:[%s199 + $0x1e4] sm:$0xf] %v2195
      %2452 = vst [vmem:[%s199 + $0x1e8] sm:$0xf] %v2196
      %2453 = vst [vmem:[%s199 + $0x1ec] sm:$0xf] %v2197
      %2454 = vst [vmem:[%s199 + $0x1f0] sm:$0xf] %v2198
      %2455 = vst [vmem:[%s199 + $0x1f4] sm:$0xf] %v2199
      %2456 = vst [vmem:[%s199 + $0x1f8] sm:$0xf] %v2200
      %2457 = vst [vmem:[%s199 + $0x1fc] sm:$0xf] %v2201
      %s2458 = smul.u32 128, %s15
      %p2459 = scmp.lt.s32.totalorder %s2458, 255
      %s2460 = scalar_select %p2459, %s2458, 255
      %s2461 = smul.addr %s2460, 4
      %s2462 = scalar_lea.vmem %s4, %s2461
      // Predicated region
      $region37: #{_lambda_.4} parent=35 // pred_check
        %p2463 = pneg %p122
      $region38: #{_lambda_.4} parent=35 // pred_check_branch
        %2465 = sbr.rel (%p2463) target = $region40
      $region39: #{_lambda_.4} parent=35 // pred_region
        %s2466 = smul.u32 128, %s15
      $region40: #{_lambda_.4} parent=35 // pred_fallthru
        _
    $region36: #{_lambda_.4} parent=5 // pred_fallthru
      _
    %p2467 = scmp.le.s32.totalorder 2, %s10
    // Predicated region
    $region41: #{_lambda_.4} parent=5 // pred_check
      %p2468 = pneg %p2467
    $region42: #{_lambda_.4} parent=5 // pred_check_branch
      %2470 = sbr.rel (%p2468) target = $region44
    $region43: #{_lambda_.4} parent=5 // pred_region
      %s2471 = ssub.s32 %s10, 2
      // Predicated region
      $region45: #{_lambda_.4} parent=43 // pred_check
        %p2472 = pneg %p128
      $region46: #{_lambda_.4} parent=43 // pred_check_branch
        %2474 = sbr.rel (%p2472) target = $region48
      $region47: #{_lambda_.4} parent=43 // pred_region
        %s2475 = smul.u32 128, %s16
        %p2476 = scmp.lt.s32.totalorder %s2475, 255
        %s2477 = scalar_select %p2476, %s2475, 255
        %s2478 = smul.addr %s2477, 4
        %s2479 = scalar_lea.vmem %s4, %s2478
      $region48: #{_lambda_.4} parent=43 // pred_fallthru
        _
    $region44: #{_lambda_.4} parent=5 // pred_fallthru
      _
  $region6: #{_lambda_.4} parent=0 // loop_footer
    %s14 = sadd.s32 1, %s10
  $region7: #{_lambda_.4} parent=0 // loop_footer_branch
    %9 = sbr.rel target = $region3
  $region8: #{_lambda_.4} parent=0 // loop_exit
    _

// kernel: _lambda_.5
$region0: #{_lambda_.5}
  #allocation0 [shape = 'u32[]', space=smem, size = 0x4, offset = 0x4, fixed_abs, tag = 'smem constant byte address 0x4 - core index']
  #allocation1 [shape = 'u32[144,128]{1,0:T(1,128)}', space=vmem, size = 0x12000, scoped, tag = 'internal scratch']
  %s0 = inlined_call_operand.vmem [shape: bf16[512,512], index: 0, kind: input, shape index: {}]
  %s1 = inlined_call_operand.vmem [shape: bf16[512,128], index: 1, kind: input, shape index: {}]
  %s2 = inlined_call_operand.vmem [shape: f32[1,128], index: 2, kind: input, shape index: {}]
  %s3 = inlined_call_operand.vmem [shape: f32[1,128], index: 3, kind: input, shape index: {}]
  %s4 = inlined_call_operand.vmem [shape: bf16[512,128], index: 4, kind: output, shape index: {}]
  %s5 = sld [smem:[#allocation0]]
  $region49: #{_lambda_.5} parent=0
    _
  %s7 = ssub.s32 1, %s5
  %s8 = scalar_select 0, %s7, %s5
  loop: start=0, step=1, limit=4
  $region2: #{_lambda_.5} parent=0 // loop_pre_header
    _
  $region3: #{_lambda_.5} parent=0 // loop_header
    %s10 = sphi 0, %s14
    %p11 = scmp.ge.s32.totalorder %s10, 4
    %s20 = sphi 0, %s22
    %s23 = sphi 0, %s20
    %s24 = sphi 0, %s23
    %s40 = sphi 0, %s24
    %s44 = sphi 0, %s44
    %s46 = sphi 0, %s44
    %s47 = sphi 0, %s46
    %s61 = sphi 0, %s47
    %s65 = sphi 0, %s65
    %s67 = sphi 0, %s65
    %s68 = sphi 0, %s67
    %s82 = sphi 0, %s68
    %s86 = sphi 0, %s86
    %s88 = sphi 0, %s86
    %s89 = sphi 0, %s88
    %s103 = sphi 0, %s89
    %s109 = sphi 0, %s111
    %s112 = sphi 0, %s109
    %s113 = sphi 0, %s112
    %s129 = sphi 0, %s113
  $region4: #{_lambda_.5} parent=0 // loop_header_branch
    %13 = sbr.rel (%p11) target = $region8
  $region5: #{_lambda_.5} parent=0 // loop_body
    %s15 = ssub.s32 %s10, 1
    %s16 = ssub.s32 %s10, 2
    %s17 = sadd.s32 %s10, 1
    %s18 = ssub.s32 %s10, %s17
    %p19 = scmp.eq.s32.totalorder %s18, 0
    %s21 = sadd.s32 %s20, 1
    %s22 = scalar_select %p19, %s20, %s21
    %p25 = pneg %p19
    %p26 = scmp.eq.s32.totalorder %s10, 1
    %p27 = por %p25, %p26
    %p28 = scmp.ne.s32.totalorder %s20, %s23
    %p29 = scmp.eq.s32.totalorder %s10, 0
    %p30 = por %p28, %p29
    %p31 = scmp.ne.s32.totalorder %s20, %s23
    %p32 = scmp.eq.s32.totalorder %s15, 1
    %p33 = por %p31, %p32
    %p34 = scmp.ne.s32.totalorder %s23, %s24
    %p35 = scmp.eq.s32.totalorder %s15, 0
    %p36 = por %p34, %p35
    %p37 = scmp.ne.s32.totalorder %s23, %s24
    %p38 = scmp.eq.s32.totalorder %s16, 1
    %p39 = por %p37, %p38
    %p41 = scmp.ne.s32.totalorder %s24, %s40
    %p42 = scmp.eq.s32.totalorder %s16, 0
    %p43 = por %p41, %p42
    %s45 = sadd.s32 %s44, 1
    %p48 = scmp.eq.s32.totalorder %s10, 1
    %p49 = scmp.ne.s32.totalorder %s44, %s46
    %p50 = scmp.eq.s32.totalorder %s10, 0
    %p51 = por %p49, %p50
    %p52 = scmp.ne.s32.totalorder %s44, %s46
    %p53 = scmp.eq.s32.totalorder %s15, 1
    %p54 = por %p52, %p53
    %p55 = scmp.ne.s32.totalorder %s46, %s47
    %p56 = scmp.eq.s32.totalorder %s15, 0
    %p57 = por %p55, %p56
    %p58 = scmp.ne.s32.totalorder %s46, %s47
    %p59 = scmp.eq.s32.totalorder %s16, 1
    %p60 = por %p58, %p59
    %p62 = scmp.ne.s32.totalorder %s47, %s61
    %p63 = scmp.eq.s32.totalorder %s16, 0
    %p64 = por %p62, %p63
    %s66 = sadd.s32 %s65, 1
    %p69 = scmp.eq.s32.totalorder %s10, 1
    %p70 = scmp.ne.s32.totalorder %s65, %s67
    %p71 = scmp.eq.s32.totalorder %s10, 0
    %p72 = por %p70, %p71
    %p73 = scmp.ne.s32.totalorder %s65, %s67
    %p74 = scmp.eq.s32.totalorder %s15, 1
    %p75 = por %p73, %p74
    %p76 = scmp.ne.s32.totalorder %s67, %s68
    %p77 = scmp.eq.s32.totalorder %s15, 0
    %p78 = por %p76, %p77
    %p79 = scmp.ne.s32.totalorder %s67, %s68
    %p80 = scmp.eq.s32.totalorder %s16, 1
    %p81 = por %p79, %p80
    %p83 = scmp.ne.s32.totalorder %s68, %s82
    %p84 = scmp.eq.s32.totalorder %s16, 0
    %p85 = por %p83, %p84
    %s87 = sadd.s32 %s86, 1
    %p90 = scmp.eq.s32.totalorder %s10, 1
    %p91 = scmp.ne.s32.totalorder %s86, %s88
    %p92 = scmp.eq.s32.totalorder %s10, 0
    %p93 = por %p91, %p92
    %p94 = scmp.ne.s32.totalorder %s86, %s88
    %p95 = scmp.eq.s32.totalorder %s15, 1
    %p96 = por %p94, %p95
    %p97 = scmp.ne.s32.totalorder %s88, %s89
    %p98 = scmp.eq.s32.totalorder %s15, 0
    %p99 = por %p97, %p98
    %p100 = scmp.ne.s32.totalorder %s88, %s89
    %p101 = scmp.eq.s32.totalorder %s16, 1
    %p102 = por %p100, %p101
    %p104 = scmp.ne.s32.totalorder %s89, %s103
    %p105 = scmp.eq.s32.totalorder %s16, 0
    %p106 = por %p104, %p105
    %s107 = ssub.s32 %s10, %s17
    %p108 = scmp.eq.s32.totalorder %s107, 0
    %s110 = sadd.s32 %s109, 1
    %s111 = scalar_select %p108, %s109, %s110
    %p114 = pneg %p108
    %p115 = scmp.eq.s32.totalorder %s10, 1
    %p116 = por %p114, %p115
    %p117 = scmp.ne.s32.totalorder %s109, %s112
    %p118 = scmp.eq.s32.totalorder %s10, 0
    %p119 = por %p117, %p118
    %p120 = scmp.ne.s32.totalorder %s109, %s112
    %p121 = scmp.eq.s32.totalorder %s15, 1
    %p122 = por %p120, %p121
    %p123 = scmp.ne.s32.totalorder %s112, %s113
    %p124 = scmp.eq.s32.totalorder %s15, 0
    %p125 = por %p123, %p124
    %p126 = scmp.ne.s32.totalorder %s112, %s113
    %p127 = scmp.eq.s32.totalorder %s16, 1
    %p128 = por %p126, %p127
    %p130 = scmp.ne.s32.totalorder %s113, %s129
    %p131 = scmp.eq.s32.totalorder %s16, 0
    %p132 = por %p130, %p131
    %p133 = scmp.le.s32.totalorder 1, %s10
    %p134 = scmp.lt.s32.totalorder %s10, 3
    %p135 = pnand %p133, %p134
    %p136 = pneg %p135
    // Predicated region
    $region9: #{_lambda_.5} parent=5 // pred_check
      _
    $region10: #{_lambda_.5} parent=5 // pred_check_branch
      %138 = sbr.rel (%p135) target = $region12
    $region11: #{_lambda_.5} parent=5 // pred_region
      %s139 = ssub.s32 %s10, 1
      // Predicated region
      $region13: #{_lambda_.5} parent=11 // pred_check
        %p140 = pneg %p57
      $region14: #{_lambda_.5} parent=11 // pred_check_branch
        %142 = sbr.rel (%p140) target = $region16
      $region15: #{_lambda_.5} parent=11 // pred_region
        _
      $region16: #{_lambda_.5} parent=11 // pred_fallthru
        _
      // Predicated region
      $region17: #{_lambda_.5} parent=11 // pred_check
        %p143 = pneg %p78
      $region18: #{_lambda_.5} parent=11 // pred_check_branch
        %145 = sbr.rel (%p143) target = $region20
      $region19: #{_lambda_.5} parent=11 // pred_region
        _
      $region20: #{_lambda_.5} parent=11 // pred_fallthru
        _
      // Predicated region
      $region21: #{_lambda_.5} parent=11 // pred_check
        %p146 = pneg %p99
      $region22: #{_lambda_.5} parent=11 // pred_check_branch
        %148 = sbr.rel (%p146) target = $region24
      $region23: #{_lambda_.5} parent=11 // pred_region
        _
      $region24: #{_lambda_.5} parent=11 // pred_fallthru
        _
    $region12: #{_lambda_.5} parent=5 // pred_fallthru
      _
    %p149 = scmp.lt.s32.totalorder %s10, 2
    // Predicated region
    $region25: #{_lambda_.5} parent=5 // pred_check
      %p150 = pneg %p149
    $region26: #{_lambda_.5} parent=5 // pred_check_branch
      %152 = sbr.rel (%p150) target = $region28
    $region27: #{_lambda_.5} parent=5 // pred_region
      // Predicated region
      $region29: #{_lambda_.5} parent=27 // pred_check
        %p153 = pneg %p30
      $region30: #{_lambda_.5} parent=27 // pred_check_branch
        %155 = sbr.rel (%p153) target = $region32
      $region31: #{_lambda_.5} parent=27 // pred_region
        %s156 = smul.u32 32, %s10
        %p157 = scmp.lt.s32.totalorder %s156, 63
        %s158 = scalar_select %p157, %s156, 63
        %s159 = smul.addr %s158, 4
        %s160 = smul.addr %s159, 4
        %s161 = scalar_lea.vmem %s0, %s160
        %s162 = smul.u32 32, %s10
      $region32: #{_lambda_.5} parent=27 // pred_fallthru
        _
    $region28: #{_lambda_.5} parent=5 // pred_fallthru
      _
    %p163 = scmp.le.s32.totalorder 1, %s10
    %p164 = scmp.lt.s32.totalorder %s10, 3
    %p165 = pnand %p163, %p164
    %p166 = pneg %p165
    // Predicated region
    $region33: #{_lambda_.5} parent=5 // pred_check
      _
    $region34: #{_lambda_.5} parent=5 // pred_check_branch
      %168 = sbr.rel (%p165) target = $region36
    $region35: #{_lambda_.5} parent=5 // pred_region
      %s169 = ssub.s32 %s10, 1
      %s170 = smul.u32 32, %s15
      %p171 = scmp.lt.s32.totalorder %s170, 63
      %s172 = scalar_select %p171, %s170, 63
      %s173 = smul.addr %s172, 4
      %s174 = smul.addr %s173, 4
      %s175 = scalar_lea.vmem %s0, %s174
      %p176 = pneg %p36
      %p177 = pneg %p33
      %p178 = pneg %p57
      %p179 = pneg %p54
      %p180 = pneg %p78
      %p181 = pneg %p75
      %p182 = pneg %p99
      %p183 = pneg %p96
      %p184 = pneg %p125
      %p185 = pneg %p122
      %s186 = smul.u32 32, %s15
      %p187 = scmp.lt.s32.totalorder %s186, 63
      %s188 = scalar_select %p187, %s186, 63
      %s189 = smul.addr %s188, 4
      %s190 = scalar_lea.vmem %s4, %s189
      %s191 = smul.u32 32, %s15
      %p192 = scmp.lt.s32.totalorder %s191, 63
      %s193 = scalar_select %p192, %s191, 63
      %s194 = smul.addr %s193, 4
      %s195 = smul.addr %s194, 4
      %s196 = scalar_lea.vmem %s0, %s195
      %s197 = smul.u32 32, %s15
      %s198 = smul.u32 32, %s15
      %p199 = scmp.lt.s32.totalorder %s198, 63
      %s200 = scalar_select %p199, %s198, 63
      %s201 = smul.addr %s200, 4
      %s202 = scalar_lea.vmem %s4, %s201
      %s203 = smul.u32 32, %s15
      %v205 = vld [vmem:[%s196] sm:$0xff]
      %v206 = vld [vmem:[%s196 + $0x8] sm:$0xff]
      %v207 = vld [vmem:[%s196 + $0x10] sm:$0xff]
      %v208 = vld [vmem:[%s196 + $0x18] sm:$0xff]
      %v209 = vld [vmem:[%s196 + $0x20] sm:$0xff]
      %v210 = vld [vmem:[%s196 + $0x28] sm:$0xff]
      %v211 = vld [vmem:[%s196 + $0x30] sm:$0xff]
      %v212 = vld [vmem:[%s196 + $0x38] sm:$0xff]
      %v213 = vld [vmem:[%s196 + $0x40] sm:$0xff]
      %v214 = vld [vmem:[%s196 + $0x48] sm:$0xff]
      %v215 = vld [vmem:[%s196 + $0x50] sm:$0xff]
      %v216 = vld [vmem:[%s196 + $0x58] sm:$0xff]
      %v217 = vld [vmem:[%s196 + $0x60] sm:$0xff]
      %v218 = vld [vmem:[%s196 + $0x68] sm:$0xff]
      %v219 = vld [vmem:[%s196 + $0x70] sm:$0xff]
      %v220 = vld [vmem:[%s196 + $0x78] sm:$0xff]
      %v221 = vld [vmem:[%s196 + $0x80] sm:$0xff]
      %v222 = vld [vmem:[%s196 + $0x88] sm:$0xff]
      %v223 = vld [vmem:[%s196 + $0x90] sm:$0xff]
      %v224 = vld [vmem:[%s196 + $0x98] sm:$0xff]
      %v225 = vld [vmem:[%s196 + $0xa0] sm:$0xff]
      %v226 = vld [vmem:[%s196 + $0xa8] sm:$0xff]
      %v227 = vld [vmem:[%s196 + $0xb0] sm:$0xff]
      %v228 = vld [vmem:[%s196 + $0xb8] sm:$0xff]
      %v229 = vld [vmem:[%s196 + $0xc0] sm:$0xff]
      %v230 = vld [vmem:[%s196 + $0xc8] sm:$0xff]
      %v231 = vld [vmem:[%s196 + $0xd0] sm:$0xff]
      %v232 = vld [vmem:[%s196 + $0xd8] sm:$0xff]
      %v233 = vld [vmem:[%s196 + $0xe0] sm:$0xff]
      %v234 = vld [vmem:[%s196 + $0xe8] sm:$0xff]
      %v235 = vld [vmem:[%s196 + $0xf0] sm:$0xff]
      %v236 = vld [vmem:[%s196 + $0xf8] sm:$0xff]
      %v237 = vld [vmem:[%s196 + $0x100] sm:$0xff]
      %v238 = vld [vmem:[%s196 + $0x108] sm:$0xff]
      %v239 = vld [vmem:[%s196 + $0x110] sm:$0xff]
      %v240 = vld [vmem:[%s196 + $0x118] sm:$0xff]
      %v241 = vld [vmem:[%s196 + $0x120] sm:$0xff]
      %v242 = vld [vmem:[%s196 + $0x128] sm:$0xff]
      %v243 = vld [vmem:[%s196 + $0x130] sm:$0xff]
      %v244 = vld [vmem:[%s196 + $0x138] sm:$0xff]
      %v245 = vld [vmem:[%s196 + $0x140] sm:$0xff]
      %v246 = vld [vmem:[%s196 + $0x148] sm:$0xff]
      %v247 = vld [vmem:[%s196 + $0x150] sm:$0xff]
      %v248 = vld [vmem:[%s196 + $0x158] sm:$0xff]
      %v249 = vld [vmem:[%s196 + $0x160] sm:$0xff]
      %v250 = vld [vmem:[%s196 + $0x168] sm:$0xff]
      %v251 = vld [vmem:[%s196 + $0x170] sm:$0xff]
      %v252 = vld [vmem:[%s196 + $0x178] sm:$0xff]
      %v253 = vld [vmem:[%s196 + $0x180] sm:$0xff]
      %v254 = vld [vmem:[%s196 + $0x188] sm:$0xff]
      %v255 = vld [vmem:[%s196 + $0x190] sm:$0xff]
      %v256 = vld [vmem:[%s196 + $0x198] sm:$0xff]
      %v257 = vld [vmem:[%s196 + $0x1a0] sm:$0xff]
      %v258 = vld [vmem:[%s196 + $0x1a8] sm:$0xff]
      %v259 = vld [vmem:[%s196 + $0x1b0] sm:$0xff]
      %v260 = vld [vmem:[%s196 + $0x1b8] sm:$0xff]
      %v261 = vld [vmem:[%s196 + $0x1c0] sm:$0xff]
      %v262 = vld [vmem:[%s196 + $0x1c8] sm:$0xff]
      %v263 = vld [vmem:[%s196 + $0x1d0] sm:$0xff]
      %v264 = vld [vmem:[%s196 + $0x1d8] sm:$0xff]
      %v265 = vld [vmem:[%s196 + $0x1e0] sm:$0xff]
      %v266 = vld [vmem:[%s196 + $0x1e8] sm:$0xff]
      %v267 = vld [vmem:[%s196 + $0x1f0] sm:$0xff]
      %v268 = vld [vmem:[%s196 + $0x1f8] sm:$0xff]
      %v269 = vld [vmem:[%s1] sm:$0xf]
      %v270 = vld [vmem:[%s1 + $0x4] sm:$0xf]
      %v271 = vld [vmem:[%s1 + $0x8] sm:$0xf]
      %v272 = vld [vmem:[%s1 + $0xc] sm:$0xf]
      %v273 = vld [vmem:[%s1 + $0x10] sm:$0xf]
      %v274 = vld [vmem:[%s1 + $0x14] sm:$0xf]
      %v275 = vld [vmem:[%s1 + $0x18] sm:$0xf]
      %v276 = vld [vmem:[%s1 + $0x1c] sm:$0xf]
      %v277 = vld [vmem:[%s1 + $0x20] sm:$0xf]
      %v278 = vld [vmem:[%s1 + $0x24] sm:$0xf]
      %v279 = vld [vmem:[%s1 + $0x28] sm:$0xf]
      %v280 = vld [vmem:[%s1 + $0x2c] sm:$0xf]
      %v281 = vld [vmem:[%s1 + $0x30] sm:$0xf]
      %v282 = vld [vmem:[%s1 + $0x34] sm:$0xf]
      %v283 = vld [vmem:[%s1 + $0x38] sm:$0xf]
      %v284 = vld [vmem:[%s1 + $0x3c] sm:$0xf]
      %v285 = vld [vmem:[%s1 + $0x40] sm:$0xf]
      %v286 = vld [vmem:[%s1 + $0x44] sm:$0xf]
      %v287 = vld [vmem:[%s1 + $0x48] sm:$0xf]
      %v288 = vld [vmem:[%s1 + $0x4c] sm:$0xf]
      %v289 = vld [vmem:[%s1 + $0x50] sm:$0xf]
      %v290 = vld [vmem:[%s1 + $0x54] sm:$0xf]
      %v291 = vld [vmem:[%s1 + $0x58] sm:$0xf]
      %v292 = vld [vmem:[%s1 + $0x5c] sm:$0xf]
      %v293 = vld [vmem:[%s1 + $0x60] sm:$0xf]
      %v294 = vld [vmem:[%s1 + $0x64] sm:$0xf]
      %v295 = vld [vmem:[%s1 + $0x68] sm:$0xf]
      %v296 = vld [vmem:[%s1 + $0x6c] sm:$0xf]
      %v297 = vld [vmem:[%s1 + $0x70] sm:$0xf]
      %v298 = vld [vmem:[%s1 + $0x74] sm:$0xf]
      %v299 = vld [vmem:[%s1 + $0x78] sm:$0xf]
      %v300 = vld [vmem:[%s1 + $0x7c] sm:$0xf]
      %v301 = vld [vmem:[%s1 + $0x80] sm:$0xf]
      %v302 = vld [vmem:[%s1 + $0x84] sm:$0xf]
      %v303 = vld [vmem:[%s1 + $0x88] sm:$0xf]
      %v304 = vld [vmem:[%s1 + $0x8c] sm:$0xf]
      %v305 = vld [vmem:[%s1 + $0x90] sm:$0xf]
      %v306 = vld [vmem:[%s1 + $0x94] sm:$0xf]
      %v307 = vld [vmem:[%s1 + $0x98] sm:$0xf]
      %v308 = vld [vmem:[%s1 + $0x9c] sm:$0xf]
      %v309 = vld [vmem:[%s1 + $0xa0] sm:$0xf]
      %v310 = vld [vmem:[%s1 + $0xa4] sm:$0xf]
      %v311 = vld [vmem:[%s1 + $0xa8] sm:$0xf]
      %v312 = vld [vmem:[%s1 + $0xac] sm:$0xf]
      %v313 = vld [vmem:[%s1 + $0xb0] sm:$0xf]
      %v314 = vld [vmem:[%s1 + $0xb4] sm:$0xf]
      %v315 = vld [vmem:[%s1 + $0xb8] sm:$0xf]
      %v316 = vld [vmem:[%s1 + $0xbc] sm:$0xf]
      %v317 = vld [vmem:[%s1 + $0xc0] sm:$0xf]
      %v318 = vld [vmem:[%s1 + $0xc4] sm:$0xf]
      %v319 = vld [vmem:[%s1 + $0xc8] sm:$0xf]
      %v320 = vld [vmem:[%s1 + $0xcc] sm:$0xf]
      %v321 = vld [vmem:[%s1 + $0xd0] sm:$0xf]
      %v322 = vld [vmem:[%s1 + $0xd4] sm:$0xf]
      %v323 = vld [vmem:[%s1 + $0xd8] sm:$0xf]
      %v324 = vld [vmem:[%s1 + $0xdc] sm:$0xf]
      %v325 = vld [vmem:[%s1 + $0xe0] sm:$0xf]
      %v326 = vld [vmem:[%s1 + $0xe4] sm:$0xf]
      %v327 = vld [vmem:[%s1 + $0xe8] sm:$0xf]
      %v328 = vld [vmem:[%s1 + $0xec] sm:$0xf]
      %v329 = vld [vmem:[%s1 + $0xf0] sm:$0xf]
      %v330 = vld [vmem:[%s1 + $0xf4] sm:$0xf]
      %v331 = vld [vmem:[%s1 + $0xf8] sm:$0xf]
      %v332 = vld [vmem:[%s1 + $0xfc] sm:$0xf]
      %v397 = vunpack.c.l.b16 %v205
      %v398 = vunpack.c.h.b16 %v205
      %v399 = vunpack.c.l.b16 %v206
      %v400 = vunpack.c.h.b16 %v206
      %v401 = vunpack.c.l.b16 %v207
      %v402 = vunpack.c.h.b16 %v207
      %v403 = vunpack.c.l.b16 %v208
      %v404 = vunpack.c.h.b16 %v208
      %v405 = vunpack.c.l.b16 %v209
      %v406 = vunpack.c.h.b16 %v209
      %v407 = vunpack.c.l.b16 %v210
      %v408 = vunpack.c.h.b16 %v210
      %v409 = vunpack.c.l.b16 %v211
      %v410 = vunpack.c.h.b16 %v211
      %v411 = vunpack.c.l.b16 %v212
      %v412 = vunpack.c.h.b16 %v212
      %v413 = vunpack.c.l.b16 %v213
      %v414 = vunpack.c.h.b16 %v213
      %v415 = vunpack.c.l.b16 %v214
      %v416 = vunpack.c.h.b16 %v214
      %v417 = vunpack.c.l.b16 %v215
      %v418 = vunpack.c.h.b16 %v215
      %v419 = vunpack.c.l.b16 %v216
      %v420 = vunpack.c.h.b16 %v216
      %v421 = vunpack.c.l.b16 %v217
      %v422 = vunpack.c.h.b16 %v217
      %v423 = vunpack.c.l.b16 %v218
      %v424 = vunpack.c.h.b16 %v218
      %v425 = vunpack.c.l.b16 %v219
      %v426 = vunpack.c.h.b16 %v219
      %v427 = vunpack.c.l.b16 %v220
      %v428 = vunpack.c.h.b16 %v220
      %v429 = vunpack.c.l.b16 %v221
      %v430 = vunpack.c.h.b16 %v221
      %v431 = vunpack.c.l.b16 %v222
      %v432 = vunpack.c.h.b16 %v222
      %v433 = vunpack.c.l.b16 %v223
      %v434 = vunpack.c.h.b16 %v223
      %v435 = vunpack.c.l.b16 %v224
      %v436 = vunpack.c.h.b16 %v224
      %v437 = vunpack.c.l.b16 %v225
      %v438 = vunpack.c.h.b16 %v225
      %v439 = vunpack.c.l.b16 %v226
      %v440 = vunpack.c.h.b16 %v226
      %v441 = vunpack.c.l.b16 %v227
      %v442 = vunpack.c.h.b16 %v227
      %v443 = vunpack.c.l.b16 %v228
      %v444 = vunpack.c.h.b16 %v228
      %v445 = vunpack.c.l.b16 %v229
      %v446 = vunpack.c.h.b16 %v229
      %v447 = vunpack.c.l.b16 %v230
      %v448 = vunpack.c.h.b16 %v230
      %v449 = vunpack.c.l.b16 %v231
      %v450 = vunpack.c.h.b16 %v231
      %v451 = vunpack.c.l.b16 %v232
      %v452 = vunpack.c.h.b16 %v232
      %v453 = vunpack.c.l.b16 %v233
      %v454 = vunpack.c.h.b16 %v233
      %v455 = vunpack.c.l.b16 %v234
      %v456 = vunpack.c.h.b16 %v234
      %v457 = vunpack.c.l.b16 %v235
      %v458 = vunpack.c.h.b16 %v235
      %v459 = vunpack.c.l.b16 %v236
      %v460 = vunpack.c.h.b16 %v236
      %v461 = vunpack.c.l.b16 %v237
      %v462 = vunpack.c.h.b16 %v237
      %v463 = vunpack.c.l.b16 %v238
      %v464 = vunpack.c.h.b16 %v238
      %v465 = vunpack.c.l.b16 %v239
      %v466 = vunpack.c.h.b16 %v239
      %v467 = vunpack.c.l.b16 %v240
      %v468 = vunpack.c.h.b16 %v240
      %v469 = vunpack.c.l.b16 %v241
      %v470 = vunpack.c.h.b16 %v241
      %v471 = vunpack.c.l.b16 %v242
      %v472 = vunpack.c.h.b16 %v242
      %v473 = vunpack.c.l.b16 %v243
      %v474 = vunpack.c.h.b16 %v243
      %v475 = vunpack.c.l.b16 %v244
      %v476 = vunpack.c.h.b16 %v244
      %v477 = vunpack.c.l.b16 %v245
      %v478 = vunpack.c.h.b16 %v245
      %v479 = vunpack.c.l.b16 %v246
      %v480 = vunpack.c.h.b16 %v246
      %v481 = vunpack.c.l.b16 %v247
      %v482 = vunpack.c.h.b16 %v247
      %v483 = vunpack.c.l.b16 %v248
      %v484 = vunpack.c.h.b16 %v248
      %v485 = vunpack.c.l.b16 %v249
      %v486 = vunpack.c.h.b16 %v249
      %v487 = vunpack.c.l.b16 %v250
      %v488 = vunpack.c.h.b16 %v250
      %v489 = vunpack.c.l.b16 %v251
      %v490 = vunpack.c.h.b16 %v251
      %v491 = vunpack.c.l.b16 %v252
      %v492 = vunpack.c.h.b16 %v252
      %v493 = vunpack.c.l.b16 %v253
      %v494 = vunpack.c.h.b16 %v253
      %v495 = vunpack.c.l.b16 %v254
      %v496 = vunpack.c.h.b16 %v254
      %v497 = vunpack.c.l.b16 %v255
      %v498 = vunpack.c.h.b16 %v255
      %v499 = vunpack.c.l.b16 %v256
      %v500 = vunpack.c.h.b16 %v256
      %v501 = vunpack.c.l.b16 %v257
      %v502 = vunpack.c.h.b16 %v257
      %v503 = vunpack.c.l.b16 %v258
      %v504 = vunpack.c.h.b16 %v258
      %v505 = vunpack.c.l.b16 %v259
      %v506 = vunpack.c.h.b16 %v259
      %v507 = vunpack.c.l.b16 %v260
      %v508 = vunpack.c.h.b16 %v260
      %v509 = vunpack.c.l.b16 %v261
      %v510 = vunpack.c.h.b16 %v261
      %v511 = vunpack.c.l.b16 %v262
      %v512 = vunpack.c.h.b16 %v262
      %v513 = vunpack.c.l.b16 %v263
      %v514 = vunpack.c.h.b16 %v263
      %v515 = vunpack.c.l.b16 %v264
      %v516 = vunpack.c.h.b16 %v264
      %v517 = vunpack.c.l.b16 %v265
      %v518 = vunpack.c.h.b16 %v265
      %v519 = vunpack.c.l.b16 %v266
      %v520 = vunpack.c.h.b16 %v266
      %v521 = vunpack.c.l.b16 %v267
      %v522 = vunpack.c.h.b16 %v267
      %v523 = vunpack.c.l.b16 %v268
      %v524 = vunpack.c.h.b16 %v268
      %v525 = vpack.c.b16 %v401, %v397
      %v526 = vpack.c.b16 %v402, %v398
      %v527 = vpack.c.b16 %v403, %v399
      %v528 = vpack.c.b16 %v404, %v400
      %v529 = vpack.c.b16 %v409, %v405
      %v530 = vpack.c.b16 %v410, %v406
      %v531 = vpack.c.b16 %v411, %v407
      %v532 = vpack.c.b16 %v412, %v408
      %v533 = vpack.c.b16 %v417, %v413
      %v534 = vpack.c.b16 %v418, %v414
      %v535 = vpack.c.b16 %v419, %v415
      %v536 = vpack.c.b16 %v420, %v416
      %v537 = vpack.c.b16 %v425, %v421
      %v538 = vpack.c.b16 %v426, %v422
      %v539 = vpack.c.b16 %v427, %v423
      %v540 = vpack.c.b16 %v428, %v424
      %v541 = vpack.c.b16 %v433, %v429
      %v542 = vpack.c.b16 %v434, %v430
      %v543 = vpack.c.b16 %v435, %v431
      %v544 = vpack.c.b16 %v436, %v432
      %v545 = vpack.c.b16 %v441, %v437
      %v546 = vpack.c.b16 %v442, %v438
      %v547 = vpack.c.b16 %v443, %v439
      %v548 = vpack.c.b16 %v444, %v440
      %v549 = vpack.c.b16 %v449, %v445
      %v550 = vpack.c.b16 %v450, %v446
      %v551 = vpack.c.b16 %v451, %v447
      %v552 = vpack.c.b16 %v452, %v448
      %v553 = vpack.c.b16 %v457, %v453
      %v554 = vpack.c.b16 %v458, %v454
      %v555 = vpack.c.b16 %v459, %v455
      %v556 = vpack.c.b16 %v460, %v456
      %v557 = vpack.c.b16 %v465, %v461
      %v558 = vpack.c.b16 %v466, %v462
      %v559 = vpack.c.b16 %v467, %v463
      %v560 = vpack.c.b16 %v468, %v464
      %v561 = vpack.c.b16 %v473, %v469
      %v562 = vpack.c.b16 %v474, %v470
      %v563 = vpack.c.b16 %v475, %v471
      %v564 = vpack.c.b16 %v476, %v472
      %v565 = vpack.c.b16 %v481, %v477
      %v566 = vpack.c.b16 %v482, %v478
      %v567 = vpack.c.b16 %v483, %v479
      %v568 = vpack.c.b16 %v484, %v480
      %v569 = vpack.c.b16 %v489, %v485
      %v570 = vpack.c.b16 %v490, %v486
      %v571 = vpack.c.b16 %v491, %v487
      %v572 = vpack.c.b16 %v492, %v488
      %v573 = vpack.c.b16 %v497, %v493
      %v574 = vpack.c.b16 %v498, %v494
      %v575 = vpack.c.b16 %v499, %v495
      %v576 = vpack.c.b16 %v500, %v496
      %v577 = vpack.c.b16 %v505, %v501
      %v578 = vpack.c.b16 %v506, %v502
      %v579 = vpack.c.b16 %v507, %v503
      %v580 = vpack.c.b16 %v508, %v504
      %v581 = vpack.c.b16 %v513, %v509
      %v582 = vpack.c.b16 %v514, %v510
      %v583 = vpack.c.b16 %v515, %v511
      %v584 = vpack.c.b16 %v516, %v512
      %v585 = vpack.c.b16 %v521, %v517
      %v586 = vpack.c.b16 %v522, %v518
      %v587 = vpack.c.b16 %v523, %v519
      %v588 = vpack.c.b16 %v524, %v520
      %v717 = vunpack.c.l.b16 %v269
      %v718 = vunpack.c.l.b16 %v270
      %v719 = vunpack.c.l.b16 %v271
      %v720 = vunpack.c.l.b16 %v272
      %v721 = vunpack.c.l.b16 %v273
      %v722 = vunpack.c.l.b16 %v274
      %v723 = vunpack.c.l.b16 %v275
      %v724 = vunpack.c.l.b16 %v276
      %v725 = vunpack.c.l.b16 %v277
      %v726 = vunpack.c.l.b16 %v278
      %v727 = vunpack.c.l.b16 %v279
      %v728 = vunpack.c.l.b16 %v280
      %v729 = vunpack.c.l.b16 %v281
      %v730 = vunpack.c.l.b16 %v282
      %v731 = vunpack.c.l.b16 %v283
      %v732 = vunpack.c.l.b16 %v284
      %v733 = vunpack.c.l.b16 %v285
      %v734 = vunpack.c.l.b16 %v286
      %v735 = vunpack.c.l.b16 %v287
      %v736 = vunpack.c.l.b16 %v288
      %v737 = vunpack.c.l.b16 %v289
      %v738 = vunpack.c.l.b16 %v290
      %v739 = vunpack.c.l.b16 %v291
      %v740 = vunpack.c.l.b16 %v292
      %v741 = vunpack.c.l.b16 %v293
      %v742 = vunpack.c.l.b16 %v294
      %v743 = vunpack.c.l.b16 %v295
      %v744 = vunpack.c.l.b16 %v296
      %v745 = vunpack.c.l.b16 %v297
      %v746 = vunpack.c.l.b16 %v298
      %v747 = vunpack.c.l.b16 %v299
      %v748 = vunpack.c.l.b16 %v300
      %v749 = vunpack.c.l.b16 %v301
      %v750 = vunpack.c.l.b16 %v302
      %v751 = vunpack.c.l.b16 %v303
      %v752 = vunpack.c.l.b16 %v304
      %v753 = vunpack.c.l.b16 %v305
      %v754 = vunpack.c.l.b16 %v306
      %v755 = vunpack.c.l.b16 %v307
      %v756 = vunpack.c.l.b16 %v308
      %v757 = vunpack.c.l.b16 %v309
      %v758 = vunpack.c.l.b16 %v310
      %v759 = vunpack.c.l.b16 %v311
      %v760 = vunpack.c.l.b16 %v312
      %v761 = vunpack.c.l.b16 %v313
      %v762 = vunpack.c.l.b16 %v314
      %v763 = vunpack.c.l.b16 %v315
      %v764 = vunpack.c.l.b16 %v316
      %v765 = vunpack.c.l.b16 %v317
      %v766 = vunpack.c.l.b16 %v318
      %v767 = vunpack.c.l.b16 %v319
      %v768 = vunpack.c.l.b16 %v320
      %v769 = vunpack.c.l.b16 %v321
      %v770 = vunpack.c.l.b16 %v322
      %v771 = vunpack.c.l.b16 %v323
      %v772 = vunpack.c.l.b16 %v324
      %v773 = vunpack.c.l.b16 %v325
      %v774 = vunpack.c.l.b16 %v326
      %v775 = vunpack.c.l.b16 %v327
      %v776 = vunpack.c.l.b16 %v328
      %v777 = vunpack.c.l.b16 %v329
      %v778 = vunpack.c.l.b16 %v330
      %v779 = vunpack.c.l.b16 %v331
      %v780 = vunpack.c.l.b16 %v332
      %v781 = vpack.c.b16 %v718, %v717
      %v782 = vpack.c.b16 %v720, %v719
      %v783 = vpack.c.b16 %v722, %v721
      %v784 = vpack.c.b16 %v724, %v723
      %v785 = vpack.c.b16 %v726, %v725
      %v786 = vpack.c.b16 %v728, %v727
      %v787 = vpack.c.b16 %v730, %v729
      %v788 = vpack.c.b16 %v732, %v731
      %v789 = vpack.c.b16 %v734, %v733
      %v790 = vpack.c.b16 %v736, %v735
      %v791 = vpack.c.b16 %v738, %v737
      %v792 = vpack.c.b16 %v740, %v739
      %v793 = vpack.c.b16 %v742, %v741
      %v794 = vpack.c.b16 %v744, %v743
      %v795 = vpack.c.b16 %v746, %v745
      %v796 = vpack.c.b16 %v748, %v747
      %v797 = vpack.c.b16 %v750, %v749
      %v798 = vpack.c.b16 %v752, %v751
      %v799 = vpack.c.b16 %v754, %v753
      %v800 = vpack.c.b16 %v756, %v755
      %v801 = vpack.c.b16 %v758, %v757
      %v802 = vpack.c.b16 %v760, %v759
      %v803 = vpack.c.b16 %v762, %v761
      %v804 = vpack.c.b16 %v764, %v763
      %v805 = vpack.c.b16 %v766, %v765
      %v806 = vpack.c.b16 %v768, %v767
      %v807 = vpack.c.b16 %v770, %v769
      %v808 = vpack.c.b16 %v772, %v771
      %v809 = vpack.c.b16 %v774, %v773
      %v810 = vpack.c.b16 %v776, %v775
      %v811 = vpack.c.b16 %v778, %v777
      %v812 = vpack.c.b16 %v780, %v779
      %845 = vmatprep.subr.bf16.mxu0 0
      %846 = vmatpush1.bf16.msra.mxu0 %v781
      %847 = vmatprep.subr.bf16.mxu0 0
      %848 = vmatpush1.bf16.msra.mxu0 %v782
      %849 = vmatprep.subr.bf16.mxu0 0
      %850 = vmatpush1.bf16.msra.mxu0 %v783
      %851 = vmatprep.subr.bf16.mxu0 0
      %852 = vmatpush1.bf16.msra.mxu0 %v784
      %853 = vmatprep.subr.bf16.mxu0 0
      %854 = vmatpush1.bf16.msra.mxu0 %v785
      %855 = vmatprep.subr.bf16.mxu0 0
      %856 = vmatpush1.bf16.msra.mxu0 %v786
      %857 = vmatprep.subr.bf16.mxu0 0
      %858 = vmatpush1.bf16.msra.mxu0 %v787
      %859 = vmatprep.subr.bf16.mxu0 0
      %860 = vmatpush1.bf16.msra.mxu0 %v788
      %861 = vmatprep.subr.bf16.mxu0 0
      %862 = vmatpush1.bf16.msra.mxu0 %v789
      %863 = vmatprep.subr.bf16.mxu0 0
      %864 = vmatpush1.bf16.msra.mxu0 %v790
      %865 = vmatprep.subr.bf16.mxu0 0
      %866 = vmatpush1.bf16.msra.mxu0 %v791
      %867 = vmatprep.subr.bf16.mxu0 0
      %868 = vmatpush1.bf16.msra.mxu0 %v792
      %869 = vmatprep.subr.bf16.mxu0 0
      %870 = vmatpush1.bf16.msra.mxu0 %v793
      %871 = vmatprep.subr.bf16.mxu0 0
      %872 = vmatpush1.bf16.msra.mxu0 %v794
      %873 = vmatprep.subr.bf16.mxu0 0
      %874 = vmatpush1.bf16.msra.mxu0 %v795
      %875 = vmatprep.subr.bf16.mxu0 0
      %876 = vmatpush1.bf16.msra.mxu0 %v796
      %877 = vmatprep.mubr.bf16.mxu0 %v526
      %878 = vmatmul.mubr.bf16.gmra.mrb[0].mxu0 %v525
      %v879 = vpop.f32.mrb[0].mxu0
      %v880 = vadd.f32 0.0, %v879
      %v881 = vpop.f32.mrb[0].mxu0
      %v882 = vpop.f32.mrb[0].mxu0
      %v883 = vadd.f32 0.0, %v882
      %v884 = vpop.f32.mrb[0].mxu0
      %885 = vmatprep.mubr.bf16.mxu0 %v530
      %886 = vmatmul.mubr.bf16.gmra.mrb[0].mxu0 %v529
      %v887 = vpop.f32.mrb[0].mxu0
      %v888 = vadd.f32 0.0, %v887
      %v889 = vpop.f32.mrb[0].mxu0
      %v890 = vpop.f32.mrb[0].mxu0
      %v891 = vadd.f32 0.0, %v890
      %v892 = vpop.f32.mrb[0].mxu0
      %893 = vmatprep.mubr.bf16.mxu0 %v534
      %894 = vmatmul.mubr.bf16.gmra.mrb[0].mxu0 %v533
      %v895 = vpop.f32.mrb[0].mxu0
      %v896 = vadd.f32 0.0, %v895
      %v897 = vpop.f32.mrb[0].mxu0
      %v898 = vpop.f32.mrb[0].mxu0
      %v899 = vadd.f32 0.0, %v898
      %v900 = vpop.f32.mrb[0].mxu0
      %901 = vmatprep.mubr.bf16.mxu0 %v538
      %902 = vmatmul.mubr.bf16.gmra.mrb[0].mxu0 %v537
      %v903 = vpop.f32.mrb[0].mxu0
      %v904 = vadd.f32 0.0, %v903
      %v905 = vpop.f32.mrb[0].mxu0
      %v906 = vpop.f32.mrb[0].mxu0
      %v907 = vadd.f32 0.0, %v906
      %v908 = vpop.f32.mrb[0].mxu0
      %909 = vmatprep.mubr.bf16.mxu0 %v542
      %910 = vmatmul.mubr.bf16.gmra.mrb[0].mxu0 %v541
      %v911 = vpop.f32.mrb[0].mxu0
      %v912 = vadd.f32 0.0, %v911
      %v913 = vpop.f32.mrb[0].mxu0
      %v914 = vpop.f32.mrb[0].mxu0
      %v915 = vadd.f32 0.0, %v914
      %v916 = vpop.f32.mrb[0].mxu0
      %917 = vmatprep.mubr.bf16.mxu0 %v546
      %918 = vmatmul.mubr.bf16.gmra.mrb[0].mxu0 %v545
      %v919 = vpop.f32.mrb[0].mxu0
      %v920 = vadd.f32 0.0, %v919
      %v921 = vpop.f32.mrb[0].mxu0
      %v922 = vpop.f32.mrb[0].mxu0
      %v923 = vadd.f32 0.0, %v922
      %v924 = vpop.f32.mrb[0].mxu0
      %925 = vmatprep.mubr.bf16.mxu0 %v550
      %926 = vmatmul.mubr.bf16.gmra.mrb[0].mxu0 %v549
      %v927 = vpop.f32.mrb[0].mxu0
      %v928 = vadd.f32 0.0, %v927
      %v929 = vpop.f32.mrb[0].mxu0
      %v930 = vpop.f32.mrb[0].mxu0
      %v931 = vadd.f32 0.0, %v930
      %v932 = vpop.f32.mrb[0].mxu0
      %933 = vmatprep.mubr.bf16.mxu0 %v554
      %934 = vmatmul.mubr.bf16.gmra.mrb[0].mxu0 %v553
      %v935 = vpop.f32.mrb[0].mxu0
      %v936 = vadd.f32 0.0, %v935
      %v937 = vpop.f32.mrb[0].mxu0
      %v938 = vpop.f32.mrb[0].mxu0
      %v939 = vadd.f32 0.0, %v938
      %v940 = vpop.f32.mrb[0].mxu0
      %941 = vmatprep.mubr.bf16.mxu0 %v558
      %942 = vmatmul.mubr.bf16.gmra.mrb[0].mxu0 %v557
      %v943 = vpop.f32.mrb[0].mxu0
      %v944 = vadd.f32 0.0, %v943
      %v945 = vpop.f32.mrb[0].mxu0
      %v946 = vpop.f32.mrb[0].mxu0
      %v947 = vadd.f32 0.0, %v946
      %v948 = vpop.f32.mrb[0].mxu0
      %949 = vmatprep.mubr.bf16.mxu0 %v562
      %950 = vmatmul.mubr.bf16.gmra.mrb[0].mxu0 %v561
      %v951 = vpop.f32.mrb[0].mxu0
      %v952 = vadd.f32 0.0, %v951
      %v953 = vpop.f32.mrb[0].mxu0
      %v954 = vpop.f32.mrb[0].mxu0
      %v955 = vadd.f32 0.0, %v954
      %v956 = vpop.f32.mrb[0].mxu0
      %957 = vmatprep.mubr.bf16.mxu0 %v566
      %958 = vmatmul.mubr.bf16.gmra.mrb[0].mxu0 %v565
      %v959 = vpop.f32.mrb[0].mxu0
      %v960 = vadd.f32 0.0, %v959
      %v961 = vpop.f32.mrb[0].mxu0
      %v962 = vpop.f32.mrb[0].mxu0
      %v963 = vadd.f32 0.0, %v962
      %v964 = vpop.f32.mrb[0].mxu0
      %965 = vmatprep.mubr.bf16.mxu0 %v570
      %966 = vmatmul.mubr.bf16.gmra.mrb[0].mxu0 %v569
      %v967 = vpop.f32.mrb[0].mxu0
      %v968 = vadd.f32 0.0, %v967
      %v969 = vpop.f32.mrb[0].mxu0
      %v970 = vpop.f32.mrb[0].mxu0
      %v971 = vadd.f32 0.0, %v970
      %v972 = vpop.f32.mrb[0].mxu0
      %973 = vmatprep.mubr.bf16.mxu0 %v574
      %974 = vmatmul.mubr.bf16.gmra.mrb[0].mxu0 %v573
      %v975 = vpop.f32.mrb[0].mxu0
      %v976 = vadd.f32 0.0, %v975
      %v977 = vpop.f32.mrb[0].mxu0
      %v978 = vpop.f32.mrb[0].mxu0
      %v979 = vadd.f32 0.0, %v978
      %v980 = vpop.f32.mrb[0].mxu0
      %981 = vmatprep.mubr.bf16.mxu0 %v578
      %982 = vmatmul.mubr.bf16.gmra.mrb[0].mxu0 %v577
      %v983 = vpop.f32.mrb[0].mxu0
      %v984 = vadd.f32 0.0, %v983
      %v985 = vpop.f32.mrb[0].mxu0
      %v986 = vpop.f32.mrb[0].mxu0
      %v987 = vadd.f32 0.0, %v986
      %v988 = vpop.f32.mrb[0].mxu0
      %989 = vmatprep.mubr.bf16.mxu0 %v582
      %990 = vmatmul.mubr.bf16.gmra.mrb[0].mxu0 %v581
      %v991 = vpop.f32.mrb[0].mxu0
      %v992 = vadd.f32 0.0, %v991
      %v993 = vpop.f32.mrb[0].mxu0
      %v994 = vpop.f32.mrb[0].mxu0
      %v995 = vadd.f32 0.0, %v994
      %v996 = vpop.f32.mrb[0].mxu0
      %997 = vmatprep.mubr.bf16.mxu0 %v586
      %998 = vmatmul.mubr.bf16.gmra.mrb[0].mxu0 %v585
      %v999 = vpop.f32.mrb[0].mxu0
      %v1000 = vadd.f32 0.0, %v999
      %v1001 = vpop.f32.mrb[0].mxu0
      %v1002 = vpop.f32.mrb[0].mxu0
      %v1003 = vadd.f32 0.0, %v1002
      %v1004 = vpop.f32.mrb[0].mxu0
      %1005 = vdwg.mxu0
      %1006 = vmatprep.subr.bf16.mxu0 0
      %1007 = vmatpush1.bf16.msra.mxu0 %v797
      %1008 = vmatprep.subr.bf16.mxu0 0
      %1009 = vmatpush1.bf16.msra.mxu0 %v798
      %1010 = vmatprep.subr.bf16.mxu0 0
      %1011 = vmatpush1.bf16.msra.mxu0 %v799
      %1012 = vmatprep.subr.bf16.mxu0 0
      %1013 = vmatpush1.bf16.msra.mxu0 %v800
      %1014 = vmatprep.subr.bf16.mxu0 0
      %1015 = vmatpush1.bf16.msra.mxu0 %v801
      %1016 = vmatprep.subr.bf16.mxu0 0
      %1017 = vmatpush1.bf16.msra.mxu0 %v802
      %1018 = vmatprep.subr.bf16.mxu0 0
      %1019 = vmatpush1.bf16.msra.mxu0 %v803
      %1020 = vmatprep.subr.bf16.mxu0 0
      %1021 = vmatpush1.bf16.msra.mxu0 %v804
      %1022 = vmatprep.subr.bf16.mxu0 0
      %1023 = vmatpush1.bf16.msra.mxu0 %v805
      %1024 = vmatprep.subr.bf16.mxu0 0
      %1025 = vmatpush1.bf16.msra.mxu0 %v806
      %1026 = vmatprep.subr.bf16.mxu0 0
      %1027 = vmatpush1.bf16.msra.mxu0 %v807
      %1028 = vmatprep.subr.bf16.mxu0 0
      %1029 = vmatpush1.bf16.msra.mxu0 %v808
      %1030 = vmatprep.subr.bf16.mxu0 0
      %1031 = vmatpush1.bf16.msra.mxu0 %v809
      %1032 = vmatprep.subr.bf16.mxu0 0
      %1033 = vmatpush1.bf16.msra.mxu0 %v810
      %1034 = vmatprep.subr.bf16.mxu0 0
      %1035 = vmatpush1.bf16.msra.mxu0 %v811
      %1036 = vmatprep.subr.bf16.mxu0 0
      %1037 = vmatpush1.bf16.msra.mxu0 %v812
      %1038 = vmatprep.mubr.bf16.mxu0 %v528
      %1039 = vmatmul.mubr.bf16.gmra.mrb[0].mxu0 %v527
      %v1040 = vpop.f32.mrb[0].mxu0
      %v1041 = vadd.f32 %v880, %v1040
      %v1042 = vpop.f32.mrb[0].mxu0
      %v1043 = vpop.f32.mrb[0].mxu0
      %v1044 = vadd.f32 %v883, %v1043
      %v1045 = vpop.f32.mrb[0].mxu0
      %1046 = vmatprep.mubr.bf16.mxu0 %v532
      %1047 = vmatmul.mubr.bf16.gmra.mrb[0].mxu0 %v531
      %v1048 = vpop.f32.mrb[0].mxu0
      %v1049 = vadd.f32 %v888, %v1048
      %v1050 = vpop.f32.mrb[0].mxu0
      %v1051 = vpop.f32.mrb[0].mxu0
      %v1052 = vadd.f32 %v891, %v1051
      %v1053 = vpop.f32.mrb[0].mxu0
      %1054 = vmatprep.mubr.bf16.mxu0 %v536
      %1055 = vmatmul.mubr.bf16.gmra.mrb[0].mxu0 %v535
      %v1056 = vpop.f32.mrb[0].mxu0
      %v1057 = vadd.f32 %v896, %v1056
      %v1058 = vpop.f32.mrb[0].mxu0
      %v1059 = vpop.f32.mrb[0].mxu0
      %v1060 = vadd.f32 %v899, %v1059
      %v1061 = vpop.f32.mrb[0].mxu0
      %1062 = vmatprep.mubr.bf16.mxu0 %v540
      %1063 = vmatmul.mubr.bf16.gmra.mrb[0].mxu0 %v539
      %v1064 = vpop.f32.mrb[0].mxu0
      %v1065 = vadd.f32 %v904, %v1064
      %v1066 = vpop.f32.mrb[0].mxu0
      %v1067 = vpop.f32.mrb[0].mxu0
      %v1068 = vadd.f32 %v907, %v1067
      %v1069 = vpop.f32.mrb[0].mxu0
      %1070 = vmatprep.mubr.bf16.mxu0 %v544
      %1071 = vmatmul.mubr.bf16.gmra.mrb[0].mxu0 %v543
      %v1072 = vpop.f32.mrb[0].mxu0
      %v1073 = vadd.f32 %v912, %v1072
      %v1074 = vpop.f32.mrb[0].mxu0
      %v1075 = vpop.f32.mrb[0].mxu0
      %v1076 = vadd.f32 %v915, %v1075
      %v1077 = vpop.f32.mrb[0].mxu0
      %1078 = vmatprep.mubr.bf16.mxu0 %v548
      %1079 = vmatmul.mubr.bf16.gmra.mrb[0].mxu0 %v547
      %v1080 = vpop.f32.mrb[0].mxu0
      %v1081 = vadd.f32 %v920, %v1080
      %v1082 = vpop.f32.mrb[0].mxu0
      %v1083 = vpop.f32.mrb[0].mxu0
      %v1084 = vadd.f32 %v923, %v1083
      %v1085 = vpop.f32.mrb[0].mxu0
      %1086 = vmatprep.mubr.bf16.mxu0 %v552
      %1087 = vmatmul.mubr.bf16.gmra.mrb[0].mxu0 %v551
      %v1088 = vpop.f32.mrb[0].mxu0
      %v1089 = vadd.f32 %v928, %v1088
      %v1090 = vpop.f32.mrb[0].mxu0
      %v1091 = vpop.f32.mrb[0].mxu0
      %v1092 = vadd.f32 %v931, %v1091
      %v1093 = vpop.f32.mrb[0].mxu0
      %1094 = vmatprep.mubr.bf16.mxu0 %v556
      %1095 = vmatmul.mubr.bf16.gmra.mrb[0].mxu0 %v555
      %v1096 = vpop.f32.mrb[0].mxu0
      %v1097 = vadd.f32 %v936, %v1096
      %v1098 = vpop.f32.mrb[0].mxu0
      %v1099 = vpop.f32.mrb[0].mxu0
      %v1100 = vadd.f32 %v939, %v1099
      %v1101 = vpop.f32.mrb[0].mxu0
      %1102 = vmatprep.mubr.bf16.mxu0 %v560
      %1103 = vmatmul.mubr.bf16.gmra.mrb[0].mxu0 %v559
      %v1104 = vpop.f32.mrb[0].mxu0
      %v1105 = vadd.f32 %v944, %v1104
      %v1106 = vpop.f32.mrb[0].mxu0
      %v1107 = vpop.f32.mrb[0].mxu0
      %v1108 = vadd.f32 %v947, %v1107
      %v1109 = vpop.f32.mrb[0].mxu0
      %1110 = vmatprep.mubr.bf16.mxu0 %v564
      %1111 = vmatmul.mubr.bf16.gmra.mrb[0].mxu0 %v563
      %v1112 = vpop.f32.mrb[0].mxu0
      %v1113 = vadd.f32 %v952, %v1112
      %v1114 = vpop.f32.mrb[0].mxu0
      %v1115 = vpop.f32.mrb[0].mxu0
      %v1116 = vadd.f32 %v955, %v1115
      %v1117 = vpop.f32.mrb[0].mxu0
      %1118 = vmatprep.mubr.bf16.mxu0 %v568
      %1119 = vmatmul.mubr.bf16.gmra.mrb[0].mxu0 %v567
      %v1120 = vpop.f32.mrb[0].mxu0
      %v1121 = vadd.f32 %v960, %v1120
      %v1122 = vpop.f32.mrb[0].mxu0
      %v1123 = vpop.f32.mrb[0].mxu0
      %v1124 = vadd.f32 %v963, %v1123
      %v1125 = vpop.f32.mrb[0].mxu0
      %1126 = vmatprep.mubr.bf16.mxu0 %v572
      %1127 = vmatmul.mubr.bf16.gmra.mrb[0].mxu0 %v571
      %v1128 = vpop.f32.mrb[0].mxu0
      %v1129 = vadd.f32 %v968, %v1128
      %v1130 = vpop.f32.mrb[0].mxu0
      %v1131 = vpop.f32.mrb[0].mxu0
      %v1132 = vadd.f32 %v971, %v1131
      %v1133 = vpop.f32.mrb[0].mxu0
      %1134 = vmatprep.mubr.bf16.mxu0 %v576
      %1135 = vmatmul.mubr.bf16.gmra.mrb[0].mxu0 %v575
      %v1136 = vpop.f32.mrb[0].mxu0
      %v1137 = vadd.f32 %v976, %v1136
      %v1138 = vpop.f32.mrb[0].mxu0
      %v1139 = vpop.f32.mrb[0].mxu0
      %v1140 = vadd.f32 %v979, %v1139
      %v1141 = vpop.f32.mrb[0].mxu0
      %1142 = vmatprep.mubr.bf16.mxu0 %v580
      %1143 = vmatmul.mubr.bf16.gmra.mrb[0].mxu0 %v579
      %v1144 = vpop.f32.mrb[0].mxu0
      %v1145 = vadd.f32 %v984, %v1144
      %v1146 = vpop.f32.mrb[0].mxu0
      %v1147 = vpop.f32.mrb[0].mxu0
      %v1148 = vadd.f32 %v987, %v1147
      %v1149 = vpop.f32.mrb[0].mxu0
      %1150 = vmatprep.mubr.bf16.mxu0 %v584
      %1151 = vmatmul.mubr.bf16.gmra.mrb[0].mxu0 %v583
      %v1152 = vpop.f32.mrb[0].mxu0
      %v1153 = vadd.f32 %v992, %v1152
      %v1154 = vpop.f32.mrb[0].mxu0
      %v1155 = vpop.f32.mrb[0].mxu0
      %v1156 = vadd.f32 %v995, %v1155
      %v1157 = vpop.f32.mrb[0].mxu0
      %1158 = vmatprep.mubr.bf16.mxu0 %v588
      %1159 = vmatmul.mubr.bf16.gmra.mrb[0].mxu0 %v587
      %v1160 = vpop.f32.mrb[0].mxu0
      %v1161 = vadd.f32 %v1000, %v1160
      %v1162 = vpop.f32.mrb[0].mxu0
      %v1163 = vpop.f32.mrb[0].mxu0
      %v1164 = vadd.f32 %v1003, %v1163
      %v1165 = vpop.f32.mrb[0].mxu0
      %1166 = vdwg.mxu0
      %v1167 = vld [vmem:[%s2] sm:$0x1]
      %v1169 = vlaneseq
      %v1170 = vshrl.u32 %v1169, 7
      %v1171 = vsub.s32 0, %v1170
      %v1172 = vrot.slane %v1167, %v1171
      %v1174 = vmul.f32 %v1041, %v1172
      %v1175 = vmul.f32 %v1044, %v1172
      %v1176 = vmul.f32 %v1049, %v1172
      %v1177 = vmul.f32 %v1052, %v1172
      %v1178 = vmul.f32 %v1057, %v1172
      %v1179 = vmul.f32 %v1060, %v1172
      %v1180 = vmul.f32 %v1065, %v1172
      %v1181 = vmul.f32 %v1068, %v1172
      %v1182 = vmul.f32 %v1073, %v1172
      %v1183 = vmul.f32 %v1076, %v1172
      %v1184 = vmul.f32 %v1081, %v1172
      %v1185 = vmul.f32 %v1084, %v1172
      %v1186 = vmul.f32 %v1089, %v1172
      %v1187 = vmul.f32 %v1092, %v1172
      %v1188 = vmul.f32 %v1097, %v1172
      %v1189 = vmul.f32 %v1100, %v1172
      %v1190 = vmul.f32 %v1105, %v1172
      %v1191 = vmul.f32 %v1108, %v1172
      %v1192 = vmul.f32 %v1113, %v1172
      %v1193 = vmul.f32 %v1116, %v1172
      %v1194 = vmul.f32 %v1121, %v1172
      %v1195 = vmul.f32 %v1124, %v1172
      %v1196 = vmul.f32 %v1129, %v1172
      %v1197 = vmul.f32 %v1132, %v1172
      %v1198 = vmul.f32 %v1137, %v1172
      %v1199 = vmul.f32 %v1140, %v1172
      %v1200 = vmul.f32 %v1145, %v1172
      %v1201 = vmul.f32 %v1148, %v1172
      %v1202 = vmul.f32 %v1153, %v1172
      %v1203 = vmul.f32 %v1156, %v1172
      %v1204 = vmul.f32 %v1161, %v1172
      %v1205 = vmul.f32 %v1164, %v1172
      %v1206 = vld [vmem:[%s3] sm:$0x1]
      %v1208 = vlaneseq
      %v1209 = vshrl.u32 %v1208, 7
      %v1210 = vsub.s32 0, %v1209
      %v1211 = vrot.slane %v1206, %v1210
      %v1213 = vadd.f32 %v1174, %v1211
      %v1214 = vadd.f32 %v1175, %v1211
      %v1215 = vadd.f32 %v1176, %v1211
      %v1216 = vadd.f32 %v1177, %v1211
      %v1217 = vadd.f32 %v1178, %v1211
      %v1218 = vadd.f32 %v1179, %v1211
      %v1219 = vadd.f32 %v1180, %v1211
      %v1220 = vadd.f32 %v1181, %v1211
      %v1221 = vadd.f32 %v1182, %v1211
      %v1222 = vadd.f32 %v1183, %v1211
      %v1223 = vadd.f32 %v1184, %v1211
      %v1224 = vadd.f32 %v1185, %v1211
      %v1225 = vadd.f32 %v1186, %v1211
      %v1226 = vadd.f32 %v1187, %v1211
      %v1227 = vadd.f32 %v1188, %v1211
      %v1228 = vadd.f32 %v1189, %v1211
      %v1229 = vadd.f32 %v1190, %v1211
      %v1230 = vadd.f32 %v1191, %v1211
      %v1231 = vadd.f32 %v1192, %v1211
      %v1232 = vadd.f32 %v1193, %v1211
      %v1233 = vadd.f32 %v1194, %v1211
      %v1234 = vadd.f32 %v1195, %v1211
      %v1235 = vadd.f32 %v1196, %v1211
      %v1236 = vadd.f32 %v1197, %v1211
      %v1237 = vadd.f32 %v1198, %v1211
      %v1238 = vadd.f32 %v1199, %v1211
      %v1239 = vadd.f32 %v1200, %v1211
      %v1240 = vadd.f32 %v1201, %v1211
      %v1241 = vadd.f32 %v1202, %v1211
      %v1242 = vadd.f32 %v1203, %v1211
      %v1243 = vadd.f32 %v1204, %v1211
      %v1244 = vadd.f32 %v1205, %v1211
      %v1245 = vmax.f32 %v1213, 0.0
      %v1246 = vmax.f32 %v1214, 0.0
      %v1247 = vmax.f32 %v1215, 0.0
      %v1248 = vmax.f32 %v1216, 0.0
      %v1249 = vmax.f32 %v1217, 0.0
      %v1250 = vmax.f32 %v1218, 0.0
      %v1251 = vmax.f32 %v1219, 0.0
      %v1252 = vmax.f32 %v1220, 0.0
      %v1253 = vmax.f32 %v1221, 0.0
      %v1254 = vmax.f32 %v1222, 0.0
      %v1255 = vmax.f32 %v1223, 0.0
      %v1256 = vmax.f32 %v1224, 0.0
      %v1257 = vmax.f32 %v1225, 0.0
      %v1258 = vmax.f32 %v1226, 0.0
      %v1259 = vmax.f32 %v1227, 0.0
      %v1260 = vmax.f32 %v1228, 0.0
      %v1261 = vmax.f32 %v1229, 0.0
      %v1262 = vmax.f32 %v1230, 0.0
      %v1263 = vmax.f32 %v1231, 0.0
      %v1264 = vmax.f32 %v1232, 0.0
      %v1265 = vmax.f32 %v1233, 0.0
      %v1266 = vmax.f32 %v1234, 0.0
      %v1267 = vmax.f32 %v1235, 0.0
      %v1268 = vmax.f32 %v1236, 0.0
      %v1269 = vmax.f32 %v1237, 0.0
      %v1270 = vmax.f32 %v1238, 0.0
      %v1271 = vmax.f32 %v1239, 0.0
      %v1272 = vmax.f32 %v1240, 0.0
      %v1273 = vmax.f32 %v1241, 0.0
      %v1274 = vmax.f32 %v1242, 0.0
      %v1275 = vmax.f32 %v1243, 0.0
      %v1276 = vmax.f32 %v1244, 0.0
      %v1277 = vpack.c.bf16 %v1246, %v1245
      %v1278 = vpack.c.bf16 %v1248, %v1247
      %v1279 = vpack.c.bf16 %v1250, %v1249
      %v1280 = vpack.c.bf16 %v1252, %v1251
      %v1281 = vpack.c.bf16 %v1254, %v1253
      %v1282 = vpack.c.bf16 %v1256, %v1255
      %v1283 = vpack.c.bf16 %v1258, %v1257
      %v1284 = vpack.c.bf16 %v1260, %v1259
      %v1285 = vpack.c.bf16 %v1262, %v1261
      %v1286 = vpack.c.bf16 %v1264, %v1263
      %v1287 = vpack.c.bf16 %v1266, %v1265
      %v1288 = vpack.c.bf16 %v1268, %v1267
      %v1289 = vpack.c.bf16 %v1270, %v1269
      %v1290 = vpack.c.bf16 %v1272, %v1271
      %v1291 = vpack.c.bf16 %v1274, %v1273
      %v1292 = vpack.c.bf16 %v1276, %v1275
      %v1309 = vunpack.c.l.b16 %v1277
      %v1310 = vunpack.c.h.b16 %v1277
      %v1311 = vunpack.c.l.b16 %v1278
      %v1312 = vunpack.c.h.b16 %v1278
      %v1313 = vunpack.c.l.b16 %v1279
      %v1314 = vunpack.c.h.b16 %v1279
      %v1315 = vunpack.c.l.b16 %v1280
      %v1316 = vunpack.c.h.b16 %v1280
      %v1317 = vunpack.c.l.b16 %v1281
      %v1318 = vunpack.c.h.b16 %v1281
      %v1319 = vunpack.c.l.b16 %v1282
      %v1320 = vunpack.c.h.b16 %v1282
      %v1321 = vunpack.c.l.b16 %v1283
      %v1322 = vunpack.c.h.b16 %v1283
      %v1323 = vunpack.c.l.b16 %v1284
      %v1324 = vunpack.c.h.b16 %v1284
      %v1325 = vunpack.c.l.b16 %v1285
      %v1326 = vunpack.c.h.b16 %v1285
      %v1327 = vunpack.c.l.b16 %v1286
      %v1328 = vunpack.c.h.b16 %v1286
      %v1329 = vunpack.c.l.b16 %v1287
      %v1330 = vunpack.c.h.b16 %v1287
      %v1331 = vunpack.c.l.b16 %v1288
      %v1332 = vunpack.c.h.b16 %v1288
      %v1333 = vunpack.c.l.b16 %v1289
      %v1334 = vunpack.c.h.b16 %v1289
      %v1335 = vunpack.c.l.b16 %v1290
      %v1336 = vunpack.c.h.b16 %v1290
      %v1337 = vunpack.c.l.b16 %v1291
      %v1338 = vunpack.c.h.b16 %v1291
      %v1339 = vunpack.c.l.b16 %v1292
      %v1340 = vunpack.c.h.b16 %v1292
      %v1341 = vpack.c.b16 %v1309, %v1309
      %v1342 = vpack.c.b16 %v1310, %v1310
      %v1343 = vpack.c.b16 %v1311, %v1311
      %v1344 = vpack.c.b16 %v1312, %v1312
      %v1345 = vpack.c.b16 %v1313, %v1313
      %v1346 = vpack.c.b16 %v1314, %v1314
      %v1347 = vpack.c.b16 %v1315, %v1315
      %v1348 = vpack.c.b16 %v1316, %v1316
      %v1349 = vpack.c.b16 %v1317, %v1317
      %v1350 = vpack.c.b16 %v1318, %v1318
      %v1351 = vpack.c.b16 %v1319, %v1319
      %v1352 = vpack.c.b16 %v1320, %v1320
      %v1353 = vpack.c.b16 %v1321, %v1321
      %v1354 = vpack.c.b16 %v1322, %v1322
      %v1355 = vpack.c.b16 %v1323, %v1323
      %v1356 = vpack.c.b16 %v1324, %v1324
      %v1357 = vpack.c.b16 %v1325, %v1325
      %v1358 = vpack.c.b16 %v1326, %v1326
      %v1359 = vpack.c.b16 %v1327, %v1327
      %v1360 = vpack.c.b16 %v1328, %v1328
      %v1361 = vpack.c.b16 %v1329, %v1329
      %v1362 = vpack.c.b16 %v1330, %v1330
      %v1363 = vpack.c.b16 %v1331, %v1331
      %v1364 = vpack.c.b16 %v1332, %v1332
      %v1365 = vpack.c.b16 %v1333, %v1333
      %v1366 = vpack.c.b16 %v1334, %v1334
      %v1367 = vpack.c.b16 %v1335, %v1335
      %v1368 = vpack.c.b16 %v1336, %v1336
      %v1369 = vpack.c.b16 %v1337, %v1337
      %v1370 = vpack.c.b16 %v1338, %v1338
      %v1371 = vpack.c.b16 %v1339, %v1339
      %v1372 = vpack.c.b16 %v1340, %v1340
      %1405 = vst [vmem:[%s202] sm:$0xf] %v1341
      %1406 = vst [vmem:[%s202 + $0x4] sm:$0xf] %v1342
      %1407 = vst [vmem:[%s202 + $0x8] sm:$0xf] %v1343
      %1408 = vst [vmem:[%s202 + $0xc] sm:$0xf] %v1344
      %1409 = vst [vmem:[%s202 + $0x10] sm:$0xf] %v1345
      %1410 = vst [vmem:[%s202 + $0x14] sm:$0xf] %v1346
      %1411 = vst [vmem:[%s202 + $0x18] sm:$0xf] %v1347
      %1412 = vst [vmem:[%s202 + $0x1c] sm:$0xf] %v1348
      %1413 = vst [vmem:[%s202 + $0x20] sm:$0xf] %v1349
      %1414 = vst [vmem:[%s202 + $0x24] sm:$0xf] %v1350
      %1415 = vst [vmem:[%s202 + $0x28] sm:$0xf] %v1351
      %1416 = vst [vmem:[%s202 + $0x2c] sm:$0xf] %v1352
      %1417 = vst [vmem:[%s202 + $0x30] sm:$0xf] %v1353
      %1418 = vst [vmem:[%s202 + $0x34] sm:$0xf] %v1354
      %1419 = vst [vmem:[%s202 + $0x38] sm:$0xf] %v1355
      %1420 = vst [vmem:[%s202 + $0x3c] sm:$0xf] %v1356
      %1421 = vst [vmem:[%s202 + $0x40] sm:$0xf] %v1357
      %1422 = vst [vmem:[%s202 + $0x44] sm:$0xf] %v1358
      %1423 = vst [vmem:[%s202 + $0x48] sm:$0xf] %v1359
      %1424 = vst [vmem:[%s202 + $0x4c] sm:$0xf] %v1360
      %1425 = vst [vmem:[%s202 + $0x50] sm:$0xf] %v1361
      %1426 = vst [vmem:[%s202 + $0x54] sm:$0xf] %v1362
      %1427 = vst [vmem:[%s202 + $0x58] sm:$0xf] %v1363
      %1428 = vst [vmem:[%s202 + $0x5c] sm:$0xf] %v1364
      %1429 = vst [vmem:[%s202 + $0x60] sm:$0xf] %v1365
      %1430 = vst [vmem:[%s202 + $0x64] sm:$0xf] %v1366
      %1431 = vst [vmem:[%s202 + $0x68] sm:$0xf] %v1367
      %1432 = vst [vmem:[%s202 + $0x6c] sm:$0xf] %v1368
      %1433 = vst [vmem:[%s202 + $0x70] sm:$0xf] %v1369
      %1434 = vst [vmem:[%s202 + $0x74] sm:$0xf] %v1370
      %1435 = vst [vmem:[%s202 + $0x78] sm:$0xf] %v1371
      %1436 = vst [vmem:[%s202 + $0x7c] sm:$0xf] %v1372
      %s1437 = smul.u32 32, %s15
      %p1438 = scmp.lt.s32.totalorder %s1437, 63
      %s1439 = scalar_select %p1438, %s1437, 63
      %s1440 = smul.addr %s1439, 4
      %s1441 = scalar_lea.vmem %s4, %s1440
      // Predicated region
      $region37: #{_lambda_.5} parent=35 // pred_check
        %p1442 = pneg %p122
      $region38: #{_lambda_.5} parent=35 // pred_check_branch
        %1444 = sbr.rel (%p1442) target = $region40
      $region39: #{_lambda_.5} parent=35 // pred_region
        %s1445 = smul.u32 32, %s15
      $region40: #{_lambda_.5} parent=35 // pred_fallthru
        _
    $region36: #{_lambda_.5} parent=5 // pred_fallthru
      _
    %p1446 = scmp.le.s32.totalorder 2, %s10
    // Predicated region
    $region41: #{_lambda_.5} parent=5 // pred_check
      %p1447 = pneg %p1446
    $region42: #{_lambda_.5} parent=5 // pred_check_branch
      %1449 = sbr.rel (%p1447) target = $region44
    $region43: #{_lambda_.5} parent=5 // pred_region
      %s1450 = ssub.s32 %s10, 2
      // Predicated region
      $region45: #{_lambda_.5} parent=43 // pred_check
        %p1451 = pneg %p128
      $region46: #{_lambda_.5} parent=43 // pred_check_branch
        %1453 = sbr.rel (%p1451) target = $region48
      $region47: #{_lambda_.5} parent=43 // pred_region
        %s1454 = smul.u32 32, %s16
        %p1455 = scmp.lt.s32.totalorder %s1454, 63
        %s1456 = scalar_select %p1455, %s1454, 63
        %s1457 = smul.addr %s1456, 4
        %s1458 = scalar_lea.vmem %s4, %s1457
      $region48: #{_lambda_.5} parent=43 // pred_fallthru
        _
    $region44: #{_lambda_.5} parent=5 // pred_fallthru
      _
  $region6: #{_lambda_.5} parent=0 // loop_footer
    %s14 = sadd.s32 1, %s10
  $region7: #{_lambda_.5} parent=0 // loop_footer_branch
    %9 = sbr.rel target = $region3
  $region8: #{_lambda_.5} parent=0 // loop_exit
    _

// kernel: _lambda_.6
$region0: #{_lambda_.6}
  #allocation0 [shape = 'u32[]', space=smem, size = 0x4, offset = 0x4, fixed_abs, tag = 'smem constant byte address 0x4 - core index']
  #allocation1 [shape = 'u32[144,128]{1,0:T(1,128)}', space=vmem, size = 0x12000, scoped, tag = 'internal scratch']
  %s0 = inlined_call_operand.vmem [shape: bf16[128,512], index: 0, kind: input, shape index: {}]
  %s1 = inlined_call_operand.vmem [shape: bf16[512,128], index: 1, kind: input, shape index: {}]
  %s2 = inlined_call_operand.vmem [shape: f32[1,128], index: 2, kind: input, shape index: {}]
  %s3 = inlined_call_operand.vmem [shape: f32[1,128], index: 3, kind: input, shape index: {}]
  %s4 = inlined_call_operand.vmem [shape: bf16[128,128], index: 4, kind: output, shape index: {}]
  %s5 = sld [smem:[#allocation0]]
  $region49: #{_lambda_.6} parent=0
    _
  %s7 = ssub.s32 1, %s5
  %s8 = scalar_select 0, %s7, %s5
  loop: start=0, step=1, limit=4
  $region2: #{_lambda_.6} parent=0 // loop_pre_header
    _
  $region3: #{_lambda_.6} parent=0 // loop_header
    %s10 = sphi 0, %s14
    %p11 = scmp.ge.s32.totalorder %s10, 4
    %s20 = sphi 0, %s22
    %s23 = sphi 0, %s20
    %s24 = sphi 0, %s23
    %s40 = sphi 0, %s24
    %s44 = sphi 0, %s44
    %s46 = sphi 0, %s44
    %s47 = sphi 0, %s46
    %s61 = sphi 0, %s47
    %s65 = sphi 0, %s65
    %s67 = sphi 0, %s65
    %s68 = sphi 0, %s67
    %s82 = sphi 0, %s68
    %s86 = sphi 0, %s86
    %s88 = sphi 0, %s86
    %s89 = sphi 0, %s88
    %s103 = sphi 0, %s89
    %s109 = sphi 0, %s111
    %s112 = sphi 0, %s109
    %s113 = sphi 0, %s112
    %s129 = sphi 0, %s113
  $region4: #{_lambda_.6} parent=0 // loop_header_branch
    %13 = sbr.rel (%p11) target = $region8
  $region5: #{_lambda_.6} parent=0 // loop_body
    %s15 = ssub.s32 %s10, 1
    %s16 = ssub.s32 %s10, 2
    %s17 = sadd.s32 %s10, 1
    %s18 = ssub.s32 %s10, %s17
    %p19 = scmp.eq.s32.totalorder %s18, 0
    %s21 = sadd.s32 %s20, 1
    %s22 = scalar_select %p19, %s20, %s21
    %p25 = pneg %p19
    %p26 = scmp.eq.s32.totalorder %s10, 1
    %p27 = por %p25, %p26
    %p28 = scmp.ne.s32.totalorder %s20, %s23
    %p29 = scmp.eq.s32.totalorder %s10, 0
    %p30 = por %p28, %p29
    %p31 = scmp.ne.s32.totalorder %s20, %s23
    %p32 = scmp.eq.s32.totalorder %s15, 1
    %p33 = por %p31, %p32
    %p34 = scmp.ne.s32.totalorder %s23, %s24
    %p35 = scmp.eq.s32.totalorder %s15, 0
    %p36 = por %p34, %p35
    %p37 = scmp.ne.s32.totalorder %s23, %s24
    %p38 = scmp.eq.s32.totalorder %s16, 1
    %p39 = por %p37, %p38
    %p41 = scmp.ne.s32.totalorder %s24, %s40
    %p42 = scmp.eq.s32.totalorder %s16, 0
    %p43 = por %p41, %p42
    %s45 = sadd.s32 %s44, 1
    %p48 = scmp.eq.s32.totalorder %s10, 1
    %p49 = scmp.ne.s32.totalorder %s44, %s46
    %p50 = scmp.eq.s32.totalorder %s10, 0
    %p51 = por %p49, %p50
    %p52 = scmp.ne.s32.totalorder %s44, %s46
    %p53 = scmp.eq.s32.totalorder %s15, 1
    %p54 = por %p52, %p53
    %p55 = scmp.ne.s32.totalorder %s46, %s47
    %p56 = scmp.eq.s32.totalorder %s15, 0
    %p57 = por %p55, %p56
    %p58 = scmp.ne.s32.totalorder %s46, %s47
    %p59 = scmp.eq.s32.totalorder %s16, 1
    %p60 = por %p58, %p59
    %p62 = scmp.ne.s32.totalorder %s47, %s61
    %p63 = scmp.eq.s32.totalorder %s16, 0
    %p64 = por %p62, %p63
    %s66 = sadd.s32 %s65, 1
    %p69 = scmp.eq.s32.totalorder %s10, 1
    %p70 = scmp.ne.s32.totalorder %s65, %s67
    %p71 = scmp.eq.s32.totalorder %s10, 0
    %p72 = por %p70, %p71
    %p73 = scmp.ne.s32.totalorder %s65, %s67
    %p74 = scmp.eq.s32.totalorder %s15, 1
    %p75 = por %p73, %p74
    %p76 = scmp.ne.s32.totalorder %s67, %s68
    %p77 = scmp.eq.s32.totalorder %s15, 0
    %p78 = por %p76, %p77
    %p79 = scmp.ne.s32.totalorder %s67, %s68
    %p80 = scmp.eq.s32.totalorder %s16, 1
    %p81 = por %p79, %p80
    %p83 = scmp.ne.s32.totalorder %s68, %s82
    %p84 = scmp.eq.s32.totalorder %s16, 0
    %p85 = por %p83, %p84
    %s87 = sadd.s32 %s86, 1
    %p90 = scmp.eq.s32.totalorder %s10, 1
    %p91 = scmp.ne.s32.totalorder %s86, %s88
    %p92 = scmp.eq.s32.totalorder %s10, 0
    %p93 = por %p91, %p92
    %p94 = scmp.ne.s32.totalorder %s86, %s88
    %p95 = scmp.eq.s32.totalorder %s15, 1
    %p96 = por %p94, %p95
    %p97 = scmp.ne.s32.totalorder %s88, %s89
    %p98 = scmp.eq.s32.totalorder %s15, 0
    %p99 = por %p97, %p98
    %p100 = scmp.ne.s32.totalorder %s88, %s89
    %p101 = scmp.eq.s32.totalorder %s16, 1
    %p102 = por %p100, %p101
    %p104 = scmp.ne.s32.totalorder %s89, %s103
    %p105 = scmp.eq.s32.totalorder %s16, 0
    %p106 = por %p104, %p105
    %s107 = ssub.s32 %s10, %s17
    %p108 = scmp.eq.s32.totalorder %s107, 0
    %s110 = sadd.s32 %s109, 1
    %s111 = scalar_select %p108, %s109, %s110
    %p114 = pneg %p108
    %p115 = scmp.eq.s32.totalorder %s10, 1
    %p116 = por %p114, %p115
    %p117 = scmp.ne.s32.totalorder %s109, %s112
    %p118 = scmp.eq.s32.totalorder %s10, 0
    %p119 = por %p117, %p118
    %p120 = scmp.ne.s32.totalorder %s109, %s112
    %p121 = scmp.eq.s32.totalorder %s15, 1
    %p122 = por %p120, %p121
    %p123 = scmp.ne.s32.totalorder %s112, %s113
    %p124 = scmp.eq.s32.totalorder %s15, 0
    %p125 = por %p123, %p124
    %p126 = scmp.ne.s32.totalorder %s112, %s113
    %p127 = scmp.eq.s32.totalorder %s16, 1
    %p128 = por %p126, %p127
    %p130 = scmp.ne.s32.totalorder %s113, %s129
    %p131 = scmp.eq.s32.totalorder %s16, 0
    %p132 = por %p130, %p131
    %p133 = scmp.le.s32.totalorder 1, %s10
    %p134 = scmp.lt.s32.totalorder %s10, 3
    %p135 = pnand %p133, %p134
    %p136 = pneg %p135
    // Predicated region
    $region9: #{_lambda_.6} parent=5 // pred_check
      _
    $region10: #{_lambda_.6} parent=5 // pred_check_branch
      %138 = sbr.rel (%p135) target = $region12
    $region11: #{_lambda_.6} parent=5 // pred_region
      %s139 = ssub.s32 %s10, 1
      // Predicated region
      $region13: #{_lambda_.6} parent=11 // pred_check
        %p140 = pneg %p57
      $region14: #{_lambda_.6} parent=11 // pred_check_branch
        %142 = sbr.rel (%p140) target = $region16
      $region15: #{_lambda_.6} parent=11 // pred_region
        _
      $region16: #{_lambda_.6} parent=11 // pred_fallthru
        _
      // Predicated region
      $region17: #{_lambda_.6} parent=11 // pred_check
        %p143 = pneg %p78
      $region18: #{_lambda_.6} parent=11 // pred_check_branch
        %145 = sbr.rel (%p143) target = $region20
      $region19: #{_lambda_.6} parent=11 // pred_region
        _
      $region20: #{_lambda_.6} parent=11 // pred_fallthru
        _
      // Predicated region
      $region21: #{_lambda_.6} parent=11 // pred_check
        %p146 = pneg %p99
      $region22: #{_lambda_.6} parent=11 // pred_check_branch
        %148 = sbr.rel (%p146) target = $region24
      $region23: #{_lambda_.6} parent=11 // pred_region
        _
      $region24: #{_lambda_.6} parent=11 // pred_fallthru
        _
    $region12: #{_lambda_.6} parent=5 // pred_fallthru
      _
    %p149 = scmp.lt.s32.totalorder %s10, 2
    // Predicated region
    $region25: #{_lambda_.6} parent=5 // pred_check
      %p150 = pneg %p149
    $region26: #{_lambda_.6} parent=5 // pred_check_branch
      %152 = sbr.rel (%p150) target = $region28
    $region27: #{_lambda_.6} parent=5 // pred_region
      // Predicated region
      $region29: #{_lambda_.6} parent=27 // pred_check
        %p153 = pneg %p30
      $region30: #{_lambda_.6} parent=27 // pred_check_branch
        %155 = sbr.rel (%p153) target = $region32
      $region31: #{_lambda_.6} parent=27 // pred_region
        %s156 = smul.u32 8, %s10
        %p157 = scmp.lt.s32.totalorder %s156, 15
        %s158 = scalar_select %p157, %s156, 15
        %s159 = smul.addr %s158, 4
        %s160 = smul.addr %s159, 4
        %s161 = scalar_lea.vmem %s0, %s160
        %s162 = smul.u32 8, %s10
      $region32: #{_lambda_.6} parent=27 // pred_fallthru
        _
    $region28: #{_lambda_.6} parent=5 // pred_fallthru
      _
    %p163 = scmp.le.s32.totalorder 1, %s10
    %p164 = scmp.lt.s32.totalorder %s10, 3
    %p165 = pnand %p163, %p164
    %p166 = pneg %p165
    // Predicated region
    $region33: #{_lambda_.6} parent=5 // pred_check
      _
    $region34: #{_lambda_.6} parent=5 // pred_check_branch
      %168 = sbr.rel (%p165) target = $region36
    $region35: #{_lambda_.6} parent=5 // pred_region
      %s169 = ssub.s32 %s10, 1
      %s170 = smul.u32 8, %s15
      %p171 = scmp.lt.s32.totalorder %s170, 15
      %s172 = scalar_select %p171, %s170, 15
      %s173 = smul.addr %s172, 4
      %s174 = smul.addr %s173, 4
      %s175 = scalar_lea.vmem %s0, %s174
      %p176 = pneg %p36
      %p177 = pneg %p33
      %p178 = pneg %p57
      %p179 = pneg %p54
      %p180 = pneg %p78
      %p181 = pneg %p75
      %p182 = pneg %p99
      %p183 = pneg %p96
      %p184 = pneg %p125
      %p185 = pneg %p122
      %s186 = smul.u32 8, %s15
      %p187 = scmp.lt.s32.totalorder %s186, 15
      %s188 = scalar_select %p187, %s186, 15
      %s189 = smul.addr %s188, 4
      %s190 = scalar_lea.vmem %s4, %s189
      %s191 = smul.u32 8, %s15
      %p192 = scmp.lt.s32.totalorder %s191, 15
      %s193 = scalar_select %p192, %s191, 15
      %s194 = smul.addr %s193, 4
      %s195 = smul.addr %s194, 4
      %s196 = scalar_lea.vmem %s0, %s195
      %s197 = smul.u32 8, %s15
      %s198 = smul.u32 8, %s15
      %p199 = scmp.lt.s32.totalorder %s198, 15
      %s200 = scalar_select %p199, %s198, 15
      %s201 = smul.addr %s200, 4
      %s202 = scalar_lea.vmem %s4, %s201
      %s203 = smul.u32 8, %s15
      %v205 = vld [vmem:[%s196] sm:$0xff]
      %v206 = vld [vmem:[%s196 + $0x8] sm:$0xff]
      %v207 = vld [vmem:[%s196 + $0x10] sm:$0xff]
      %v208 = vld [vmem:[%s196 + $0x18] sm:$0xff]
      %v209 = vld [vmem:[%s196 + $0x20] sm:$0xff]
      %v210 = vld [vmem:[%s196 + $0x28] sm:$0xff]
      %v211 = vld [vmem:[%s196 + $0x30] sm:$0xff]
      %v212 = vld [vmem:[%s196 + $0x38] sm:$0xff]
      %v213 = vld [vmem:[%s196 + $0x40] sm:$0xff]
      %v214 = vld [vmem:[%s196 + $0x48] sm:$0xff]
      %v215 = vld [vmem:[%s196 + $0x50] sm:$0xff]
      %v216 = vld [vmem:[%s196 + $0x58] sm:$0xff]
      %v217 = vld [vmem:[%s196 + $0x60] sm:$0xff]
      %v218 = vld [vmem:[%s196 + $0x68] sm:$0xff]
      %v219 = vld [vmem:[%s196 + $0x70] sm:$0xff]
      %v220 = vld [vmem:[%s196 + $0x78] sm:$0xff]
      %v221 = vld [vmem:[%s1] sm:$0xf]
      %v222 = vld [vmem:[%s1 + $0x4] sm:$0xf]
      %v223 = vld [vmem:[%s1 + $0x8] sm:$0xf]
      %v224 = vld [vmem:[%s1 + $0xc] sm:$0xf]
      %v225 = vld [vmem:[%s1 + $0x10] sm:$0xf]
      %v226 = vld [vmem:[%s1 + $0x14] sm:$0xf]
      %v227 = vld [vmem:[%s1 + $0x18] sm:$0xf]
      %v228 = vld [vmem:[%s1 + $0x1c] sm:$0xf]
      %v229 = vld [vmem:[%s1 + $0x20] sm:$0xf]
      %v230 = vld [vmem:[%s1 + $0x24] sm:$0xf]
      %v231 = vld [vmem:[%s1 + $0x28] sm:$0xf]
      %v232 = vld [vmem:[%s1 + $0x2c] sm:$0xf]
      %v233 = vld [vmem:[%s1 + $0x30] sm:$0xf]
      %v234 = vld [vmem:[%s1 + $0x34] sm:$0xf]
      %v235 = vld [vmem:[%s1 + $0x38] sm:$0xf]
      %v236 = vld [vmem:[%s1 + $0x3c] sm:$0xf]
      %v237 = vld [vmem:[%s1 + $0x40] sm:$0xf]
      %v238 = vld [vmem:[%s1 + $0x44] sm:$0xf]
      %v239 = vld [vmem:[%s1 + $0x48] sm:$0xf]
      %v240 = vld [vmem:[%s1 + $0x4c] sm:$0xf]
      %v241 = vld [vmem:[%s1 + $0x50] sm:$0xf]
      %v242 = vld [vmem:[%s1 + $0x54] sm:$0xf]
      %v243 = vld [vmem:[%s1 + $0x58] sm:$0xf]
      %v244 = vld [vmem:[%s1 + $0x5c] sm:$0xf]
      %v245 = vld [vmem:[%s1 + $0x60] sm:$0xf]
      %v246 = vld [vmem:[%s1 + $0x64] sm:$0xf]
      %v247 = vld [vmem:[%s1 + $0x68] sm:$0xf]
      %v248 = vld [vmem:[%s1 + $0x6c] sm:$0xf]
      %v249 = vld [vmem:[%s1 + $0x70] sm:$0xf]
      %v250 = vld [vmem:[%s1 + $0x74] sm:$0xf]
      %v251 = vld [vmem:[%s1 + $0x78] sm:$0xf]
      %v252 = vld [vmem:[%s1 + $0x7c] sm:$0xf]
      %v253 = vld [vmem:[%s1 + $0x80] sm:$0xf]
      %v254 = vld [vmem:[%s1 + $0x84] sm:$0xf]
      %v255 = vld [vmem:[%s1 + $0x88] sm:$0xf]
      %v256 = vld [vmem:[%s1 + $0x8c] sm:$0xf]
      %v257 = vld [vmem:[%s1 + $0x90] sm:$0xf]
      %v258 = vld [vmem:[%s1 + $0x94] sm:$0xf]
      %v259 = vld [vmem:[%s1 + $0x98] sm:$0xf]
      %v260 = vld [vmem:[%s1 + $0x9c] sm:$0xf]
      %v261 = vld [vmem:[%s1 + $0xa0] sm:$0xf]
      %v262 = vld [vmem:[%s1 + $0xa4] sm:$0xf]
      %v263 = vld [vmem:[%s1 + $0xa8] sm:$0xf]
      %v264 = vld [vmem:[%s1 + $0xac] sm:$0xf]
      %v265 = vld [vmem:[%s1 + $0xb0] sm:$0xf]
      %v266 = vld [vmem:[%s1 + $0xb4] sm:$0xf]
      %v267 = vld [vmem:[%s1 + $0xb8] sm:$0xf]
      %v268 = vld [vmem:[%s1 + $0xbc] sm:$0xf]
      %v269 = vld [vmem:[%s1 + $0xc0] sm:$0xf]
      %v270 = vld [vmem:[%s1 + $0xc4] sm:$0xf]
      %v271 = vld [vmem:[%s1 + $0xc8] sm:$0xf]
      %v272 = vld [vmem:[%s1 + $0xcc] sm:$0xf]
      %v273 = vld [vmem:[%s1 + $0xd0] sm:$0xf]
      %v274 = vld [vmem:[%s1 + $0xd4] sm:$0xf]
      %v275 = vld [vmem:[%s1 + $0xd8] sm:$0xf]
      %v276 = vld [vmem:[%s1 + $0xdc] sm:$0xf]
      %v277 = vld [vmem:[%s1 + $0xe0] sm:$0xf]
      %v278 = vld [vmem:[%s1 + $0xe4] sm:$0xf]
      %v279 = vld [vmem:[%s1 + $0xe8] sm:$0xf]
      %v280 = vld [vmem:[%s1 + $0xec] sm:$0xf]
      %v281 = vld [vmem:[%s1 + $0xf0] sm:$0xf]
      %v282 = vld [vmem:[%s1 + $0xf4] sm:$0xf]
      %v283 = vld [vmem:[%s1 + $0xf8] sm:$0xf]
      %v284 = vld [vmem:[%s1 + $0xfc] sm:$0xf]
      %v301 = vunpack.c.l.b16 %v205
      %v302 = vunpack.c.h.b16 %v205
      %v303 = vunpack.c.l.b16 %v206
      %v304 = vunpack.c.h.b16 %v206
      %v305 = vunpack.c.l.b16 %v207
      %v306 = vunpack.c.h.b16 %v207
      %v307 = vunpack.c.l.b16 %v208
      %v308 = vunpack.c.h.b16 %v208
      %v309 = vunpack.c.l.b16 %v209
      %v310 = vunpack.c.h.b16 %v209
      %v311 = vunpack.c.l.b16 %v210
      %v312 = vunpack.c.h.b16 %v210
      %v313 = vunpack.c.l.b16 %v211
      %v314 = vunpack.c.h.b16 %v211
      %v315 = vunpack.c.l.b16 %v212
      %v316 = vunpack.c.h.b16 %v212
      %v317 = vunpack.c.l.b16 %v213
      %v318 = vunpack.c.h.b16 %v213
      %v319 = vunpack.c.l.b16 %v214
      %v320 = vunpack.c.h.b16 %v214
      %v321 = vunpack.c.l.b16 %v215
      %v322 = vunpack.c.h.b16 %v215
      %v323 = vunpack.c.l.b16 %v216
      %v324 = vunpack.c.h.b16 %v216
      %v325 = vunpack.c.l.b16 %v217
      %v326 = vunpack.c.h.b16 %v217
      %v327 = vunpack.c.l.b16 %v218
      %v328 = vunpack.c.h.b16 %v218
      %v329 = vunpack.c.l.b16 %v219
      %v330 = vunpack.c.h.b16 %v219
      %v331 = vunpack.c.l.b16 %v220
      %v332 = vunpack.c.h.b16 %v220
      %v333 = vpack.c.b16 %v305, %v301
      %v334 = vpack.c.b16 %v306, %v302
      %v335 = vpack.c.b16 %v307, %v303
      %v336 = vpack.c.b16 %v308, %v304
      %v337 = vpack.c.b16 %v313, %v309
      %v338 = vpack.c.b16 %v314, %v310
      %v339 = vpack.c.b16 %v315, %v311
      %v340 = vpack.c.b16 %v316, %v312
      %v341 = vpack.c.b16 %v321, %v317
      %v342 = vpack.c.b16 %v322, %v318
      %v343 = vpack.c.b16 %v323, %v319
      %v344 = vpack.c.b16 %v324, %v320
      %v345 = vpack.c.b16 %v329, %v325
      %v346 = vpack.c.b16 %v330, %v326
      %v347 = vpack.c.b16 %v331, %v327
      %v348 = vpack.c.b16 %v332, %v328
      %v429 = vunpack.c.l.b16 %v221
      %v430 = vunpack.c.l.b16 %v222
      %v431 = vunpack.c.l.b16 %v223
      %v432 = vunpack.c.l.b16 %v224
      %v433 = vunpack.c.l.b16 %v225
      %v434 = vunpack.c.l.b16 %v226
      %v435 = vunpack.c.l.b16 %v227
      %v436 = vunpack.c.l.b16 %v228
      %v437 = vunpack.c.l.b16 %v229
      %v438 = vunpack.c.l.b16 %v230
      %v439 = vunpack.c.l.b16 %v231
      %v440 = vunpack.c.l.b16 %v232
      %v441 = vunpack.c.l.b16 %v233
      %v442 = vunpack.c.l.b16 %v234
      %v443 = vunpack.c.l.b16 %v235
      %v444 = vunpack.c.l.b16 %v236
      %v445 = vunpack.c.l.b16 %v237
      %v446 = vunpack.c.l.b16 %v238
      %v447 = vunpack.c.l.b16 %v239
      %v448 = vunpack.c.l.b16 %v240
      %v449 = vunpack.c.l.b16 %v241
      %v450 = vunpack.c.l.b16 %v242
      %v451 = vunpack.c.l.b16 %v243
      %v452 = vunpack.c.l.b16 %v244
      %v453 = vunpack.c.l.b16 %v245
      %v454 = vunpack.c.l.b16 %v246
      %v455 = vunpack.c.l.b16 %v247
      %v456 = vunpack.c.l.b16 %v248
      %v457 = vunpack.c.l.b16 %v249
      %v458 = vunpack.c.l.b16 %v250
      %v459 = vunpack.c.l.b16 %v251
      %v460 = vunpack.c.l.b16 %v252
      %v461 = vunpack.c.l.b16 %v253
      %v462 = vunpack.c.l.b16 %v254
      %v463 = vunpack.c.l.b16 %v255
      %v464 = vunpack.c.l.b16 %v256
      %v465 = vunpack.c.l.b16 %v257
      %v466 = vunpack.c.l.b16 %v258
      %v467 = vunpack.c.l.b16 %v259
      %v468 = vunpack.c.l.b16 %v260
      %v469 = vunpack.c.l.b16 %v261
      %v470 = vunpack.c.l.b16 %v262
      %v471 = vunpack.c.l.b16 %v263
      %v472 = vunpack.c.l.b16 %v264
      %v473 = vunpack.c.l.b16 %v265
      %v474 = vunpack.c.l.b16 %v266
      %v475 = vunpack.c.l.b16 %v267
      %v476 = vunpack.c.l.b16 %v268
      %v477 = vunpack.c.l.b16 %v269
      %v478 = vunpack.c.l.b16 %v270
      %v479 = vunpack.c.l.b16 %v271
      %v480 = vunpack.c.l.b16 %v272
      %v481 = vunpack.c.l.b16 %v273
      %v482 = vunpack.c.l.b16 %v274
      %v483 = vunpack.c.l.b16 %v275
      %v484 = vunpack.c.l.b16 %v276
      %v485 = vunpack.c.l.b16 %v277
      %v486 = vunpack.c.l.b16 %v278
      %v487 = vunpack.c.l.b16 %v279
      %v488 = vunpack.c.l.b16 %v280
      %v489 = vunpack.c.l.b16 %v281
      %v490 = vunpack.c.l.b16 %v282
      %v491 = vunpack.c.l.b16 %v283
      %v492 = vunpack.c.l.b16 %v284
      %v493 = vpack.c.b16 %v430, %v429
      %v494 = vpack.c.b16 %v432, %v431
      %v495 = vpack.c.b16 %v434, %v433
      %v496 = vpack.c.b16 %v436, %v435
      %v497 = vpack.c.b16 %v438, %v437
      %v498 = vpack.c.b16 %v440, %v439
      %v499 = vpack.c.b16 %v442, %v441
      %v500 = vpack.c.b16 %v444, %v443
      %v501 = vpack.c.b16 %v446, %v445
      %v502 = vpack.c.b16 %v448, %v447
      %v503 = vpack.c.b16 %v450, %v449
      %v504 = vpack.c.b16 %v452, %v451
      %v505 = vpack.c.b16 %v454, %v453
      %v506 = vpack.c.b16 %v456, %v455
      %v507 = vpack.c.b16 %v458, %v457
      %v508 = vpack.c.b16 %v460, %v459
      %v509 = vpack.c.b16 %v462, %v461
      %v510 = vpack.c.b16 %v464, %v463
      %v511 = vpack.c.b16 %v466, %v465
      %v512 = vpack.c.b16 %v468, %v467
      %v513 = vpack.c.b16 %v470, %v469
      %v514 = vpack.c.b16 %v472, %v471
      %v515 = vpack.c.b16 %v474, %v473
      %v516 = vpack.c.b16 %v476, %v475
      %v517 = vpack.c.b16 %v478, %v477
      %v518 = vpack.c.b16 %v480, %v479
      %v519 = vpack.c.b16 %v482, %v481
      %v520 = vpack.c.b16 %v484, %v483
      %v521 = vpack.c.b16 %v486, %v485
      %v522 = vpack.c.b16 %v488, %v487
      %v523 = vpack.c.b16 %v490, %v489
      %v524 = vpack.c.b16 %v492, %v491
      %557 = vmatprep.subr.bf16.mxu0 0
      %558 = vmatpush1.bf16.msra.mxu0 %v493
      %559 = vmatprep.subr.bf16.mxu0 0
      %560 = vmatpush1.bf16.msra.mxu0 %v494
      %561 = vmatprep.subr.bf16.mxu0 0
      %562 = vmatpush1.bf16.msra.mxu0 %v495
      %563 = vmatprep.subr.bf16.mxu0 0
      %564 = vmatpush1.bf16.msra.mxu0 %v496
      %565 = vmatprep.subr.bf16.mxu0 0
      %566 = vmatpush1.bf16.msra.mxu0 %v497
      %567 = vmatprep.subr.bf16.mxu0 0
      %568 = vmatpush1.bf16.msra.mxu0 %v498
      %569 = vmatprep.subr.bf16.mxu0 0
      %570 = vmatpush1.bf16.msra.mxu0 %v499
      %571 = vmatprep.subr.bf16.mxu0 0
      %572 = vmatpush1.bf16.msra.mxu0 %v500
      %573 = vmatprep.subr.bf16.mxu0 0
      %574 = vmatpush1.bf16.msra.mxu0 %v501
      %575 = vmatprep.subr.bf16.mxu0 0
      %576 = vmatpush1.bf16.msra.mxu0 %v502
      %577 = vmatprep.subr.bf16.mxu0 0
      %578 = vmatpush1.bf16.msra.mxu0 %v503
      %579 = vmatprep.subr.bf16.mxu0 0
      %580 = vmatpush1.bf16.msra.mxu0 %v504
      %581 = vmatprep.subr.bf16.mxu0 0
      %582 = vmatpush1.bf16.msra.mxu0 %v505
      %583 = vmatprep.subr.bf16.mxu0 0
      %584 = vmatpush1.bf16.msra.mxu0 %v506
      %585 = vmatprep.subr.bf16.mxu0 0
      %586 = vmatpush1.bf16.msra.mxu0 %v507
      %587 = vmatprep.subr.bf16.mxu0 0
      %588 = vmatpush1.bf16.msra.mxu0 %v508
      %589 = vmatprep.mubr.bf16.mxu0 %v334
      %590 = vmatmul.mubr.bf16.gmra.mrb[0].mxu0 %v333
      %v591 = vpop.f32.mrb[0].mxu0
      %v592 = vadd.f32 0.0, %v591
      %v593 = vpop.f32.mrb[0].mxu0
      %v594 = vpop.f32.mrb[0].mxu0
      %v595 = vadd.f32 0.0, %v594
      %v596 = vpop.f32.mrb[0].mxu0
      %597 = vmatprep.mubr.bf16.mxu0 %v338
      %598 = vmatmul.mubr.bf16.gmra.mrb[0].mxu0 %v337
      %v599 = vpop.f32.mrb[0].mxu0
      %v600 = vadd.f32 0.0, %v599
      %v601 = vpop.f32.mrb[0].mxu0
      %v602 = vpop.f32.mrb[0].mxu0
      %v603 = vadd.f32 0.0, %v602
      %v604 = vpop.f32.mrb[0].mxu0
      %605 = vmatprep.mubr.bf16.mxu0 %v342
      %606 = vmatmul.mubr.bf16.gmra.mrb[0].mxu0 %v341
      %v607 = vpop.f32.mrb[0].mxu0
      %v608 = vadd.f32 0.0, %v607
      %v609 = vpop.f32.mrb[0].mxu0
      %v610 = vpop.f32.mrb[0].mxu0
      %v611 = vadd.f32 0.0, %v610
      %v612 = vpop.f32.mrb[0].mxu0
      %613 = vmatprep.mubr.bf16.mxu0 %v346
      %614 = vmatmul.mubr.bf16.gmra.mrb[0].mxu0 %v345
      %v615 = vpop.f32.mrb[0].mxu0
      %v616 = vadd.f32 0.0, %v615
      %v617 = vpop.f32.mrb[0].mxu0
      %v618 = vpop.f32.mrb[0].mxu0
      %v619 = vadd.f32 0.0, %v618
      %v620 = vpop.f32.mrb[0].mxu0
      %621 = vdwg.mxu0
      %622 = vmatprep.subr.bf16.mxu0 0
      %623 = vmatpush1.bf16.msra.mxu0 %v509
      %624 = vmatprep.subr.bf16.mxu0 0
      %625 = vmatpush1.bf16.msra.mxu0 %v510
      %626 = vmatprep.subr.bf16.mxu0 0
      %627 = vmatpush1.bf16.msra.mxu0 %v511
      %628 = vmatprep.subr.bf16.mxu0 0
      %629 = vmatpush1.bf16.msra.mxu0 %v512
      %630 = vmatprep.subr.bf16.mxu0 0
      %631 = vmatpush1.bf16.msra.mxu0 %v513
      %632 = vmatprep.subr.bf16.mxu0 0
      %633 = vmatpush1.bf16.msra.mxu0 %v514
      %634 = vmatprep.subr.bf16.mxu0 0
      %635 = vmatpush1.bf16.msra.mxu0 %v515
      %636 = vmatprep.subr.bf16.mxu0 0
      %637 = vmatpush1.bf16.msra.mxu0 %v516
      %638 = vmatprep.subr.bf16.mxu0 0
      %639 = vmatpush1.bf16.msra.mxu0 %v517
      %640 = vmatprep.subr.bf16.mxu0 0
      %641 = vmatpush1.bf16.msra.mxu0 %v518
      %642 = vmatprep.subr.bf16.mxu0 0
      %643 = vmatpush1.bf16.msra.mxu0 %v519
      %644 = vmatprep.subr.bf16.mxu0 0
      %645 = vmatpush1.bf16.msra.mxu0 %v520
      %646 = vmatprep.subr.bf16.mxu0 0
      %647 = vmatpush1.bf16.msra.mxu0 %v521
      %648 = vmatprep.subr.bf16.mxu0 0
      %649 = vmatpush1.bf16.msra.mxu0 %v522
      %650 = vmatprep.subr.bf16.mxu0 0
      %651 = vmatpush1.bf16.msra.mxu0 %v523
      %652 = vmatprep.subr.bf16.mxu0 0
      %653 = vmatpush1.bf16.msra.mxu0 %v524
      %654 = vmatprep.mubr.bf16.mxu0 %v336
      %655 = vmatmul.mubr.bf16.gmra.mrb[0].mxu0 %v335
      %v656 = vpop.f32.mrb[0].mxu0
      %v657 = vadd.f32 %v592, %v656
      %v658 = vpop.f32.mrb[0].mxu0
      %v659 = vpop.f32.mrb[0].mxu0
      %v660 = vadd.f32 %v595, %v659
      %v661 = vpop.f32.mrb[0].mxu0
      %662 = vmatprep.mubr.bf16.mxu0 %v340
      %663 = vmatmul.mubr.bf16.gmra.mrb[0].mxu0 %v339
      %v664 = vpop.f32.mrb[0].mxu0
      %v665 = vadd.f32 %v600, %v664
      %v666 = vpop.f32.mrb[0].mxu0
      %v667 = vpop.f32.mrb[0].mxu0
      %v668 = vadd.f32 %v603, %v667
      %v669 = vpop.f32.mrb[0].mxu0
      %670 = vmatprep.mubr.bf16.mxu0 %v344
      %671 = vmatmul.mubr.bf16.gmra.mrb[0].mxu0 %v343
      %v672 = vpop.f32.mrb[0].mxu0
      %v673 = vadd.f32 %v608, %v672
      %v674 = vpop.f32.mrb[0].mxu0
      %v675 = vpop.f32.mrb[0].mxu0
      %v676 = vadd.f32 %v611, %v675
      %v677 = vpop.f32.mrb[0].mxu0
      %678 = vmatprep.mubr.bf16.mxu0 %v348
      %679 = vmatmul.mubr.bf16.gmra.mrb[0].mxu0 %v347
      %v680 = vpop.f32.mrb[0].mxu0
      %v681 = vadd.f32 %v616, %v680
      %v682 = vpop.f32.mrb[0].mxu0
      %v683 = vpop.f32.mrb[0].mxu0
      %v684 = vadd.f32 %v619, %v683
      %v685 = vpop.f32.mrb[0].mxu0
      %686 = vdwg.mxu0
      %v687 = vld [vmem:[%s2] sm:$0x1]
      %v689 = vlaneseq
      %v690 = vshrl.u32 %v689, 7
      %v691 = vsub.s32 0, %v690
      %v692 = vrot.slane %v687, %v691
      %v694 = vmul.f32 %v657, %v692
      %v695 = vmul.f32 %v660, %v692
      %v696 = vmul.f32 %v665, %v692
      %v697 = vmul.f32 %v668, %v692
      %v698 = vmul.f32 %v673, %v692
      %v699 = vmul.f32 %v676, %v692
      %v700 = vmul.f32 %v681, %v692
      %v701 = vmul.f32 %v684, %v692
      %v702 = vld [vmem:[%s3] sm:$0x1]
      %v704 = vlaneseq
      %v705 = vshrl.u32 %v704, 7
      %v706 = vsub.s32 0, %v705
      %v707 = vrot.slane %v702, %v706
      %v709 = vadd.f32 %v694, %v707
      %v710 = vadd.f32 %v695, %v707
      %v711 = vadd.f32 %v696, %v707
      %v712 = vadd.f32 %v697, %v707
      %v713 = vadd.f32 %v698, %v707
      %v714 = vadd.f32 %v699, %v707
      %v715 = vadd.f32 %v700, %v707
      %v716 = vadd.f32 %v701, %v707
      %v717 = vmax.f32 %v709, 0.0
      %v718 = vmax.f32 %v710, 0.0
      %v719 = vmax.f32 %v711, 0.0
      %v720 = vmax.f32 %v712, 0.0
      %v721 = vmax.f32 %v713, 0.0
      %v722 = vmax.f32 %v714, 0.0
      %v723 = vmax.f32 %v715, 0.0
      %v724 = vmax.f32 %v716, 0.0
      %v725 = vpack.c.bf16 %v718, %v717
      %v726 = vpack.c.bf16 %v720, %v719
      %v727 = vpack.c.bf16 %v722, %v721
      %v728 = vpack.c.bf16 %v724, %v723
      %v733 = vunpack.c.l.b16 %v725
      %v734 = vunpack.c.h.b16 %v725
      %v735 = vunpack.c.l.b16 %v726
      %v736 = vunpack.c.h.b16 %v726
      %v737 = vunpack.c.l.b16 %v727
      %v738 = vunpack.c.h.b16 %v727
      %v739 = vunpack.c.l.b16 %v728
      %v740 = vunpack.c.h.b16 %v728
      %v741 = vpack.c.b16 %v733, %v733
      %v742 = vpack.c.b16 %v734, %v734
      %v743 = vpack.c.b16 %v735, %v735
      %v744 = vpack.c.b16 %v736, %v736
      %v745 = vpack.c.b16 %v737, %v737
      %v746 = vpack.c.b16 %v738, %v738
      %v747 = vpack.c.b16 %v739, %v739
      %v748 = vpack.c.b16 %v740, %v740
      %757 = vst [vmem:[%s202] sm:$0xf] %v741
      %758 = vst [vmem:[%s202 + $0x4] sm:$0xf] %v742
      %759 = vst [vmem:[%s202 + $0x8] sm:$0xf] %v743
      %760 = vst [vmem:[%s202 + $0xc] sm:$0xf] %v744
      %761 = vst [vmem:[%s202 + $0x10] sm:$0xf] %v745
      %762 = vst [vmem:[%s202 + $0x14] sm:$0xf] %v746
      %763 = vst [vmem:[%s202 + $0x18] sm:$0xf] %v747
      %764 = vst [vmem:[%s202 + $0x1c] sm:$0xf] %v748
      %s765 = smul.u32 8, %s15
      %p766 = scmp.lt.s32.totalorder %s765, 15
      %s767 = scalar_select %p766, %s765, 15
      %s768 = smul.addr %s767, 4
      %s769 = scalar_lea.vmem %s4, %s768
      // Predicated region
      $region37: #{_lambda_.6} parent=35 // pred_check
        %p770 = pneg %p122
      $region38: #{_lambda_.6} parent=35 // pred_check_branch
        %772 = sbr.rel (%p770) target = $region40
      $region39: #{_lambda_.6} parent=35 // pred_region
        %s773 = smul.u32 8, %s15
      $region40: #{_lambda_.6} parent=35 // pred_fallthru
        _
    $region36: #{_lambda_.6} parent=5 // pred_fallthru
      _
    %p774 = scmp.le.s32.totalorder 2, %s10
    // Predicated region
    $region41: #{_lambda_.6} parent=5 // pred_check
      %p775 = pneg %p774
    $region42: #{_lambda_.6} parent=5 // pred_check_branch
      %777 = sbr.rel (%p775) target = $region44
    $region43: #{_lambda_.6} parent=5 // pred_region
      %s778 = ssub.s32 %s10, 2
      // Predicated region
      $region45: #{_lambda_.6} parent=43 // pred_check
        %p779 = pneg %p128
      $region46: #{_lambda_.6} parent=43 // pred_check_branch
        %781 = sbr.rel (%p779) target = $region48
      $region47: #{_lambda_.6} parent=43 // pred_region
        %s782 = smul.u32 8, %s16
        %p783 = scmp.lt.s32.totalorder %s782, 15
        %s784 = scalar_select %p783, %s782, 15
        %s785 = smul.addr %s784, 4
        %s786 = scalar_lea.vmem %s4, %s785
      $region48: #{_lambda_.6} parent=43 // pred_fallthru
        _
    $region44: #{_lambda_.6} parent=5 // pred_fallthru
      _
  $region6: #{_lambda_.6} parent=0 // loop_footer
    %s14 = sadd.s32 1, %s10
  $region7: #{_lambda_.6} parent=0 // loop_footer_branch
    %9 = sbr.rel target = $region3
  $region8: #{_lambda_.6} parent=0 // loop_exit
    _

// kernel: _lambda_.7
$region0: #{_lambda_.7}
  #allocation0 [shape = 'u32[]', space=smem, size = 0x4, offset = 0x4, fixed_abs, tag = 'smem constant byte address 0x4 - core index']
  #allocation1 [shape = 'u32[144,128]{1,0:T(1,128)}', space=vmem, size = 0x12000, scoped, tag = 'internal scratch']
  %s0 = inlined_call_operand.vmem [shape: bf16[128,1024], index: 0, kind: input, shape index: {}]
  %s1 = inlined_call_operand.vmem [shape: bf16[1024,128], index: 1, kind: input, shape index: {}]
  %s2 = inlined_call_operand.vmem [shape: f32[1,128], index: 2, kind: input, shape index: {}]
  %s3 = inlined_call_operand.vmem [shape: f32[1,128], index: 3, kind: input, shape index: {}]
  %s4 = inlined_call_operand.vmem [shape: bf16[2048,256], index: 4, kind: input, shape index: {}]
  %s5 = inlined_call_operand.vmem [shape: f32[1,256], index: 5, kind: input, shape index: {}]
  %s6 = inlined_call_operand.vmem [shape: f32[1,256], index: 6, kind: input, shape index: {}]
  %s7 = inlined_call_operand.vmem [shape: bf16[256,512], index: 7, kind: input, shape index: {}]
  %s8 = inlined_call_operand.vmem [shape: f32[1,512], index: 8, kind: input, shape index: {}]
  %s9 = inlined_call_operand.vmem [shape: bf16[512,128], index: 9, kind: input, shape index: {}]
  %s10 = inlined_call_operand.vmem [shape: f32[1,128], index: 10, kind: input, shape index: {}]
  %s11 = inlined_call_operand.vmem [shape: f32[8,128], index: 11, kind: output, shape index: {}]
  %s12 = sld [smem:[#allocation0]]
  $region54: #{_lambda_.7} parent=0
    _
  %s14 = ssub.s32 1, %s12
  %s15 = scalar_select 0, %s14, %s12
  // Predicated region
  $region2: #{_lambda_.7} parent=0 // pred_check
    _
  $region3: #{_lambda_.7} parent=0 // pred_check_branch
    %17 = sbr.rel (0) target = $region5
  $region4: #{_lambda_.7} parent=0 // pred_region
    _
  $region5: #{_lambda_.7} parent=0 // pred_fallthru
    _
  // Predicated region
  $region6: #{_lambda_.7} parent=0 // pred_check
    _
  $region7: #{_lambda_.7} parent=0 // pred_check_branch
    %19 = sbr.rel (0) target = $region9
  $region8: #{_lambda_.7} parent=0 // pred_region
    _
  $region9: #{_lambda_.7} parent=0 // pred_fallthru
    _
  // Predicated region
  $region10: #{_lambda_.7} parent=0 // pred_check
    _
  $region11: #{_lambda_.7} parent=0 // pred_check_branch
    %21 = sbr.rel (0) target = $region13
  $region12: #{_lambda_.7} parent=0 // pred_region
    _
  $region13: #{_lambda_.7} parent=0 // pred_fallthru
    _
  // Predicated region
  $region14: #{_lambda_.7} parent=0 // pred_check
    _
  $region15: #{_lambda_.7} parent=0 // pred_check_branch
    %23 = sbr.rel (0) target = $region17
  $region16: #{_lambda_.7} parent=0 // pred_region
    _
  $region17: #{_lambda_.7} parent=0 // pred_fallthru
    _
  // Predicated region
  $region18: #{_lambda_.7} parent=0 // pred_check
    _
  $region19: #{_lambda_.7} parent=0 // pred_check_branch
    %25 = sbr.rel (0) target = $region21
  $region20: #{_lambda_.7} parent=0 // pred_region
    _
  $region21: #{_lambda_.7} parent=0 // pred_fallthru
    _
  // Predicated region
  $region22: #{_lambda_.7} parent=0 // pred_check
    _
  $region23: #{_lambda_.7} parent=0 // pred_check_branch
    %27 = sbr.rel (0) target = $region25
  $region24: #{_lambda_.7} parent=0 // pred_region
    _
  $region25: #{_lambda_.7} parent=0 // pred_fallthru
    _
  // Predicated region
  $region26: #{_lambda_.7} parent=0 // pred_check
    _
  $region27: #{_lambda_.7} parent=0 // pred_check_branch
    %29 = sbr.rel (0) target = $region29
  $region28: #{_lambda_.7} parent=0 // pred_region
    _
  $region29: #{_lambda_.7} parent=0 // pred_fallthru
    _
  // Predicated region
  $region30: #{_lambda_.7} parent=0 // pred_check
    _
  $region31: #{_lambda_.7} parent=0 // pred_check_branch
    %31 = sbr.rel (0) target = $region33
  $region32: #{_lambda_.7} parent=0 // pred_region
    _
  $region33: #{_lambda_.7} parent=0 // pred_fallthru
    _
  // Predicated region
  $region34: #{_lambda_.7} parent=0 // pred_check
    _
  $region35: #{_lambda_.7} parent=0 // pred_check_branch
    %33 = sbr.rel (0) target = $region37
  $region36: #{_lambda_.7} parent=0 // pred_region
    _
  $region37: #{_lambda_.7} parent=0 // pred_fallthru
    _
  // Predicated region
  $region38: #{_lambda_.7} parent=0 // pred_check
    _
  $region39: #{_lambda_.7} parent=0 // pred_check_branch
    %35 = sbr.rel (0) target = $region41
  $region40: #{_lambda_.7} parent=0 // pred_region
    _
  $region41: #{_lambda_.7} parent=0 // pred_fallthru
    _
  // Predicated region
  $region42: #{_lambda_.7} parent=0 // pred_check
    _
  $region43: #{_lambda_.7} parent=0 // pred_check_branch
    %37 = sbr.rel (0) target = $region45
  $region44: #{_lambda_.7} parent=0 // pred_region
    _
  $region45: #{_lambda_.7} parent=0 // pred_fallthru
    _
  %v39 = vld [vmem:[%s0] sm:$0xff]
  %v40 = vld [vmem:[%s0 + $0x8] sm:$0xff]
  %v41 = vld [vmem:[%s0 + $0x10] sm:$0xff]
  %v42 = vld [vmem:[%s0 + $0x18] sm:$0xff]
  %v43 = vld [vmem:[%s0 + $0x20] sm:$0xff]
  %v44 = vld [vmem:[%s0 + $0x28] sm:$0xff]
  %v45 = vld [vmem:[%s0 + $0x30] sm:$0xff]
  %v46 = vld [vmem:[%s0 + $0x38] sm:$0xff]
  %v47 = vld [vmem:[%s0 + $0x40] sm:$0xff]
  %v48 = vld [vmem:[%s0 + $0x48] sm:$0xff]
  %v49 = vld [vmem:[%s0 + $0x50] sm:$0xff]
  %v50 = vld [vmem:[%s0 + $0x58] sm:$0xff]
  %v51 = vld [vmem:[%s0 + $0x60] sm:$0xff]
  %v52 = vld [vmem:[%s0 + $0x68] sm:$0xff]
  %v53 = vld [vmem:[%s0 + $0x70] sm:$0xff]
  %v54 = vld [vmem:[%s0 + $0x78] sm:$0xff]
  %v55 = vld [vmem:[%s0 + $0x80] sm:$0xff]
  %v56 = vld [vmem:[%s0 + $0x88] sm:$0xff]
  %v57 = vld [vmem:[%s0 + $0x90] sm:$0xff]
  %v58 = vld [vmem:[%s0 + $0x98] sm:$0xff]
  %v59 = vld [vmem:[%s0 + $0xa0] sm:$0xff]
  %v60 = vld [vmem:[%s0 + $0xa8] sm:$0xff]
  %v61 = vld [vmem:[%s0 + $0xb0] sm:$0xff]
  %v62 = vld [vmem:[%s0 + $0xb8] sm:$0xff]
  %v63 = vld [vmem:[%s0 + $0xc0] sm:$0xff]
  %v64 = vld [vmem:[%s0 + $0xc8] sm:$0xff]
  %v65 = vld [vmem:[%s0 + $0xd0] sm:$0xff]
  %v66 = vld [vmem:[%s0 + $0xd8] sm:$0xff]
  %v67 = vld [vmem:[%s0 + $0xe0] sm:$0xff]
  %v68 = vld [vmem:[%s0 + $0xe8] sm:$0xff]
  %v69 = vld [vmem:[%s0 + $0xf0] sm:$0xff]
  %v70 = vld [vmem:[%s0 + $0xf8] sm:$0xff]
  %v71 = vld [vmem:[%s0 + $0x100] sm:$0xff]
  %v72 = vld [vmem:[%s0 + $0x108] sm:$0xff]
  %v73 = vld [vmem:[%s0 + $0x110] sm:$0xff]
  %v74 = vld [vmem:[%s0 + $0x118] sm:$0xff]
  %v75 = vld [vmem:[%s0 + $0x120] sm:$0xff]
  %v76 = vld [vmem:[%s0 + $0x128] sm:$0xff]
  %v77 = vld [vmem:[%s0 + $0x130] sm:$0xff]
  %v78 = vld [vmem:[%s0 + $0x138] sm:$0xff]
  %v79 = vld [vmem:[%s0 + $0x140] sm:$0xff]
  %v80 = vld [vmem:[%s0 + $0x148] sm:$0xff]
  %v81 = vld [vmem:[%s0 + $0x150] sm:$0xff]
  %v82 = vld [vmem:[%s0 + $0x158] sm:$0xff]
  %v83 = vld [vmem:[%s0 + $0x160] sm:$0xff]
  %v84 = vld [vmem:[%s0 + $0x168] sm:$0xff]
  %v85 = vld [vmem:[%s0 + $0x170] sm:$0xff]
  %v86 = vld [vmem:[%s0 + $0x178] sm:$0xff]
  %v87 = vld [vmem:[%s0 + $0x180] sm:$0xff]
  %v88 = vld [vmem:[%s0 + $0x188] sm:$0xff]
  %v89 = vld [vmem:[%s0 + $0x190] sm:$0xff]
  %v90 = vld [vmem:[%s0 + $0x198] sm:$0xff]
  %v91 = vld [vmem:[%s0 + $0x1a0] sm:$0xff]
  %v92 = vld [vmem:[%s0 + $0x1a8] sm:$0xff]
  %v93 = vld [vmem:[%s0 + $0x1b0] sm:$0xff]
  %v94 = vld [vmem:[%s0 + $0x1b8] sm:$0xff]
  %v95 = vld [vmem:[%s0 + $0x1c0] sm:$0xff]
  %v96 = vld [vmem:[%s0 + $0x1c8] sm:$0xff]
  %v97 = vld [vmem:[%s0 + $0x1d0] sm:$0xff]
  %v98 = vld [vmem:[%s0 + $0x1d8] sm:$0xff]
  %v99 = vld [vmem:[%s0 + $0x1e0] sm:$0xff]
  %v100 = vld [vmem:[%s0 + $0x1e8] sm:$0xff]
  %v101 = vld [vmem:[%s0 + $0x1f0] sm:$0xff]
  %v102 = vld [vmem:[%s0 + $0x1f8] sm:$0xff]
  %v103 = vld [vmem:[%s1] sm:$0xf]
  %v104 = vld [vmem:[%s1 + $0x4] sm:$0xf]
  %v105 = vld [vmem:[%s1 + $0x8] sm:$0xf]
  %v106 = vld [vmem:[%s1 + $0xc] sm:$0xf]
  %v107 = vld [vmem:[%s1 + $0x10] sm:$0xf]
  %v108 = vld [vmem:[%s1 + $0x14] sm:$0xf]
  %v109 = vld [vmem:[%s1 + $0x18] sm:$0xf]
  %v110 = vld [vmem:[%s1 + $0x1c] sm:$0xf]
  %v111 = vld [vmem:[%s1 + $0x20] sm:$0xf]
  %v112 = vld [vmem:[%s1 + $0x24] sm:$0xf]
  %v113 = vld [vmem:[%s1 + $0x28] sm:$0xf]
  %v114 = vld [vmem:[%s1 + $0x2c] sm:$0xf]
  %v115 = vld [vmem:[%s1 + $0x30] sm:$0xf]
  %v116 = vld [vmem:[%s1 + $0x34] sm:$0xf]
  %v117 = vld [vmem:[%s1 + $0x38] sm:$0xf]
  %v118 = vld [vmem:[%s1 + $0x3c] sm:$0xf]
  %v119 = vld [vmem:[%s1 + $0x40] sm:$0xf]
  %v120 = vld [vmem:[%s1 + $0x44] sm:$0xf]
  %v121 = vld [vmem:[%s1 + $0x48] sm:$0xf]
  %v122 = vld [vmem:[%s1 + $0x4c] sm:$0xf]
  %v123 = vld [vmem:[%s1 + $0x50] sm:$0xf]
  %v124 = vld [vmem:[%s1 + $0x54] sm:$0xf]
  %v125 = vld [vmem:[%s1 + $0x58] sm:$0xf]
  %v126 = vld [vmem:[%s1 + $0x5c] sm:$0xf]
  %v127 = vld [vmem:[%s1 + $0x60] sm:$0xf]
  %v128 = vld [vmem:[%s1 + $0x64] sm:$0xf]
  %v129 = vld [vmem:[%s1 + $0x68] sm:$0xf]
  %v130 = vld [vmem:[%s1 + $0x6c] sm:$0xf]
  %v131 = vld [vmem:[%s1 + $0x70] sm:$0xf]
  %v132 = vld [vmem:[%s1 + $0x74] sm:$0xf]
  %v133 = vld [vmem:[%s1 + $0x78] sm:$0xf]
  %v134 = vld [vmem:[%s1 + $0x7c] sm:$0xf]
  %v135 = vld [vmem:[%s1 + $0x80] sm:$0xf]
  %v136 = vld [vmem:[%s1 + $0x84] sm:$0xf]
  %v137 = vld [vmem:[%s1 + $0x88] sm:$0xf]
  %v138 = vld [vmem:[%s1 + $0x8c] sm:$0xf]
  %v139 = vld [vmem:[%s1 + $0x90] sm:$0xf]
  %v140 = vld [vmem:[%s1 + $0x94] sm:$0xf]
  %v141 = vld [vmem:[%s1 + $0x98] sm:$0xf]
  %v142 = vld [vmem:[%s1 + $0x9c] sm:$0xf]
  %v143 = vld [vmem:[%s1 + $0xa0] sm:$0xf]
  %v144 = vld [vmem:[%s1 + $0xa4] sm:$0xf]
  %v145 = vld [vmem:[%s1 + $0xa8] sm:$0xf]
  %v146 = vld [vmem:[%s1 + $0xac] sm:$0xf]
  %v147 = vld [vmem:[%s1 + $0xb0] sm:$0xf]
  %v148 = vld [vmem:[%s1 + $0xb4] sm:$0xf]
  %v149 = vld [vmem:[%s1 + $0xb8] sm:$0xf]
  %v150 = vld [vmem:[%s1 + $0xbc] sm:$0xf]
  %v151 = vld [vmem:[%s1 + $0xc0] sm:$0xf]
  %v152 = vld [vmem:[%s1 + $0xc4] sm:$0xf]
  %v153 = vld [vmem:[%s1 + $0xc8] sm:$0xf]
  %v154 = vld [vmem:[%s1 + $0xcc] sm:$0xf]
  %v155 = vld [vmem:[%s1 + $0xd0] sm:$0xf]
  %v156 = vld [vmem:[%s1 + $0xd4] sm:$0xf]
  %v157 = vld [vmem:[%s1 + $0xd8] sm:$0xf]
  %v158 = vld [vmem:[%s1 + $0xdc] sm:$0xf]
  %v159 = vld [vmem:[%s1 + $0xe0] sm:$0xf]
  %v160 = vld [vmem:[%s1 + $0xe4] sm:$0xf]
  %v161 = vld [vmem:[%s1 + $0xe8] sm:$0xf]
  %v162 = vld [vmem:[%s1 + $0xec] sm:$0xf]
  %v163 = vld [vmem:[%s1 + $0xf0] sm:$0xf]
  %v164 = vld [vmem:[%s1 + $0xf4] sm:$0xf]
  %v165 = vld [vmem:[%s1 + $0xf8] sm:$0xf]
  %v166 = vld [vmem:[%s1 + $0xfc] sm:$0xf]
  %v167 = vld [vmem:[%s1 + $0x100] sm:$0xf]
  %v168 = vld [vmem:[%s1 + $0x104] sm:$0xf]
  %v169 = vld [vmem:[%s1 + $0x108] sm:$0xf]
  %v170 = vld [vmem:[%s1 + $0x10c] sm:$0xf]
  %v171 = vld [vmem:[%s1 + $0x110] sm:$0xf]
  %v172 = vld [vmem:[%s1 + $0x114] sm:$0xf]
  %v173 = vld [vmem:[%s1 + $0x118] sm:$0xf]
  %v174 = vld [vmem:[%s1 + $0x11c] sm:$0xf]
  %v175 = vld [vmem:[%s1 + $0x120] sm:$0xf]
  %v176 = vld [vmem:[%s1 + $0x124] sm:$0xf]
  %v177 = vld [vmem:[%s1 + $0x128] sm:$0xf]
  %v178 = vld [vmem:[%s1 + $0x12c] sm:$0xf]
  %v179 = vld [vmem:[%s1 + $0x130] sm:$0xf]
  %v180 = vld [vmem:[%s1 + $0x134] sm:$0xf]
  %v181 = vld [vmem:[%s1 + $0x138] sm:$0xf]
  %v182 = vld [vmem:[%s1 + $0x13c] sm:$0xf]
  %v183 = vld [vmem:[%s1 + $0x140] sm:$0xf]
  %v184 = vld [vmem:[%s1 + $0x144] sm:$0xf]
  %v185 = vld [vmem:[%s1 + $0x148] sm:$0xf]
  %v186 = vld [vmem:[%s1 + $0x14c] sm:$0xf]
  %v187 = vld [vmem:[%s1 + $0x150] sm:$0xf]
  %v188 = vld [vmem:[%s1 + $0x154] sm:$0xf]
  %v189 = vld [vmem:[%s1 + $0x158] sm:$0xf]
  %v190 = vld [vmem:[%s1 + $0x15c] sm:$0xf]
  %v191 = vld [vmem:[%s1 + $0x160] sm:$0xf]
  %v192 = vld [vmem:[%s1 + $0x164] sm:$0xf]
  %v193 = vld [vmem:[%s1 + $0x168] sm:$0xf]
  %v194 = vld [vmem:[%s1 + $0x16c] sm:$0xf]
  %v195 = vld [vmem:[%s1 + $0x170] sm:$0xf]
  %v196 = vld [vmem:[%s1 + $0x174] sm:$0xf]
  %v197 = vld [vmem:[%s1 + $0x178] sm:$0xf]
  %v198 = vld [vmem:[%s1 + $0x17c] sm:$0xf]
  %v199 = vld [vmem:[%s1 + $0x180] sm:$0xf]
  %v200 = vld [vmem:[%s1 + $0x184] sm:$0xf]
  %v201 = vld [vmem:[%s1 + $0x188] sm:$0xf]
  %v202 = vld [vmem:[%s1 + $0x18c] sm:$0xf]
  %v203 = vld [vmem:[%s1 + $0x190] sm:$0xf]
  %v204 = vld [vmem:[%s1 + $0x194] sm:$0xf]
  %v205 = vld [vmem:[%s1 + $0x198] sm:$0xf]
  %v206 = vld [vmem:[%s1 + $0x19c] sm:$0xf]
  %v207 = vld [vmem:[%s1 + $0x1a0] sm:$0xf]
  %v208 = vld [vmem:[%s1 + $0x1a4] sm:$0xf]
  %v209 = vld [vmem:[%s1 + $0x1a8] sm:$0xf]
  %v210 = vld [vmem:[%s1 + $0x1ac] sm:$0xf]
  %v211 = vld [vmem:[%s1 + $0x1b0] sm:$0xf]
  %v212 = vld [vmem:[%s1 + $0x1b4] sm:$0xf]
  %v213 = vld [vmem:[%s1 + $0x1b8] sm:$0xf]
  %v214 = vld [vmem:[%s1 + $0x1bc] sm:$0xf]
  %v215 = vld [vmem:[%s1 + $0x1c0] sm:$0xf]
  %v216 = vld [vmem:[%s1 + $0x1c4] sm:$0xf]
  %v217 = vld [vmem:[%s1 + $0x1c8] sm:$0xf]
  %v218 = vld [vmem:[%s1 + $0x1cc] sm:$0xf]
  %v219 = vld [vmem:[%s1 + $0x1d0] sm:$0xf]
  %v220 = vld [vmem:[%s1 + $0x1d4] sm:$0xf]
  %v221 = vld [vmem:[%s1 + $0x1d8] sm:$0xf]
  %v222 = vld [vmem:[%s1 + $0x1dc] sm:$0xf]
  %v223 = vld [vmem:[%s1 + $0x1e0] sm:$0xf]
  %v224 = vld [vmem:[%s1 + $0x1e4] sm:$0xf]
  %v225 = vld [vmem:[%s1 + $0x1e8] sm:$0xf]
  %v226 = vld [vmem:[%s1 + $0x1ec] sm:$0xf]
  %v227 = vld [vmem:[%s1 + $0x1f0] sm:$0xf]
  %v228 = vld [vmem:[%s1 + $0x1f4] sm:$0xf]
  %v229 = vld [vmem:[%s1 + $0x1f8] sm:$0xf]
  %v230 = vld [vmem:[%s1 + $0x1fc] sm:$0xf]
  %v295 = vunpack.c.l.b16 %v39
  %v296 = vunpack.c.h.b16 %v39
  %v297 = vunpack.c.l.b16 %v40
  %v298 = vunpack.c.h.b16 %v40
  %v299 = vunpack.c.l.b16 %v41
  %v300 = vunpack.c.h.b16 %v41
  %v301 = vunpack.c.l.b16 %v42
  %v302 = vunpack.c.h.b16 %v42
  %v303 = vunpack.c.l.b16 %v43
  %v304 = vunpack.c.h.b16 %v43
  %v305 = vunpack.c.l.b16 %v44
  %v306 = vunpack.c.h.b16 %v44
  %v307 = vunpack.c.l.b16 %v45
  %v308 = vunpack.c.h.b16 %v45
  %v309 = vunpack.c.l.b16 %v46
  %v310 = vunpack.c.h.b16 %v46
  %v311 = vunpack.c.l.b16 %v47
  %v312 = vunpack.c.h.b16 %v47
  %v313 = vunpack.c.l.b16 %v48
  %v314 = vunpack.c.h.b16 %v48
  %v315 = vunpack.c.l.b16 %v49
  %v316 = vunpack.c.h.b16 %v49
  %v317 = vunpack.c.l.b16 %v50
  %v318 = vunpack.c.h.b16 %v50
  %v319 = vunpack.c.l.b16 %v51
  %v320 = vunpack.c.h.b16 %v51
  %v321 = vunpack.c.l.b16 %v52
  %v322 = vunpack.c.h.b16 %v52
  %v323 = vunpack.c.l.b16 %v53
  %v324 = vunpack.c.h.b16 %v53
  %v325 = vunpack.c.l.b16 %v54
  %v326 = vunpack.c.h.b16 %v54
  %v327 = vunpack.c.l.b16 %v55
  %v328 = vunpack.c.h.b16 %v55
  %v329 = vunpack.c.l.b16 %v56
  %v330 = vunpack.c.h.b16 %v56
  %v331 = vunpack.c.l.b16 %v57
  %v332 = vunpack.c.h.b16 %v57
  %v333 = vunpack.c.l.b16 %v58
  %v334 = vunpack.c.h.b16 %v58
  %v335 = vunpack.c.l.b16 %v59
  %v336 = vunpack.c.h.b16 %v59
  %v337 = vunpack.c.l.b16 %v60
  %v338 = vunpack.c.h.b16 %v60
  %v339 = vunpack.c.l.b16 %v61
  %v340 = vunpack.c.h.b16 %v61
  %v341 = vunpack.c.l.b16 %v62
  %v342 = vunpack.c.h.b16 %v62
  %v343 = vunpack.c.l.b16 %v63
  %v344 = vunpack.c.h.b16 %v63
  %v345 = vunpack.c.l.b16 %v64
  %v346 = vunpack.c.h.b16 %v64
  %v347 = vunpack.c.l.b16 %v65
  %v348 = vunpack.c.h.b16 %v65
  %v349 = vunpack.c.l.b16 %v66
  %v350 = vunpack.c.h.b16 %v66
  %v351 = vunpack.c.l.b16 %v67
  %v352 = vunpack.c.h.b16 %v67
  %v353 = vunpack.c.l.b16 %v68
  %v354 = vunpack.c.h.b16 %v68
  %v355 = vunpack.c.l.b16 %v69
  %v356 = vunpack.c.h.b16 %v69
  %v357 = vunpack.c.l.b16 %v70
  %v358 = vunpack.c.h.b16 %v70
  %v359 = vunpack.c.l.b16 %v71
  %v360 = vunpack.c.h.b16 %v71
  %v361 = vunpack.c.l.b16 %v72
  %v362 = vunpack.c.h.b16 %v72
  %v363 = vunpack.c.l.b16 %v73
  %v364 = vunpack.c.h.b16 %v73
  %v365 = vunpack.c.l.b16 %v74
  %v366 = vunpack.c.h.b16 %v74
  %v367 = vunpack.c.l.b16 %v75
  %v368 = vunpack.c.h.b16 %v75
  %v369 = vunpack.c.l.b16 %v76
  %v370 = vunpack.c.h.b16 %v76
  %v371 = vunpack.c.l.b16 %v77
  %v372 = vunpack.c.h.b16 %v77
  %v373 = vunpack.c.l.b16 %v78
  %v374 = vunpack.c.h.b16 %v78
  %v375 = vunpack.c.l.b16 %v79
  %v376 = vunpack.c.h.b16 %v79
  %v377 = vunpack.c.l.b16 %v80
  %v378 = vunpack.c.h.b16 %v80
  %v379 = vunpack.c.l.b16 %v81
  %v380 = vunpack.c.h.b16 %v81
  %v381 = vunpack.c.l.b16 %v82
  %v382 = vunpack.c.h.b16 %v82
  %v383 = vunpack.c.l.b16 %v83
  %v384 = vunpack.c.h.b16 %v83
  %v385 = vunpack.c.l.b16 %v84
  %v386 = vunpack.c.h.b16 %v84
  %v387 = vunpack.c.l.b16 %v85
  %v388 = vunpack.c.h.b16 %v85
  %v389 = vunpack.c.l.b16 %v86
  %v390 = vunpack.c.h.b16 %v86
  %v391 = vunpack.c.l.b16 %v87
  %v392 = vunpack.c.h.b16 %v87
  %v393 = vunpack.c.l.b16 %v88
  %v394 = vunpack.c.h.b16 %v88
  %v395 = vunpack.c.l.b16 %v89
  %v396 = vunpack.c.h.b16 %v89
  %v397 = vunpack.c.l.b16 %v90
  %v398 = vunpack.c.h.b16 %v90
  %v399 = vunpack.c.l.b16 %v91
  %v400 = vunpack.c.h.b16 %v91
  %v401 = vunpack.c.l.b16 %v92
  %v402 = vunpack.c.h.b16 %v92
  %v403 = vunpack.c.l.b16 %v93
  %v404 = vunpack.c.h.b16 %v93
  %v405 = vunpack.c.l.b16 %v94
  %v406 = vunpack.c.h.b16 %v94
  %v407 = vunpack.c.l.b16 %v95
  %v408 = vunpack.c.h.b16 %v95
  %v409 = vunpack.c.l.b16 %v96
  %v410 = vunpack.c.h.b16 %v96
  %v411 = vunpack.c.l.b16 %v97
  %v412 = vunpack.c.h.b16 %v97
  %v413 = vunpack.c.l.b16 %v98
  %v414 = vunpack.c.h.b16 %v98
  %v415 = vunpack.c.l.b16 %v99
  %v416 = vunpack.c.h.b16 %v99
  %v417 = vunpack.c.l.b16 %v100
  %v418 = vunpack.c.h.b16 %v100
  %v419 = vunpack.c.l.b16 %v101
  %v420 = vunpack.c.h.b16 %v101
  %v421 = vunpack.c.l.b16 %v102
  %v422 = vunpack.c.h.b16 %v102
  %v423 = vpack.c.b16 %v303, %v295
  %v424 = vpack.c.b16 %v304, %v296
  %v425 = vpack.c.b16 %v305, %v297
  %v426 = vpack.c.b16 %v306, %v298
  %v427 = vpack.c.b16 %v307, %v299
  %v428 = vpack.c.b16 %v308, %v300
  %v429 = vpack.c.b16 %v309, %v301
  %v430 = vpack.c.b16 %v310, %v302
  %v431 = vpack.c.b16 %v319, %v311
  %v432 = vpack.c.b16 %v320, %v312
  %v433 = vpack.c.b16 %v321, %v313
  %v434 = vpack.c.b16 %v322, %v314
  %v435 = vpack.c.b16 %v323, %v315
  %v436 = vpack.c.b16 %v324, %v316
  %v437 = vpack.c.b16 %v325, %v317
  %v438 = vpack.c.b16 %v326, %v318
  %v439 = vpack.c.b16 %v335, %v327
  %v440 = vpack.c.b16 %v336, %v328
  %v441 = vpack.c.b16 %v337, %v329
  %v442 = vpack.c.b16 %v338, %v330
  %v443 = vpack.c.b16 %v339, %v331
  %v444 = vpack.c.b16 %v340, %v332
  %v445 = vpack.c.b16 %v341, %v333
  %v446 = vpack.c.b16 %v342, %v334
  %v447 = vpack.c.b16 %v351, %v343
  %v448 = vpack.c.b16 %v352, %v344
  %v449 = vpack.c.b16 %v353, %v345
  %v450 = vpack.c.b16 %v354, %v346
  %v451 = vpack.c.b16 %v355, %v347
  %v452 = vpack.c.b16 %v356, %v348
  %v453 = vpack.c.b16 %v357, %v349
  %v454 = vpack.c.b16 %v358, %v350
  %v455 = vpack.c.b16 %v367, %v359
  %v456 = vpack.c.b16 %v368, %v360
  %v457 = vpack.c.b16 %v369, %v361
  %v458 = vpack.c.b16 %v370, %v362
  %v459 = vpack.c.b16 %v371, %v363
  %v460 = vpack.c.b16 %v372, %v364
  %v461 = vpack.c.b16 %v373, %v365
  %v462 = vpack.c.b16 %v374, %v366
  %v463 = vpack.c.b16 %v383, %v375
  %v464 = vpack.c.b16 %v384, %v376
  %v465 = vpack.c.b16 %v385, %v377
  %v466 = vpack.c.b16 %v386, %v378
  %v467 = vpack.c.b16 %v387, %v379
  %v468 = vpack.c.b16 %v388, %v380
  %v469 = vpack.c.b16 %v389, %v381
  %v470 = vpack.c.b16 %v390, %v382
  %v471 = vpack.c.b16 %v399, %v391
  %v472 = vpack.c.b16 %v400, %v392
  %v473 = vpack.c.b16 %v401, %v393
  %v474 = vpack.c.b16 %v402, %v394
  %v475 = vpack.c.b16 %v403, %v395
  %v476 = vpack.c.b16 %v404, %v396
  %v477 = vpack.c.b16 %v405, %v397
  %v478 = vpack.c.b16 %v406, %v398
  %v479 = vpack.c.b16 %v415, %v407
  %v480 = vpack.c.b16 %v416, %v408
  %v481 = vpack.c.b16 %v417, %v409
  %v482 = vpack.c.b16 %v418, %v410
  %v483 = vpack.c.b16 %v419, %v411
  %v484 = vpack.c.b16 %v420, %v412
  %v485 = vpack.c.b16 %v421, %v413
  %v486 = vpack.c.b16 %v422, %v414
  %v679 = vunpack.c.l.b16 %v103
  %v680 = vunpack.c.l.b16 %v104
  %v681 = vunpack.c.l.b16 %v105
  %v682 = vunpack.c.l.b16 %v106
  %v683 = vunpack.c.l.b16 %v107
  %v684 = vunpack.c.l.b16 %v108
  %v685 = vunpack.c.l.b16 %v109
  %v686 = vunpack.c.l.b16 %v110
  %v687 = vunpack.c.l.b16 %v111
  %v688 = vunpack.c.l.b16 %v112
  %v689 = vunpack.c.l.b16 %v113
  %v690 = vunpack.c.l.b16 %v114
  %v691 = vunpack.c.l.b16 %v115
  %v692 = vunpack.c.l.b16 %v116
  %v693 = vunpack.c.l.b16 %v117
  %v694 = vunpack.c.l.b16 %v118
  %v695 = vunpack.c.l.b16 %v119
  %v696 = vunpack.c.l.b16 %v120
  %v697 = vunpack.c.l.b16 %v121
  %v698 = vunpack.c.l.b16 %v122
  %v699 = vunpack.c.l.b16 %v123
  %v700 = vunpack.c.l.b16 %v124
  %v701 = vunpack.c.l.b16 %v125
  %v702 = vunpack.c.l.b16 %v126
  %v703 = vunpack.c.l.b16 %v127
  %v704 = vunpack.c.l.b16 %v128
  %v705 = vunpack.c.l.b16 %v129
  %v706 = vunpack.c.l.b16 %v130
  %v707 = vunpack.c.l.b16 %v131
  %v708 = vunpack.c.l.b16 %v132
  %v709 = vunpack.c.l.b16 %v133
  %v710 = vunpack.c.l.b16 %v134
  %v711 = vunpack.c.l.b16 %v135
  %v712 = vunpack.c.l.b16 %v136
  %v713 = vunpack.c.l.b16 %v137
  %v714 = vunpack.c.l.b16 %v138
  %v715 = vunpack.c.l.b16 %v139
  %v716 = vunpack.c.l.b16 %v140
  %v717 = vunpack.c.l.b16 %v141
  %v718 = vunpack.c.l.b16 %v142
  %v719 = vunpack.c.l.b16 %v143
  %v720 = vunpack.c.l.b16 %v144
  %v721 = vunpack.c.l.b16 %v145
  %v722 = vunpack.c.l.b16 %v146
  %v723 = vunpack.c.l.b16 %v147
  %v724 = vunpack.c.l.b16 %v148
  %v725 = vunpack.c.l.b16 %v149
  %v726 = vunpack.c.l.b16 %v150
  %v727 = vunpack.c.l.b16 %v151
  %v728 = vunpack.c.l.b16 %v152
  %v729 = vunpack.c.l.b16 %v153
  %v730 = vunpack.c.l.b16 %v154
  %v731 = vunpack.c.l.b16 %v155
  %v732 = vunpack.c.l.b16 %v156
  %v733 = vunpack.c.l.b16 %v157
  %v734 = vunpack.c.l.b16 %v158
  %v735 = vunpack.c.l.b16 %v159
  %v736 = vunpack.c.l.b16 %v160
  %v737 = vunpack.c.l.b16 %v161
  %v738 = vunpack.c.l.b16 %v162
  %v739 = vunpack.c.l.b16 %v163
  %v740 = vunpack.c.l.b16 %v164
  %v741 = vunpack.c.l.b16 %v165
  %v742 = vunpack.c.l.b16 %v166
  %v743 = vunpack.c.l.b16 %v167
  %v744 = vunpack.c.l.b16 %v168
  %v745 = vunpack.c.l.b16 %v169
  %v746 = vunpack.c.l.b16 %v170
  %v747 = vunpack.c.l.b16 %v171
  %v748 = vunpack.c.l.b16 %v172
  %v749 = vunpack.c.l.b16 %v173
  %v750 = vunpack.c.l.b16 %v174
  %v751 = vunpack.c.l.b16 %v175
  %v752 = vunpack.c.l.b16 %v176
  %v753 = vunpack.c.l.b16 %v177
  %v754 = vunpack.c.l.b16 %v178
  %v755 = vunpack.c.l.b16 %v179
  %v756 = vunpack.c.l.b16 %v180
  %v757 = vunpack.c.l.b16 %v181
  %v758 = vunpack.c.l.b16 %v182
  %v759 = vunpack.c.l.b16 %v183
  %v760 = vunpack.c.l.b16 %v184
  %v761 = vunpack.c.l.b16 %v185
  %v762 = vunpack.c.l.b16 %v186
  %v763 = vunpack.c.l.b16 %v187
  %v764 = vunpack.c.l.b16 %v188
  %v765 = vunpack.c.l.b16 %v189
  %v766 = vunpack.c.l.b16 %v190
  %v767 = vunpack.c.l.b16 %v191
  %v768 = vunpack.c.l.b16 %v192
  %v769 = vunpack.c.l.b16 %v193
  %v770 = vunpack.c.l.b16 %v194
  %v771 = vunpack.c.l.b16 %v195
  %v772 = vunpack.c.l.b16 %v196
  %v773 = vunpack.c.l.b16 %v197
  %v774 = vunpack.c.l.b16 %v198
  %v775 = vunpack.c.l.b16 %v199
  %v776 = vunpack.c.l.b16 %v200
  %v777 = vunpack.c.l.b16 %v201
  %v778 = vunpack.c.l.b16 %v202
  %v779 = vunpack.c.l.b16 %v203
  %v780 = vunpack.c.l.b16 %v204
  %v781 = vunpack.c.l.b16 %v205
  %v782 = vunpack.c.l.b16 %v206
  %v783 = vunpack.c.l.b16 %v207
  %v784 = vunpack.c.l.b16 %v208
  %v785 = vunpack.c.l.b16 %v209
  %v786 = vunpack.c.l.b16 %v210
  %v787 = vunpack.c.l.b16 %v211
  %v788 = vunpack.c.l.b16 %v212
  %v789 = vunpack.c.l.b16 %v213
  %v790 = vunpack.c.l.b16 %v214
  %v791 = vunpack.c.l.b16 %v215
  %v792 = vunpack.c.l.b16 %v216
  %v793 = vunpack.c.l.b16 %v217
  %v794 = vunpack.c.l.b16 %v218
  %v795 = vunpack.c.l.b16 %v219
  %v796 = vunpack.c.l.b16 %v220
  %v797 = vunpack.c.l.b16 %v221
  %v798 = vunpack.c.l.b16 %v222
  %v799 = vunpack.c.l.b16 %v223
  %v800 = vunpack.c.l.b16 %v224
  %v801 = vunpack.c.l.b16 %v225
  %v802 = vunpack.c.l.b16 %v226
  %v803 = vunpack.c.l.b16 %v227
  %v804 = vunpack.c.l.b16 %v228
  %v805 = vunpack.c.l.b16 %v229
  %v806 = vunpack.c.l.b16 %v230
  %v807 = vpack.c.b16 %v680, %v679
  %v808 = vpack.c.b16 %v682, %v681
  %v809 = vpack.c.b16 %v684, %v683
  %v810 = vpack.c.b16 %v686, %v685
  %v811 = vpack.c.b16 %v688, %v687
  %v812 = vpack.c.b16 %v690, %v689
  %v813 = vpack.c.b16 %v692, %v691
  %v814 = vpack.c.b16 %v694, %v693
  %v815 = vpack.c.b16 %v696, %v695
  %v816 = vpack.c.b16 %v698, %v697
  %v817 = vpack.c.b16 %v700, %v699
  %v818 = vpack.c.b16 %v702, %v701
  %v819 = vpack.c.b16 %v704, %v703
  %v820 = vpack.c.b16 %v706, %v705
  %v821 = vpack.c.b16 %v708, %v707
  %v822 = vpack.c.b16 %v710, %v709
  %v823 = vpack.c.b16 %v712, %v711
  %v824 = vpack.c.b16 %v714, %v713
  %v825 = vpack.c.b16 %v716, %v715
  %v826 = vpack.c.b16 %v718, %v717
  %v827 = vpack.c.b16 %v720, %v719
  %v828 = vpack.c.b16 %v722, %v721
  %v829 = vpack.c.b16 %v724, %v723
  %v830 = vpack.c.b16 %v726, %v725
  %v831 = vpack.c.b16 %v728, %v727
  %v832 = vpack.c.b16 %v730, %v729
  %v833 = vpack.c.b16 %v732, %v731
  %v834 = vpack.c.b16 %v734, %v733
  %v835 = vpack.c.b16 %v736, %v735
  %v836 = vpack.c.b16 %v738, %v737
  %v837 = vpack.c.b16 %v740, %v739
  %v838 = vpack.c.b16 %v742, %v741
  %v839 = vpack.c.b16 %v744, %v743
  %v840 = vpack.c.b16 %v746, %v745
  %v841 = vpack.c.b16 %v748, %v747
  %v842 = vpack.c.b16 %v750, %v749
  %v843 = vpack.c.b16 %v752, %v751
  %v844 = vpack.c.b16 %v754, %v753
  %v845 = vpack.c.b16 %v756, %v755
  %v846 = vpack.c.b16 %v758, %v757
  %v847 = vpack.c.b16 %v760, %v759
  %v848 = vpack.c.b16 %v762, %v761
  %v849 = vpack.c.b16 %v764, %v763
  %v850 = vpack.c.b16 %v766, %v765
  %v851 = vpack.c.b16 %v768, %v767
  %v852 = vpack.c.b16 %v770, %v769
  %v853 = vpack.c.b16 %v772, %v771
  %v854 = vpack.c.b16 %v774, %v773
  %v855 = vpack.c.b16 %v776, %v775
  %v856 = vpack.c.b16 %v778, %v777
  %v857 = vpack.c.b16 %v780, %v779
  %v858 = vpack.c.b16 %v782, %v781
  %v859 = vpack.c.b16 %v784, %v783
  %v860 = vpack.c.b16 %v786, %v785
  %v861 = vpack.c.b16 %v788, %v787
  %v862 = vpack.c.b16 %v790, %v789
  %v863 = vpack.c.b16 %v792, %v791
  %v864 = vpack.c.b16 %v794, %v793
  %v865 = vpack.c.b16 %v796, %v795
  %v866 = vpack.c.b16 %v798, %v797
  %v867 = vpack.c.b16 %v800, %v799
  %v868 = vpack.c.b16 %v802, %v801
  %v869 = vpack.c.b16 %v804, %v803
  %v870 = vpack.c.b16 %v806, %v805
  %935 = vmatprep.subr.bf16.mxu0 0
  %936 = vmatpush1.bf16.msra.mxu0 %v807
  %937 = vmatprep.subr.bf16.mxu0 0
  %938 = vmatpush1.bf16.msra.mxu0 %v808
  %939 = vmatprep.subr.bf16.mxu0 0
  %940 = vmatpush1.bf16.msra.mxu0 %v809
  %941 = vmatprep.subr.bf16.mxu0 0
  %942 = vmatpush1.bf16.msra.mxu0 %v810
  %943 = vmatprep.subr.bf16.mxu0 0
  %944 = vmatpush1.bf16.msra.mxu0 %v811
  %945 = vmatprep.subr.bf16.mxu0 0
  %946 = vmatpush1.bf16.msra.mxu0 %v812
  %947 = vmatprep.subr.bf16.mxu0 0
  %948 = vmatpush1.bf16.msra.mxu0 %v813
  %949 = vmatprep.subr.bf16.mxu0 0
  %950 = vmatpush1.bf16.msra.mxu0 %v814
  %951 = vmatprep.subr.bf16.mxu0 0
  %952 = vmatpush1.bf16.msra.mxu0 %v815
  %953 = vmatprep.subr.bf16.mxu0 0
  %954 = vmatpush1.bf16.msra.mxu0 %v816
  %955 = vmatprep.subr.bf16.mxu0 0
  %956 = vmatpush1.bf16.msra.mxu0 %v817
  %957 = vmatprep.subr.bf16.mxu0 0
  %958 = vmatpush1.bf16.msra.mxu0 %v818
  %959 = vmatprep.subr.bf16.mxu0 0
  %960 = vmatpush1.bf16.msra.mxu0 %v819
  %961 = vmatprep.subr.bf16.mxu0 0
  %962 = vmatpush1.bf16.msra.mxu0 %v820
  %963 = vmatprep.subr.bf16.mxu0 0
  %964 = vmatpush1.bf16.msra.mxu0 %v821
  %965 = vmatprep.subr.bf16.mxu0 0
  %966 = vmatpush1.bf16.msra.mxu0 %v822
  %967 = vmatprep.mubr.bf16.mxu0 %v424
  %968 = vmatmul.mubr.bf16.gmra.mrb[0].mxu0 %v423
  %v969 = vpop.f32.mrb[0].mxu0
  %v970 = vadd.f32 0.0, %v969
  %v971 = vpop.f32.mrb[0].mxu0
  %v972 = vpop.f32.mrb[0].mxu0
  %v973 = vadd.f32 0.0, %v972
  %v974 = vpop.f32.mrb[0].mxu0
  %975 = vmatprep.mubr.bf16.mxu0 %v432
  %976 = vmatmul.mubr.bf16.gmra.mrb[0].mxu0 %v431
  %v977 = vpop.f32.mrb[0].mxu0
  %v978 = vadd.f32 0.0, %v977
  %v979 = vpop.f32.mrb[0].mxu0
  %v980 = vpop.f32.mrb[0].mxu0
  %v981 = vadd.f32 0.0, %v980
  %v982 = vpop.f32.mrb[0].mxu0
  %983 = vmatprep.mubr.bf16.mxu0 %v440
  %984 = vmatmul.mubr.bf16.gmra.mrb[0].mxu0 %v439
  %v985 = vpop.f32.mrb[0].mxu0
  %v986 = vadd.f32 0.0, %v985
  %v987 = vpop.f32.mrb[0].mxu0
  %v988 = vpop.f32.mrb[0].mxu0
  %v989 = vadd.f32 0.0, %v988
  %v990 = vpop.f32.mrb[0].mxu0
  %991 = vmatprep.mubr.bf16.mxu0 %v448
  %992 = vmatmul.mubr.bf16.gmra.mrb[0].mxu0 %v447
  %v993 = vpop.f32.mrb[0].mxu0
  %v994 = vadd.f32 0.0, %v993
  %v995 = vpop.f32.mrb[0].mxu0
  %v996 = vpop.f32.mrb[0].mxu0
  %v997 = vadd.f32 0.0, %v996
  %v998 = vpop.f32.mrb[0].mxu0
  %999 = vmatprep.mubr.bf16.mxu0 %v456
  %1000 = vmatmul.mubr.bf16.gmra.mrb[0].mxu0 %v455
  %v1001 = vpop.f32.mrb[0].mxu0
  %v1002 = vadd.f32 0.0, %v1001
  %v1003 = vpop.f32.mrb[0].mxu0
  %v1004 = vpop.f32.mrb[0].mxu0
  %v1005 = vadd.f32 0.0, %v1004
  %v1006 = vpop.f32.mrb[0].mxu0
  %1007 = vmatprep.mubr.bf16.mxu0 %v464
  %1008 = vmatmul.mubr.bf16.gmra.mrb[0].mxu0 %v463
  %v1009 = vpop.f32.mrb[0].mxu0
  %v1010 = vadd.f32 0.0, %v1009
  %v1011 = vpop.f32.mrb[0].mxu0
  %v1012 = vpop.f32.mrb[0].mxu0
  %v1013 = vadd.f32 0.0, %v1012
  %v1014 = vpop.f32.mrb[0].mxu0
  %1015 = vmatprep.mubr.bf16.mxu0 %v472
  %1016 = vmatmul.mubr.bf16.gmra.mrb[0].mxu0 %v471
  %v1017 = vpop.f32.mrb[0].mxu0
  %v1018 = vadd.f32 0.0, %v1017
  %v1019 = vpop.f32.mrb[0].mxu0
  %v1020 = vpop.f32.mrb[0].mxu0
  %v1021 = vadd.f32 0.0, %v1020
  %v1022 = vpop.f32.mrb[0].mxu0
  %1023 = vmatprep.mubr.bf16.mxu0 %v480
  %1024 = vmatmul.mubr.bf16.gmra.mrb[0].mxu0 %v479
  %v1025 = vpop.f32.mrb[0].mxu0
  %v1026 = vadd.f32 0.0, %v1025
  %v1027 = vpop.f32.mrb[0].mxu0
  %v1028 = vpop.f32.mrb[0].mxu0
  %v1029 = vadd.f32 0.0, %v1028
  %v1030 = vpop.f32.mrb[0].mxu0
  %1031 = vdwg.mxu0
  %1032 = vmatprep.subr.bf16.mxu0 0
  %1033 = vmatpush1.bf16.msra.mxu0 %v823
  %1034 = vmatprep.subr.bf16.mxu0 0
  %1035 = vmatpush1.bf16.msra.mxu0 %v824
  %1036 = vmatprep.subr.bf16.mxu0 0
  %1037 = vmatpush1.bf16.msra.mxu0 %v825
  %1038 = vmatprep.subr.bf16.mxu0 0
  %1039 = vmatpush1.bf16.msra.mxu0 %v826
  %1040 = vmatprep.subr.bf16.mxu0 0
  %1041 = vmatpush1.bf16.msra.mxu0 %v827
  %1042 = vmatprep.subr.bf16.mxu0 0
  %1043 = vmatpush1.bf16.msra.mxu0 %v828
  %1044 = vmatprep.subr.bf16.mxu0 0
  %1045 = vmatpush1.bf16.msra.mxu0 %v829
  %1046 = vmatprep.subr.bf16.mxu0 0
  %1047 = vmatpush1.bf16.msra.mxu0 %v830
  %1048 = vmatprep.subr.bf16.mxu0 0
  %1049 = vmatpush1.bf16.msra.mxu0 %v831
  %1050 = vmatprep.subr.bf16.mxu0 0
  %1051 = vmatpush1.bf16.msra.mxu0 %v832
  %1052 = vmatprep.subr.bf16.mxu0 0
  %1053 = vmatpush1.bf16.msra.mxu0 %v833
  %1054 = vmatprep.subr.bf16.mxu0 0
  %1055 = vmatpush1.bf16.msra.mxu0 %v834
  %1056 = vmatprep.subr.bf16.mxu0 0
  %1057 = vmatpush1.bf16.msra.mxu0 %v835
  %1058 = vmatprep.subr.bf16.mxu0 0
  %1059 = vmatpush1.bf16.msra.mxu0 %v836
  %1060 = vmatprep.subr.bf16.mxu0 0
  %1061 = vmatpush1.bf16.msra.mxu0 %v837
  %1062 = vmatprep.subr.bf16.mxu0 0
  %1063 = vmatpush1.bf16.msra.mxu0 %v838
  %1064 = vmatprep.mubr.bf16.mxu0 %v426
  %1065 = vmatmul.mubr.bf16.gmra.mrb[0].mxu0 %v425
  %v1066 = vpop.f32.mrb[0].mxu0
  %v1067 = vadd.f32 %v970, %v1066
  %v1068 = vpop.f32.mrb[0].mxu0
  %v1069 = vpop.f32.mrb[0].mxu0
  %v1070 = vadd.f32 %v973, %v1069
  %v1071 = vpop.f32.mrb[0].mxu0
  %1072 = vmatprep.mubr.bf16.mxu0 %v434
  %1073 = vmatmul.mubr.bf16.gmra.mrb[0].mxu0 %v433
  %v1074 = vpop.f32.mrb[0].mxu0
  %v1075 = vadd.f32 %v978, %v1074
  %v1076 = vpop.f32.mrb[0].mxu0
  %v1077 = vpop.f32.mrb[0].mxu0
  %v1078 = vadd.f32 %v981, %v1077
  %v1079 = vpop.f32.mrb[0].mxu0
  %1080 = vmatprep.mubr.bf16.mxu0 %v442
  %1081 = vmatmul.mubr.bf16.gmra.mrb[0].mxu0 %v441
  %v1082 = vpop.f32.mrb[0].mxu0
  %v1083 = vadd.f32 %v986, %v1082
  %v1084 = vpop.f32.mrb[0].mxu0
  %v1085 = vpop.f32.mrb[0].mxu0
  %v1086 = vadd.f32 %v989, %v1085
  %v1087 = vpop.f32.mrb[0].mxu0
  %1088 = vmatprep.mubr.bf16.mxu0 %v450
  %1089 = vmatmul.mubr.bf16.gmra.mrb[0].mxu0 %v449
  %v1090 = vpop.f32.mrb[0].mxu0
  %v1091 = vadd.f32 %v994, %v1090
  %v1092 = vpop.f32.mrb[0].mxu0
  %v1093 = vpop.f32.mrb[0].mxu0
  %v1094 = vadd.f32 %v997, %v1093
  %v1095 = vpop.f32.mrb[0].mxu0
  %1096 = vmatprep.mubr.bf16.mxu0 %v458
  %1097 = vmatmul.mubr.bf16.gmra.mrb[0].mxu0 %v457
  %v1098 = vpop.f32.mrb[0].mxu0
  %v1099 = vadd.f32 %v1002, %v1098
  %v1100 = vpop.f32.mrb[0].mxu0
  %v1101 = vpop.f32.mrb[0].mxu0
  %v1102 = vadd.f32 %v1005, %v1101
  %v1103 = vpop.f32.mrb[0].mxu0
  %1104 = vmatprep.mubr.bf16.mxu0 %v466
  %1105 = vmatmul.mubr.bf16.gmra.mrb[0].mxu0 %v465
  %v1106 = vpop.f32.mrb[0].mxu0
  %v1107 = vadd.f32 %v1010, %v1106
  %v1108 = vpop.f32.mrb[0].mxu0
  %v1109 = vpop.f32.mrb[0].mxu0
  %v1110 = vadd.f32 %v1013, %v1109
  %v1111 = vpop.f32.mrb[0].mxu0
  %1112 = vmatprep.mubr.bf16.mxu0 %v474
  %1113 = vmatmul.mubr.bf16.gmra.mrb[0].mxu0 %v473
  %v1114 = vpop.f32.mrb[0].mxu0
  %v1115 = vadd.f32 %v1018, %v1114
  %v1116 = vpop.f32.mrb[0].mxu0
  %v1117 = vpop.f32.mrb[0].mxu0
  %v1118 = vadd.f32 %v1021, %v1117
  %v1119 = vpop.f32.mrb[0].mxu0
  %1120 = vmatprep.mubr.bf16.mxu0 %v482
  %1121 = vmatmul.mubr.bf16.gmra.mrb[0].mxu0 %v481
  %v1122 = vpop.f32.mrb[0].mxu0
  %v1123 = vadd.f32 %v1026, %v1122
  %v1124 = vpop.f32.mrb[0].mxu0
  %v1125 = vpop.f32.mrb[0].mxu0
  %v1126 = vadd.f32 %v1029, %v1125
  %v1127 = vpop.f32.mrb[0].mxu0
  %1128 = vdwg.mxu0
  %1129 = vmatprep.subr.bf16.mxu0 0
  %1130 = vmatpush1.bf16.msra.mxu0 %v839
  %1131 = vmatprep.subr.bf16.mxu0 0
  %1132 = vmatpush1.bf16.msra.mxu0 %v840
  %1133 = vmatprep.subr.bf16.mxu0 0
  %1134 = vmatpush1.bf16.msra.mxu0 %v841
  %1135 = vmatprep.subr.bf16.mxu0 0
  %1136 = vmatpush1.bf16.msra.mxu0 %v842
  %1137 = vmatprep.subr.bf16.mxu0 0
  %1138 = vmatpush1.bf16.msra.mxu0 %v843
  %1139 = vmatprep.subr.bf16.mxu0 0
  %1140 = vmatpush1.bf16.msra.mxu0 %v844
  %1141 = vmatprep.subr.bf16.mxu0 0
  %1142 = vmatpush1.bf16.msra.mxu0 %v845
  %1143 = vmatprep.subr.bf16.mxu0 0
  %1144 = vmatpush1.bf16.msra.mxu0 %v846
  %1145 = vmatprep.subr.bf16.mxu0 0
  %1146 = vmatpush1.bf16.msra.mxu0 %v847
  %1147 = vmatprep.subr.bf16.mxu0 0
  %1148 = vmatpush1.bf16.msra.mxu0 %v848
  %1149 = vmatprep.subr.bf16.mxu0 0
  %1150 = vmatpush1.bf16.msra.mxu0 %v849
  %1151 = vmatprep.subr.bf16.mxu0 0
  %1152 = vmatpush1.bf16.msra.mxu0 %v850
  %1153 = vmatprep.subr.bf16.mxu0 0
  %1154 = vmatpush1.bf16.msra.mxu0 %v851
  %1155 = vmatprep.subr.bf16.mxu0 0
  %1156 = vmatpush1.bf16.msra.mxu0 %v852
  %1157 = vmatprep.subr.bf16.mxu0 0
  %1158 = vmatpush1.bf16.msra.mxu0 %v853
  %1159 = vmatprep.subr.bf16.mxu0 0
  %1160 = vmatpush1.bf16.msra.mxu0 %v854
  %1161 = vmatprep.mubr.bf16.mxu0 %v428
  %1162 = vmatmul.mubr.bf16.gmra.mrb[0].mxu0 %v427
  %v1163 = vpop.f32.mrb[0].mxu0
  %v1164 = vadd.f32 %v1067, %v1163
  %v1165 = vpop.f32.mrb[0].mxu0
  %v1166 = vpop.f32.mrb[0].mxu0
  %v1167 = vadd.f32 %v1070, %v1166
  %v1168 = vpop.f32.mrb[0].mxu0
  %1169 = vmatprep.mubr.bf16.mxu0 %v436
  %1170 = vmatmul.mubr.bf16.gmra.mrb[0].mxu0 %v435
  %v1171 = vpop.f32.mrb[0].mxu0
  %v1172 = vadd.f32 %v1075, %v1171
  %v1173 = vpop.f32.mrb[0].mxu0
  %v1174 = vpop.f32.mrb[0].mxu0
  %v1175 = vadd.f32 %v1078, %v1174
  %v1176 = vpop.f32.mrb[0].mxu0
  %1177 = vmatprep.mubr.bf16.mxu0 %v444
  %1178 = vmatmul.mubr.bf16.gmra.mrb[0].mxu0 %v443
  %v1179 = vpop.f32.mrb[0].mxu0
  %v1180 = vadd.f32 %v1083, %v1179
  %v1181 = vpop.f32.mrb[0].mxu0
  %v1182 = vpop.f32.mrb[0].mxu0
  %v1183 = vadd.f32 %v1086, %v1182
  %v1184 = vpop.f32.mrb[0].mxu0
  %1185 = vmatprep.mubr.bf16.mxu0 %v452
  %1186 = vmatmul.mubr.bf16.gmra.mrb[0].mxu0 %v451
  %v1187 = vpop.f32.mrb[0].mxu0
  %v1188 = vadd.f32 %v1091, %v1187
  %v1189 = vpop.f32.mrb[0].mxu0
  %v1190 = vpop.f32.mrb[0].mxu0
  %v1191 = vadd.f32 %v1094, %v1190
  %v1192 = vpop.f32.mrb[0].mxu0
  %1193 = vmatprep.mubr.bf16.mxu0 %v460
  %1194 = vmatmul.mubr.bf16.gmra.mrb[0].mxu0 %v459
  %v1195 = vpop.f32.mrb[0].mxu0
  %v1196 = vadd.f32 %v1099, %v1195
  %v1197 = vpop.f32.mrb[0].mxu0
  %v1198 = vpop.f32.mrb[0].mxu0
  %v1199 = vadd.f32 %v1102, %v1198
  %v1200 = vpop.f32.mrb[0].mxu0
  %1201 = vmatprep.mubr.bf16.mxu0 %v468
  %1202 = vmatmul.mubr.bf16.gmra.mrb[0].mxu0 %v467
  %v1203 = vpop.f32.mrb[0].mxu0
  %v1204 = vadd.f32 %v1107, %v1203
  %v1205 = vpop.f32.mrb[0].mxu0
  %v1206 = vpop.f32.mrb[0].mxu0
  %v1207 = vadd.f32 %v1110, %v1206
  %v1208 = vpop.f32.mrb[0].mxu0
  %1209 = vmatprep.mubr.bf16.mxu0 %v476
  %1210 = vmatmul.mubr.bf16.gmra.mrb[0].mxu0 %v475
  %v1211 = vpop.f32.mrb[0].mxu0
  %v1212 = vadd.f32 %v1115, %v1211
  %v1213 = vpop.f32.mrb[0].mxu0
  %v1214 = vpop.f32.mrb[0].mxu0
  %v1215 = vadd.f32 %v1118, %v1214
  %v1216 = vpop.f32.mrb[0].mxu0
  %1217 = vmatprep.mubr.bf16.mxu0 %v484
  %1218 = vmatmul.mubr.bf16.gmra.mrb[0].mxu0 %v483
  %v1219 = vpop.f32.mrb[0].mxu0
  %v1220 = vadd.f32 %v1123, %v1219
  %v1221 = vpop.f32.mrb[0].mxu0
  %v1222 = vpop.f32.mrb[0].mxu0
  %v1223 = vadd.f32 %v1126, %v1222
  %v1224 = vpop.f32.mrb[0].mxu0
  %1225 = vdwg.mxu0
  %1226 = vmatprep.subr.bf16.mxu0 0
  %1227 = vmatpush1.bf16.msra.mxu0 %v855
  %1228 = vmatprep.subr.bf16.mxu0 0
  %1229 = vmatpush1.bf16.msra.mxu0 %v856
  %1230 = vmatprep.subr.bf16.mxu0 0
  %1231 = vmatpush1.bf16.msra.mxu0 %v857
  %1232 = vmatprep.subr.bf16.mxu0 0
  %1233 = vmatpush1.bf16.msra.mxu0 %v858
  %1234 = vmatprep.subr.bf16.mxu0 0
  %1235 = vmatpush1.bf16.msra.mxu0 %v859
  %1236 = vmatprep.subr.bf16.mxu0 0
  %1237 = vmatpush1.bf16.msra.mxu0 %v860
  %1238 = vmatprep.subr.bf16.mxu0 0
  %1239 = vmatpush1.bf16.msra.mxu0 %v861
  %1240 = vmatprep.subr.bf16.mxu0 0
  %1241 = vmatpush1.bf16.msra.mxu0 %v862
  %1242 = vmatprep.subr.bf16.mxu0 0
  %1243 = vmatpush1.bf16.msra.mxu0 %v863
  %1244 = vmatprep.subr.bf16.mxu0 0
  %1245 = vmatpush1.bf16.msra.mxu0 %v864
  %1246 = vmatprep.subr.bf16.mxu0 0
  %1247 = vmatpush1.bf16.msra.mxu0 %v865
  %1248 = vmatprep.subr.bf16.mxu0 0
  %1249 = vmatpush1.bf16.msra.mxu0 %v866
  %1250 = vmatprep.subr.bf16.mxu0 0
  %1251 = vmatpush1.bf16.msra.mxu0 %v867
  %1252 = vmatprep.subr.bf16.mxu0 0
  %1253 = vmatpush1.bf16.msra.mxu0 %v868
  %1254 = vmatprep.subr.bf16.mxu0 0
  %1255 = vmatpush1.bf16.msra.mxu0 %v869
  %1256 = vmatprep.subr.bf16.mxu0 0
  %1257 = vmatpush1.bf16.msra.mxu0 %v870
  %1258 = vmatprep.mubr.bf16.mxu0 %v430
  %1259 = vmatmul.mubr.bf16.gmra.mrb[0].mxu0 %v429
  %v1260 = vpop.f32.mrb[0].mxu0
  %v1261 = vadd.f32 %v1164, %v1260
  %v1262 = vpop.f32.mrb[0].mxu0
  %v1263 = vpop.f32.mrb[0].mxu0
  %v1264 = vadd.f32 %v1167, %v1263
  %v1265 = vpop.f32.mrb[0].mxu0
  %1266 = vmatprep.mubr.bf16.mxu0 %v438
  %1267 = vmatmul.mubr.bf16.gmra.mrb[0].mxu0 %v437
  %v1268 = vpop.f32.mrb[0].mxu0
  %v1269 = vadd.f32 %v1172, %v1268
  %v1270 = vpop.f32.mrb[0].mxu0
  %v1271 = vpop.f32.mrb[0].mxu0
  %v1272 = vadd.f32 %v1175, %v1271
  %v1273 = vpop.f32.mrb[0].mxu0
  %1274 = vmatprep.mubr.bf16.mxu0 %v446
  %1275 = vmatmul.mubr.bf16.gmra.mrb[0].mxu0 %v445
  %v1276 = vpop.f32.mrb[0].mxu0
  %v1277 = vadd.f32 %v1180, %v1276
  %v1278 = vpop.f32.mrb[0].mxu0
  %v1279 = vpop.f32.mrb[0].mxu0
  %v1280 = vadd.f32 %v1183, %v1279
  %v1281 = vpop.f32.mrb[0].mxu0
  %1282 = vmatprep.mubr.bf16.mxu0 %v454
  %1283 = vmatmul.mubr.bf16.gmra.mrb[0].mxu0 %v453
  %v1284 = vpop.f32.mrb[0].mxu0
  %v1285 = vadd.f32 %v1188, %v1284
  %v1286 = vpop.f32.mrb[0].mxu0
  %v1287 = vpop.f32.mrb[0].mxu0
  %v1288 = vadd.f32 %v1191, %v1287
  %v1289 = vpop.f32.mrb[0].mxu0
  %1290 = vmatprep.mubr.bf16.mxu0 %v462
  %1291 = vmatmul.mubr.bf16.gmra.mrb[0].mxu0 %v461
  %v1292 = vpop.f32.mrb[0].mxu0
  %v1293 = vadd.f32 %v1196, %v1292
  %v1294 = vpop.f32.mrb[0].mxu0
  %v1295 = vpop.f32.mrb[0].mxu0
  %v1296 = vadd.f32 %v1199, %v1295
  %v1297 = vpop.f32.mrb[0].mxu0
  %1298 = vmatprep.mubr.bf16.mxu0 %v470
  %1299 = vmatmul.mubr.bf16.gmra.mrb[0].mxu0 %v469
  %v1300 = vpop.f32.mrb[0].mxu0
  %v1301 = vadd.f32 %v1204, %v1300
  %v1302 = vpop.f32.mrb[0].mxu0
  %v1303 = vpop.f32.mrb[0].mxu0
  %v1304 = vadd.f32 %v1207, %v1303
  %v1305 = vpop.f32.mrb[0].mxu0
  %1306 = vmatprep.mubr.bf16.mxu0 %v478
  %1307 = vmatmul.mubr.bf16.gmra.mrb[0].mxu0 %v477
  %v1308 = vpop.f32.mrb[0].mxu0
  %v1309 = vadd.f32 %v1212, %v1308
  %v1310 = vpop.f32.mrb[0].mxu0
  %v1311 = vpop.f32.mrb[0].mxu0
  %v1312 = vadd.f32 %v1215, %v1311
  %v1313 = vpop.f32.mrb[0].mxu0
  %1314 = vmatprep.mubr.bf16.mxu0 %v486
  %1315 = vmatmul.mubr.bf16.gmra.mrb[0].mxu0 %v485
  %v1316 = vpop.f32.mrb[0].mxu0
  %v1317 = vadd.f32 %v1220, %v1316
  %v1318 = vpop.f32.mrb[0].mxu0
  %v1319 = vpop.f32.mrb[0].mxu0
  %v1320 = vadd.f32 %v1223, %v1319
  %v1321 = vpop.f32.mrb[0].mxu0
  %1322 = vdwg.mxu0
  %v1323 = vld [vmem:[%s2] sm:$0x1]
  %v1325 = vlaneseq
  %v1326 = vshrl.u32 %v1325, 7
  %v1327 = vsub.s32 0, %v1326
  %v1328 = vrot.slane %v1323, %v1327
  %v1330 = vmul.f32 %v1261, %v1328
  %v1331 = vmul.f32 %v1264, %v1328
  %v1332 = vmul.f32 %v1269, %v1328
  %v1333 = vmul.f32 %v1272, %v1328
  %v1334 = vmul.f32 %v1277, %v1328
  %v1335 = vmul.f32 %v1280, %v1328
  %v1336 = vmul.f32 %v1285, %v1328
  %v1337 = vmul.f32 %v1288, %v1328
  %v1338 = vmul.f32 %v1293, %v1328
  %v1339 = vmul.f32 %v1296, %v1328
  %v1340 = vmul.f32 %v1301, %v1328
  %v1341 = vmul.f32 %v1304, %v1328
  %v1342 = vmul.f32 %v1309, %v1328
  %v1343 = vmul.f32 %v1312, %v1328
  %v1344 = vmul.f32 %v1317, %v1328
  %v1345 = vmul.f32 %v1320, %v1328
  %v1346 = vld [vmem:[%s3] sm:$0x1]
  %v1348 = vlaneseq
  %v1349 = vshrl.u32 %v1348, 7
  %v1350 = vsub.s32 0, %v1349
  %v1351 = vrot.slane %v1346, %v1350
  %v1353 = vadd.f32 %v1330, %v1351
  %v1354 = vadd.f32 %v1331, %v1351
  %v1355 = vadd.f32 %v1332, %v1351
  %v1356 = vadd.f32 %v1333, %v1351
  %v1357 = vadd.f32 %v1334, %v1351
  %v1358 = vadd.f32 %v1335, %v1351
  %v1359 = vadd.f32 %v1336, %v1351
  %v1360 = vadd.f32 %v1337, %v1351
  %v1361 = vadd.f32 %v1338, %v1351
  %v1362 = vadd.f32 %v1339, %v1351
  %v1363 = vadd.f32 %v1340, %v1351
  %v1364 = vadd.f32 %v1341, %v1351
  %v1365 = vadd.f32 %v1342, %v1351
  %v1366 = vadd.f32 %v1343, %v1351
  %v1367 = vadd.f32 %v1344, %v1351
  %v1368 = vadd.f32 %v1345, %v1351
  %v1369 = vmax.f32 %v1353, 0.0
  %v1370 = vmax.f32 %v1354, 0.0
  %v1371 = vmax.f32 %v1355, 0.0
  %v1372 = vmax.f32 %v1356, 0.0
  %v1373 = vmax.f32 %v1357, 0.0
  %v1374 = vmax.f32 %v1358, 0.0
  %v1375 = vmax.f32 %v1359, 0.0
  %v1376 = vmax.f32 %v1360, 0.0
  %v1377 = vmax.f32 %v1361, 0.0
  %v1378 = vmax.f32 %v1362, 0.0
  %v1379 = vmax.f32 %v1363, 0.0
  %v1380 = vmax.f32 %v1364, 0.0
  %v1381 = vmax.f32 %v1365, 0.0
  %v1382 = vmax.f32 %v1366, 0.0
  %v1383 = vmax.f32 %v1367, 0.0
  %v1384 = vmax.f32 %v1368, 0.0
  %v1385 = vpack.c.bf16 %v1369, %v1369
  %v1386 = vld [vmem:[%s4] sm:$0xff]
  %v1387 = vld [vmem:[%s4 + $0x8] sm:$0xff]
  %v1388 = vld [vmem:[%s4 + $0x10] sm:$0xff]
  %v1389 = vld [vmem:[%s4 + $0x18] sm:$0xff]
  %v1390 = vld [vmem:[%s4 + $0x20] sm:$0xff]
  %v1391 = vld [vmem:[%s4 + $0x28] sm:$0xff]
  %v1392 = vld [vmem:[%s4 + $0x30] sm:$0xff]
  %v1393 = vld [vmem:[%s4 + $0x38] sm:$0xff]
  %v1394 = vld [vmem:[%s4 + $0x40] sm:$0xff]
  %v1395 = vld [vmem:[%s4 + $0x48] sm:$0xff]
  %v1396 = vld [vmem:[%s4 + $0x50] sm:$0xff]
  %v1397 = vld [vmem:[%s4 + $0x58] sm:$0xff]
  %v1398 = vld [vmem:[%s4 + $0x60] sm:$0xff]
  %v1399 = vld [vmem:[%s4 + $0x68] sm:$0xff]
  %v1400 = vld [vmem:[%s4 + $0x70] sm:$0xff]
  %v1401 = vld [vmem:[%s4 + $0x78] sm:$0xff]
  %v1402 = vpack.c.bf16 %v1370, %v1370
  %v1403 = vld [vmem:[%s4 + $0x80] sm:$0xff]
  %v1404 = vld [vmem:[%s4 + $0x88] sm:$0xff]
  %v1405 = vld [vmem:[%s4 + $0x90] sm:$0xff]
  %v1406 = vld [vmem:[%s4 + $0x98] sm:$0xff]
  %v1407 = vld [vmem:[%s4 + $0xa0] sm:$0xff]
  %v1408 = vld [vmem:[%s4 + $0xa8] sm:$0xff]
  %v1409 = vld [vmem:[%s4 + $0xb0] sm:$0xff]
  %v1410 = vld [vmem:[%s4 + $0xb8] sm:$0xff]
  %v1411 = vld [vmem:[%s4 + $0xc0] sm:$0xff]
  %v1412 = vld [vmem:[%s4 + $0xc8] sm:$0xff]
  %v1413 = vld [vmem:[%s4 + $0xd0] sm:$0xff]
  %v1414 = vld [vmem:[%s4 + $0xd8] sm:$0xff]
  %v1415 = vld [vmem:[%s4 + $0xe0] sm:$0xff]
  %v1416 = vld [vmem:[%s4 + $0xe8] sm:$0xff]
  %v1417 = vld [vmem:[%s4 + $0xf0] sm:$0xff]
  %v1418 = vld [vmem:[%s4 + $0xf8] sm:$0xff]
  %v1435 = vunpack.c.l.b16 %v1403
  %v1436 = vunpack.c.h.b16 %v1403
  %v1437 = vunpack.c.l.b16 %v1404
  %v1438 = vunpack.c.h.b16 %v1404
  %v1439 = vunpack.c.l.b16 %v1405
  %v1440 = vunpack.c.h.b16 %v1405
  %v1441 = vunpack.c.l.b16 %v1406
  %v1442 = vunpack.c.h.b16 %v1406
  %v1443 = vunpack.c.l.b16 %v1407
  %v1444 = vunpack.c.h.b16 %v1407
  %v1445 = vunpack.c.l.b16 %v1408
  %v1446 = vunpack.c.h.b16 %v1408
  %v1447 = vunpack.c.l.b16 %v1409
  %v1448 = vunpack.c.h.b16 %v1409
  %v1449 = vunpack.c.l.b16 %v1410
  %v1450 = vunpack.c.h.b16 %v1410
  %v1451 = vunpack.c.l.b16 %v1411
  %v1452 = vunpack.c.h.b16 %v1411
  %v1453 = vunpack.c.l.b16 %v1412
  %v1454 = vunpack.c.h.b16 %v1412
  %v1455 = vunpack.c.l.b16 %v1413
  %v1456 = vunpack.c.h.b16 %v1413
  %v1457 = vunpack.c.l.b16 %v1414
  %v1458 = vunpack.c.h.b16 %v1414
  %v1459 = vunpack.c.l.b16 %v1415
  %v1460 = vunpack.c.h.b16 %v1415
  %v1461 = vunpack.c.l.b16 %v1416
  %v1462 = vunpack.c.h.b16 %v1416
  %v1463 = vunpack.c.l.b16 %v1417
  %v1464 = vunpack.c.h.b16 %v1417
  %v1465 = vunpack.c.l.b16 %v1418
  %v1466 = vunpack.c.h.b16 %v1418
  %v1467 = vpack.c.b16 %v1437, %v1435
  %v1468 = vpack.c.b16 %v1438, %v1436
  %v1469 = vpack.c.b16 %v1441, %v1439
  %v1470 = vpack.c.b16 %v1442, %v1440
  %v1471 = vpack.c.b16 %v1445, %v1443
  %v1472 = vpack.c.b16 %v1446, %v1444
  %v1473 = vpack.c.b16 %v1449, %v1447
  %v1474 = vpack.c.b16 %v1450, %v1448
  %v1475 = vpack.c.b16 %v1453, %v1451
  %v1476 = vpack.c.b16 %v1454, %v1452
  %v1477 = vpack.c.b16 %v1457, %v1455
  %v1478 = vpack.c.b16 %v1458, %v1456
  %v1479 = vpack.c.b16 %v1461, %v1459
  %v1480 = vpack.c.b16 %v1462, %v1460
  %v1481 = vpack.c.b16 %v1465, %v1463
  %v1482 = vpack.c.b16 %v1466, %v1464
  %1499 = vmatprep.subr.bf16.mxu0 %v1468
  %1500 = vmatpush1.bf16.msra.mxu0 %v1467
  %1501 = vmatprep.subr.bf16.mxu0 %v1470
  %1502 = vmatpush1.bf16.msra.mxu0 %v1469
  %1503 = vmatprep.subr.bf16.mxu0 %v1472
  %1504 = vmatpush1.bf16.msra.mxu0 %v1471
  %1505 = vmatprep.subr.bf16.mxu0 %v1474
  %1506 = vmatpush1.bf16.msra.mxu0 %v1473
  %1507 = vmatprep.subr.bf16.mxu0 %v1476
  %1508 = vmatpush1.bf16.msra.mxu0 %v1475
  %1509 = vmatprep.subr.bf16.mxu0 %v1478
  %1510 = vmatpush1.bf16.msra.mxu0 %v1477
  %1511 = vmatprep.subr.bf16.mxu0 %v1480
  %1512 = vmatpush1.bf16.msra.mxu0 %v1479
  %1513 = vmatprep.subr.bf16.mxu0 %v1482
  %1514 = vmatpush1.bf16.msra.mxu0 %v1481
  %1515 = vmatprep.subr.bf16.mxu0 0
  %1516 = vmatpush1.bf16.msra.mxu0 0
  %1517 = vmatprep.subr.bf16.mxu0 0
  %1518 = vmatpush1.bf16.msra.mxu0 0
  %1519 = vmatprep.subr.bf16.mxu0 0
  %1520 = vmatpush1.bf16.msra.mxu0 0
  %1521 = vmatprep.subr.bf16.mxu0 0
  %1522 = vmatpush1.bf16.msra.mxu0 0
  %1523 = vmatprep.subr.bf16.mxu0 0
  %1524 = vmatpush1.bf16.msra.mxu0 0
  %1525 = vmatprep.subr.bf16.mxu0 0
  %1526 = vmatpush1.bf16.msra.mxu0 0
  %1527 = vmatprep.subr.bf16.mxu0 0
  %1528 = vmatpush1.bf16.msra.mxu0 0
  %1529 = vmatprep.subr.bf16.mxu0 0
  %1530 = vmatpush1.bf16.msra.mxu0 0
  %1531 = vmatprep.mubr.bf16.mxu0 0
  %1532 = vmatmul.mubr.bf16.gmra.mrb[0].mxu0 %v1402
  %v1533 = vpop.f32.mrb[0].mxu0
  %v1534 = vadd.f32 0.0, %v1533
  %v1535 = vpop.f32.mrb[0].mxu0
  %v1536 = vadd.f32 0.0, %v1535
  %v1537 = vpop.f32.mrb[0].mxu0
  %v1538 = vpop.f32.mrb[0].mxu0
  %1539 = vdwg.mxu0
  %v1556 = vunpack.c.l.b16 %v1386
  %v1557 = vunpack.c.h.b16 %v1386
  %v1558 = vunpack.c.l.b16 %v1387
  %v1559 = vunpack.c.h.b16 %v1387
  %v1560 = vunpack.c.l.b16 %v1388
  %v1561 = vunpack.c.h.b16 %v1388
  %v1562 = vunpack.c.l.b16 %v1389
  %v1563 = vunpack.c.h.b16 %v1389
  %v1564 = vunpack.c.l.b16 %v1390
  %v1565 = vunpack.c.h.b16 %v1390
  %v1566 = vunpack.c.l.b16 %v1391
  %v1567 = vunpack.c.h.b16 %v1391
  %v1568 = vunpack.c.l.b16 %v1392
  %v1569 = vunpack.c.h.b16 %v1392
  %v1570 = vunpack.c.l.b16 %v1393
  %v1571 = vunpack.c.h.b16 %v1393
  %v1572 = vunpack.c.l.b16 %v1394
  %v1573 = vunpack.c.h.b16 %v1394
  %v1574 = vunpack.c.l.b16 %v1395
  %v1575 = vunpack.c.h.b16 %v1395
  %v1576 = vunpack.c.l.b16 %v1396
  %v1577 = vunpack.c.h.b16 %v1396
  %v1578 = vunpack.c.l.b16 %v1397
  %v1579 = vunpack.c.h.b16 %v1397
  %v1580 = vunpack.c.l.b16 %v1398
  %v1581 = vunpack.c.h.b16 %v1398
  %v1582 = vunpack.c.l.b16 %v1399
  %v1583 = vunpack.c.h.b16 %v1399
  %v1584 = vunpack.c.l.b16 %v1400
  %v1585 = vunpack.c.h.b16 %v1400
  %v1586 = vunpack.c.l.b16 %v1401
  %v1587 = vunpack.c.h.b16 %v1401
  %v1588 = vpack.c.b16 %v1558, %v1556
  %v1589 = vpack.c.b16 %v1559, %v1557
  %v1590 = vpack.c.b16 %v1562, %v1560
  %v1591 = vpack.c.b16 %v1563, %v1561
  %v1592 = vpack.c.b16 %v1566, %v1564
  %v1593 = vpack.c.b16 %v1567, %v1565
  %v1594 = vpack.c.b16 %v1570, %v1568
  %v1595 = vpack.c.b16 %v1571, %v1569
  %v1596 = vpack.c.b16 %v1574, %v1572
  %v1597 = vpack.c.b16 %v1575, %v1573
  %v1598 = vpack.c.b16 %v1578, %v1576
  %v1599 = vpack.c.b16 %v1579, %v1577
  %v1600 = vpack.c.b16 %v1582, %v1580
  %v1601 = vpack.c.b16 %v1583, %v1581
  %v1602 = vpack.c.b16 %v1586, %v1584
  %v1603 = vpack.c.b16 %v1587, %v1585
  %1620 = vmatprep.subr.bf16.mxu0 %v1589
  %1621 = vmatpush1.bf16.msra.mxu0 %v1588
  %1622 = vmatprep.subr.bf16.mxu0 %v1591
  %1623 = vmatpush1.bf16.msra.mxu0 %v1590
  %1624 = vmatprep.subr.bf16.mxu0 %v1593
  %1625 = vmatpush1.bf16.msra.mxu0 %v1592
  %1626 = vmatprep.subr.bf16.mxu0 %v1595
  %1627 = vmatpush1.bf16.msra.mxu0 %v1594
  %1628 = vmatprep.subr.bf16.mxu0 %v1597
  %1629 = vmatpush1.bf16.msra.mxu0 %v1596
  %1630 = vmatprep.subr.bf16.mxu0 %v1599
  %1631 = vmatpush1.bf16.msra.mxu0 %v1598
  %1632 = vmatprep.subr.bf16.mxu0 %v1601
  %1633 = vmatpush1.bf16.msra.mxu0 %v1600
  %1634 = vmatprep.subr.bf16.mxu0 %v1603
  %1635 = vmatpush1.bf16.msra.mxu0 %v1602
  %1636 = vmatprep.subr.bf16.mxu0 0
  %1637 = vmatpush1.bf16.msra.mxu0 0
  %1638 = vmatprep.subr.bf16.mxu0 0
  %1639 = vmatpush1.bf16.msra.mxu0 0
  %1640 = vmatprep.subr.bf16.mxu0 0
  %1641 = vmatpush1.bf16.msra.mxu0 0
  %1642 = vmatprep.subr.bf16.mxu0 0
  %1643 = vmatpush1.bf16.msra.mxu0 0
  %1644 = vmatprep.subr.bf16.mxu0 0
  %1645 = vmatpush1.bf16.msra.mxu0 0
  %1646 = vmatprep.subr.bf16.mxu0 0
  %1647 = vmatpush1.bf16.msra.mxu0 0
  %1648 = vmatprep.subr.bf16.mxu0 0
  %1649 = vmatpush1.bf16.msra.mxu0 0
  %1650 = vmatprep.subr.bf16.mxu0 0
  %1651 = vmatpush1.bf16.msra.mxu0 0
  %1652 = vmatprep.mubr.bf16.mxu0 0
  %1653 = vmatmul.mubr.bf16.gmra.mrb[0].mxu0 %v1385
  %v1654 = vpop.f32.mrb[0].mxu0
  %v1655 = vadd.f32 %v1534, %v1654
  %v1656 = vpop.f32.mrb[0].mxu0
  %v1657 = vadd.f32 %v1536, %v1656
  %v1658 = vpop.f32.mrb[0].mxu0
  %v1659 = vpop.f32.mrb[0].mxu0
  %1660 = vdwg.mxu0
  %v1661 = vpack.c.bf16 %v1371, %v1371
  %v1662 = vld [vmem:[%s4 + $0x100] sm:$0xff]
  %v1663 = vld [vmem:[%s4 + $0x108] sm:$0xff]
  %v1664 = vld [vmem:[%s4 + $0x110] sm:$0xff]
  %v1665 = vld [vmem:[%s4 + $0x118] sm:$0xff]
  %v1666 = vld [vmem:[%s4 + $0x120] sm:$0xff]
  %v1667 = vld [vmem:[%s4 + $0x128] sm:$0xff]
  %v1668 = vld [vmem:[%s4 + $0x130] sm:$0xff]
  %v1669 = vld [vmem:[%s4 + $0x138] sm:$0xff]
  %v1670 = vld [vmem:[%s4 + $0x140] sm:$0xff]
  %v1671 = vld [vmem:[%s4 + $0x148] sm:$0xff]
  %v1672 = vld [vmem:[%s4 + $0x150] sm:$0xff]
  %v1673 = vld [vmem:[%s4 + $0x158] sm:$0xff]
  %v1674 = vld [vmem:[%s4 + $0x160] sm:$0xff]
  %v1675 = vld [vmem:[%s4 + $0x168] sm:$0xff]
  %v1676 = vld [vmem:[%s4 + $0x170] sm:$0xff]
  %v1677 = vld [vmem:[%s4 + $0x178] sm:$0xff]
  %v1694 = vunpack.c.l.b16 %v1662
  %v1695 = vunpack.c.h.b16 %v1662
  %v1696 = vunpack.c.l.b16 %v1663
  %v1697 = vunpack.c.h.b16 %v1663
  %v1698 = vunpack.c.l.b16 %v1664
  %v1699 = vunpack.c.h.b16 %v1664
  %v1700 = vunpack.c.l.b16 %v1665
  %v1701 = vunpack.c.h.b16 %v1665
  %v1702 = vunpack.c.l.b16 %v1666
  %v1703 = vunpack.c.h.b16 %v1666
  %v1704 = vunpack.c.l.b16 %v1667
  %v1705 = vunpack.c.h.b16 %v1667
  %v1706 = vunpack.c.l.b16 %v1668
  %v1707 = vunpack.c.h.b16 %v1668
  %v1708 = vunpack.c.l.b16 %v1669
  %v1709 = vunpack.c.h.b16 %v1669
  %v1710 = vunpack.c.l.b16 %v1670
  %v1711 = vunpack.c.h.b16 %v1670
  %v1712 = vunpack.c.l.b16 %v1671
  %v1713 = vunpack.c.h.b16 %v1671
  %v1714 = vunpack.c.l.b16 %v1672
  %v1715 = vunpack.c.h.b16 %v1672
  %v1716 = vunpack.c.l.b16 %v1673
  %v1717 = vunpack.c.h.b16 %v1673
  %v1718 = vunpack.c.l.b16 %v1674
  %v1719 = vunpack.c.h.b16 %v1674
  %v1720 = vunpack.c.l.b16 %v1675
  %v1721 = vunpack.c.h.b16 %v1675
  %v1722 = vunpack.c.l.b16 %v1676
  %v1723 = vunpack.c.h.b16 %v1676
  %v1724 = vunpack.c.l.b16 %v1677
  %v1725 = vunpack.c.h.b16 %v1677
  %v1726 = vpack.c.b16 %v1696, %v1694
  %v1727 = vpack.c.b16 %v1697, %v1695
  %v1728 = vpack.c.b16 %v1700, %v1698
  %v1729 = vpack.c.b16 %v1701, %v1699
  %v1730 = vpack.c.b16 %v1704, %v1702
  %v1731 = vpack.c.b16 %v1705, %v1703
  %v1732 = vpack.c.b16 %v1708, %v1706
  %v1733 = vpack.c.b16 %v1709, %v1707
  %v1734 = vpack.c.b16 %v1712, %v1710
  %v1735 = vpack.c.b16 %v1713, %v1711
  %v1736 = vpack.c.b16 %v1716, %v1714
  %v1737 = vpack.c.b16 %v1717, %v1715
  %v1738 = vpack.c.b16 %v1720, %v1718
  %v1739 = vpack.c.b16 %v1721, %v1719
  %v1740 = vpack.c.b16 %v1724, %v1722
  %v1741 = vpack.c.b16 %v1725, %v1723
  %1758 = vmatprep.subr.bf16.mxu0 %v1727
  %1759 = vmatpush1.bf16.msra.mxu0 %v1726
  %1760 = vmatprep.subr.bf16.mxu0 %v1729
  %1761 = vmatpush1.bf16.msra.mxu0 %v1728
  %1762 = vmatprep.subr.bf16.mxu0 %v1731
  %1763 = vmatpush1.bf16.msra.mxu0 %v1730
  %1764 = vmatprep.subr.bf16.mxu0 %v1733
  %1765 = vmatpush1.bf16.msra.mxu0 %v1732
  %1766 = vmatprep.subr.bf16.mxu0 %v1735
  %1767 = vmatpush1.bf16.msra.mxu0 %v1734
  %1768 = vmatprep.subr.bf16.mxu0 %v1737
  %1769 = vmatpush1.bf16.msra.mxu0 %v1736
  %1770 = vmatprep.subr.bf16.mxu0 %v1739
  %1771 = vmatpush1.bf16.msra.mxu0 %v1738
  %1772 = vmatprep.subr.bf16.mxu0 %v1741
  %1773 = vmatpush1.bf16.msra.mxu0 %v1740
  %1774 = vmatprep.subr.bf16.mxu0 0
  %1775 = vmatpush1.bf16.msra.mxu0 0
  %1776 = vmatprep.subr.bf16.mxu0 0
  %1777 = vmatpush1.bf16.msra.mxu0 0
  %1778 = vmatprep.subr.bf16.mxu0 0
  %1779 = vmatpush1.bf16.msra.mxu0 0
  %1780 = vmatprep.subr.bf16.mxu0 0
  %1781 = vmatpush1.bf16.msra.mxu0 0
  %1782 = vmatprep.subr.bf16.mxu0 0
  %1783 = vmatpush1.bf16.msra.mxu0 0
  %1784 = vmatprep.subr.bf16.mxu0 0
  %1785 = vmatpush1.bf16.msra.mxu0 0
  %1786 = vmatprep.subr.bf16.mxu0 0
  %1787 = vmatpush1.bf16.msra.mxu0 0
  %1788 = vmatprep.subr.bf16.mxu0 0
  %1789 = vmatpush1.bf16.msra.mxu0 0
  %1790 = vmatprep.mubr.bf16.mxu0 0
  %1791 = vmatmul.mubr.bf16.gmra.mrb[0].mxu0 %v1661
  %v1792 = vpop.f32.mrb[0].mxu0
  %v1793 = vadd.f32 0.0, %v1792
  %v1794 = vpop.f32.mrb[0].mxu0
  %v1795 = vadd.f32 0.0, %v1794
  %v1796 = vpop.f32.mrb[0].mxu0
  %v1797 = vpop.f32.mrb[0].mxu0
  %1798 = vdwg.mxu0
  %v1799 = vadd.f32 %v1655, %v1793
  %v1800 = vadd.f32 %v1657, %v1795
  %v1801 = vpack.c.bf16 %v1372, %v1372
  %v1802 = vld [vmem:[%s4 + $0x180] sm:$0xff]
  %v1803 = vld [vmem:[%s4 + $0x188] sm:$0xff]
  %v1804 = vld [vmem:[%s4 + $0x190] sm:$0xff]
  %v1805 = vld [vmem:[%s4 + $0x198] sm:$0xff]
  %v1806 = vld [vmem:[%s4 + $0x1a0] sm:$0xff]
  %v1807 = vld [vmem:[%s4 + $0x1a8] sm:$0xff]
  %v1808 = vld [vmem:[%s4 + $0x1b0] sm:$0xff]
  %v1809 = vld [vmem:[%s4 + $0x1b8] sm:$0xff]
  %v1810 = vld [vmem:[%s4 + $0x1c0] sm:$0xff]
  %v1811 = vld [vmem:[%s4 + $0x1c8] sm:$0xff]
  %v1812 = vld [vmem:[%s4 + $0x1d0] sm:$0xff]
  %v1813 = vld [vmem:[%s4 + $0x1d8] sm:$0xff]
  %v1814 = vld [vmem:[%s4 + $0x1e0] sm:$0xff]
  %v1815 = vld [vmem:[%s4 + $0x1e8] sm:$0xff]
  %v1816 = vld [vmem:[%s4 + $0x1f0] sm:$0xff]
  %v1817 = vld [vmem:[%s4 + $0x1f8] sm:$0xff]
  %v1834 = vunpack.c.l.b16 %v1802
  %v1835 = vunpack.c.h.b16 %v1802
  %v1836 = vunpack.c.l.b16 %v1803
  %v1837 = vunpack.c.h.b16 %v1803
  %v1838 = vunpack.c.l.b16 %v1804
  %v1839 = vunpack.c.h.b16 %v1804
  %v1840 = vunpack.c.l.b16 %v1805
  %v1841 = vunpack.c.h.b16 %v1805
  %v1842 = vunpack.c.l.b16 %v1806
  %v1843 = vunpack.c.h.b16 %v1806
  %v1844 = vunpack.c.l.b16 %v1807
  %v1845 = vunpack.c.h.b16 %v1807
  %v1846 = vunpack.c.l.b16 %v1808
  %v1847 = vunpack.c.h.b16 %v1808
  %v1848 = vunpack.c.l.b16 %v1809
  %v1849 = vunpack.c.h.b16 %v1809
  %v1850 = vunpack.c.l.b16 %v1810
  %v1851 = vunpack.c.h.b16 %v1810
  %v1852 = vunpack.c.l.b16 %v1811
  %v1853 = vunpack.c.h.b16 %v1811
  %v1854 = vunpack.c.l.b16 %v1812
  %v1855 = vunpack.c.h.b16 %v1812
  %v1856 = vunpack.c.l.b16 %v1813
  %v1857 = vunpack.c.h.b16 %v1813
  %v1858 = vunpack.c.l.b16 %v1814
  %v1859 = vunpack.c.h.b16 %v1814
  %v1860 = vunpack.c.l.b16 %v1815
  %v1861 = vunpack.c.h.b16 %v1815
  %v1862 = vunpack.c.l.b16 %v1816
  %v1863 = vunpack.c.h.b16 %v1816
  %v1864 = vunpack.c.l.b16 %v1817
  %v1865 = vunpack.c.h.b16 %v1817
  %v1866 = vpack.c.b16 %v1836, %v1834
  %v1867 = vpack.c.b16 %v1837, %v1835
  %v1868 = vpack.c.b16 %v1840, %v1838
  %v1869 = vpack.c.b16 %v1841, %v1839
  %v1870 = vpack.c.b16 %v1844, %v1842
  %v1871 = vpack.c.b16 %v1845, %v1843
  %v1872 = vpack.c.b16 %v1848, %v1846
  %v1873 = vpack.c.b16 %v1849, %v1847
  %v1874 = vpack.c.b16 %v1852, %v1850
  %v1875 = vpack.c.b16 %v1853, %v1851
  %v1876 = vpack.c.b16 %v1856, %v1854
  %v1877 = vpack.c.b16 %v1857, %v1855
  %v1878 = vpack.c.b16 %v1860, %v1858
  %v1879 = vpack.c.b16 %v1861, %v1859
  %v1880 = vpack.c.b16 %v1864, %v1862
  %v1881 = vpack.c.b16 %v1865, %v1863
  %1898 = vmatprep.subr.bf16.mxu0 %v1867
  %1899 = vmatpush1.bf16.msra.mxu0 %v1866
  %1900 = vmatprep.subr.bf16.mxu0 %v1869
  %1901 = vmatpush1.bf16.msra.mxu0 %v1868
  %1902 = vmatprep.subr.bf16.mxu0 %v1871
  %1903 = vmatpush1.bf16.msra.mxu0 %v1870
  %1904 = vmatprep.subr.bf16.mxu0 %v1873
  %1905 = vmatpush1.bf16.msra.mxu0 %v1872
  %1906 = vmatprep.subr.bf16.mxu0 %v1875
  %1907 = vmatpush1.bf16.msra.mxu0 %v1874
  %1908 = vmatprep.subr.bf16.mxu0 %v1877
  %1909 = vmatpush1.bf16.msra.mxu0 %v1876
  %1910 = vmatprep.subr.bf16.mxu0 %v1879
  %1911 = vmatpush1.bf16.msra.mxu0 %v1878
  %1912 = vmatprep.subr.bf16.mxu0 %v1881
  %1913 = vmatpush1.bf16.msra.mxu0 %v1880
  %1914 = vmatprep.subr.bf16.mxu0 0
  %1915 = vmatpush1.bf16.msra.mxu0 0
  %1916 = vmatprep.subr.bf16.mxu0 0
  %1917 = vmatpush1.bf16.msra.mxu0 0
  %1918 = vmatprep.subr.bf16.mxu0 0
  %1919 = vmatpush1.bf16.msra.mxu0 0
  %1920 = vmatprep.subr.bf16.mxu0 0
  %1921 = vmatpush1.bf16.msra.mxu0 0
  %1922 = vmatprep.subr.bf16.mxu0 0
  %1923 = vmatpush1.bf16.msra.mxu0 0
  %1924 = vmatprep.subr.bf16.mxu0 0
  %1925 = vmatpush1.bf16.msra.mxu0 0
  %1926 = vmatprep.subr.bf16.mxu0 0
  %1927 = vmatpush1.bf16.msra.mxu0 0
  %1928 = vmatprep.subr.bf16.mxu0 0
  %1929 = vmatpush1.bf16.msra.mxu0 0
  %1930 = vmatprep.mubr.bf16.mxu0 0
  %1931 = vmatmul.mubr.bf16.gmra.mrb[0].mxu0 %v1801
  %v1932 = vpop.f32.mrb[0].mxu0
  %v1933 = vadd.f32 0.0, %v1932
  %v1934 = vpop.f32.mrb[0].mxu0
  %v1935 = vadd.f32 0.0, %v1934
  %v1936 = vpop.f32.mrb[0].mxu0
  %v1937 = vpop.f32.mrb[0].mxu0
  %1938 = vdwg.mxu0
  %v1939 = vadd.f32 %v1799, %v1933
  %v1940 = vadd.f32 %v1800, %v1935
  %v1941 = vpack.c.bf16 %v1373, %v1373
  %v1942 = vld [vmem:[%s4 + $0x200] sm:$0xff]
  %v1943 = vld [vmem:[%s4 + $0x208] sm:$0xff]
  %v1944 = vld [vmem:[%s4 + $0x210] sm:$0xff]
  %v1945 = vld [vmem:[%s4 + $0x218] sm:$0xff]
  %v1946 = vld [vmem:[%s4 + $0x220] sm:$0xff]
  %v1947 = vld [vmem:[%s4 + $0x228] sm:$0xff]
  %v1948 = vld [vmem:[%s4 + $0x230] sm:$0xff]
  %v1949 = vld [vmem:[%s4 + $0x238] sm:$0xff]
  %v1950 = vld [vmem:[%s4 + $0x240] sm:$0xff]
  %v1951 = vld [vmem:[%s4 + $0x248] sm:$0xff]
  %v1952 = vld [vmem:[%s4 + $0x250] sm:$0xff]
  %v1953 = vld [vmem:[%s4 + $0x258] sm:$0xff]
  %v1954 = vld [vmem:[%s4 + $0x260] sm:$0xff]
  %v1955 = vld [vmem:[%s4 + $0x268] sm:$0xff]
  %v1956 = vld [vmem:[%s4 + $0x270] sm:$0xff]
  %v1957 = vld [vmem:[%s4 + $0x278] sm:$0xff]
  %v1974 = vunpack.c.l.b16 %v1942
  %v1975 = vunpack.c.h.b16 %v1942
  %v1976 = vunpack.c.l.b16 %v1943
  %v1977 = vunpack.c.h.b16 %v1943
  %v1978 = vunpack.c.l.b16 %v1944
  %v1979 = vunpack.c.h.b16 %v1944
  %v1980 = vunpack.c.l.b16 %v1945
  %v1981 = vunpack.c.h.b16 %v1945
  %v1982 = vunpack.c.l.b16 %v1946
  %v1983 = vunpack.c.h.b16 %v1946
  %v1984 = vunpack.c.l.b16 %v1947
  %v1985 = vunpack.c.h.b16 %v1947
  %v1986 = vunpack.c.l.b16 %v1948
  %v1987 = vunpack.c.h.b16 %v1948
  %v1988 = vunpack.c.l.b16 %v1949
  %v1989 = vunpack.c.h.b16 %v1949
  %v1990 = vunpack.c.l.b16 %v1950
  %v1991 = vunpack.c.h.b16 %v1950
  %v1992 = vunpack.c.l.b16 %v1951
  %v1993 = vunpack.c.h.b16 %v1951
  %v1994 = vunpack.c.l.b16 %v1952
  %v1995 = vunpack.c.h.b16 %v1952
  %v1996 = vunpack.c.l.b16 %v1953
  %v1997 = vunpack.c.h.b16 %v1953
  %v1998 = vunpack.c.l.b16 %v1954
  %v1999 = vunpack.c.h.b16 %v1954
  %v2000 = vunpack.c.l.b16 %v1955
  %v2001 = vunpack.c.h.b16 %v1955
  %v2002 = vunpack.c.l.b16 %v1956
  %v2003 = vunpack.c.h.b16 %v1956
  %v2004 = vunpack.c.l.b16 %v1957
  %v2005 = vunpack.c.h.b16 %v1957
  %v2006 = vpack.c.b16 %v1976, %v1974
  %v2007 = vpack.c.b16 %v1977, %v1975
  %v2008 = vpack.c.b16 %v1980, %v1978
  %v2009 = vpack.c.b16 %v1981, %v1979
  %v2010 = vpack.c.b16 %v1984, %v1982
  %v2011 = vpack.c.b16 %v1985, %v1983
  %v2012 = vpack.c.b16 %v1988, %v1986
  %v2013 = vpack.c.b16 %v1989, %v1987
  %v2014 = vpack.c.b16 %v1992, %v1990
  %v2015 = vpack.c.b16 %v1993, %v1991
  %v2016 = vpack.c.b16 %v1996, %v1994
  %v2017 = vpack.c.b16 %v1997, %v1995
  %v2018 = vpack.c.b16 %v2000, %v1998
  %v2019 = vpack.c.b16 %v2001, %v1999
  %v2020 = vpack.c.b16 %v2004, %v2002
  %v2021 = vpack.c.b16 %v2005, %v2003
  %2038 = vmatprep.subr.bf16.mxu0 %v2007
  %2039 = vmatpush1.bf16.msra.mxu0 %v2006
  %2040 = vmatprep.subr.bf16.mxu0 %v2009
  %2041 = vmatpush1.bf16.msra.mxu0 %v2008
  %2042 = vmatprep.subr.bf16.mxu0 %v2011
  %2043 = vmatpush1.bf16.msra.mxu0 %v2010
  %2044 = vmatprep.subr.bf16.mxu0 %v2013
  %2045 = vmatpush1.bf16.msra.mxu0 %v2012
  %2046 = vmatprep.subr.bf16.mxu0 %v2015
  %2047 = vmatpush1.bf16.msra.mxu0 %v2014
  %2048 = vmatprep.subr.bf16.mxu0 %v2017
  %2049 = vmatpush1.bf16.msra.mxu0 %v2016
  %2050 = vmatprep.subr.bf16.mxu0 %v2019
  %2051 = vmatpush1.bf16.msra.mxu0 %v2018
  %2052 = vmatprep.subr.bf16.mxu0 %v2021
  %2053 = vmatpush1.bf16.msra.mxu0 %v2020
  %2054 = vmatprep.subr.bf16.mxu0 0
  %2055 = vmatpush1.bf16.msra.mxu0 0
  %2056 = vmatprep.subr.bf16.mxu0 0
  %2057 = vmatpush1.bf16.msra.mxu0 0
  %2058 = vmatprep.subr.bf16.mxu0 0
  %2059 = vmatpush1.bf16.msra.mxu0 0
  %2060 = vmatprep.subr.bf16.mxu0 0
  %2061 = vmatpush1.bf16.msra.mxu0 0
  %2062 = vmatprep.subr.bf16.mxu0 0
  %2063 = vmatpush1.bf16.msra.mxu0 0
  %2064 = vmatprep.subr.bf16.mxu0 0
  %2065 = vmatpush1.bf16.msra.mxu0 0
  %2066 = vmatprep.subr.bf16.mxu0 0
  %2067 = vmatpush1.bf16.msra.mxu0 0
  %2068 = vmatprep.subr.bf16.mxu0 0
  %2069 = vmatpush1.bf16.msra.mxu0 0
  %2070 = vmatprep.mubr.bf16.mxu0 0
  %2071 = vmatmul.mubr.bf16.gmra.mrb[0].mxu0 %v1941
  %v2072 = vpop.f32.mrb[0].mxu0
  %v2073 = vadd.f32 0.0, %v2072
  %v2074 = vpop.f32.mrb[0].mxu0
  %v2075 = vadd.f32 0.0, %v2074
  %v2076 = vpop.f32.mrb[0].mxu0
  %v2077 = vpop.f32.mrb[0].mxu0
  %2078 = vdwg.mxu0
  %v2079 = vadd.f32 %v1939, %v2073
  %v2080 = vadd.f32 %v1940, %v2075
  %v2081 = vpack.c.bf16 %v1374, %v1374
  %v2082 = vld [vmem:[%s4 + $0x280] sm:$0xff]
  %v2083 = vld [vmem:[%s4 + $0x288] sm:$0xff]
  %v2084 = vld [vmem:[%s4 + $0x290] sm:$0xff]
  %v2085 = vld [vmem:[%s4 + $0x298] sm:$0xff]
  %v2086 = vld [vmem:[%s4 + $0x2a0] sm:$0xff]
  %v2087 = vld [vmem:[%s4 + $0x2a8] sm:$0xff]
  %v2088 = vld [vmem:[%s4 + $0x2b0] sm:$0xff]
  %v2089 = vld [vmem:[%s4 + $0x2b8] sm:$0xff]
  %v2090 = vld [vmem:[%s4 + $0x2c0] sm:$0xff]
  %v2091 = vld [vmem:[%s4 + $0x2c8] sm:$0xff]
  %v2092 = vld [vmem:[%s4 + $0x2d0] sm:$0xff]
  %v2093 = vld [vmem:[%s4 + $0x2d8] sm:$0xff]
  %v2094 = vld [vmem:[%s4 + $0x2e0] sm:$0xff]
  %v2095 = vld [vmem:[%s4 + $0x2e8] sm:$0xff]
  %v2096 = vld [vmem:[%s4 + $0x2f0] sm:$0xff]
  %v2097 = vld [vmem:[%s4 + $0x2f8] sm:$0xff]
  %v2114 = vunpack.c.l.b16 %v2082
  %v2115 = vunpack.c.h.b16 %v2082
  %v2116 = vunpack.c.l.b16 %v2083
  %v2117 = vunpack.c.h.b16 %v2083
  %v2118 = vunpack.c.l.b16 %v2084
  %v2119 = vunpack.c.h.b16 %v2084
  %v2120 = vunpack.c.l.b16 %v2085
  %v2121 = vunpack.c.h.b16 %v2085
  %v2122 = vunpack.c.l.b16 %v2086
  %v2123 = vunpack.c.h.b16 %v2086
  %v2124 = vunpack.c.l.b16 %v2087
  %v2125 = vunpack.c.h.b16 %v2087
  %v2126 = vunpack.c.l.b16 %v2088
  %v2127 = vunpack.c.h.b16 %v2088
  %v2128 = vunpack.c.l.b16 %v2089
  %v2129 = vunpack.c.h.b16 %v2089
  %v2130 = vunpack.c.l.b16 %v2090
  %v2131 = vunpack.c.h.b16 %v2090
  %v2132 = vunpack.c.l.b16 %v2091
  %v2133 = vunpack.c.h.b16 %v2091
  %v2134 = vunpack.c.l.b16 %v2092
  %v2135 = vunpack.c.h.b16 %v2092
  %v2136 = vunpack.c.l.b16 %v2093
  %v2137 = vunpack.c.h.b16 %v2093
  %v2138 = vunpack.c.l.b16 %v2094
  %v2139 = vunpack.c.h.b16 %v2094
  %v2140 = vunpack.c.l.b16 %v2095
  %v2141 = vunpack.c.h.b16 %v2095
  %v2142 = vunpack.c.l.b16 %v2096
  %v2143 = vunpack.c.h.b16 %v2096
  %v2144 = vunpack.c.l.b16 %v2097
  %v2145 = vunpack.c.h.b16 %v2097
  %v2146 = vpack.c.b16 %v2116, %v2114
  %v2147 = vpack.c.b16 %v2117, %v2115
  %v2148 = vpack.c.b16 %v2120, %v2118
  %v2149 = vpack.c.b16 %v2121, %v2119
  %v2150 = vpack.c.b16 %v2124, %v2122
  %v2151 = vpack.c.b16 %v2125, %v2123
  %v2152 = vpack.c.b16 %v2128, %v2126
  %v2153 = vpack.c.b16 %v2129, %v2127
  %v2154 = vpack.c.b16 %v2132, %v2130
  %v2155 = vpack.c.b16 %v2133, %v2131
  %v2156 = vpack.c.b16 %v2136, %v2134
  %v2157 = vpack.c.b16 %v2137, %v2135
  %v2158 = vpack.c.b16 %v2140, %v2138
  %v2159 = vpack.c.b16 %v2141, %v2139
  %v2160 = vpack.c.b16 %v2144, %v2142
  %v2161 = vpack.c.b16 %v2145, %v2143
  %2178 = vmatprep.subr.bf16.mxu0 %v2147
  %2179 = vmatpush1.bf16.msra.mxu0 %v2146
  %2180 = vmatprep.subr.bf16.mxu0 %v2149
  %2181 = vmatpush1.bf16.msra.mxu0 %v2148
  %2182 = vmatprep.subr.bf16.mxu0 %v2151
  %2183 = vmatpush1.bf16.msra.mxu0 %v2150
  %2184 = vmatprep.subr.bf16.mxu0 %v2153
  %2185 = vmatpush1.bf16.msra.mxu0 %v2152
  %2186 = vmatprep.subr.bf16.mxu0 %v2155
  %2187 = vmatpush1.bf16.msra.mxu0 %v2154
  %2188 = vmatprep.subr.bf16.mxu0 %v2157
  %2189 = vmatpush1.bf16.msra.mxu0 %v2156
  %2190 = vmatprep.subr.bf16.mxu0 %v2159
  %2191 = vmatpush1.bf16.msra.mxu0 %v2158
  %2192 = vmatprep.subr.bf16.mxu0 %v2161
  %2193 = vmatpush1.bf16.msra.mxu0 %v2160
  %2194 = vmatprep.subr.bf16.mxu0 0
  %2195 = vmatpush1.bf16.msra.mxu0 0
  %2196 = vmatprep.subr.bf16.mxu0 0
  %2197 = vmatpush1.bf16.msra.mxu0 0
  %2198 = vmatprep.subr.bf16.mxu0 0
  %2199 = vmatpush1.bf16.msra.mxu0 0
  %2200 = vmatprep.subr.bf16.mxu0 0
  %2201 = vmatpush1.bf16.msra.mxu0 0
  %2202 = vmatprep.subr.bf16.mxu0 0
  %2203 = vmatpush1.bf16.msra.mxu0 0
  %2204 = vmatprep.subr.bf16.mxu0 0
  %2205 = vmatpush1.bf16.msra.mxu0 0
  %2206 = vmatprep.subr.bf16.mxu0 0
  %2207 = vmatpush1.bf16.msra.mxu0 0
  %2208 = vmatprep.subr.bf16.mxu0 0
  %2209 = vmatpush1.bf16.msra.mxu0 0
  %2210 = vmatprep.mubr.bf16.mxu0 0
  %2211 = vmatmul.mubr.bf16.gmra.mrb[0].mxu0 %v2081
  %v2212 = vpop.f32.mrb[0].mxu0
  %v2213 = vadd.f32 0.0, %v2212
  %v2214 = vpop.f32.mrb[0].mxu0
  %v2215 = vadd.f32 0.0, %v2214
  %v2216 = vpop.f32.mrb[0].mxu0
  %v2217 = vpop.f32.mrb[0].mxu0
  %2218 = vdwg.mxu0
  %v2219 = vadd.f32 %v2079, %v2213
  %v2220 = vadd.f32 %v2080, %v2215
  %v2221 = vpack.c.bf16 %v1375, %v1375
  %v2222 = vld [vmem:[%s4 + $0x300] sm:$0xff]
  %v2223 = vld [vmem:[%s4 + $0x308] sm:$0xff]
  %v2224 = vld [vmem:[%s4 + $0x310] sm:$0xff]
  %v2225 = vld [vmem:[%s4 + $0x318] sm:$0xff]
  %v2226 = vld [vmem:[%s4 + $0x320] sm:$0xff]
  %v2227 = vld [vmem:[%s4 + $0x328] sm:$0xff]
  %v2228 = vld [vmem:[%s4 + $0x330] sm:$0xff]
  %v2229 = vld [vmem:[%s4 + $0x338] sm:$0xff]
  %v2230 = vld [vmem:[%s4 + $0x340] sm:$0xff]
  %v2231 = vld [vmem:[%s4 + $0x348] sm:$0xff]
  %v2232 = vld [vmem:[%s4 + $0x350] sm:$0xff]
  %v2233 = vld [vmem:[%s4 + $0x358] sm:$0xff]
  %v2234 = vld [vmem:[%s4 + $0x360] sm:$0xff]
  %v2235 = vld [vmem:[%s4 + $0x368] sm:$0xff]
  %v2236 = vld [vmem:[%s4 + $0x370] sm:$0xff]
  %v2237 = vld [vmem:[%s4 + $0x378] sm:$0xff]
  %v2254 = vunpack.c.l.b16 %v2222
  %v2255 = vunpack.c.h.b16 %v2222
  %v2256 = vunpack.c.l.b16 %v2223
  %v2257 = vunpack.c.h.b16 %v2223
  %v2258 = vunpack.c.l.b16 %v2224
  %v2259 = vunpack.c.h.b16 %v2224
  %v2260 = vunpack.c.l.b16 %v2225
  %v2261 = vunpack.c.h.b16 %v2225
  %v2262 = vunpack.c.l.b16 %v2226
  %v2263 = vunpack.c.h.b16 %v2226
  %v2264 = vunpack.c.l.b16 %v2227
  %v2265 = vunpack.c.h.b16 %v2227
  %v2266 = vunpack.c.l.b16 %v2228
  %v2267 = vunpack.c.h.b16 %v2228
  %v2268 = vunpack.c.l.b16 %v2229
  %v2269 = vunpack.c.h.b16 %v2229
  %v2270 = vunpack.c.l.b16 %v2230
  %v2271 = vunpack.c.h.b16 %v2230
  %v2272 = vunpack.c.l.b16 %v2231
  %v2273 = vunpack.c.h.b16 %v2231
  %v2274 = vunpack.c.l.b16 %v2232
  %v2275 = vunpack.c.h.b16 %v2232
  %v2276 = vunpack.c.l.b16 %v2233
  %v2277 = vunpack.c.h.b16 %v2233
  %v2278 = vunpack.c.l.b16 %v2234
  %v2279 = vunpack.c.h.b16 %v2234
  %v2280 = vunpack.c.l.b16 %v2235
  %v2281 = vunpack.c.h.b16 %v2235
  %v2282 = vunpack.c.l.b16 %v2236
  %v2283 = vunpack.c.h.b16 %v2236
  %v2284 = vunpack.c.l.b16 %v2237
  %v2285 = vunpack.c.h.b16 %v2237
  %v2286 = vpack.c.b16 %v2256, %v2254
  %v2287 = vpack.c.b16 %v2257, %v2255
  %v2288 = vpack.c.b16 %v2260, %v2258
  %v2289 = vpack.c.b16 %v2261, %v2259
  %v2290 = vpack.c.b16 %v2264, %v2262
  %v2291 = vpack.c.b16 %v2265, %v2263
  %v2292 = vpack.c.b16 %v2268, %v2266
  %v2293 = vpack.c.b16 %v2269, %v2267
  %v2294 = vpack.c.b16 %v2272, %v2270
  %v2295 = vpack.c.b16 %v2273, %v2271
  %v2296 = vpack.c.b16 %v2276, %v2274
  %v2297 = vpack.c.b16 %v2277, %v2275
  %v2298 = vpack.c.b16 %v2280, %v2278
  %v2299 = vpack.c.b16 %v2281, %v2279
  %v2300 = vpack.c.b16 %v2284, %v2282
  %v2301 = vpack.c.b16 %v2285, %v2283
  %2318 = vmatprep.subr.bf16.mxu0 %v2287
  %2319 = vmatpush1.bf16.msra.mxu0 %v2286
  %2320 = vmatprep.subr.bf16.mxu0 %v2289
  %2321 = vmatpush1.bf16.msra.mxu0 %v2288
  %2322 = vmatprep.subr.bf16.mxu0 %v2291
  %2323 = vmatpush1.bf16.msra.mxu0 %v2290
  %2324 = vmatprep.subr.bf16.mxu0 %v2293
  %2325 = vmatpush1.bf16.msra.mxu0 %v2292
  %2326 = vmatprep.subr.bf16.mxu0 %v2295
  %2327 = vmatpush1.bf16.msra.mxu0 %v2294
  %2328 = vmatprep.subr.bf16.mxu0 %v2297
  %2329 = vmatpush1.bf16.msra.mxu0 %v2296
  %2330 = vmatprep.subr.bf16.mxu0 %v2299
  %2331 = vmatpush1.bf16.msra.mxu0 %v2298
  %2332 = vmatprep.subr.bf16.mxu0 %v2301
  %2333 = vmatpush1.bf16.msra.mxu0 %v2300
  %2334 = vmatprep.subr.bf16.mxu0 0
  %2335 = vmatpush1.bf16.msra.mxu0 0
  %2336 = vmatprep.subr.bf16.mxu0 0
  %2337 = vmatpush1.bf16.msra.mxu0 0
  %2338 = vmatprep.subr.bf16.mxu0 0
  %2339 = vmatpush1.bf16.msra.mxu0 0
  %2340 = vmatprep.subr.bf16.mxu0 0
  %2341 = vmatpush1.bf16.msra.mxu0 0
  %2342 = vmatprep.subr.bf16.mxu0 0
  %2343 = vmatpush1.bf16.msra.mxu0 0
  %2344 = vmatprep.subr.bf16.mxu0 0
  %2345 = vmatpush1.bf16.msra.mxu0 0
  %2346 = vmatprep.subr.bf16.mxu0 0
  %2347 = vmatpush1.bf16.msra.mxu0 0
  %2348 = vmatprep.subr.bf16.mxu0 0
  %2349 = vmatpush1.bf16.msra.mxu0 0
  %2350 = vmatprep.mubr.bf16.mxu0 0
  %2351 = vmatmul.mubr.bf16.gmra.mrb[0].mxu0 %v2221
  %v2352 = vpop.f32.mrb[0].mxu0
  %v2353 = vadd.f32 0.0, %v2352
  %v2354 = vpop.f32.mrb[0].mxu0
  %v2355 = vadd.f32 0.0, %v2354
  %v2356 = vpop.f32.mrb[0].mxu0
  %v2357 = vpop.f32.mrb[0].mxu0
  %2358 = vdwg.mxu0
  %v2359 = vadd.f32 %v2219, %v2353
  %v2360 = vadd.f32 %v2220, %v2355
  %v2361 = vpack.c.bf16 %v1376, %v1376
  %v2362 = vld [vmem:[%s4 + $0x380] sm:$0xff]
  %v2363 = vld [vmem:[%s4 + $0x388] sm:$0xff]
  %v2364 = vld [vmem:[%s4 + $0x390] sm:$0xff]
  %v2365 = vld [vmem:[%s4 + $0x398] sm:$0xff]
  %v2366 = vld [vmem:[%s4 + $0x3a0] sm:$0xff]
  %v2367 = vld [vmem:[%s4 + $0x3a8] sm:$0xff]
  %v2368 = vld [vmem:[%s4 + $0x3b0] sm:$0xff]
  %v2369 = vld [vmem:[%s4 + $0x3b8] sm:$0xff]
  %v2370 = vld [vmem:[%s4 + $0x3c0] sm:$0xff]
  %v2371 = vld [vmem:[%s4 + $0x3c8] sm:$0xff]
  %v2372 = vld [vmem:[%s4 + $0x3d0] sm:$0xff]
  %v2373 = vld [vmem:[%s4 + $0x3d8] sm:$0xff]
  %v2374 = vld [vmem:[%s4 + $0x3e0] sm:$0xff]
  %v2375 = vld [vmem:[%s4 + $0x3e8] sm:$0xff]
  %v2376 = vld [vmem:[%s4 + $0x3f0] sm:$0xff]
  %v2377 = vld [vmem:[%s4 + $0x3f8] sm:$0xff]
  %v2394 = vunpack.c.l.b16 %v2362
  %v2395 = vunpack.c.h.b16 %v2362
  %v2396 = vunpack.c.l.b16 %v2363
  %v2397 = vunpack.c.h.b16 %v2363
  %v2398 = vunpack.c.l.b16 %v2364
  %v2399 = vunpack.c.h.b16 %v2364
  %v2400 = vunpack.c.l.b16 %v2365
  %v2401 = vunpack.c.h.b16 %v2365
  %v2402 = vunpack.c.l.b16 %v2366
  %v2403 = vunpack.c.h.b16 %v2366
  %v2404 = vunpack.c.l.b16 %v2367
  %v2405 = vunpack.c.h.b16 %v2367
  %v2406 = vunpack.c.l.b16 %v2368
  %v2407 = vunpack.c.h.b16 %v2368
  %v2408 = vunpack.c.l.b16 %v2369
  %v2409 = vunpack.c.h.b16 %v2369
  %v2410 = vunpack.c.l.b16 %v2370
  %v2411 = vunpack.c.h.b16 %v2370
  %v2412 = vunpack.c.l.b16 %v2371
  %v2413 = vunpack.c.h.b16 %v2371
  %v2414 = vunpack.c.l.b16 %v2372
  %v2415 = vunpack.c.h.b16 %v2372
  %v2416 = vunpack.c.l.b16 %v2373
  %v2417 = vunpack.c.h.b16 %v2373
  %v2418 = vunpack.c.l.b16 %v2374
  %v2419 = vunpack.c.h.b16 %v2374
  %v2420 = vunpack.c.l.b16 %v2375
  %v2421 = vunpack.c.h.b16 %v2375
  %v2422 = vunpack.c.l.b16 %v2376
  %v2423 = vunpack.c.h.b16 %v2376
  %v2424 = vunpack.c.l.b16 %v2377
  %v2425 = vunpack.c.h.b16 %v2377
  %v2426 = vpack.c.b16 %v2396, %v2394
  %v2427 = vpack.c.b16 %v2397, %v2395
  %v2428 = vpack.c.b16 %v2400, %v2398
  %v2429 = vpack.c.b16 %v2401, %v2399
  %v2430 = vpack.c.b16 %v2404, %v2402
  %v2431 = vpack.c.b16 %v2405, %v2403
  %v2432 = vpack.c.b16 %v2408, %v2406
  %v2433 = vpack.c.b16 %v2409, %v2407
  %v2434 = vpack.c.b16 %v2412, %v2410
  %v2435 = vpack.c.b16 %v2413, %v2411
  %v2436 = vpack.c.b16 %v2416, %v2414
  %v2437 = vpack.c.b16 %v2417, %v2415
  %v2438 = vpack.c.b16 %v2420, %v2418
  %v2439 = vpack.c.b16 %v2421, %v2419
  %v2440 = vpack.c.b16 %v2424, %v2422
  %v2441 = vpack.c.b16 %v2425, %v2423
  %2458 = vmatprep.subr.bf16.mxu0 %v2427
  %2459 = vmatpush1.bf16.msra.mxu0 %v2426
  %2460 = vmatprep.subr.bf16.mxu0 %v2429
  %2461 = vmatpush1.bf16.msra.mxu0 %v2428
  %2462 = vmatprep.subr.bf16.mxu0 %v2431
  %2463 = vmatpush1.bf16.msra.mxu0 %v2430
  %2464 = vmatprep.subr.bf16.mxu0 %v2433
  %2465 = vmatpush1.bf16.msra.mxu0 %v2432
  %2466 = vmatprep.subr.bf16.mxu0 %v2435
  %2467 = vmatpush1.bf16.msra.mxu0 %v2434
  %2468 = vmatprep.subr.bf16.mxu0 %v2437
  %2469 = vmatpush1.bf16.msra.mxu0 %v2436
  %2470 = vmatprep.subr.bf16.mxu0 %v2439
  %2471 = vmatpush1.bf16.msra.mxu0 %v2438
  %2472 = vmatprep.subr.bf16.mxu0 %v2441
  %2473 = vmatpush1.bf16.msra.mxu0 %v2440
  %2474 = vmatprep.subr.bf16.mxu0 0
  %2475 = vmatpush1.bf16.msra.mxu0 0
  %2476 = vmatprep.subr.bf16.mxu0 0
  %2477 = vmatpush1.bf16.msra.mxu0 0
  %2478 = vmatprep.subr.bf16.mxu0 0
  %2479 = vmatpush1.bf16.msra.mxu0 0
  %2480 = vmatprep.subr.bf16.mxu0 0
  %2481 = vmatpush1.bf16.msra.mxu0 0
  %2482 = vmatprep.subr.bf16.mxu0 0
  %2483 = vmatpush1.bf16.msra.mxu0 0
  %2484 = vmatprep.subr.bf16.mxu0 0
  %2485 = vmatpush1.bf16.msra.mxu0 0
  %2486 = vmatprep.subr.bf16.mxu0 0
  %2487 = vmatpush1.bf16.msra.mxu0 0
  %2488 = vmatprep.subr.bf16.mxu0 0
  %2489 = vmatpush1.bf16.msra.mxu0 0
  %2490 = vmatprep.mubr.bf16.mxu0 0
  %2491 = vmatmul.mubr.bf16.gmra.mrb[0].mxu0 %v2361
  %v2492 = vpop.f32.mrb[0].mxu0
  %v2493 = vadd.f32 0.0, %v2492
  %v2494 = vpop.f32.mrb[0].mxu0
  %v2495 = vadd.f32 0.0, %v2494
  %v2496 = vpop.f32.mrb[0].mxu0
  %v2497 = vpop.f32.mrb[0].mxu0
  %2498 = vdwg.mxu0
  %v2499 = vadd.f32 %v2359, %v2493
  %v2500 = vadd.f32 %v2360, %v2495
  %v2501 = vpack.c.bf16 %v1377, %v1377
  %v2502 = vld [vmem:[%s4 + $0x400] sm:$0xff]
  %v2503 = vld [vmem:[%s4 + $0x408] sm:$0xff]
  %v2504 = vld [vmem:[%s4 + $0x410] sm:$0xff]
  %v2505 = vld [vmem:[%s4 + $0x418] sm:$0xff]
  %v2506 = vld [vmem:[%s4 + $0x420] sm:$0xff]
  %v2507 = vld [vmem:[%s4 + $0x428] sm:$0xff]
  %v2508 = vld [vmem:[%s4 + $0x430] sm:$0xff]
  %v2509 = vld [vmem:[%s4 + $0x438] sm:$0xff]
  %v2510 = vld [vmem:[%s4 + $0x440] sm:$0xff]
  %v2511 = vld [vmem:[%s4 + $0x448] sm:$0xff]
  %v2512 = vld [vmem:[%s4 + $0x450] sm:$0xff]
  %v2513 = vld [vmem:[%s4 + $0x458] sm:$0xff]
  %v2514 = vld [vmem:[%s4 + $0x460] sm:$0xff]
  %v2515 = vld [vmem:[%s4 + $0x468] sm:$0xff]
  %v2516 = vld [vmem:[%s4 + $0x470] sm:$0xff]
  %v2517 = vld [vmem:[%s4 + $0x478] sm:$0xff]
  %v2534 = vunpack.c.l.b16 %v2502
  %v2535 = vunpack.c.h.b16 %v2502
  %v2536 = vunpack.c.l.b16 %v2503
  %v2537 = vunpack.c.h.b16 %v2503
  %v2538 = vunpack.c.l.b16 %v2504
  %v2539 = vunpack.c.h.b16 %v2504
  %v2540 = vunpack.c.l.b16 %v2505
  %v2541 = vunpack.c.h.b16 %v2505
  %v2542 = vunpack.c.l.b16 %v2506
  %v2543 = vunpack.c.h.b16 %v2506
  %v2544 = vunpack.c.l.b16 %v2507
  %v2545 = vunpack.c.h.b16 %v2507
  %v2546 = vunpack.c.l.b16 %v2508
  %v2547 = vunpack.c.h.b16 %v2508
  %v2548 = vunpack.c.l.b16 %v2509
  %v2549 = vunpack.c.h.b16 %v2509
  %v2550 = vunpack.c.l.b16 %v2510
  %v2551 = vunpack.c.h.b16 %v2510
  %v2552 = vunpack.c.l.b16 %v2511
  %v2553 = vunpack.c.h.b16 %v2511
  %v2554 = vunpack.c.l.b16 %v2512
  %v2555 = vunpack.c.h.b16 %v2512
  %v2556 = vunpack.c.l.b16 %v2513
  %v2557 = vunpack.c.h.b16 %v2513
  %v2558 = vunpack.c.l.b16 %v2514
  %v2559 = vunpack.c.h.b16 %v2514
  %v2560 = vunpack.c.l.b16 %v2515
  %v2561 = vunpack.c.h.b16 %v2515
  %v2562 = vunpack.c.l.b16 %v2516
  %v2563 = vunpack.c.h.b16 %v2516
  %v2564 = vunpack.c.l.b16 %v2517
  %v2565 = vunpack.c.h.b16 %v2517
  %v2566 = vpack.c.b16 %v2536, %v2534
  %v2567 = vpack.c.b16 %v2537, %v2535
  %v2568 = vpack.c.b16 %v2540, %v2538
  %v2569 = vpack.c.b16 %v2541, %v2539
  %v2570 = vpack.c.b16 %v2544, %v2542
  %v2571 = vpack.c.b16 %v2545, %v2543
  %v2572 = vpack.c.b16 %v2548, %v2546
  %v2573 = vpack.c.b16 %v2549, %v2547
  %v2574 = vpack.c.b16 %v2552, %v2550
  %v2575 = vpack.c.b16 %v2553, %v2551
  %v2576 = vpack.c.b16 %v2556, %v2554
  %v2577 = vpack.c.b16 %v2557, %v2555
  %v2578 = vpack.c.b16 %v2560, %v2558
  %v2579 = vpack.c.b16 %v2561, %v2559
  %v2580 = vpack.c.b16 %v2564, %v2562
  %v2581 = vpack.c.b16 %v2565, %v2563
  %2598 = vmatprep.subr.bf16.mxu0 %v2567
  %2599 = vmatpush1.bf16.msra.mxu0 %v2566
  %2600 = vmatprep.subr.bf16.mxu0 %v2569
  %2601 = vmatpush1.bf16.msra.mxu0 %v2568
  %2602 = vmatprep.subr.bf16.mxu0 %v2571
  %2603 = vmatpush1.bf16.msra.mxu0 %v2570
  %2604 = vmatprep.subr.bf16.mxu0 %v2573
  %2605 = vmatpush1.bf16.msra.mxu0 %v2572
  %2606 = vmatprep.subr.bf16.mxu0 %v2575
  %2607 = vmatpush1.bf16.msra.mxu0 %v2574
  %2608 = vmatprep.subr.bf16.mxu0 %v2577
  %2609 = vmatpush1.bf16.msra.mxu0 %v2576
  %2610 = vmatprep.subr.bf16.mxu0 %v2579
  %2611 = vmatpush1.bf16.msra.mxu0 %v2578
  %2612 = vmatprep.subr.bf16.mxu0 %v2581
  %2613 = vmatpush1.bf16.msra.mxu0 %v2580
  %2614 = vmatprep.subr.bf16.mxu0 0
  %2615 = vmatpush1.bf16.msra.mxu0 0
  %2616 = vmatprep.subr.bf16.mxu0 0
  %2617 = vmatpush1.bf16.msra.mxu0 0
  %2618 = vmatprep.subr.bf16.mxu0 0
  %2619 = vmatpush1.bf16.msra.mxu0 0
  %2620 = vmatprep.subr.bf16.mxu0 0
  %2621 = vmatpush1.bf16.msra.mxu0 0
  %2622 = vmatprep.subr.bf16.mxu0 0
  %2623 = vmatpush1.bf16.msra.mxu0 0
  %2624 = vmatprep.subr.bf16.mxu0 0
  %2625 = vmatpush1.bf16.msra.mxu0 0
  %2626 = vmatprep.subr.bf16.mxu0 0
  %2627 = vmatpush1.bf16.msra.mxu0 0
  %2628 = vmatprep.subr.bf16.mxu0 0
  %2629 = vmatpush1.bf16.msra.mxu0 0
  %2630 = vmatprep.mubr.bf16.mxu0 0
  %2631 = vmatmul.mubr.bf16.gmra.mrb[0].mxu0 %v2501
  %v2632 = vpop.f32.mrb[0].mxu0
  %v2633 = vadd.f32 0.0, %v2632
  %v2634 = vpop.f32.mrb[0].mxu0
  %v2635 = vadd.f32 0.0, %v2634
  %v2636 = vpop.f32.mrb[0].mxu0
  %v2637 = vpop.f32.mrb[0].mxu0
  %2638 = vdwg.mxu0
  %v2639 = vadd.f32 %v2499, %v2633
  %v2640 = vadd.f32 %v2500, %v2635
  %v2641 = vpack.c.bf16 %v1378, %v1378
  %v2642 = vld [vmem:[%s4 + $0x480] sm:$0xff]
  %v2643 = vld [vmem:[%s4 + $0x488] sm:$0xff]
  %v2644 = vld [vmem:[%s4 + $0x490] sm:$0xff]
  %v2645 = vld [vmem:[%s4 + $0x498] sm:$0xff]
  %v2646 = vld [vmem:[%s4 + $0x4a0] sm:$0xff]
  %v2647 = vld [vmem:[%s4 + $0x4a8] sm:$0xff]
  %v2648 = vld [vmem:[%s4 + $0x4b0] sm:$0xff]
  %v2649 = vld [vmem:[%s4 + $0x4b8] sm:$0xff]
  %v2650 = vld [vmem:[%s4 + $0x4c0] sm:$0xff]
  %v2651 = vld [vmem:[%s4 + $0x4c8] sm:$0xff]
  %v2652 = vld [vmem:[%s4 + $0x4d0] sm:$0xff]
  %v2653 = vld [vmem:[%s4 + $0x4d8] sm:$0xff]
  %v2654 = vld [vmem:[%s4 + $0x4e0] sm:$0xff]
  %v2655 = vld [vmem:[%s4 + $0x4e8] sm:$0xff]
  %v2656 = vld [vmem:[%s4 + $0x4f0] sm:$0xff]
  %v2657 = vld [vmem:[%s4 + $0x4f8] sm:$0xff]
  %v2674 = vunpack.c.l.b16 %v2642
  %v2675 = vunpack.c.h.b16 %v2642
  %v2676 = vunpack.c.l.b16 %v2643
  %v2677 = vunpack.c.h.b16 %v2643
  %v2678 = vunpack.c.l.b16 %v2644
  %v2679 = vunpack.c.h.b16 %v2644
  %v2680 = vunpack.c.l.b16 %v2645
  %v2681 = vunpack.c.h.b16 %v2645
  %v2682 = vunpack.c.l.b16 %v2646
  %v2683 = vunpack.c.h.b16 %v2646
  %v2684 = vunpack.c.l.b16 %v2647
  %v2685 = vunpack.c.h.b16 %v2647
  %v2686 = vunpack.c.l.b16 %v2648
  %v2687 = vunpack.c.h.b16 %v2648
  %v2688 = vunpack.c.l.b16 %v2649
  %v2689 = vunpack.c.h.b16 %v2649
  %v2690 = vunpack.c.l.b16 %v2650
  %v2691 = vunpack.c.h.b16 %v2650
  %v2692 = vunpack.c.l.b16 %v2651
  %v2693 = vunpack.c.h.b16 %v2651
  %v2694 = vunpack.c.l.b16 %v2652
  %v2695 = vunpack.c.h.b16 %v2652
  %v2696 = vunpack.c.l.b16 %v2653
  %v2697 = vunpack.c.h.b16 %v2653
  %v2698 = vunpack.c.l.b16 %v2654
  %v2699 = vunpack.c.h.b16 %v2654
  %v2700 = vunpack.c.l.b16 %v2655
  %v2701 = vunpack.c.h.b16 %v2655
  %v2702 = vunpack.c.l.b16 %v2656
  %v2703 = vunpack.c.h.b16 %v2656
  %v2704 = vunpack.c.l.b16 %v2657
  %v2705 = vunpack.c.h.b16 %v2657
  %v2706 = vpack.c.b16 %v2676, %v2674
  %v2707 = vpack.c.b16 %v2677, %v2675
  %v2708 = vpack.c.b16 %v2680, %v2678
  %v2709 = vpack.c.b16 %v2681, %v2679
  %v2710 = vpack.c.b16 %v2684, %v2682
  %v2711 = vpack.c.b16 %v2685, %v2683
  %v2712 = vpack.c.b16 %v2688, %v2686
  %v2713 = vpack.c.b16 %v2689, %v2687
  %v2714 = vpack.c.b16 %v2692, %v2690
  %v2715 = vpack.c.b16 %v2693, %v2691
  %v2716 = vpack.c.b16 %v2696, %v2694
  %v2717 = vpack.c.b16 %v2697, %v2695
  %v2718 = vpack.c.b16 %v2700, %v2698
  %v2719 = vpack.c.b16 %v2701, %v2699
  %v2720 = vpack.c.b16 %v2704, %v2702
  %v2721 = vpack.c.b16 %v2705, %v2703
  %2738 = vmatprep.subr.bf16.mxu0 %v2707
  %2739 = vmatpush1.bf16.msra.mxu0 %v2706
  %2740 = vmatprep.subr.bf16.mxu0 %v2709
  %2741 = vmatpush1.bf16.msra.mxu0 %v2708
  %2742 = vmatprep.subr.bf16.mxu0 %v2711
  %2743 = vmatpush1.bf16.msra.mxu0 %v2710
  %2744 = vmatprep.subr.bf16.mxu0 %v2713
  %2745 = vmatpush1.bf16.msra.mxu0 %v2712
  %2746 = vmatprep.subr.bf16.mxu0 %v2715
  %2747 = vmatpush1.bf16.msra.mxu0 %v2714
  %2748 = vmatprep.subr.bf16.mxu0 %v2717
  %2749 = vmatpush1.bf16.msra.mxu0 %v2716
  %2750 = vmatprep.subr.bf16.mxu0 %v2719
  %2751 = vmatpush1.bf16.msra.mxu0 %v2718
  %2752 = vmatprep.subr.bf16.mxu0 %v2721
  %2753 = vmatpush1.bf16.msra.mxu0 %v2720
  %2754 = vmatprep.subr.bf16.mxu0 0
  %2755 = vmatpush1.bf16.msra.mxu0 0
  %2756 = vmatprep.subr.bf16.mxu0 0
  %2757 = vmatpush1.bf16.msra.mxu0 0
  %2758 = vmatprep.subr.bf16.mxu0 0
  %2759 = vmatpush1.bf16.msra.mxu0 0
  %2760 = vmatprep.subr.bf16.mxu0 0
  %2761 = vmatpush1.bf16.msra.mxu0 0
  %2762 = vmatprep.subr.bf16.mxu0 0
  %2763 = vmatpush1.bf16.msra.mxu0 0
  %2764 = vmatprep.subr.bf16.mxu0 0
  %2765 = vmatpush1.bf16.msra.mxu0 0
  %2766 = vmatprep.subr.bf16.mxu0 0
  %2767 = vmatpush1.bf16.msra.mxu0 0
  %2768 = vmatprep.subr.bf16.mxu0 0
  %2769 = vmatpush1.bf16.msra.mxu0 0
  %2770 = vmatprep.mubr.bf16.mxu0 0
  %2771 = vmatmul.mubr.bf16.gmra.mrb[0].mxu0 %v2641
  %v2772 = vpop.f32.mrb[0].mxu0
  %v2773 = vadd.f32 0.0, %v2772
  %v2774 = vpop.f32.mrb[0].mxu0
  %v2775 = vadd.f32 0.0, %v2774
  %v2776 = vpop.f32.mrb[0].mxu0
  %v2777 = vpop.f32.mrb[0].mxu0
  %2778 = vdwg.mxu0
  %v2779 = vadd.f32 %v2639, %v2773
  %v2780 = vadd.f32 %v2640, %v2775
  %v2781 = vpack.c.bf16 %v1379, %v1379
  %v2782 = vld [vmem:[%s4 + $0x500] sm:$0xff]
  %v2783 = vld [vmem:[%s4 + $0x508] sm:$0xff]
  %v2784 = vld [vmem:[%s4 + $0x510] sm:$0xff]
  %v2785 = vld [vmem:[%s4 + $0x518] sm:$0xff]
  %v2786 = vld [vmem:[%s4 + $0x520] sm:$0xff]
  %v2787 = vld [vmem:[%s4 + $0x528] sm:$0xff]
  %v2788 = vld [vmem:[%s4 + $0x530] sm:$0xff]
  %v2789 = vld [vmem:[%s4 + $0x538] sm:$0xff]
  %v2790 = vld [vmem:[%s4 + $0x540] sm:$0xff]
  %v2791 = vld [vmem:[%s4 + $0x548] sm:$0xff]
  %v2792 = vld [vmem:[%s4 + $0x550] sm:$0xff]
  %v2793 = vld [vmem:[%s4 + $0x558] sm:$0xff]
  %v2794 = vld [vmem:[%s4 + $0x560] sm:$0xff]
  %v2795 = vld [vmem:[%s4 + $0x568] sm:$0xff]
  %v2796 = vld [vmem:[%s4 + $0x570] sm:$0xff]
  %v2797 = vld [vmem:[%s4 + $0x578] sm:$0xff]
  %v2814 = vunpack.c.l.b16 %v2782
  %v2815 = vunpack.c.h.b16 %v2782
  %v2816 = vunpack.c.l.b16 %v2783
  %v2817 = vunpack.c.h.b16 %v2783
  %v2818 = vunpack.c.l.b16 %v2784
  %v2819 = vunpack.c.h.b16 %v2784
  %v2820 = vunpack.c.l.b16 %v2785
  %v2821 = vunpack.c.h.b16 %v2785
  %v2822 = vunpack.c.l.b16 %v2786
  %v2823 = vunpack.c.h.b16 %v2786
  %v2824 = vunpack.c.l.b16 %v2787
  %v2825 = vunpack.c.h.b16 %v2787
  %v2826 = vunpack.c.l.b16 %v2788
  %v2827 = vunpack.c.h.b16 %v2788
  %v2828 = vunpack.c.l.b16 %v2789
  %v2829 = vunpack.c.h.b16 %v2789
  %v2830 = vunpack.c.l.b16 %v2790
  %v2831 = vunpack.c.h.b16 %v2790
  %v2832 = vunpack.c.l.b16 %v2791
  %v2833 = vunpack.c.h.b16 %v2791
  %v2834 = vunpack.c.l.b16 %v2792
  %v2835 = vunpack.c.h.b16 %v2792
  %v2836 = vunpack.c.l.b16 %v2793
  %v2837 = vunpack.c.h.b16 %v2793
  %v2838 = vunpack.c.l.b16 %v2794
  %v2839 = vunpack.c.h.b16 %v2794
  %v2840 = vunpack.c.l.b16 %v2795
  %v2841 = vunpack.c.h.b16 %v2795
  %v2842 = vunpack.c.l.b16 %v2796
  %v2843 = vunpack.c.h.b16 %v2796
  %v2844 = vunpack.c.l.b16 %v2797
  %v2845 = vunpack.c.h.b16 %v2797
  %v2846 = vpack.c.b16 %v2816, %v2814
  %v2847 = vpack.c.b16 %v2817, %v2815
  %v2848 = vpack.c.b16 %v2820, %v2818
  %v2849 = vpack.c.b16 %v2821, %v2819
  %v2850 = vpack.c.b16 %v2824, %v2822
  %v2851 = vpack.c.b16 %v2825, %v2823
  %v2852 = vpack.c.b16 %v2828, %v2826
  %v2853 = vpack.c.b16 %v2829, %v2827
  %v2854 = vpack.c.b16 %v2832, %v2830
  %v2855 = vpack.c.b16 %v2833, %v2831
  %v2856 = vpack.c.b16 %v2836, %v2834
  %v2857 = vpack.c.b16 %v2837, %v2835
  %v2858 = vpack.c.b16 %v2840, %v2838
  %v2859 = vpack.c.b16 %v2841, %v2839
  %v2860 = vpack.c.b16 %v2844, %v2842
  %v2861 = vpack.c.b16 %v2845, %v2843
  %2878 = vmatprep.subr.bf16.mxu0 %v2847
  %2879 = vmatpush1.bf16.msra.mxu0 %v2846
  %2880 = vmatprep.subr.bf16.mxu0 %v2849
  %2881 = vmatpush1.bf16.msra.mxu0 %v2848
  %2882 = vmatprep.subr.bf16.mxu0 %v2851
  %2883 = vmatpush1.bf16.msra.mxu0 %v2850
  %2884 = vmatprep.subr.bf16.mxu0 %v2853
  %2885 = vmatpush1.bf16.msra.mxu0 %v2852
  %2886 = vmatprep.subr.bf16.mxu0 %v2855
  %2887 = vmatpush1.bf16.msra.mxu0 %v2854
  %2888 = vmatprep.subr.bf16.mxu0 %v2857
  %2889 = vmatpush1.bf16.msra.mxu0 %v2856
  %2890 = vmatprep.subr.bf16.mxu0 %v2859
  %2891 = vmatpush1.bf16.msra.mxu0 %v2858
  %2892 = vmatprep.subr.bf16.mxu0 %v2861
  %2893 = vmatpush1.bf16.msra.mxu0 %v2860
  %2894 = vmatprep.subr.bf16.mxu0 0
  %2895 = vmatpush1.bf16.msra.mxu0 0
  %2896 = vmatprep.subr.bf16.mxu0 0
  %2897 = vmatpush1.bf16.msra.mxu0 0
  %2898 = vmatprep.subr.bf16.mxu0 0
  %2899 = vmatpush1.bf16.msra.mxu0 0
  %2900 = vmatprep.subr.bf16.mxu0 0
  %2901 = vmatpush1.bf16.msra.mxu0 0
  %2902 = vmatprep.subr.bf16.mxu0 0
  %2903 = vmatpush1.bf16.msra.mxu0 0
  %2904 = vmatprep.subr.bf16.mxu0 0
  %2905 = vmatpush1.bf16.msra.mxu0 0
  %2906 = vmatprep.subr.bf16.mxu0 0
  %2907 = vmatpush1.bf16.msra.mxu0 0
  %2908 = vmatprep.subr.bf16.mxu0 0
  %2909 = vmatpush1.bf16.msra.mxu0 0
  %2910 = vmatprep.mubr.bf16.mxu0 0
  %2911 = vmatmul.mubr.bf16.gmra.mrb[0].mxu0 %v2781
  %v2912 = vpop.f32.mrb[0].mxu0
  %v2913 = vadd.f32 0.0, %v2912
  %v2914 = vpop.f32.mrb[0].mxu0
  %v2915 = vadd.f32 0.0, %v2914
  %v2916 = vpop.f32.mrb[0].mxu0
  %v2917 = vpop.f32.mrb[0].mxu0
  %2918 = vdwg.mxu0
  %v2919 = vadd.f32 %v2779, %v2913
  %v2920 = vadd.f32 %v2780, %v2915
  %v2921 = vpack.c.bf16 %v1380, %v1380
  %v2922 = vld [vmem:[%s4 + $0x580] sm:$0xff]
  %v2923 = vld [vmem:[%s4 + $0x588] sm:$0xff]
  %v2924 = vld [vmem:[%s4 + $0x590] sm:$0xff]
  %v2925 = vld [vmem:[%s4 + $0x598] sm:$0xff]
  %v2926 = vld [vmem:[%s4 + $0x5a0] sm:$0xff]
  %v2927 = vld [vmem:[%s4 + $0x5a8] sm:$0xff]
  %v2928 = vld [vmem:[%s4 + $0x5b0] sm:$0xff]
  %v2929 = vld [vmem:[%s4 + $0x5b8] sm:$0xff]
  %v2930 = vld [vmem:[%s4 + $0x5c0] sm:$0xff]
  %v2931 = vld [vmem:[%s4 + $0x5c8] sm:$0xff]
  %v2932 = vld [vmem:[%s4 + $0x5d0] sm:$0xff]
  %v2933 = vld [vmem:[%s4 + $0x5d8] sm:$0xff]
  %v2934 = vld [vmem:[%s4 + $0x5e0] sm:$0xff]
  %v2935 = vld [vmem:[%s4 + $0x5e8] sm:$0xff]
  %v2936 = vld [vmem:[%s4 + $0x5f0] sm:$0xff]
  %v2937 = vld [vmem:[%s4 + $0x5f8] sm:$0xff]
  %v2954 = vunpack.c.l.b16 %v2922
  %v2955 = vunpack.c.h.b16 %v2922
  %v2956 = vunpack.c.l.b16 %v2923
  %v2957 = vunpack.c.h.b16 %v2923
  %v2958 = vunpack.c.l.b16 %v2924
  %v2959 = vunpack.c.h.b16 %v2924
  %v2960 = vunpack.c.l.b16 %v2925
  %v2961 = vunpack.c.h.b16 %v2925
  %v2962 = vunpack.c.l.b16 %v2926
  %v2963 = vunpack.c.h.b16 %v2926
  %v2964 = vunpack.c.l.b16 %v2927
  %v2965 = vunpack.c.h.b16 %v2927
  %v2966 = vunpack.c.l.b16 %v2928
  %v2967 = vunpack.c.h.b16 %v2928
  %v2968 = vunpack.c.l.b16 %v2929
  %v2969 = vunpack.c.h.b16 %v2929
  %v2970 = vunpack.c.l.b16 %v2930
  %v2971 = vunpack.c.h.b16 %v2930
  %v2972 = vunpack.c.l.b16 %v2931
  %v2973 = vunpack.c.h.b16 %v2931
  %v2974 = vunpack.c.l.b16 %v2932
  %v2975 = vunpack.c.h.b16 %v2932
  %v2976 = vunpack.c.l.b16 %v2933
  %v2977 = vunpack.c.h.b16 %v2933
  %v2978 = vunpack.c.l.b16 %v2934
  %v2979 = vunpack.c.h.b16 %v2934
  %v2980 = vunpack.c.l.b16 %v2935
  %v2981 = vunpack.c.h.b16 %v2935
  %v2982 = vunpack.c.l.b16 %v2936
  %v2983 = vunpack.c.h.b16 %v2936
  %v2984 = vunpack.c.l.b16 %v2937
  %v2985 = vunpack.c.h.b16 %v2937
  %v2986 = vpack.c.b16 %v2956, %v2954
  %v2987 = vpack.c.b16 %v2957, %v2955
  %v2988 = vpack.c.b16 %v2960, %v2958
  %v2989 = vpack.c.b16 %v2961, %v2959
  %v2990 = vpack.c.b16 %v2964, %v2962
  %v2991 = vpack.c.b16 %v2965, %v2963
  %v2992 = vpack.c.b16 %v2968, %v2966
  %v2993 = vpack.c.b16 %v2969, %v2967
  %v2994 = vpack.c.b16 %v2972, %v2970
  %v2995 = vpack.c.b16 %v2973, %v2971
  %v2996 = vpack.c.b16 %v2976, %v2974
  %v2997 = vpack.c.b16 %v2977, %v2975
  %v2998 = vpack.c.b16 %v2980, %v2978
  %v2999 = vpack.c.b16 %v2981, %v2979
  %v3000 = vpack.c.b16 %v2984, %v2982
  %v3001 = vpack.c.b16 %v2985, %v2983
  %3018 = vmatprep.subr.bf16.mxu0 %v2987
  %3019 = vmatpush1.bf16.msra.mxu0 %v2986
  %3020 = vmatprep.subr.bf16.mxu0 %v2989
  %3021 = vmatpush1.bf16.msra.mxu0 %v2988
  %3022 = vmatprep.subr.bf16.mxu0 %v2991
  %3023 = vmatpush1.bf16.msra.mxu0 %v2990
  %3024 = vmatprep.subr.bf16.mxu0 %v2993
  %3025 = vmatpush1.bf16.msra.mxu0 %v2992
  %3026 = vmatprep.subr.bf16.mxu0 %v2995
  %3027 = vmatpush1.bf16.msra.mxu0 %v2994
  %3028 = vmatprep.subr.bf16.mxu0 %v2997
  %3029 = vmatpush1.bf16.msra.mxu0 %v2996
  %3030 = vmatprep.subr.bf16.mxu0 %v2999
  %3031 = vmatpush1.bf16.msra.mxu0 %v2998
  %3032 = vmatprep.subr.bf16.mxu0 %v3001
  %3033 = vmatpush1.bf16.msra.mxu0 %v3000
  %3034 = vmatprep.subr.bf16.mxu0 0
  %3035 = vmatpush1.bf16.msra.mxu0 0
  %3036 = vmatprep.subr.bf16.mxu0 0
  %3037 = vmatpush1.bf16.msra.mxu0 0
  %3038 = vmatprep.subr.bf16.mxu0 0
  %3039 = vmatpush1.bf16.msra.mxu0 0
  %3040 = vmatprep.subr.bf16.mxu0 0
  %3041 = vmatpush1.bf16.msra.mxu0 0
  %3042 = vmatprep.subr.bf16.mxu0 0
  %3043 = vmatpush1.bf16.msra.mxu0 0
  %3044 = vmatprep.subr.bf16.mxu0 0
  %3045 = vmatpush1.bf16.msra.mxu0 0
  %3046 = vmatprep.subr.bf16.mxu0 0
  %3047 = vmatpush1.bf16.msra.mxu0 0
  %3048 = vmatprep.subr.bf16.mxu0 0
  %3049 = vmatpush1.bf16.msra.mxu0 0
  %3050 = vmatprep.mubr.bf16.mxu0 0
  %3051 = vmatmul.mubr.bf16.gmra.mrb[0].mxu0 %v2921
  %v3052 = vpop.f32.mrb[0].mxu0
  %v3053 = vadd.f32 0.0, %v3052
  %v3054 = vpop.f32.mrb[0].mxu0
  %v3055 = vadd.f32 0.0, %v3054
  %v3056 = vpop.f32.mrb[0].mxu0
  %v3057 = vpop.f32.mrb[0].mxu0
  %3058 = vdwg.mxu0
  %v3059 = vadd.f32 %v2919, %v3053
  %v3060 = vadd.f32 %v2920, %v3055
  %v3061 = vpack.c.bf16 %v1381, %v1381
  %v3062 = vld [vmem:[%s4 + $0x600] sm:$0xff]
  %v3063 = vld [vmem:[%s4 + $0x608] sm:$0xff]
  %v3064 = vld [vmem:[%s4 + $0x610] sm:$0xff]
  %v3065 = vld [vmem:[%s4 + $0x618] sm:$0xff]
  %v3066 = vld [vmem:[%s4 + $0x620] sm:$0xff]
  %v3067 = vld [vmem:[%s4 + $0x628] sm:$0xff]
  %v3068 = vld [vmem:[%s4 + $0x630] sm:$0xff]
  %v3069 = vld [vmem:[%s4 + $0x638] sm:$0xff]
  %v3070 = vld [vmem:[%s4 + $0x640] sm:$0xff]
  %v3071 = vld [vmem:[%s4 + $0x648] sm:$0xff]
  %v3072 = vld [vmem:[%s4 + $0x650] sm:$0xff]
  %v3073 = vld [vmem:[%s4 + $0x658] sm:$0xff]
  %v3074 = vld [vmem:[%s4 + $0x660] sm:$0xff]
  %v3075 = vld [vmem:[%s4 + $0x668] sm:$0xff]
  %v3076 = vld [vmem:[%s4 + $0x670] sm:$0xff]
  %v3077 = vld [vmem:[%s4 + $0x678] sm:$0xff]
  %v3094 = vunpack.c.l.b16 %v3062
  %v3095 = vunpack.c.h.b16 %v3062
  %v3096 = vunpack.c.l.b16 %v3063
  %v3097 = vunpack.c.h.b16 %v3063
  %v3098 = vunpack.c.l.b16 %v3064
  %v3099 = vunpack.c.h.b16 %v3064
  %v3100 = vunpack.c.l.b16 %v3065
  %v3101 = vunpack.c.h.b16 %v3065
  %v3102 = vunpack.c.l.b16 %v3066
  %v3103 = vunpack.c.h.b16 %v3066
  %v3104 = vunpack.c.l.b16 %v3067
  %v3105 = vunpack.c.h.b16 %v3067
  %v3106 = vunpack.c.l.b16 %v3068
  %v3107 = vunpack.c.h.b16 %v3068
  %v3108 = vunpack.c.l.b16 %v3069
  %v3109 = vunpack.c.h.b16 %v3069
  %v3110 = vunpack.c.l.b16 %v3070
  %v3111 = vunpack.c.h.b16 %v3070
  %v3112 = vunpack.c.l.b16 %v3071
  %v3113 = vunpack.c.h.b16 %v3071
  %v3114 = vunpack.c.l.b16 %v3072
  %v3115 = vunpack.c.h.b16 %v3072
  %v3116 = vunpack.c.l.b16 %v3073
  %v3117 = vunpack.c.h.b16 %v3073
  %v3118 = vunpack.c.l.b16 %v3074
  %v3119 = vunpack.c.h.b16 %v3074
  %v3120 = vunpack.c.l.b16 %v3075
  %v3121 = vunpack.c.h.b16 %v3075
  %v3122 = vunpack.c.l.b16 %v3076
  %v3123 = vunpack.c.h.b16 %v3076
  %v3124 = vunpack.c.l.b16 %v3077
  %v3125 = vunpack.c.h.b16 %v3077
  %v3126 = vpack.c.b16 %v3096, %v3094
  %v3127 = vpack.c.b16 %v3097, %v3095
  %v3128 = vpack.c.b16 %v3100, %v3098
  %v3129 = vpack.c.b16 %v3101, %v3099
  %v3130 = vpack.c.b16 %v3104, %v3102
  %v3131 = vpack.c.b16 %v3105, %v3103
  %v3132 = vpack.c.b16 %v3108, %v3106
  %v3133 = vpack.c.b16 %v3109, %v3107
  %v3134 = vpack.c.b16 %v3112, %v3110
  %v3135 = vpack.c.b16 %v3113, %v3111
  %v3136 = vpack.c.b16 %v3116, %v3114
  %v3137 = vpack.c.b16 %v3117, %v3115
  %v3138 = vpack.c.b16 %v3120, %v3118
  %v3139 = vpack.c.b16 %v3121, %v3119
  %v3140 = vpack.c.b16 %v3124, %v3122
  %v3141 = vpack.c.b16 %v3125, %v3123
  %3158 = vmatprep.subr.bf16.mxu0 %v3127
  %3159 = vmatpush1.bf16.msra.mxu0 %v3126
  %3160 = vmatprep.subr.bf16.mxu0 %v3129
  %3161 = vmatpush1.bf16.msra.mxu0 %v3128
  %3162 = vmatprep.subr.bf16.mxu0 %v3131
  %3163 = vmatpush1.bf16.msra.mxu0 %v3130
  %3164 = vmatprep.subr.bf16.mxu0 %v3133
  %3165 = vmatpush1.bf16.msra.mxu0 %v3132
  %3166 = vmatprep.subr.bf16.mxu0 %v3135
  %3167 = vmatpush1.bf16.msra.mxu0 %v3134
  %3168 = vmatprep.subr.bf16.mxu0 %v3137
  %3169 = vmatpush1.bf16.msra.mxu0 %v3136
  %3170 = vmatprep.subr.bf16.mxu0 %v3139
  %3171 = vmatpush1.bf16.msra.mxu0 %v3138
  %3172 = vmatprep.subr.bf16.mxu0 %v3141
  %3173 = vmatpush1.bf16.msra.mxu0 %v3140
  %3174 = vmatprep.subr.bf16.mxu0 0
  %3175 = vmatpush1.bf16.msra.mxu0 0
  %3176 = vmatprep.subr.bf16.mxu0 0
  %3177 = vmatpush1.bf16.msra.mxu0 0
  %3178 = vmatprep.subr.bf16.mxu0 0
  %3179 = vmatpush1.bf16.msra.mxu0 0
  %3180 = vmatprep.subr.bf16.mxu0 0
  %3181 = vmatpush1.bf16.msra.mxu0 0
  %3182 = vmatprep.subr.bf16.mxu0 0
  %3183 = vmatpush1.bf16.msra.mxu0 0
  %3184 = vmatprep.subr.bf16.mxu0 0
  %3185 = vmatpush1.bf16.msra.mxu0 0
  %3186 = vmatprep.subr.bf16.mxu0 0
  %3187 = vmatpush1.bf16.msra.mxu0 0
  %3188 = vmatprep.subr.bf16.mxu0 0
  %3189 = vmatpush1.bf16.msra.mxu0 0
  %3190 = vmatprep.mubr.bf16.mxu0 0
  %3191 = vmatmul.mubr.bf16.gmra.mrb[0].mxu0 %v3061
  %v3192 = vpop.f32.mrb[0].mxu0
  %v3193 = vadd.f32 0.0, %v3192
  %v3194 = vpop.f32.mrb[0].mxu0
  %v3195 = vadd.f32 0.0, %v3194
  %v3196 = vpop.f32.mrb[0].mxu0
  %v3197 = vpop.f32.mrb[0].mxu0
  %3198 = vdwg.mxu0
  %v3199 = vadd.f32 %v3059, %v3193
  %v3200 = vadd.f32 %v3060, %v3195
  %v3201 = vpack.c.bf16 %v1382, %v1382
  %v3202 = vld [vmem:[%s4 + $0x680] sm:$0xff]
  %v3203 = vld [vmem:[%s4 + $0x688] sm:$0xff]
  %v3204 = vld [vmem:[%s4 + $0x690] sm:$0xff]
  %v3205 = vld [vmem:[%s4 + $0x698] sm:$0xff]
  %v3206 = vld [vmem:[%s4 + $0x6a0] sm:$0xff]
  %v3207 = vld [vmem:[%s4 + $0x6a8] sm:$0xff]
  %v3208 = vld [vmem:[%s4 + $0x6b0] sm:$0xff]
  %v3209 = vld [vmem:[%s4 + $0x6b8] sm:$0xff]
  %v3210 = vld [vmem:[%s4 + $0x6c0] sm:$0xff]
  %v3211 = vld [vmem:[%s4 + $0x6c8] sm:$0xff]
  %v3212 = vld [vmem:[%s4 + $0x6d0] sm:$0xff]
  %v3213 = vld [vmem:[%s4 + $0x6d8] sm:$0xff]
  %v3214 = vld [vmem:[%s4 + $0x6e0] sm:$0xff]
  %v3215 = vld [vmem:[%s4 + $0x6e8] sm:$0xff]
  %v3216 = vld [vmem:[%s4 + $0x6f0] sm:$0xff]
  %v3217 = vld [vmem:[%s4 + $0x6f8] sm:$0xff]
  %v3234 = vunpack.c.l.b16 %v3202
  %v3235 = vunpack.c.h.b16 %v3202
  %v3236 = vunpack.c.l.b16 %v3203
  %v3237 = vunpack.c.h.b16 %v3203
  %v3238 = vunpack.c.l.b16 %v3204
  %v3239 = vunpack.c.h.b16 %v3204
  %v3240 = vunpack.c.l.b16 %v3205
  %v3241 = vunpack.c.h.b16 %v3205
  %v3242 = vunpack.c.l.b16 %v3206
  %v3243 = vunpack.c.h.b16 %v3206
  %v3244 = vunpack.c.l.b16 %v3207
  %v3245 = vunpack.c.h.b16 %v3207
  %v3246 = vunpack.c.l.b16 %v3208
  %v3247 = vunpack.c.h.b16 %v3208
  %v3248 = vunpack.c.l.b16 %v3209
  %v3249 = vunpack.c.h.b16 %v3209
  %v3250 = vunpack.c.l.b16 %v3210
  %v3251 = vunpack.c.h.b16 %v3210
  %v3252 = vunpack.c.l.b16 %v3211
  %v3253 = vunpack.c.h.b16 %v3211
  %v3254 = vunpack.c.l.b16 %v3212
  %v3255 = vunpack.c.h.b16 %v3212
  %v3256 = vunpack.c.l.b16 %v3213
  %v3257 = vunpack.c.h.b16 %v3213
  %v3258 = vunpack.c.l.b16 %v3214
  %v3259 = vunpack.c.h.b16 %v3214
  %v3260 = vunpack.c.l.b16 %v3215
  %v3261 = vunpack.c.h.b16 %v3215
  %v3262 = vunpack.c.l.b16 %v3216
  %v3263 = vunpack.c.h.b16 %v3216
  %v3264 = vunpack.c.l.b16 %v3217
  %v3265 = vunpack.c.h.b16 %v3217
  %v3266 = vpack.c.b16 %v3236, %v3234
  %v3267 = vpack.c.b16 %v3237, %v3235
  %v3268 = vpack.c.b16 %v3240, %v3238
  %v3269 = vpack.c.b16 %v3241, %v3239
  %v3270 = vpack.c.b16 %v3244, %v3242
  %v3271 = vpack.c.b16 %v3245, %v3243
  %v3272 = vpack.c.b16 %v3248, %v3246
  %v3273 = vpack.c.b16 %v3249, %v3247
  %v3274 = vpack.c.b16 %v3252, %v3250
  %v3275 = vpack.c.b16 %v3253, %v3251
  %v3276 = vpack.c.b16 %v3256, %v3254
  %v3277 = vpack.c.b16 %v3257, %v3255
  %v3278 = vpack.c.b16 %v3260, %v3258
  %v3279 = vpack.c.b16 %v3261, %v3259
  %v3280 = vpack.c.b16 %v3264, %v3262
  %v3281 = vpack.c.b16 %v3265, %v3263
  %3298 = vmatprep.subr.bf16.mxu0 %v3267
  %3299 = vmatpush1.bf16.msra.mxu0 %v3266
  %3300 = vmatprep.subr.bf16.mxu0 %v3269
  %3301 = vmatpush1.bf16.msra.mxu0 %v3268
  %3302 = vmatprep.subr.bf16.mxu0 %v3271
  %3303 = vmatpush1.bf16.msra.mxu0 %v3270
  %3304 = vmatprep.subr.bf16.mxu0 %v3273
  %3305 = vmatpush1.bf16.msra.mxu0 %v3272
  %3306 = vmatprep.subr.bf16.mxu0 %v3275
  %3307 = vmatpush1.bf16.msra.mxu0 %v3274
  %3308 = vmatprep.subr.bf16.mxu0 %v3277
  %3309 = vmatpush1.bf16.msra.mxu0 %v3276
  %3310 = vmatprep.subr.bf16.mxu0 %v3279
  %3311 = vmatpush1.bf16.msra.mxu0 %v3278
  %3312 = vmatprep.subr.bf16.mxu0 %v3281
  %3313 = vmatpush1.bf16.msra.mxu0 %v3280
  %3314 = vmatprep.subr.bf16.mxu0 0
  %3315 = vmatpush1.bf16.msra.mxu0 0
  %3316 = vmatprep.subr.bf16.mxu0 0
  %3317 = vmatpush1.bf16.msra.mxu0 0
  %3318 = vmatprep.subr.bf16.mxu0 0
  %3319 = vmatpush1.bf16.msra.mxu0 0
  %3320 = vmatprep.subr.bf16.mxu0 0
  %3321 = vmatpush1.bf16.msra.mxu0 0
  %3322 = vmatprep.subr.bf16.mxu0 0
  %3323 = vmatpush1.bf16.msra.mxu0 0
  %3324 = vmatprep.subr.bf16.mxu0 0
  %3325 = vmatpush1.bf16.msra.mxu0 0
  %3326 = vmatprep.subr.bf16.mxu0 0
  %3327 = vmatpush1.bf16.msra.mxu0 0
  %3328 = vmatprep.subr.bf16.mxu0 0
  %3329 = vmatpush1.bf16.msra.mxu0 0
  %3330 = vmatprep.mubr.bf16.mxu0 0
  %3331 = vmatmul.mubr.bf16.gmra.mrb[0].mxu0 %v3201
  %v3332 = vpop.f32.mrb[0].mxu0
  %v3333 = vadd.f32 0.0, %v3332
  %v3334 = vpop.f32.mrb[0].mxu0
  %v3335 = vadd.f32 0.0, %v3334
  %v3336 = vpop.f32.mrb[0].mxu0
  %v3337 = vpop.f32.mrb[0].mxu0
  %3338 = vdwg.mxu0
  %v3339 = vadd.f32 %v3199, %v3333
  %v3340 = vadd.f32 %v3200, %v3335
  %v3341 = vpack.c.bf16 %v1383, %v1383
  %v3342 = vld [vmem:[%s4 + $0x700] sm:$0xff]
  %v3343 = vld [vmem:[%s4 + $0x708] sm:$0xff]
  %v3344 = vld [vmem:[%s4 + $0x710] sm:$0xff]
  %v3345 = vld [vmem:[%s4 + $0x718] sm:$0xff]
  %v3346 = vld [vmem:[%s4 + $0x720] sm:$0xff]
  %v3347 = vld [vmem:[%s4 + $0x728] sm:$0xff]
  %v3348 = vld [vmem:[%s4 + $0x730] sm:$0xff]
  %v3349 = vld [vmem:[%s4 + $0x738] sm:$0xff]
  %v3350 = vld [vmem:[%s4 + $0x740] sm:$0xff]
  %v3351 = vld [vmem:[%s4 + $0x748] sm:$0xff]
  %v3352 = vld [vmem:[%s4 + $0x750] sm:$0xff]
  %v3353 = vld [vmem:[%s4 + $0x758] sm:$0xff]
  %v3354 = vld [vmem:[%s4 + $0x760] sm:$0xff]
  %v3355 = vld [vmem:[%s4 + $0x768] sm:$0xff]
  %v3356 = vld [vmem:[%s4 + $0x770] sm:$0xff]
  %v3357 = vld [vmem:[%s4 + $0x778] sm:$0xff]
  %v3374 = vunpack.c.l.b16 %v3342
  %v3375 = vunpack.c.h.b16 %v3342
  %v3376 = vunpack.c.l.b16 %v3343
  %v3377 = vunpack.c.h.b16 %v3343
  %v3378 = vunpack.c.l.b16 %v3344
  %v3379 = vunpack.c.h.b16 %v3344
  %v3380 = vunpack.c.l.b16 %v3345
  %v3381 = vunpack.c.h.b16 %v3345
  %v3382 = vunpack.c.l.b16 %v3346
  %v3383 = vunpack.c.h.b16 %v3346
  %v3384 = vunpack.c.l.b16 %v3347
  %v3385 = vunpack.c.h.b16 %v3347
  %v3386 = vunpack.c.l.b16 %v3348
  %v3387 = vunpack.c.h.b16 %v3348
  %v3388 = vunpack.c.l.b16 %v3349
  %v3389 = vunpack.c.h.b16 %v3349
  %v3390 = vunpack.c.l.b16 %v3350
  %v3391 = vunpack.c.h.b16 %v3350
  %v3392 = vunpack.c.l.b16 %v3351
  %v3393 = vunpack.c.h.b16 %v3351
  %v3394 = vunpack.c.l.b16 %v3352
  %v3395 = vunpack.c.h.b16 %v3352
  %v3396 = vunpack.c.l.b16 %v3353
  %v3397 = vunpack.c.h.b16 %v3353
  %v3398 = vunpack.c.l.b16 %v3354
  %v3399 = vunpack.c.h.b16 %v3354
  %v3400 = vunpack.c.l.b16 %v3355
  %v3401 = vunpack.c.h.b16 %v3355
  %v3402 = vunpack.c.l.b16 %v3356
  %v3403 = vunpack.c.h.b16 %v3356
  %v3404 = vunpack.c.l.b16 %v3357
  %v3405 = vunpack.c.h.b16 %v3357
  %v3406 = vpack.c.b16 %v3376, %v3374
  %v3407 = vpack.c.b16 %v3377, %v3375
  %v3408 = vpack.c.b16 %v3380, %v3378
  %v3409 = vpack.c.b16 %v3381, %v3379
  %v3410 = vpack.c.b16 %v3384, %v3382
  %v3411 = vpack.c.b16 %v3385, %v3383
  %v3412 = vpack.c.b16 %v3388, %v3386
  %v3413 = vpack.c.b16 %v3389, %v3387
  %v3414 = vpack.c.b16 %v3392, %v3390
  %v3415 = vpack.c.b16 %v3393, %v3391
  %v3416 = vpack.c.b16 %v3396, %v3394
  %v3417 = vpack.c.b16 %v3397, %v3395
  %v3418 = vpack.c.b16 %v3400, %v3398
  %v3419 = vpack.c.b16 %v3401, %v3399
  %v3420 = vpack.c.b16 %v3404, %v3402
  %v3421 = vpack.c.b16 %v3405, %v3403
  %3438 = vmatprep.subr.bf16.mxu0 %v3407
  %3439 = vmatpush1.bf16.msra.mxu0 %v3406
  %3440 = vmatprep.subr.bf16.mxu0 %v3409
  %3441 = vmatpush1.bf16.msra.mxu0 %v3408
  %3442 = vmatprep.subr.bf16.mxu0 %v3411
  %3443 = vmatpush1.bf16.msra.mxu0 %v3410
  %3444 = vmatprep.subr.bf16.mxu0 %v3413
  %3445 = vmatpush1.bf16.msra.mxu0 %v3412
  %3446 = vmatprep.subr.bf16.mxu0 %v3415
  %3447 = vmatpush1.bf16.msra.mxu0 %v3414
  %3448 = vmatprep.subr.bf16.mxu0 %v3417
  %3449 = vmatpush1.bf16.msra.mxu0 %v3416
  %3450 = vmatprep.subr.bf16.mxu0 %v3419
  %3451 = vmatpush1.bf16.msra.mxu0 %v3418
  %3452 = vmatprep.subr.bf16.mxu0 %v3421
  %3453 = vmatpush1.bf16.msra.mxu0 %v3420
  %3454 = vmatprep.subr.bf16.mxu0 0
  %3455 = vmatpush1.bf16.msra.mxu0 0
  %3456 = vmatprep.subr.bf16.mxu0 0
  %3457 = vmatpush1.bf16.msra.mxu0 0
  %3458 = vmatprep.subr.bf16.mxu0 0
  %3459 = vmatpush1.bf16.msra.mxu0 0
  %3460 = vmatprep.subr.bf16.mxu0 0
  %3461 = vmatpush1.bf16.msra.mxu0 0
  %3462 = vmatprep.subr.bf16.mxu0 0
  %3463 = vmatpush1.bf16.msra.mxu0 0
  %3464 = vmatprep.subr.bf16.mxu0 0
  %3465 = vmatpush1.bf16.msra.mxu0 0
  %3466 = vmatprep.subr.bf16.mxu0 0
  %3467 = vmatpush1.bf16.msra.mxu0 0
  %3468 = vmatprep.subr.bf16.mxu0 0
  %3469 = vmatpush1.bf16.msra.mxu0 0
  %3470 = vmatprep.mubr.bf16.mxu0 0
  %3471 = vmatmul.mubr.bf16.gmra.mrb[0].mxu0 %v3341
  %v3472 = vpop.f32.mrb[0].mxu0
  %v3473 = vadd.f32 0.0, %v3472
  %v3474 = vpop.f32.mrb[0].mxu0
  %v3475 = vadd.f32 0.0, %v3474
  %v3476 = vpop.f32.mrb[0].mxu0
  %v3477 = vpop.f32.mrb[0].mxu0
  %3478 = vdwg.mxu0
  %v3479 = vadd.f32 %v3339, %v3473
  %v3480 = vadd.f32 %v3340, %v3475
  %v3481 = vpack.c.bf16 %v1384, %v1384
  %v3482 = vld [vmem:[%s4 + $0x780] sm:$0xff]
  %v3483 = vld [vmem:[%s4 + $0x788] sm:$0xff]
  %v3484 = vld [vmem:[%s4 + $0x790] sm:$0xff]
  %v3485 = vld [vmem:[%s4 + $0x798] sm:$0xff]
  %v3486 = vld [vmem:[%s4 + $0x7a0] sm:$0xff]
  %v3487 = vld [vmem:[%s4 + $0x7a8] sm:$0xff]
  %v3488 = vld [vmem:[%s4 + $0x7b0] sm:$0xff]
  %v3489 = vld [vmem:[%s4 + $0x7b8] sm:$0xff]
  %v3490 = vld [vmem:[%s4 + $0x7c0] sm:$0xff]
  %v3491 = vld [vmem:[%s4 + $0x7c8] sm:$0xff]
  %v3492 = vld [vmem:[%s4 + $0x7d0] sm:$0xff]
  %v3493 = vld [vmem:[%s4 + $0x7d8] sm:$0xff]
  %v3494 = vld [vmem:[%s4 + $0x7e0] sm:$0xff]
  %v3495 = vld [vmem:[%s4 + $0x7e8] sm:$0xff]
  %v3496 = vld [vmem:[%s4 + $0x7f0] sm:$0xff]
  %v3497 = vld [vmem:[%s4 + $0x7f8] sm:$0xff]
  %v3514 = vunpack.c.l.b16 %v3482
  %v3515 = vunpack.c.h.b16 %v3482
  %v3516 = vunpack.c.l.b16 %v3483
  %v3517 = vunpack.c.h.b16 %v3483
  %v3518 = vunpack.c.l.b16 %v3484
  %v3519 = vunpack.c.h.b16 %v3484
  %v3520 = vunpack.c.l.b16 %v3485
  %v3521 = vunpack.c.h.b16 %v3485
  %v3522 = vunpack.c.l.b16 %v3486
  %v3523 = vunpack.c.h.b16 %v3486
  %v3524 = vunpack.c.l.b16 %v3487
  %v3525 = vunpack.c.h.b16 %v3487
  %v3526 = vunpack.c.l.b16 %v3488
  %v3527 = vunpack.c.h.b16 %v3488
  %v3528 = vunpack.c.l.b16 %v3489
  %v3529 = vunpack.c.h.b16 %v3489
  %v3530 = vunpack.c.l.b16 %v3490
  %v3531 = vunpack.c.h.b16 %v3490
  %v3532 = vunpack.c.l.b16 %v3491
  %v3533 = vunpack.c.h.b16 %v3491
  %v3534 = vunpack.c.l.b16 %v3492
  %v3535 = vunpack.c.h.b16 %v3492
  %v3536 = vunpack.c.l.b16 %v3493
  %v3537 = vunpack.c.h.b16 %v3493
  %v3538 = vunpack.c.l.b16 %v3494
  %v3539 = vunpack.c.h.b16 %v3494
  %v3540 = vunpack.c.l.b16 %v3495
  %v3541 = vunpack.c.h.b16 %v3495
  %v3542 = vunpack.c.l.b16 %v3496
  %v3543 = vunpack.c.h.b16 %v3496
  %v3544 = vunpack.c.l.b16 %v3497
  %v3545 = vunpack.c.h.b16 %v3497
  %v3546 = vpack.c.b16 %v3516, %v3514
  %v3547 = vpack.c.b16 %v3517, %v3515
  %v3548 = vpack.c.b16 %v3520, %v3518
  %v3549 = vpack.c.b16 %v3521, %v3519
  %v3550 = vpack.c.b16 %v3524, %v3522
  %v3551 = vpack.c.b16 %v3525, %v3523
  %v3552 = vpack.c.b16 %v3528, %v3526
  %v3553 = vpack.c.b16 %v3529, %v3527
  %v3554 = vpack.c.b16 %v3532, %v3530
  %v3555 = vpack.c.b16 %v3533, %v3531
  %v3556 = vpack.c.b16 %v3536, %v3534
  %v3557 = vpack.c.b16 %v3537, %v3535
  %v3558 = vpack.c.b16 %v3540, %v3538
  %v3559 = vpack.c.b16 %v3541, %v3539
  %v3560 = vpack.c.b16 %v3544, %v3542
  %v3561 = vpack.c.b16 %v3545, %v3543
  %3578 = vmatprep.subr.bf16.mxu0 %v3547
  %3579 = vmatpush1.bf16.msra.mxu0 %v3546
  %3580 = vmatprep.subr.bf16.mxu0 %v3549
  %3581 = vmatpush1.bf16.msra.mxu0 %v3548
  %3582 = vmatprep.subr.bf16.mxu0 %v3551
  %3583 = vmatpush1.bf16.msra.mxu0 %v3550
  %3584 = vmatprep.subr.bf16.mxu0 %v3553
  %3585 = vmatpush1.bf16.msra.mxu0 %v3552
  %3586 = vmatprep.subr.bf16.mxu0 %v3555
  %3587 = vmatpush1.bf16.msra.mxu0 %v3554
  %3588 = vmatprep.subr.bf16.mxu0 %v3557
  %3589 = vmatpush1.bf16.msra.mxu0 %v3556
  %3590 = vmatprep.subr.bf16.mxu0 %v3559
  %3591 = vmatpush1.bf16.msra.mxu0 %v3558
  %3592 = vmatprep.subr.bf16.mxu0 %v3561
  %3593 = vmatpush1.bf16.msra.mxu0 %v3560
  %3594 = vmatprep.subr.bf16.mxu0 0
  %3595 = vmatpush1.bf16.msra.mxu0 0
  %3596 = vmatprep.subr.bf16.mxu0 0
  %3597 = vmatpush1.bf16.msra.mxu0 0
  %3598 = vmatprep.subr.bf16.mxu0 0
  %3599 = vmatpush1.bf16.msra.mxu0 0
  %3600 = vmatprep.subr.bf16.mxu0 0
  %3601 = vmatpush1.bf16.msra.mxu0 0
  %3602 = vmatprep.subr.bf16.mxu0 0
  %3603 = vmatpush1.bf16.msra.mxu0 0
  %3604 = vmatprep.subr.bf16.mxu0 0
  %3605 = vmatpush1.bf16.msra.mxu0 0
  %3606 = vmatprep.subr.bf16.mxu0 0
  %3607 = vmatpush1.bf16.msra.mxu0 0
  %3608 = vmatprep.subr.bf16.mxu0 0
  %3609 = vmatpush1.bf16.msra.mxu0 0
  %3610 = vmatprep.mubr.bf16.mxu0 0
  %3611 = vmatmul.mubr.bf16.gmra.mrb[0].mxu0 %v3481
  %v3612 = vpop.f32.mrb[0].mxu0
  %v3613 = vadd.f32 0.0, %v3612
  %v3614 = vpop.f32.mrb[0].mxu0
  %v3615 = vadd.f32 0.0, %v3614
  %v3616 = vpop.f32.mrb[0].mxu0
  %v3617 = vpop.f32.mrb[0].mxu0
  %3618 = vdwg.mxu0
  %v3619 = vadd.f32 %v3479, %v3613
  %v3620 = vadd.f32 %v3480, %v3615
  %v3621 = vld [vmem:[%s5] sm:$0x3]
  %v3623 = vlaneseq
  %v3624 = vshrl.u32 %v3623, 7
  %v3625 = vsub.s32 0, %v3624
  %v3626 = vrot.slane %v3621, %v3625
  %v3627 = vlaneseq
  %v3628 = vshrl.u32 %v3627, 7
  %v3629 = vsub.s32 1, %v3628
  %v3630 = vrot.slane %v3621, %v3629
  %v3633 = vmul.f32 %v3619, %v3626
  %v3634 = vmul.f32 %v3620, %v3630
  %v3635 = vld [vmem:[%s6] sm:$0x3]
  %v3637 = vlaneseq
  %v3638 = vshrl.u32 %v3637, 7
  %v3639 = vsub.s32 0, %v3638
  %v3640 = vrot.slane %v3635, %v3639
  %v3641 = vlaneseq
  %v3642 = vshrl.u32 %v3641, 7
  %v3643 = vsub.s32 1, %v3642
  %v3644 = vrot.slane %v3635, %v3643
  %v3647 = vadd.f32 %v3633, %v3640
  %v3648 = vadd.f32 %v3634, %v3644
  %v3649 = vmax.f32 %v3647, 0.0
  %v3650 = vmax.f32 %v3648, 0.0
  %v3651 = vpack.c.bf16 %v3649, %v3649
  %v3652 = vpack.c.bf16 %v3650, %v3650
  %v3653 = vld [vmem:[%s7] sm:$0xff]
  %v3654 = vld [vmem:[%s7 + $0x8] sm:$0xff]
  %v3655 = vld [vmem:[%s7 + $0x10] sm:$0xff]
  %v3656 = vld [vmem:[%s7 + $0x18] sm:$0xff]
  %v3657 = vld [vmem:[%s7 + $0x20] sm:$0xff]
  %v3658 = vld [vmem:[%s7 + $0x28] sm:$0xff]
  %v3659 = vld [vmem:[%s7 + $0x30] sm:$0xff]
  %v3660 = vld [vmem:[%s7 + $0x38] sm:$0xff]
  %v3661 = vld [vmem:[%s7 + $0x40] sm:$0xff]
  %v3662 = vld [vmem:[%s7 + $0x48] sm:$0xff]
  %v3663 = vld [vmem:[%s7 + $0x50] sm:$0xff]
  %v3664 = vld [vmem:[%s7 + $0x58] sm:$0xff]
  %v3665 = vld [vmem:[%s7 + $0x60] sm:$0xff]
  %v3666 = vld [vmem:[%s7 + $0x68] sm:$0xff]
  %v3667 = vld [vmem:[%s7 + $0x70] sm:$0xff]
  %v3668 = vld [vmem:[%s7 + $0x78] sm:$0xff]
  %v3669 = vld [vmem:[%s7 + $0x80] sm:$0xff]
  %v3670 = vld [vmem:[%s7 + $0x88] sm:$0xff]
  %v3671 = vld [vmem:[%s7 + $0x90] sm:$0xff]
  %v3672 = vld [vmem:[%s7 + $0x98] sm:$0xff]
  %v3673 = vld [vmem:[%s7 + $0xa0] sm:$0xff]
  %v3674 = vld [vmem:[%s7 + $0xa8] sm:$0xff]
  %v3675 = vld [vmem:[%s7 + $0xb0] sm:$0xff]
  %v3676 = vld [vmem:[%s7 + $0xb8] sm:$0xff]
  %v3677 = vld [vmem:[%s7 + $0xc0] sm:$0xff]
  %v3678 = vld [vmem:[%s7 + $0xc8] sm:$0xff]
  %v3679 = vld [vmem:[%s7 + $0xd0] sm:$0xff]
  %v3680 = vld [vmem:[%s7 + $0xd8] sm:$0xff]
  %v3681 = vld [vmem:[%s7 + $0xe0] sm:$0xff]
  %v3682 = vld [vmem:[%s7 + $0xe8] sm:$0xff]
  %v3683 = vld [vmem:[%s7 + $0xf0] sm:$0xff]
  %v3684 = vld [vmem:[%s7 + $0xf8] sm:$0xff]
  %v3685 = vld [vmem:[%s7 + $0x100] sm:$0xff]
  %v3686 = vld [vmem:[%s7 + $0x108] sm:$0xff]
  %v3687 = vld [vmem:[%s7 + $0x110] sm:$0xff]
  %v3688 = vld [vmem:[%s7 + $0x118] sm:$0xff]
  %v3689 = vld [vmem:[%s7 + $0x120] sm:$0xff]
  %v3690 = vld [vmem:[%s7 + $0x128] sm:$0xff]
  %v3691 = vld [vmem:[%s7 + $0x130] sm:$0xff]
  %v3692 = vld [vmem:[%s7 + $0x138] sm:$0xff]
  %v3693 = vld [vmem:[%s7 + $0x140] sm:$0xff]
  %v3694 = vld [vmem:[%s7 + $0x148] sm:$0xff]
  %v3695 = vld [vmem:[%s7 + $0x150] sm:$0xff]
  %v3696 = vld [vmem:[%s7 + $0x158] sm:$0xff]
  %v3697 = vld [vmem:[%s7 + $0x160] sm:$0xff]
  %v3698 = vld [vmem:[%s7 + $0x168] sm:$0xff]
  %v3699 = vld [vmem:[%s7 + $0x170] sm:$0xff]
  %v3700 = vld [vmem:[%s7 + $0x178] sm:$0xff]
  %v3701 = vld [vmem:[%s7 + $0x180] sm:$0xff]
  %v3702 = vld [vmem:[%s7 + $0x188] sm:$0xff]
  %v3703 = vld [vmem:[%s7 + $0x190] sm:$0xff]
  %v3704 = vld [vmem:[%s7 + $0x198] sm:$0xff]
  %v3705 = vld [vmem:[%s7 + $0x1a0] sm:$0xff]
  %v3706 = vld [vmem:[%s7 + $0x1a8] sm:$0xff]
  %v3707 = vld [vmem:[%s7 + $0x1b0] sm:$0xff]
  %v3708 = vld [vmem:[%s7 + $0x1b8] sm:$0xff]
  %v3709 = vld [vmem:[%s7 + $0x1c0] sm:$0xff]
  %v3710 = vld [vmem:[%s7 + $0x1c8] sm:$0xff]
  %v3711 = vld [vmem:[%s7 + $0x1d0] sm:$0xff]
  %v3712 = vld [vmem:[%s7 + $0x1d8] sm:$0xff]
  %v3713 = vld [vmem:[%s7 + $0x1e0] sm:$0xff]
  %v3714 = vld [vmem:[%s7 + $0x1e8] sm:$0xff]
  %v3715 = vld [vmem:[%s7 + $0x1f0] sm:$0xff]
  %v3716 = vld [vmem:[%s7 + $0x1f8] sm:$0xff]
  %v3717 = vld [vmem:[%s8] sm:$0xf]
  %v3719 = vlaneseq
  %v3720 = vshrl.u32 %v3719, 7
  %v3721 = vsub.s32 0, %v3720
  %v3722 = vrot.slane %v3717, %v3721
  %v3723 = vlaneseq
  %v3724 = vshrl.u32 %v3723, 7
  %v3725 = vsub.s32 1, %v3724
  %v3726 = vrot.slane %v3717, %v3725
  %v3727 = vlaneseq
  %v3728 = vshrl.u32 %v3727, 7
  %v3729 = vsub.s32 2, %v3728
  %v3730 = vrot.slane %v3717, %v3729
  %v3731 = vlaneseq
  %v3732 = vshrl.u32 %v3731, 7
  %v3733 = vsub.s32 3, %v3732
  %v3734 = vrot.slane %v3717, %v3733
  %v3803 = vunpack.c.l.b16 %v3653
  %v3804 = vunpack.c.h.b16 %v3653
  %v3805 = vunpack.c.l.b16 %v3654
  %v3806 = vunpack.c.h.b16 %v3654
  %v3807 = vunpack.c.l.b16 %v3655
  %v3808 = vunpack.c.h.b16 %v3655
  %v3809 = vunpack.c.l.b16 %v3656
  %v3810 = vunpack.c.h.b16 %v3656
  %v3811 = vunpack.c.l.b16 %v3657
  %v3812 = vunpack.c.h.b16 %v3657
  %v3813 = vunpack.c.l.b16 %v3658
  %v3814 = vunpack.c.h.b16 %v3658
  %v3815 = vunpack.c.l.b16 %v3659
  %v3816 = vunpack.c.h.b16 %v3659
  %v3817 = vunpack.c.l.b16 %v3660
  %v3818 = vunpack.c.h.b16 %v3660
  %v3819 = vunpack.c.l.b16 %v3661
  %v3820 = vunpack.c.h.b16 %v3661
  %v3821 = vunpack.c.l.b16 %v3662
  %v3822 = vunpack.c.h.b16 %v3662
  %v3823 = vunpack.c.l.b16 %v3663
  %v3824 = vunpack.c.h.b16 %v3663
  %v3825 = vunpack.c.l.b16 %v3664
  %v3826 = vunpack.c.h.b16 %v3664
  %v3827 = vunpack.c.l.b16 %v3665
  %v3828 = vunpack.c.h.b16 %v3665
  %v3829 = vunpack.c.l.b16 %v3666
  %v3830 = vunpack.c.h.b16 %v3666
  %v3831 = vunpack.c.l.b16 %v3667
  %v3832 = vunpack.c.h.b16 %v3667
  %v3833 = vunpack.c.l.b16 %v3668
  %v3834 = vunpack.c.h.b16 %v3668
  %v3835 = vunpack.c.l.b16 %v3669
  %v3836 = vunpack.c.h.b16 %v3669
  %v3837 = vunpack.c.l.b16 %v3670
  %v3838 = vunpack.c.h.b16 %v3670
  %v3839 = vunpack.c.l.b16 %v3671
  %v3840 = vunpack.c.h.b16 %v3671
  %v3841 = vunpack.c.l.b16 %v3672
  %v3842 = vunpack.c.h.b16 %v3672
  %v3843 = vunpack.c.l.b16 %v3673
  %v3844 = vunpack.c.h.b16 %v3673
  %v3845 = vunpack.c.l.b16 %v3674
  %v3846 = vunpack.c.h.b16 %v3674
  %v3847 = vunpack.c.l.b16 %v3675
  %v3848 = vunpack.c.h.b16 %v3675
  %v3849 = vunpack.c.l.b16 %v3676
  %v3850 = vunpack.c.h.b16 %v3676
  %v3851 = vunpack.c.l.b16 %v3677
  %v3852 = vunpack.c.h.b16 %v3677
  %v3853 = vunpack.c.l.b16 %v3678
  %v3854 = vunpack.c.h.b16 %v3678
  %v3855 = vunpack.c.l.b16 %v3679
  %v3856 = vunpack.c.h.b16 %v3679
  %v3857 = vunpack.c.l.b16 %v3680
  %v3858 = vunpack.c.h.b16 %v3680
  %v3859 = vunpack.c.l.b16 %v3681
  %v3860 = vunpack.c.h.b16 %v3681
  %v3861 = vunpack.c.l.b16 %v3682
  %v3862 = vunpack.c.h.b16 %v3682
  %v3863 = vunpack.c.l.b16 %v3683
  %v3864 = vunpack.c.h.b16 %v3683
  %v3865 = vunpack.c.l.b16 %v3684
  %v3866 = vunpack.c.h.b16 %v3684
  %v3867 = vunpack.c.l.b16 %v3685
  %v3868 = vunpack.c.h.b16 %v3685
  %v3869 = vunpack.c.l.b16 %v3686
  %v3870 = vunpack.c.h.b16 %v3686
  %v3871 = vunpack.c.l.b16 %v3687
  %v3872 = vunpack.c.h.b16 %v3687
  %v3873 = vunpack.c.l.b16 %v3688
  %v3874 = vunpack.c.h.b16 %v3688
  %v3875 = vunpack.c.l.b16 %v3689
  %v3876 = vunpack.c.h.b16 %v3689
  %v3877 = vunpack.c.l.b16 %v3690
  %v3878 = vunpack.c.h.b16 %v3690
  %v3879 = vunpack.c.l.b16 %v3691
  %v3880 = vunpack.c.h.b16 %v3691
  %v3881 = vunpack.c.l.b16 %v3692
  %v3882 = vunpack.c.h.b16 %v3692
  %v3883 = vunpack.c.l.b16 %v3693
  %v3884 = vunpack.c.h.b16 %v3693
  %v3885 = vunpack.c.l.b16 %v3694
  %v3886 = vunpack.c.h.b16 %v3694
  %v3887 = vunpack.c.l.b16 %v3695
  %v3888 = vunpack.c.h.b16 %v3695
  %v3889 = vunpack.c.l.b16 %v3696
  %v3890 = vunpack.c.h.b16 %v3696
  %v3891 = vunpack.c.l.b16 %v3697
  %v3892 = vunpack.c.h.b16 %v3697
  %v3893 = vunpack.c.l.b16 %v3698
  %v3894 = vunpack.c.h.b16 %v3698
  %v3895 = vunpack.c.l.b16 %v3699
  %v3896 = vunpack.c.h.b16 %v3699
  %v3897 = vunpack.c.l.b16 %v3700
  %v3898 = vunpack.c.h.b16 %v3700
  %v3899 = vunpack.c.l.b16 %v3701
  %v3900 = vunpack.c.h.b16 %v3701
  %v3901 = vunpack.c.l.b16 %v3702
  %v3902 = vunpack.c.h.b16 %v3702
  %v3903 = vunpack.c.l.b16 %v3703
  %v3904 = vunpack.c.h.b16 %v3703
  %v3905 = vunpack.c.l.b16 %v3704
  %v3906 = vunpack.c.h.b16 %v3704
  %v3907 = vunpack.c.l.b16 %v3705
  %v3908 = vunpack.c.h.b16 %v3705
  %v3909 = vunpack.c.l.b16 %v3706
  %v3910 = vunpack.c.h.b16 %v3706
  %v3911 = vunpack.c.l.b16 %v3707
  %v3912 = vunpack.c.h.b16 %v3707
  %v3913 = vunpack.c.l.b16 %v3708
  %v3914 = vunpack.c.h.b16 %v3708
  %v3915 = vunpack.c.l.b16 %v3709
  %v3916 = vunpack.c.h.b16 %v3709
  %v3917 = vunpack.c.l.b16 %v3710
  %v3918 = vunpack.c.h.b16 %v3710
  %v3919 = vunpack.c.l.b16 %v3711
  %v3920 = vunpack.c.h.b16 %v3711
  %v3921 = vunpack.c.l.b16 %v3712
  %v3922 = vunpack.c.h.b16 %v3712
  %v3923 = vunpack.c.l.b16 %v3713
  %v3924 = vunpack.c.h.b16 %v3713
  %v3925 = vunpack.c.l.b16 %v3714
  %v3926 = vunpack.c.h.b16 %v3714
  %v3927 = vunpack.c.l.b16 %v3715
  %v3928 = vunpack.c.h.b16 %v3715
  %v3929 = vunpack.c.l.b16 %v3716
  %v3930 = vunpack.c.h.b16 %v3716
  %v3931 = vpack.c.b16 %v3807, %v3803
  %v3932 = vpack.c.b16 %v3808, %v3804
  %v3933 = vpack.c.b16 %v3809, %v3805
  %v3934 = vpack.c.b16 %v3810, %v3806
  %v3935 = vpack.c.b16 %v3815, %v3811
  %v3936 = vpack.c.b16 %v3816, %v3812
  %v3937 = vpack.c.b16 %v3817, %v3813
  %v3938 = vpack.c.b16 %v3818, %v3814
  %v3939 = vpack.c.b16 %v3823, %v3819
  %v3940 = vpack.c.b16 %v3824, %v3820
  %v3941 = vpack.c.b16 %v3825, %v3821
  %v3942 = vpack.c.b16 %v3826, %v3822
  %v3943 = vpack.c.b16 %v3831, %v3827
  %v3944 = vpack.c.b16 %v3832, %v3828
  %v3945 = vpack.c.b16 %v3833, %v3829
  %v3946 = vpack.c.b16 %v3834, %v3830
  %v3947 = vpack.c.b16 %v3839, %v3835
  %v3948 = vpack.c.b16 %v3840, %v3836
  %v3949 = vpack.c.b16 %v3841, %v3837
  %v3950 = vpack.c.b16 %v3842, %v3838
  %v3951 = vpack.c.b16 %v3847, %v3843
  %v3952 = vpack.c.b16 %v3848, %v3844
  %v3953 = vpack.c.b16 %v3849, %v3845
  %v3954 = vpack.c.b16 %v3850, %v3846
  %v3955 = vpack.c.b16 %v3855, %v3851
  %v3956 = vpack.c.b16 %v3856, %v3852
  %v3957 = vpack.c.b16 %v3857, %v3853
  %v3958 = vpack.c.b16 %v3858, %v3854
  %v3959 = vpack.c.b16 %v3863, %v3859
  %v3960 = vpack.c.b16 %v3864, %v3860
  %v3961 = vpack.c.b16 %v3865, %v3861
  %v3962 = vpack.c.b16 %v3866, %v3862
  %v3963 = vpack.c.b16 %v3871, %v3867
  %v3964 = vpack.c.b16 %v3872, %v3868
  %v3965 = vpack.c.b16 %v3873, %v3869
  %v3966 = vpack.c.b16 %v3874, %v3870
  %v3967 = vpack.c.b16 %v3879, %v3875
  %v3968 = vpack.c.b16 %v3880, %v3876
  %v3969 = vpack.c.b16 %v3881, %v3877
  %v3970 = vpack.c.b16 %v3882, %v3878
  %v3971 = vpack.c.b16 %v3887, %v3883
  %v3972 = vpack.c.b16 %v3888, %v3884
  %v3973 = vpack.c.b16 %v3889, %v3885
  %v3974 = vpack.c.b16 %v3890, %v3886
  %v3975 = vpack.c.b16 %v3895, %v3891
  %v3976 = vpack.c.b16 %v3896, %v3892
  %v3977 = vpack.c.b16 %v3897, %v3893
  %v3978 = vpack.c.b16 %v3898, %v3894
  %v3979 = vpack.c.b16 %v3903, %v3899
  %v3980 = vpack.c.b16 %v3904, %v3900
  %v3981 = vpack.c.b16 %v3905, %v3901
  %v3982 = vpack.c.b16 %v3906, %v3902
  %v3983 = vpack.c.b16 %v3911, %v3907
  %v3984 = vpack.c.b16 %v3912, %v3908
  %v3985 = vpack.c.b16 %v3913, %v3909
  %v3986 = vpack.c.b16 %v3914, %v3910
  %v3987 = vpack.c.b16 %v3919, %v3915
  %v3988 = vpack.c.b16 %v3920, %v3916
  %v3989 = vpack.c.b16 %v3921, %v3917
  %v3990 = vpack.c.b16 %v3922, %v3918
  %v3991 = vpack.c.b16 %v3927, %v3923
  %v3992 = vpack.c.b16 %v3928, %v3924
  %v3993 = vpack.c.b16 %v3929, %v3925
  %v3994 = vpack.c.b16 %v3930, %v3926
  %4059 = vmatprep.subr.bf16.mxu0 %v3932
  %4060 = vmatpush1.bf16.msra.mxu0 %v3931
  %4061 = vmatprep.subr.bf16.mxu0 %v3936
  %4062 = vmatpush1.bf16.msra.mxu0 %v3935
  %4063 = vmatprep.subr.bf16.mxu0 %v3940
  %4064 = vmatpush1.bf16.msra.mxu0 %v3939
  %4065 = vmatprep.subr.bf16.mxu0 %v3944
  %4066 = vmatpush1.bf16.msra.mxu0 %v3943
  %4067 = vmatprep.subr.bf16.mxu0 %v3948
  %4068 = vmatpush1.bf16.msra.mxu0 %v3947
  %4069 = vmatprep.subr.bf16.mxu0 %v3952
  %4070 = vmatpush1.bf16.msra.mxu0 %v3951
  %4071 = vmatprep.subr.bf16.mxu0 %v3956
  %4072 = vmatpush1.bf16.msra.mxu0 %v3955
  %4073 = vmatprep.subr.bf16.mxu0 %v3960
  %4074 = vmatpush1.bf16.msra.mxu0 %v3959
  %4075 = vmatprep.subr.bf16.mxu0 %v3964
  %4076 = vmatpush1.bf16.msra.mxu0 %v3963
  %4077 = vmatprep.subr.bf16.mxu0 %v3968
  %4078 = vmatpush1.bf16.msra.mxu0 %v3967
  %4079 = vmatprep.subr.bf16.mxu0 %v3972
  %4080 = vmatpush1.bf16.msra.mxu0 %v3971
  %4081 = vmatprep.subr.bf16.mxu0 %v3976
  %4082 = vmatpush1.bf16.msra.mxu0 %v3975
  %4083 = vmatprep.subr.bf16.mxu0 %v3980
  %4084 = vmatpush1.bf16.msra.mxu0 %v3979
  %4085 = vmatprep.subr.bf16.mxu0 %v3984
  %4086 = vmatpush1.bf16.msra.mxu0 %v3983
  %4087 = vmatprep.subr.bf16.mxu0 %v3988
  %4088 = vmatpush1.bf16.msra.mxu0 %v3987
  %4089 = vmatprep.subr.bf16.mxu0 %v3992
  %4090 = vmatpush1.bf16.msra.mxu0 %v3991
  %4091 = vmatprep.mubr.bf16.mxu0 %v3652
  %4092 = vmatmul.mubr.bf16.gmra.mrb[0].mxu0 %v3651
  %v4093 = vpop.f32.mrb[0].mxu0
  %v4094 = vadd.f32 %v3722, %v4093
  %v4095 = vpop.f32.mrb[0].mxu0
  %v4096 = vadd.f32 %v3726, %v4095
  %v4097 = vpop.f32.mrb[0].mxu0
  %v4098 = vpop.f32.mrb[0].mxu0
  %4099 = vdwg.mxu0
  %4100 = vmatprep.subr.bf16.mxu0 %v3934
  %4101 = vmatpush1.bf16.msra.mxu0 %v3933
  %4102 = vmatprep.subr.bf16.mxu0 %v3938
  %4103 = vmatpush1.bf16.msra.mxu0 %v3937
  %4104 = vmatprep.subr.bf16.mxu0 %v3942
  %4105 = vmatpush1.bf16.msra.mxu0 %v3941
  %4106 = vmatprep.subr.bf16.mxu0 %v3946
  %4107 = vmatpush1.bf16.msra.mxu0 %v3945
  %4108 = vmatprep.subr.bf16.mxu0 %v3950
  %4109 = vmatpush1.bf16.msra.mxu0 %v3949
  %4110 = vmatprep.subr.bf16.mxu0 %v3954
  %4111 = vmatpush1.bf16.msra.mxu0 %v3953
  %4112 = vmatprep.subr.bf16.mxu0 %v3958
  %4113 = vmatpush1.bf16.msra.mxu0 %v3957
  %4114 = vmatprep.subr.bf16.mxu0 %v3962
  %4115 = vmatpush1.bf16.msra.mxu0 %v3961
  %4116 = vmatprep.subr.bf16.mxu0 %v3966
  %4117 = vmatpush1.bf16.msra.mxu0 %v3965
  %4118 = vmatprep.subr.bf16.mxu0 %v3970
  %4119 = vmatpush1.bf16.msra.mxu0 %v3969
  %4120 = vmatprep.subr.bf16.mxu0 %v3974
  %4121 = vmatpush1.bf16.msra.mxu0 %v3973
  %4122 = vmatprep.subr.bf16.mxu0 %v3978
  %4123 = vmatpush1.bf16.msra.mxu0 %v3977
  %4124 = vmatprep.subr.bf16.mxu0 %v3982
  %4125 = vmatpush1.bf16.msra.mxu0 %v3981
  %4126 = vmatprep.subr.bf16.mxu0 %v3986
  %4127 = vmatpush1.bf16.msra.mxu0 %v3985
  %4128 = vmatprep.subr.bf16.mxu0 %v3990
  %4129 = vmatpush1.bf16.msra.mxu0 %v3989
  %4130 = vmatprep.subr.bf16.mxu0 %v3994
  %4131 = vmatpush1.bf16.msra.mxu0 %v3993
  %4132 = vmatprep.mubr.bf16.mxu0 %v3652
  %4133 = vmatmul.mubr.bf16.gmra.mrb[0].mxu0 %v3651
  %v4134 = vpop.f32.mrb[0].mxu0
  %v4135 = vadd.f32 %v3730, %v4134
  %v4136 = vpop.f32.mrb[0].mxu0
  %v4137 = vadd.f32 %v3734, %v4136
  %v4138 = vpop.f32.mrb[0].mxu0
  %v4139 = vpop.f32.mrb[0].mxu0
  %4140 = vdwg.mxu0
  %v4141 = vpack.c.bf16 %v4094, %v4094
  %v4142 = vpack.c.bf16 %v4096, %v4096
  %v4143 = vpack.c.bf16 %v4135, %v4135
  %v4144 = vpack.c.bf16 %v4137, %v4137
  %v4145 = vld [vmem:[%s9] sm:$0xf]
  %v4146 = vld [vmem:[%s9 + $0x4] sm:$0xf]
  %v4147 = vld [vmem:[%s9 + $0x8] sm:$0xf]
  %v4148 = vld [vmem:[%s9 + $0xc] sm:$0xf]
  %v4149 = vld [vmem:[%s9 + $0x10] sm:$0xf]
  %v4150 = vld [vmem:[%s9 + $0x14] sm:$0xf]
  %v4151 = vld [vmem:[%s9 + $0x18] sm:$0xf]
  %v4152 = vld [vmem:[%s9 + $0x1c] sm:$0xf]
  %v4153 = vld [vmem:[%s9 + $0x20] sm:$0xf]
  %v4154 = vld [vmem:[%s9 + $0x24] sm:$0xf]
  %v4155 = vld [vmem:[%s9 + $0x28] sm:$0xf]
  %v4156 = vld [vmem:[%s9 + $0x2c] sm:$0xf]
  %v4157 = vld [vmem:[%s9 + $0x30] sm:$0xf]
  %v4158 = vld [vmem:[%s9 + $0x34] sm:$0xf]
  %v4159 = vld [vmem:[%s9 + $0x38] sm:$0xf]
  %v4160 = vld [vmem:[%s9 + $0x3c] sm:$0xf]
  %v4161 = vld [vmem:[%s9 + $0x40] sm:$0xf]
  %v4162 = vld [vmem:[%s9 + $0x44] sm:$0xf]
  %v4163 = vld [vmem:[%s9 + $0x48] sm:$0xf]
  %v4164 = vld [vmem:[%s9 + $0x4c] sm:$0xf]
  %v4165 = vld [vmem:[%s9 + $0x50] sm:$0xf]
  %v4166 = vld [vmem:[%s9 + $0x54] sm:$0xf]
  %v4167 = vld [vmem:[%s9 + $0x58] sm:$0xf]
  %v4168 = vld [vmem:[%s9 + $0x5c] sm:$0xf]
  %v4169 = vld [vmem:[%s9 + $0x60] sm:$0xf]
  %v4170 = vld [vmem:[%s9 + $0x64] sm:$0xf]
  %v4171 = vld [vmem:[%s9 + $0x68] sm:$0xf]
  %v4172 = vld [vmem:[%s9 + $0x6c] sm:$0xf]
  %v4173 = vld [vmem:[%s9 + $0x70] sm:$0xf]
  %v4174 = vld [vmem:[%s9 + $0x74] sm:$0xf]
  %v4175 = vld [vmem:[%s9 + $0x78] sm:$0xf]
  %v4176 = vld [vmem:[%s9 + $0x7c] sm:$0xf]
  %v4177 = vld [vmem:[%s9 + $0x80] sm:$0xf]
  %v4178 = vld [vmem:[%s9 + $0x84] sm:$0xf]
  %v4179 = vld [vmem:[%s9 + $0x88] sm:$0xf]
  %v4180 = vld [vmem:[%s9 + $0x8c] sm:$0xf]
  %v4181 = vld [vmem:[%s9 + $0x90] sm:$0xf]
  %v4182 = vld [vmem:[%s9 + $0x94] sm:$0xf]
  %v4183 = vld [vmem:[%s9 + $0x98] sm:$0xf]
  %v4184 = vld [vmem:[%s9 + $0x9c] sm:$0xf]
  %v4185 = vld [vmem:[%s9 + $0xa0] sm:$0xf]
  %v4186 = vld [vmem:[%s9 + $0xa4] sm:$0xf]
  %v4187 = vld [vmem:[%s9 + $0xa8] sm:$0xf]
  %v4188 = vld [vmem:[%s9 + $0xac] sm:$0xf]
  %v4189 = vld [vmem:[%s9 + $0xb0] sm:$0xf]
  %v4190 = vld [vmem:[%s9 + $0xb4] sm:$0xf]
  %v4191 = vld [vmem:[%s9 + $0xb8] sm:$0xf]
  %v4192 = vld [vmem:[%s9 + $0xbc] sm:$0xf]
  %v4193 = vld [vmem:[%s9 + $0xc0] sm:$0xf]
  %v4194 = vld [vmem:[%s9 + $0xc4] sm:$0xf]
  %v4195 = vld [vmem:[%s9 + $0xc8] sm:$0xf]
  %v4196 = vld [vmem:[%s9 + $0xcc] sm:$0xf]
  %v4197 = vld [vmem:[%s9 + $0xd0] sm:$0xf]
  %v4198 = vld [vmem:[%s9 + $0xd4] sm:$0xf]
  %v4199 = vld [vmem:[%s9 + $0xd8] sm:$0xf]
  %v4200 = vld [vmem:[%s9 + $0xdc] sm:$0xf]
  %v4201 = vld [vmem:[%s9 + $0xe0] sm:$0xf]
  %v4202 = vld [vmem:[%s9 + $0xe4] sm:$0xf]
  %v4203 = vld [vmem:[%s9 + $0xe8] sm:$0xf]
  %v4204 = vld [vmem:[%s9 + $0xec] sm:$0xf]
  %v4205 = vld [vmem:[%s9 + $0xf0] sm:$0xf]
  %v4206 = vld [vmem:[%s9 + $0xf4] sm:$0xf]
  %v4207 = vld [vmem:[%s9 + $0xf8] sm:$0xf]
  %v4208 = vld [vmem:[%s9 + $0xfc] sm:$0xf]
  %v4209 = vld [vmem:[%s10] sm:$0x1]
  %v4211 = vlaneseq
  %v4212 = vshrl.u32 %v4211, 7
  %v4213 = vsub.s32 0, %v4212
  %v4214 = vrot.slane %v4209, %v4213
  %v4280 = vunpack.c.l.b16 %v4145
  %v4281 = vunpack.c.l.b16 %v4146
  %v4282 = vunpack.c.l.b16 %v4147
  %v4283 = vunpack.c.l.b16 %v4148
  %v4284 = vunpack.c.l.b16 %v4149
  %v4285 = vunpack.c.l.b16 %v4150
  %v4286 = vunpack.c.l.b16 %v4151
  %v4287 = vunpack.c.l.b16 %v4152
  %v4288 = vunpack.c.l.b16 %v4153
  %v4289 = vunpack.c.l.b16 %v4154
  %v4290 = vunpack.c.l.b16 %v4155
  %v4291 = vunpack.c.l.b16 %v4156
  %v4292 = vunpack.c.l.b16 %v4157
  %v4293 = vunpack.c.l.b16 %v4158
  %v4294 = vunpack.c.l.b16 %v4159
  %v4295 = vunpack.c.l.b16 %v4160
  %v4296 = vunpack.c.l.b16 %v4161
  %v4297 = vunpack.c.l.b16 %v4162
  %v4298 = vunpack.c.l.b16 %v4163
  %v4299 = vunpack.c.l.b16 %v4164
  %v4300 = vunpack.c.l.b16 %v4165
  %v4301 = vunpack.c.l.b16 %v4166
  %v4302 = vunpack.c.l.b16 %v4167
  %v4303 = vunpack.c.l.b16 %v4168
  %v4304 = vunpack.c.l.b16 %v4169
  %v4305 = vunpack.c.l.b16 %v4170
  %v4306 = vunpack.c.l.b16 %v4171
  %v4307 = vunpack.c.l.b16 %v4172
  %v4308 = vunpack.c.l.b16 %v4173
  %v4309 = vunpack.c.l.b16 %v4174
  %v4310 = vunpack.c.l.b16 %v4175
  %v4311 = vunpack.c.l.b16 %v4176
  %v4312 = vunpack.c.l.b16 %v4177
  %v4313 = vunpack.c.l.b16 %v4178
  %v4314 = vunpack.c.l.b16 %v4179
  %v4315 = vunpack.c.l.b16 %v4180
  %v4316 = vunpack.c.l.b16 %v4181
  %v4317 = vunpack.c.l.b16 %v4182
  %v4318 = vunpack.c.l.b16 %v4183
  %v4319 = vunpack.c.l.b16 %v4184
  %v4320 = vunpack.c.l.b16 %v4185
  %v4321 = vunpack.c.l.b16 %v4186
  %v4322 = vunpack.c.l.b16 %v4187
  %v4323 = vunpack.c.l.b16 %v4188
  %v4324 = vunpack.c.l.b16 %v4189
  %v4325 = vunpack.c.l.b16 %v4190
  %v4326 = vunpack.c.l.b16 %v4191
  %v4327 = vunpack.c.l.b16 %v4192
  %v4328 = vunpack.c.l.b16 %v4193
  %v4329 = vunpack.c.l.b16 %v4194
  %v4330 = vunpack.c.l.b16 %v4195
  %v4331 = vunpack.c.l.b16 %v4196
  %v4332 = vunpack.c.l.b16 %v4197
  %v4333 = vunpack.c.l.b16 %v4198
  %v4334 = vunpack.c.l.b16 %v4199
  %v4335 = vunpack.c.l.b16 %v4200
  %v4336 = vunpack.c.l.b16 %v4201
  %v4337 = vunpack.c.l.b16 %v4202
  %v4338 = vunpack.c.l.b16 %v4203
  %v4339 = vunpack.c.l.b16 %v4204
  %v4340 = vunpack.c.l.b16 %v4205
  %v4341 = vunpack.c.l.b16 %v4206
  %v4342 = vunpack.c.l.b16 %v4207
  %v4343 = vunpack.c.l.b16 %v4208
  %v4344 = vpack.c.b16 %v4281, %v4280
  %v4345 = vpack.c.b16 %v4283, %v4282
  %v4346 = vpack.c.b16 %v4285, %v4284
  %v4347 = vpack.c.b16 %v4287, %v4286
  %v4348 = vpack.c.b16 %v4289, %v4288
  %v4349 = vpack.c.b16 %v4291, %v4290
  %v4350 = vpack.c.b16 %v4293, %v4292
  %v4351 = vpack.c.b16 %v4295, %v4294
  %v4352 = vpack.c.b16 %v4297, %v4296
  %v4353 = vpack.c.b16 %v4299, %v4298
  %v4354 = vpack.c.b16 %v4301, %v4300
  %v4355 = vpack.c.b16 %v4303, %v4302
  %v4356 = vpack.c.b16 %v4305, %v4304
  %v4357 = vpack.c.b16 %v4307, %v4306
  %v4358 = vpack.c.b16 %v4309, %v4308
  %v4359 = vpack.c.b16 %v4311, %v4310
  %v4360 = vpack.c.b16 %v4313, %v4312
  %v4361 = vpack.c.b16 %v4315, %v4314
  %v4362 = vpack.c.b16 %v4317, %v4316
  %v4363 = vpack.c.b16 %v4319, %v4318
  %v4364 = vpack.c.b16 %v4321, %v4320
  %v4365 = vpack.c.b16 %v4323, %v4322
  %v4366 = vpack.c.b16 %v4325, %v4324
  %v4367 = vpack.c.b16 %v4327, %v4326
  %v4368 = vpack.c.b16 %v4329, %v4328
  %v4369 = vpack.c.b16 %v4331, %v4330
  %v4370 = vpack.c.b16 %v4333, %v4332
  %v4371 = vpack.c.b16 %v4335, %v4334
  %v4372 = vpack.c.b16 %v4337, %v4336
  %v4373 = vpack.c.b16 %v4339, %v4338
  %v4374 = vpack.c.b16 %v4341, %v4340
  %v4375 = vpack.c.b16 %v4343, %v4342
  %4408 = vmatprep.subr.bf16.mxu0 0
  %4409 = vmatpush1.bf16.msra.mxu0 %v4344
  %4410 = vmatprep.subr.bf16.mxu0 0
  %4411 = vmatpush1.bf16.msra.mxu0 %v4345
  %4412 = vmatprep.subr.bf16.mxu0 0
  %4413 = vmatpush1.bf16.msra.mxu0 %v4346
  %4414 = vmatprep.subr.bf16.mxu0 0
  %4415 = vmatpush1.bf16.msra.mxu0 %v4347
  %4416 = vmatprep.subr.bf16.mxu0 0
  %4417 = vmatpush1.bf16.msra.mxu0 %v4348
  %4418 = vmatprep.subr.bf16.mxu0 0
  %4419 = vmatpush1.bf16.msra.mxu0 %v4349
  %4420 = vmatprep.subr.bf16.mxu0 0
  %4421 = vmatpush1.bf16.msra.mxu0 %v4350
  %4422 = vmatprep.subr.bf16.mxu0 0
  %4423 = vmatpush1.bf16.msra.mxu0 %v4351
  %4424 = vmatprep.subr.bf16.mxu0 0
  %4425 = vmatpush1.bf16.msra.mxu0 %v4352
  %4426 = vmatprep.subr.bf16.mxu0 0
  %4427 = vmatpush1.bf16.msra.mxu0 %v4353
  %4428 = vmatprep.subr.bf16.mxu0 0
  %4429 = vmatpush1.bf16.msra.mxu0 %v4354
  %4430 = vmatprep.subr.bf16.mxu0 0
  %4431 = vmatpush1.bf16.msra.mxu0 %v4355
  %4432 = vmatprep.subr.bf16.mxu0 0
  %4433 = vmatpush1.bf16.msra.mxu0 %v4356
  %4434 = vmatprep.subr.bf16.mxu0 0
  %4435 = vmatpush1.bf16.msra.mxu0 %v4357
  %4436 = vmatprep.subr.bf16.mxu0 0
  %4437 = vmatpush1.bf16.msra.mxu0 %v4358
  %4438 = vmatprep.subr.bf16.mxu0 0
  %4439 = vmatpush1.bf16.msra.mxu0 %v4359
  %4440 = vmatprep.mubr.bf16.mxu0 %v4142
  %4441 = vmatmul.mubr.bf16.gmra.mrb[0].mxu0 %v4141
  %v4442 = vpop.f32.mrb[0].mxu0
  %v4443 = vadd.f32 %v4214, %v4442
  %v4444 = vpop.f32.mrb[0].mxu0
  %v4445 = vpop.f32.mrb[0].mxu0
  %v4446 = vpop.f32.mrb[0].mxu0
  %4447 = vdwg.mxu0
  %4448 = vmatprep.subr.bf16.mxu0 0
  %4449 = vmatpush1.bf16.msra.mxu0 %v4360
  %4450 = vmatprep.subr.bf16.mxu0 0
  %4451 = vmatpush1.bf16.msra.mxu0 %v4361
  %4452 = vmatprep.subr.bf16.mxu0 0
  %4453 = vmatpush1.bf16.msra.mxu0 %v4362
  %4454 = vmatprep.subr.bf16.mxu0 0
  %4455 = vmatpush1.bf16.msra.mxu0 %v4363
  %4456 = vmatprep.subr.bf16.mxu0 0
  %4457 = vmatpush1.bf16.msra.mxu0 %v4364
  %4458 = vmatprep.subr.bf16.mxu0 0
  %4459 = vmatpush1.bf16.msra.mxu0 %v4365
  %4460 = vmatprep.subr.bf16.mxu0 0
  %4461 = vmatpush1.bf16.msra.mxu0 %v4366
  %4462 = vmatprep.subr.bf16.mxu0 0
  %4463 = vmatpush1.bf16.msra.mxu0 %v4367
  %4464 = vmatprep.subr.bf16.mxu0 0
  %4465 = vmatpush1.bf16.msra.mxu0 %v4368
  %4466 = vmatprep.subr.bf16.mxu0 0
  %4467 = vmatpush1.bf16.msra.mxu0 %v4369
  %4468 = vmatprep.subr.bf16.mxu0 0
  %4469 = vmatpush1.bf16.msra.mxu0 %v4370
  %4470 = vmatprep.subr.bf16.mxu0 0
  %4471 = vmatpush1.bf16.msra.mxu0 %v4371
  %4472 = vmatprep.subr.bf16.mxu0 0
  %4473 = vmatpush1.bf16.msra.mxu0 %v4372
  %4474 = vmatprep.subr.bf16.mxu0 0
  %4475 = vmatpush1.bf16.msra.mxu0 %v4373
  %4476 = vmatprep.subr.bf16.mxu0 0
  %4477 = vmatpush1.bf16.msra.mxu0 %v4374
  %4478 = vmatprep.subr.bf16.mxu0 0
  %4479 = vmatpush1.bf16.msra.mxu0 %v4375
  %4480 = vmatprep.mubr.bf16.mxu0 %v4144
  %4481 = vmatmul.mubr.bf16.gmra.mrb[0].mxu0 %v4143
  %v4482 = vpop.f32.mrb[0].mxu0
  %v4483 = vadd.f32 %v4443, %v4482
  %v4484 = vpop.f32.mrb[0].mxu0
  %v4485 = vpop.f32.mrb[0].mxu0
  %v4486 = vpop.f32.mrb[0].mxu0
  %4487 = vdwg.mxu0
  %4488 = vst [vmem:[%s11] sm:$0xff] %v4483
  // Predicated region
  $region46: #{_lambda_.7} parent=0 // pred_check
    _
  $region47: #{_lambda_.7} parent=0 // pred_check_branch
    %4490 = sbr.rel (0) target = $region49
  $region48: #{_lambda_.7} parent=0 // pred_region
    _
  $region49: #{_lambda_.7} parent=0 // pred_fallthru
    _
  // Predicated region
  $region50: #{_lambda_.7} parent=0 // pred_check
    _
  $region51: #{_lambda_.7} parent=0 // pred_check_branch
    %4492 = sbr.rel (0) target = $region53
  $region52: #{_lambda_.7} parent=0 // pred_region
    _
  $region53: #{_lambda_.7} parent=0 // pred_fallthru
    _

</llo_original>
